<compile_context>
chip_gen: v7x
topology: tpu7x:2x2x1
jax: 0.10.0
libtpu: 0.0.40
codegen_flags: <defaults>
</compile_context>

<pallas_src>
import functools
import math

import jax
import jax.numpy as jnp
from jax.experimental import pallas as pl
from jax.experimental.pallas import tpu as pltpu


# --------------------------------------------------------------------- fused conv matmul kernel
def _fused_conv_kernel(*refs, has_skip, emit_raw, emit_act):
    """y = patches @ w (+ skip);  optionally emit z = relu(y * scale + shift)."""
    it = iter(refs)
    a_ref = next(it)                       # (TM, K)   bf16 im2col patches
    w_ref = next(it)                       # (K, Cout) bf16 weights (full, VMEM resident)
    skip_ref = next(it) if has_skip else None
    scale_ref = next(it) if emit_act else None
    shift_ref = next(it) if emit_act else None
    y_ref = next(it) if emit_raw else None
    z_ref = next(it) if emit_act else None

    y = jnp.dot(a_ref[...], w_ref[...], preferred_element_type=jnp.float32)
    if has_skip:
        y = y + skip_ref[...]
    if emit_raw:
        y_ref[...] = y
    if emit_act:
        z_ref[...] = jnp.maximum(y * scale_ref[...] + shift_ref[...], 0.0)


def _pick_tile_m(m):
    # >=2 tiles when possible (v7x megacore), but keep the grid short.
    if m >= 1024 and m % 512 == 0:
        return 512
    if m % 2 == 0 and (m // 2) % 8 == 0:
        return m // 2
    return m


def fused_conv_matmul(patches, w2d, *, skip=None, act_scale=None, act_shift=None,
                      emit_raw=True):
    """Single pallas_call: (M,K)@(K,Cout) + fused residual add + fused next BN+ReLU."""
    M, K = patches.shape
    Cout = w2d.shape[1]
    emit_act = act_scale is not None
    has_skip = skip is not None
    assert emit_raw or emit_act

    tm = _pick_tile_m(M)
    grid = (M // tm,)

    in_specs = [
        pl.BlockSpec((tm, K), lambda i: (i, 0)),       # patches tile
        pl.BlockSpec((K, Cout), lambda i: (0, 0)),     # full weight block
    ]
    inputs = [patches, w2d]
    if has_skip:
        in_specs.append(pl.BlockSpec((tm, Cout), lambda i: (i, 0)))
        inputs.append(skip)
    if emit_act:
        in_specs.append(pl.BlockSpec((1, Cout), lambda i: (0, 0)))
        in_specs.append(pl.BlockSpec((1, Cout), lambda i: (0, 0)))
        inputs.append(act_scale.reshape(1, Cout).astype(jnp.float32))
        inputs.append(act_shift.reshape(1, Cout).astype(jnp.float32))

    out_shape, out_specs = [], []
    if emit_raw:
        out_shape.append(jax.ShapeDtypeStruct((M, Cout), jnp.float32))
        out_specs.append(pl.BlockSpec((tm, Cout), lambda i: (i, 0)))
    if emit_act:
        out_shape.append(jax.ShapeDtypeStruct((M, Cout), jnp.float32))
        out_specs.append(pl.BlockSpec((tm, Cout), lambda i: (i, 0)))

    res = pl.pallas_call(
        functools.partial(_fused_conv_kernel, has_skip=has_skip,
                          emit_raw=emit_raw, emit_act=emit_act),
        out_shape=out_shape,
        grid=grid,
        in_specs=in_specs,
        out_specs=out_specs,
        compiler_params=pltpu.CompilerParams(dimension_semantics=("parallel",)),
    )(*inputs)

    it = iter(res)
    y = next(it) if emit_raw else None
    z = next(it) if emit_act else None
    return y, z


# --------------------------------------------------------------------- fused avg-pool + FC head
def _head_kernel(x_ref, w_ref, b_ref, o_ref, *, inv_hw):
    pooled = jnp.sum(x_ref[...], axis=1) * inv_hw          # global average pool -> (N, C)
    o_ref[...] = (jnp.dot(pooled, w_ref[...], preferred_element_type=jnp.float32)
                  + b_ref[...])


def fused_pool_fc(x_nhwc, fc_w, fc_b):
    N, H, W, C = x_nhwc.shape
    K = fc_w.shape[1]
    x3d = x_nhwc.reshape(N, H * W, C)
    return pl.pallas_call(
        functools.partial(_head_kernel, inv_hw=1.0 / (H * W)),
        out_shape=jax.ShapeDtypeStruct((N, K), jnp.float32),
        grid=(1,),
        in_specs=[pl.BlockSpec((N, H * W, C), lambda i: (0, 0, 0)),
                  pl.BlockSpec((C, K), lambda i: (0, 0)),
                  pl.BlockSpec((1, K), lambda i: (0, 0))],
        out_specs=pl.BlockSpec((N, K), lambda i: (0, 0)),
    )(x3d, fc_w, fc_b.reshape(1, K))


# --------------------------------------------------------------------- XLA wrapper glue
def im2col(x_nhwc, ksize, stride, pad):
    """pad + 9 shifted slices + concat + bf16 cast (fuses into one XLA fusion)."""
    N, H, W, C = x_nhwc.shape
    Ho = (H + 2 * pad - ksize) // stride + 1
    Wo = (W + 2 * pad - ksize) // stride + 1
    xp = jnp.pad(x_nhwc, ((0, 0), (pad, pad), (pad, pad), (0, 0))) if pad else x_nhwc
    cols = []
    for dh in range(ksize):
        for dw in range(ksize):
            cols.append(xp[:, dh:dh + (Ho - 1) * stride + 1:stride,
                               dw:dw + (Wo - 1) * stride + 1:stride, :])
    patches = cols[0] if len(cols) == 1 else jnp.concatenate(cols, axis=-1)
    patches = patches.reshape(N * Ho * Wo, ksize * ksize * C)
    pad_k = (-patches.shape[1]) % 8        # keep K a multiple of 8 (stem: 27 -> 32)
    if pad_k:
        patches = jnp.pad(patches, ((0, 0), (0, pad_k)))
    return patches.astype(jnp.bfloat16), (N, Ho, Wo)


def fold_bn(bn, eps=1e-5):
    gamma, beta, mean, var = bn
    scale = gamma * jax.lax.rsqrt(var + eps)
    shift = beta - mean * scale
    return scale, shift


# --------------------------------------------------------------------- parameter construction
def _conv_w2d(key, out_c, in_c, k):
    std = math.sqrt(2.0 / (k * k * out_c))          # module's fan-out normal init
    w = std * jax.random.normal(key, (out_c, in_c, k, k), dtype=jnp.float32)
    w2d = jnp.transpose(w, (2, 3, 1, 0)).reshape(k * k * in_c, out_c)
    pad_k = (-w2d.shape[0]) % 8
    if pad_k:
        w2d = jnp.pad(w2d, ((0, pad_k), (0, 0)))
    return w2d.astype(jnp.bfloat16)


def _bn_init(c):
    # (gamma, beta, running_mean, running_var) exactly as the module's __init__ sets them
    return (jnp.ones((c,), jnp.float32), jnp.zeros((c,), jnp.float32),
            jnp.zeros((c,), jnp.float32), jnp.ones((c,), jnp.float32))


def init_wide_resnet(key, depth=10, num_classes=10, widen_factor=1):
    assert (depth - 4) % 6 == 0
    n = (depth - 4) // 6
    nch = [16, 16 * widen_factor, 32 * widen_factor, 64 * widen_factor]
    keys = iter(jax.random.split(key, 256))

    params = {"conv1_w": _conv_w2d(next(keys), nch[0], 3, 3)}

    def make_block(in_p, out_p, stride):
        layers = []
        for i in range(n):
            ip = in_p if i == 0 else out_p
            st = stride if i == 0 else 1
            lyr = {
                "bn1": _bn_init(ip),
                "w1": _conv_w2d(next(keys), out_p, ip, 3),
                "bn2": _bn_init(out_p),
                "w2": _conv_w2d(next(keys), out_p, out_p, 3),
                "stride": st,
                "equal": ip == out_p,
                "cout": out_p,
            }
            if not lyr["equal"]:
                lyr["wsc"] = _conv_w2d(next(keys), out_p, ip, 1)
            layers.append(lyr)
        return layers

    params["block1"] = make_block(nch[0], nch[1], 1)
    params["block2"] = make_block(nch[1], nch[2], 2)
    params["block3"] = make_block(nch[2], nch[3], 2)
    params["bn_final"] = _bn_init(nch[3])

    bound = 1.0 / math.sqrt(nch[3])
    params["fc_w"] = jax.random.uniform(next(keys), (nch[3], num_classes),
                                        minval=-bound, maxval=bound, dtype=jnp.float32)
    params["fc_b"] = jnp.zeros((num_classes,), jnp.float32)
    return params


# --------------------------------------------------------------------- forward pass
def wide_resnet_forward(params, x_nchw):
    x = jnp.transpose(x_nchw, (0, 2, 3, 1)).astype(jnp.float32)     # NCHW -> NHWC
    layers = list(params["block1"]) + list(params["block2"]) + list(params["block3"])
    L = len(layers)

    def next_bn(j):
        return layers[j + 1]["bn1"] if j + 1 < L else params["bn_final"]

    # stem conv; fuse layer-0's bn1+relu into its epilogue (second "z" output)
    patches, (N, Ho, Wo) = im2col(x, 3, 1, 1)
    s0, b0 = fold_bn(layers[0]["bn1"])
    need_raw = layers[0]["equal"]       # raw y only needed when the next skip is identity
    c0 = params["conv1_w"].shape[1]
    y_flat, z_flat = fused_conv_matmul(patches, params["conv1_w"],
                                       act_scale=s0, act_shift=b0, emit_raw=need_raw)
    y = y_flat.reshape(N, Ho, Wo, c0) if need_raw else None
    z = z_flat.reshape(N, Ho, Wo, c0)

    for j, lyr in enumerate(layers):
        stride, equal, cout = lyr["stride"], lyr["equal"], lyr["cout"]

        # conv1 consumes z = relu(bn1(y)); bn2+relu fused into its epilogue
        p1, (N, Ho, Wo) = im2col(z, 3, stride, 1)
        s2, b2 = fold_bn(lyr["bn2"])
        _, h2_flat = fused_conv_matmul(p1, lyr["w1"], act_scale=s2, act_shift=b2,
                                       emit_raw=False)
        h2 = h2_flat.reshape(N, Ho, Wo, cout)
        # TODO(synk): F.dropout would go here (dropRate=0.0 in this config -> no-op).

        # skip path
        if equal:
            skip_flat = y.reshape(N * Ho * Wo, cout)               # identity skip (stride 1)
        else:
            zs = z[:, ::stride, ::stride, :]                       # 1x1 stride-s shortcut conv
            psc = zs.reshape(N * Ho * Wo, zs.shape[-1]).astype(jnp.bfloat16)
            skip_flat, _ = fused_conv_matmul(psc, lyr["wsc"], emit_raw=True)

        # conv2 consumes h2; fuse residual add + NEXT layer's bn1 (or final bn) + relu
        p2, _ = im2col(h2, 3, 1, 1)
        ns, nb = fold_bn(next_bn(j))
        need_raw = (j + 1 < L) and layers[j + 1]["equal"]
        y_flat, z_flat = fused_conv_matmul(p2, lyr["w2"], skip=skip_flat,
                                           act_scale=ns, act_shift=nb, emit_raw=need_raw)
        y = y_flat.reshape(N, Ho, Wo, cout) if need_raw else None
        z = z_flat.reshape(N, Ho, Wo, cout)

    # z already carries relu(bn_final(.)): fused global-average-pool + FC head
    return fused_pool_fc(z, params["fc_w"], params["fc_b"])


# --------------------------------------------------------------------- main
if __name__ == "__main__":
    key = jax.random.PRNGKey(0)
    kp, kx = jax.random.split(key)
    params = init_wide_resnet(kp, depth=10, num_classes=10, widen_factor=1)
    # batch=2, CIFAR-like 3x32x32 NCHW input (the two stride-2 stages + avg_pool2d(out, 8)
    # in the PyTorch module imply a 32x32 spatial extent).
    x = jax.random.normal(kx, (2, 3, 32, 32), dtype=jnp.float32)
    fwd = jax.jit(functools.partial(wide_resnet_forward, params))
    logits = jax.block_until_ready(fwd(x))
    assert logits.shape == (2, 10), logits.shape
    assert bool(jnp.all(jnp.isfinite(logits)))
    print("KERNEL_OK")
</pallas_src>

<mosaic_0001>
module attributes {stable_mosaic.version = 11 : i64} {
  func.func @_fused_conv_kernel(%arg0: i32, %arg1: memref<512x32xbf16, #tpu.memory_space<vmem>>, %arg2: memref<32x16xbf16, #tpu.memory_space<vmem>>, %arg3: memref<1x16xf32, #tpu.memory_space<vmem>>, %arg4: memref<1x16xf32, #tpu.memory_space<vmem>>, %arg5: memref<512x16xf32, #tpu.memory_space<vmem>>, %arg6: memref<512x16xf32, #tpu.memory_space<vmem>>) attributes {dimension_semantics = [#tpu.dimension_semantics<parallel>], iteration_bounds = array<i64: 4>, scalar_prefetch = 0 : i64, scratch_operands = 0 : i64, tpu.core_type = #tpu.core_type<tc>, window_params = [{transform_indices = @transform_0, window_bounds = array<i64: 512, 32>}, {pipeline_mode = #tpu.pipeline_mode<synchronous>, transform_indices = @transform_1, window_bounds = array<i64: 32, 16>}, {pipeline_mode = #tpu.pipeline_mode<synchronous>, transform_indices = @transform_2, window_bounds = array<i64: 1, 16>}, {pipeline_mode = #tpu.pipeline_mode<synchronous>, transform_indices = @transform_3, window_bounds = array<i64: 1, 16>}, {transform_indices = @transform_4, window_bounds = array<i64: 512, 16>}, {transform_indices = @transform_5, window_bounds = array<i64: 512, 16>}]} {
    %c0 = arith.constant 0 : index
    %c0_0 = arith.constant 0 : index
    %0 = vector.load %arg1[%c0, %c0_0] : memref<512x32xbf16, #tpu.memory_space<vmem>>, vector<512x32xbf16>
    %c0_1 = arith.constant 0 : index
    %c0_2 = arith.constant 0 : index
    %1 = vector.load %arg2[%c0_1, %c0_2] : memref<32x16xbf16, #tpu.memory_space<vmem>>, vector<32x16xbf16>
    %cst = arith.constant dense<0.000000e+00> : vector<512x16xf32>
    %2 = tpu.matmul %0, %1, %cst {dimension_numbers = #tpu.dot_dimension_numbers<[1], [0], [0], [1], [0, 0, 1, 1], [], []>} : vector<512x32xbf16>, vector<32x16xbf16>, vector<512x16xf32> -> vector<512x16xf32>
    %c0_3 = arith.constant 0 : index
    %c0_4 = arith.constant 0 : index
    %3 = vector.load %arg5[%c0_3, %c0_4] : memref<512x16xf32, #tpu.memory_space<vmem>>, vector<512x16xf32>
    tpu.vector_store %arg5[%c0_3, %c0_4], %2 {strides = array<i32>} : memref<512x16xf32, #tpu.memory_space<vmem>>, vector<512x16xf32>,
    %c0_5 = arith.constant 0 : index
    %c0_6 = arith.constant 0 : index
    %4 = vector.load %arg3[%c0_5, %c0_6] : memref<1x16xf32, #tpu.memory_space<vmem>>, vector<1x16xf32>
    %5 = vector.broadcast %4 : vector<1x16xf32> to vector<512x16xf32>
    %6 = arith.mulf %2, %5 : vector<512x16xf32>
    %c0_7 = arith.constant 0 : index
    %c0_8 = arith.constant 0 : index
    %7 = vector.load %arg4[%c0_7, %c0_8] : memref<1x16xf32, #tpu.memory_space<vmem>>, vector<1x16xf32>
    %8 = vector.broadcast %7 : vector<1x16xf32> to vector<512x16xf32>
    %9 = arith.addf %6, %8 : vector<512x16xf32>
    %cst_9 = arith.constant 0.000000e+00 : f32
    %10 = vector.broadcast %cst_9 : f32 to vector<512x16xf32>
    %11 = arith.maximumf %9, %10 : vector<512x16xf32>
    %c0_10 = arith.constant 0 : index
    %c0_11 = arith.constant 0 : index
    %12 = vector.load %arg6[%c0_10, %c0_11] : memref<512x16xf32, #tpu.memory_space<vmem>>, vector<512x16xf32>
    tpu.vector_store %arg6[%c0_10, %c0_11], %11 {strides = array<i32>} : memref<512x16xf32, #tpu.memory_space<vmem>>, vector<512x16xf32>,
    return
  }
  func.func @transform_0(%arg0: i32) -> (i32, i32) {
    %c0_i32 = arith.constant 0 : i32
    %c0_i32_0 = arith.constant 0 : i32
    return %arg0, %c0_i32 : i32, i32
  }
  func.func @transform_1(%arg0: i32) -> (i32, i32) {
    %c0_i32 = arith.constant 0 : i32
    %c0_i32_0 = arith.constant 0 : i32
    %c0_i32_1 = arith.constant 0 : i32
    return %c0_i32, %c0_i32_0 : i32, i32
  }
  func.func @transform_2(%arg0: i32) -> (i32, i32) {
    %c0_i32 = arith.constant 0 : i32
    %c0_i32_0 = arith.constant 0 : i32
    %c0_i32_1 = arith.constant 0 : i32
    return %c0_i32, %c0_i32_0 : i32, i32
  }
  func.func @transform_3(%arg0: i32) -> (i32, i32) {
    %c0_i32 = arith.constant 0 : i32
    %c0_i32_0 = arith.constant 0 : i32
    %c0_i32_1 = arith.constant 0 : i32
    return %c0_i32, %c0_i32_0 : i32, i32
  }
  func.func @transform_4(%arg0: i32) -> (i32, i32) {
    %c0_i32 = arith.constant 0 : i32
    %c0_i32_0 = arith.constant 0 : i32
    return %arg0, %c0_i32 : i32, i32
  }
  func.func @transform_5(%arg0: i32) -> (i32, i32) {
    %c0_i32 = arith.constant 0 : i32
    %c0_i32_0 = arith.constant 0 : i32
    return %arg0, %c0_i32 : i32, i32
  }
}

module attributes {stable_mosaic.version = 11 : i64} {
  func.func @_fused_conv_kernel(%arg0: i32, %arg1: memref<512x144xbf16, #tpu.memory_space<vmem>>, %arg2: memref<144x16xbf16, #tpu.memory_space<vmem>>, %arg3: memref<1x16xf32, #tpu.memory_space<vmem>>, %arg4: memref<1x16xf32, #tpu.memory_space<vmem>>, %arg5: memref<512x16xf32, #tpu.memory_space<vmem>>) attributes {dimension_semantics = [#tpu.dimension_semantics<parallel>], iteration_bounds = array<i64: 4>, scalar_prefetch = 0 : i64, scratch_operands = 0 : i64, tpu.core_type = #tpu.core_type<tc>, window_params = [{transform_indices = @transform_0, window_bounds = array<i64: 512, 144>}, {pipeline_mode = #tpu.pipeline_mode<synchronous>, transform_indices = @transform_1, window_bounds = array<i64: 144, 16>}, {pipeline_mode = #tpu.pipeline_mode<synchronous>, transform_indices = @transform_2, window_bounds = array<i64: 1, 16>}, {pipeline_mode = #tpu.pipeline_mode<synchronous>, transform_indices = @transform_3, window_bounds = array<i64: 1, 16>}, {transform_indices = @transform_4, window_bounds = array<i64: 512, 16>}]} {
    %c0 = arith.constant 0 : index
    %c0_0 = arith.constant 0 : index
    %0 = vector.load %arg1[%c0, %c0_0] : memref<512x144xbf16, #tpu.memory_space<vmem>>, vector<512x144xbf16>
    %c0_1 = arith.constant 0 : index
    %c0_2 = arith.constant 0 : index
    %1 = vector.load %arg2[%c0_1, %c0_2] : memref<144x16xbf16, #tpu.memory_space<vmem>>, vector<144x16xbf16>
    %cst = arith.constant dense<0.000000e+00> : vector<512x16xf32>
    %2 = tpu.matmul %0, %1, %cst {dimension_numbers = #tpu.dot_dimension_numbers<[1], [0], [0], [1], [0, 0, 1, 1], [], []>} : vector<512x144xbf16>, vector<144x16xbf16>, vector<512x16xf32> -> vector<512x16xf32>
    %c0_3 = arith.constant 0 : index
    %c0_4 = arith.constant 0 : index
    %3 = vector.load %arg3[%c0_3, %c0_4] : memref<1x16xf32, #tpu.memory_space<vmem>>, vector<1x16xf32>
    %4 = vector.broadcast %3 : vector<1x16xf32> to vector<512x16xf32>
    %5 = arith.mulf %2, %4 : vector<512x16xf32>
    %c0_5 = arith.constant 0 : index
    %c0_6 = arith.constant 0 : index
    %6 = vector.load %arg4[%c0_5, %c0_6] : memref<1x16xf32, #tpu.memory_space<vmem>>, vector<1x16xf32>
    %7 = vector.broadcast %6 : vector<1x16xf32> to vector<512x16xf32>
    %8 = arith.addf %5, %7 : vector<512x16xf32>
    %cst_7 = arith.constant 0.000000e+00 : f32
    %9 = vector.broadcast %cst_7 : f32 to vector<512x16xf32>
    %10 = arith.maximumf %8, %9 : vector<512x16xf32>
    %c0_8 = arith.constant 0 : index
    %c0_9 = arith.constant 0 : index
    %11 = vector.load %arg5[%c0_8, %c0_9] : memref<512x16xf32, #tpu.memory_space<vmem>>, vector<512x16xf32>
    tpu.vector_store %arg5[%c0_8, %c0_9], %10 {strides = array<i32>} : memref<512x16xf32, #tpu.memory_space<vmem>>, vector<512x16xf32>,
    return
  }
  func.func @transform_0(%arg0: i32) -> (i32, i32) {
    %c0_i32 = arith.constant 0 : i32
    %c0_i32_0 = arith.constant 0 : i32
    return %arg0, %c0_i32 : i32, i32
  }
  func.func @transform_1(%arg0: i32) -> (i32, i32) {
    %c0_i32 = arith.constant 0 : i32
    %c0_i32_0 = arith.constant 0 : i32
    %c0_i32_1 = arith.constant 0 : i32
    return %c0_i32, %c0_i32_0 : i32, i32
  }
  func.func @transform_2(%arg0: i32) -> (i32, i32) {
    %c0_i32 = arith.constant 0 : i32
    %c0_i32_0 = arith.constant 0 : i32
    %c0_i32_1 = arith.constant 0 : i32
    return %c0_i32, %c0_i32_0 : i32, i32
  }
  func.func @transform_3(%arg0: i32) -> (i32, i32) {
    %c0_i32 = arith.constant 0 : i32
    %c0_i32_0 = arith.constant 0 : i32
    %c0_i32_1 = arith.constant 0 : i32
    return %c0_i32, %c0_i32_0 : i32, i32
  }
  func.func @transform_4(%arg0: i32) -> (i32, i32) {
    %c0_i32 = arith.constant 0 : i32
    %c0_i32_0 = arith.constant 0 : i32
    return %arg0, %c0_i32 : i32, i32
  }
}

module attributes {stable_mosaic.version = 11 : i64} {
  func.func @_fused_conv_kernel(%arg0: i32, %arg1: memref<512x144xbf16, #tpu.memory_space<vmem>>, %arg2: memref<144x16xbf16, #tpu.memory_space<vmem>>, %arg3: memref<512x16xf32, #tpu.memory_space<vmem>>, %arg4: memref<1x16xf32, #tpu.memory_space<vmem>>, %arg5: memref<1x16xf32, #tpu.memory_space<vmem>>, %arg6: memref<512x16xf32, #tpu.memory_space<vmem>>) attributes {dimension_semantics = [#tpu.dimension_semantics<parallel>], iteration_bounds = array<i64: 4>, scalar_prefetch = 0 : i64, scratch_operands = 0 : i64, tpu.core_type = #tpu.core_type<tc>, window_params = [{transform_indices = @transform_0, window_bounds = array<i64: 512, 144>}, {pipeline_mode = #tpu.pipeline_mode<synchronous>, transform_indices = @transform_1, window_bounds = array<i64: 144, 16>}, {transform_indices = @transform_2, window_bounds = array<i64: 512, 16>}, {pipeline_mode = #tpu.pipeline_mode<synchronous>, transform_indices = @transform_3, window_bounds = array<i64: 1, 16>}, {pipeline_mode = #tpu.pipeline_mode<synchronous>, transform_indices = @transform_4, window_bounds = array<i64: 1, 16>}, {transform_indices = @transform_5, window_bounds = array<i64: 512, 16>}]} {
    %c0 = arith.constant 0 : index
    %c0_0 = arith.constant 0 : index
    %0 = vector.load %arg1[%c0, %c0_0] : memref<512x144xbf16, #tpu.memory_space<vmem>>, vector<512x144xbf16>
    %c0_1 = arith.constant 0 : index
    %c0_2 = arith.constant 0 : index
    %1 = vector.load %arg2[%c0_1, %c0_2] : memref<144x16xbf16, #tpu.memory_space<vmem>>, vector<144x16xbf16>
    %cst = arith.constant dense<0.000000e+00> : vector<512x16xf32>
    %2 = tpu.matmul %0, %1, %cst {dimension_numbers = #tpu.dot_dimension_numbers<[1], [0], [0], [1], [0, 0, 1, 1], [], []>} : vector<512x144xbf16>, vector<144x16xbf16>, vector<512x16xf32> -> vector<512x16xf32>
    %c0_3 = arith.constant 0 : index
    %c0_4 = arith.constant 0 : index
    %3 = vector.load %arg3[%c0_3, %c0_4] : memref<512x16xf32, #tpu.memory_space<vmem>>, vector<512x16xf32>
    %4 = arith.addf %2, %3 : vector<512x16xf32>
    %c0_5 = arith.constant 0 : index
    %c0_6 = arith.constant 0 : index
    %5 = vector.load %arg4[%c0_5, %c0_6] : memref<1x16xf32, #tpu.memory_space<vmem>>, vector<1x16xf32>
    %6 = vector.broadcast %5 : vector<1x16xf32> to vector<512x16xf32>
    %7 = arith.mulf %4, %6 : vector<512x16xf32>
    %c0_7 = arith.constant 0 : index
    %c0_8 = arith.constant 0 : index
    %8 = vector.load %arg5[%c0_7, %c0_8] : memref<1x16xf32, #tpu.memory_space<vmem>>, vector<1x16xf32>
    %9 = vector.broadcast %8 : vector<1x16xf32> to vector<512x16xf32>
    %10 = arith.addf %7, %9 : vector<512x16xf32>
    %cst_9 = arith.constant 0.000000e+00 : f32
    %11 = vector.broadcast %cst_9 : f32 to vector<512x16xf32>
    %12 = arith.maximumf %10, %11 : vector<512x16xf32>
    %c0_10 = arith.constant 0 : index
    %c0_11 = arith.constant 0 : index
    %13 = vector.load %arg6[%c0_10, %c0_11] : memref<512x16xf32, #tpu.memory_space<vmem>>, vector<512x16xf32>
    tpu.vector_store %arg6[%c0_10, %c0_11], %12 {strides = array<i32>} : memref<512x16xf32, #tpu.memory_space<vmem>>, vector<512x16xf32>,
    return
  }
  func.func @transform_0(%arg0: i32) -> (i32, i32) {
    %c0_i32 = arith.constant 0 : i32
    %c0_i32_0 = arith.constant 0 : i32
    return %arg0, %c0_i32 : i32, i32
  }
  func.func @transform_1(%arg0: i32) -> (i32, i32) {
    %c0_i32 = arith.constant 0 : i32
    %c0_i32_0 = arith.constant 0 : i32
    %c0_i32_1 = arith.constant 0 : i32
    return %c0_i32, %c0_i32_0 : i32, i32
  }
  func.func @transform_2(%arg0: i32) -> (i32, i32) {
    %c0_i32 = arith.constant 0 : i32
    %c0_i32_0 = arith.constant 0 : i32
    return %arg0, %c0_i32 : i32, i32
  }
  func.func @transform_3(%arg0: i32) -> (i32, i32) {
    %c0_i32 = arith.constant 0 : i32
    %c0_i32_0 = arith.constant 0 : i32
    %c0_i32_1 = arith.constant 0 : i32
    return %c0_i32, %c0_i32_0 : i32, i32
  }
  func.func @transform_4(%arg0: i32) -> (i32, i32) {
    %c0_i32 = arith.constant 0 : i32
    %c0_i32_0 = arith.constant 0 : i32
    %c0_i32_1 = arith.constant 0 : i32
    return %c0_i32, %c0_i32_0 : i32, i32
  }
  func.func @transform_5(%arg0: i32) -> (i32, i32) {
    %c0_i32 = arith.constant 0 : i32
    %c0_i32_0 = arith.constant 0 : i32
    return %arg0, %c0_i32 : i32, i32
  }
}

module attributes {stable_mosaic.version = 11 : i64} {
  func.func @_fused_conv_kernel(%arg0: i32, %arg1: memref<256x16xbf16, #tpu.memory_space<vmem>>, %arg2: memref<16x32xbf16, #tpu.memory_space<vmem>>, %arg3: memref<256x32xf32, #tpu.memory_space<vmem>>) attributes {dimension_semantics = [#tpu.dimension_semantics<parallel>], iteration_bounds = array<i64: 2>, scalar_prefetch = 0 : i64, scratch_operands = 0 : i64, tpu.core_type = #tpu.core_type<tc>, window_params = [{transform_indices = @transform_0, window_bounds = array<i64: 256, 16>}, {pipeline_mode = #tpu.pipeline_mode<synchronous>, transform_indices = @transform_1, window_bounds = array<i64: 16, 32>}, {transform_indices = @transform_2, window_bounds = array<i64: 256, 32>}]} {
    %c0 = arith.constant 0 : index
    %c0_0 = arith.constant 0 : index
    %0 = vector.load %arg1[%c0, %c0_0] : memref<256x16xbf16, #tpu.memory_space<vmem>>, vector<256x16xbf16>
    %c0_1 = arith.constant 0 : index
    %c0_2 = arith.constant 0 : index
    %1 = vector.load %arg2[%c0_1, %c0_2] : memref<16x32xbf16, #tpu.memory_space<vmem>>, vector<16x32xbf16>
    %cst = arith.constant dense<0.000000e+00> : vector<256x32xf32>
    %2 = tpu.matmul %0, %1, %cst {dimension_numbers = #tpu.dot_dimension_numbers<[1], [0], [0], [1], [0, 0, 1, 1], [], []>} : vector<256x16xbf16>, vector<16x32xbf16>, vector<256x32xf32> -> vector<256x32xf32>
    %c0_3 = arith.constant 0 : index
    %c0_4 = arith.constant 0 : index
    %3 = vector.load %arg3[%c0_3, %c0_4] : memref<256x32xf32, #tpu.memory_space<vmem>>, vector<256x32xf32>
    tpu.vector_store %arg3[%c0_3, %c0_4], %2 {strides = array<i32>} : memref<256x32xf32, #tpu.memory_space<vmem>>, vector<256x32xf32>,
    return
  }
  func.func @transform_0(%arg0: i32) -> (i32, i32) {
    %c0_i32 = arith.constant 0 : i32
    %c0_i32_0 = arith.constant 0 : i32
    return %arg0, %c0_i32 : i32, i32
  }
  func.func @transform_1(%arg0: i32) -> (i32, i32) {
    %c0_i32 = arith.constant 0 : i32
    %c0_i32_0 = arith.constant 0 : i32
    %c0_i32_1 = arith.constant 0 : i32
    return %c0_i32, %c0_i32_0 : i32, i32
  }
  func.func @transform_2(%arg0: i32) -> (i32, i32) {
    %c0_i32 = arith.constant 0 : i32
    %c0_i32_0 = arith.constant 0 : i32
    return %arg0, %c0_i32 : i32, i32
  }
}

module attributes {stable_mosaic.version = 11 : i64} {
  func.func @_fused_conv_kernel(%arg0: i32, %arg1: memref<256x144xbf16, #tpu.memory_space<vmem>>, %arg2: memref<144x32xbf16, #tpu.memory_space<vmem>>, %arg3: memref<1x32xf32, #tpu.memory_space<vmem>>, %arg4: memref<1x32xf32, #tpu.memory_space<vmem>>, %arg5: memref<256x32xf32, #tpu.memory_space<vmem>>) attributes {dimension_semantics = [#tpu.dimension_semantics<parallel>], iteration_bounds = array<i64: 2>, scalar_prefetch = 0 : i64, scratch_operands = 0 : i64, tpu.core_type = #tpu.core_type<tc>, window_params = [{transform_indices = @transform_0, window_bounds = array<i64: 256, 144>}, {pipeline_mode = #tpu.pipeline_mode<synchronous>, transform_indices = @transform_1, window_bounds = array<i64: 144, 32>}, {pipeline_mode = #tpu.pipeline_mode<synchronous>, transform_indices = @transform_2, window_bounds = array<i64: 1, 32>}, {pipeline_mode = #tpu.pipeline_mode<synchronous>, transform_indices = @transform_3, window_bounds = array<i64: 1, 32>}, {transform_indices = @transform_4, window_bounds = array<i64: 256, 32>}]} {
    %c0 = arith.constant 0 : index
    %c0_0 = arith.constant 0 : index
    %0 = vector.load %arg1[%c0, %c0_0] : memref<256x144xbf16, #tpu.memory_space<vmem>>, vector<256x144xbf16>
    %c0_1 = arith.constant 0 : index
    %c0_2 = arith.constant 0 : index
    %1 = vector.load %arg2[%c0_1, %c0_2] : memref<144x32xbf16, #tpu.memory_space<vmem>>, vector<144x32xbf16>
    %cst = arith.constant dense<0.000000e+00> : vector<256x32xf32>
    %2 = tpu.matmul %0, %1, %cst {dimension_numbers = #tpu.dot_dimension_numbers<[1], [0], [0], [1], [0, 0, 1, 1], [], []>} : vector<256x144xbf16>, vector<144x32xbf16>, vector<256x32xf32> -> vector<256x32xf32>
    %c0_3 = arith.constant 0 : index
    %c0_4 = arith.constant 0 : index
    %3 = vector.load %arg3[%c0_3, %c0_4] : memref<1x32xf32, #tpu.memory_space<vmem>>, vector<1x32xf32>
    %4 = vector.broadcast %3 : vector<1x32xf32> to vector<256x32xf32>
    %5 = arith.mulf %2, %4 : vector<256x32xf32>
    %c0_5 = arith.constant 0 : index
    %c0_6 = arith.constant 0 : index
    %6 = vector.load %arg4[%c0_5, %c0_6] : memref<1x32xf32, #tpu.memory_space<vmem>>, vector<1x32xf32>
    %7 = vector.broadcast %6 : vector<1x32xf32> to vector<256x32xf32>
    %8 = arith.addf %5, %7 : vector<256x32xf32>
    %cst_7 = arith.constant 0.000000e+00 : f32
    %9 = vector.broadcast %cst_7 : f32 to vector<256x32xf32>
    %10 = arith.maximumf %8, %9 : vector<256x32xf32>
    %c0_8 = arith.constant 0 : index
    %c0_9 = arith.constant 0 : index
    %11 = vector.load %arg5[%c0_8, %c0_9] : memref<256x32xf32, #tpu.memory_space<vmem>>, vector<256x32xf32>
    tpu.vector_store %arg5[%c0_8, %c0_9], %10 {strides = array<i32>} : memref<256x32xf32, #tpu.memory_space<vmem>>, vector<256x32xf32>,
    return
  }
  func.func @transform_0(%arg0: i32) -> (i32, i32) {
    %c0_i32 = arith.constant 0 : i32
    %c0_i32_0 = arith.constant 0 : i32
    return %arg0, %c0_i32 : i32, i32
  }
  func.func @transform_1(%arg0: i32) -> (i32, i32) {
    %c0_i32 = arith.constant 0 : i32
    %c0_i32_0 = arith.constant 0 : i32
    %c0_i32_1 = arith.constant 0 : i32
    return %c0_i32, %c0_i32_0 : i32, i32
  }
  func.func @transform_2(%arg0: i32) -> (i32, i32) {
    %c0_i32 = arith.constant 0 : i32
    %c0_i32_0 = arith.constant 0 : i32
    %c0_i32_1 = arith.constant 0 : i32
    return %c0_i32, %c0_i32_0 : i32, i32
  }
  func.func @transform_3(%arg0: i32) -> (i32, i32) {
    %c0_i32 = arith.constant 0 : i32
    %c0_i32_0 = arith.constant 0 : i32
    %c0_i32_1 = arith.constant 0 : i32
    return %c0_i32, %c0_i32_0 : i32, i32
  }
  func.func @transform_4(%arg0: i32) -> (i32, i32) {
    %c0_i32 = arith.constant 0 : i32
    %c0_i32_0 = arith.constant 0 : i32
    return %arg0, %c0_i32 : i32, i32
  }
}

module attributes {stable_mosaic.version = 11 : i64} {
  func.func @_fused_conv_kernel(%arg0: i32, %arg1: memref<256x288xbf16, #tpu.memory_space<vmem>>, %arg2: memref<288x32xbf16, #tpu.memory_space<vmem>>, %arg3: memref<256x32xf32, #tpu.memory_space<vmem>>, %arg4: memref<1x32xf32, #tpu.memory_space<vmem>>, %arg5: memref<1x32xf32, #tpu.memory_space<vmem>>, %arg6: memref<256x32xf32, #tpu.memory_space<vmem>>) attributes {dimension_semantics = [#tpu.dimension_semantics<parallel>], iteration_bounds = array<i64: 2>, scalar_prefetch = 0 : i64, scratch_operands = 0 : i64, tpu.core_type = #tpu.core_type<tc>, window_params = [{transform_indices = @transform_0, window_bounds = array<i64: 256, 288>}, {pipeline_mode = #tpu.pipeline_mode<synchronous>, transform_indices = @transform_1, window_bounds = array<i64: 288, 32>}, {transform_indices = @transform_2, window_bounds = array<i64: 256, 32>}, {pipeline_mode = #tpu.pipeline_mode<synchronous>, transform_indices = @transform_3, window_bounds = array<i64: 1, 32>}, {pipeline_mode = #tpu.pipeline_mode<synchronous>, transform_indices = @transform_4, window_bounds = array<i64: 1, 32>}, {transform_indices = @transform_5, window_bounds = array<i64: 256, 32>}]} {
    %c0 = arith.constant 0 : index
    %c0_0 = arith.constant 0 : index
    %0 = vector.load %arg1[%c0, %c0_0] : memref<256x288xbf16, #tpu.memory_space<vmem>>, vector<256x288xbf16>
    %c0_1 = arith.constant 0 : index
    %c0_2 = arith.constant 0 : index
    %1 = vector.load %arg2[%c0_1, %c0_2] : memref<288x32xbf16, #tpu.memory_space<vmem>>, vector<288x32xbf16>
    %cst = arith.constant dense<0.000000e+00> : vector<256x32xf32>
    %2 = tpu.matmul %0, %1, %cst {dimension_numbers = #tpu.dot_dimension_numbers<[1], [0], [0], [1], [0, 0, 1, 1], [], []>} : vector<256x288xbf16>, vector<288x32xbf16>, vector<256x32xf32> -> vector<256x32xf32>
    %c0_3 = arith.constant 0 : index
    %c0_4 = arith.constant 0 : index
    %3 = vector.load %arg3[%c0_3, %c0_4] : memref<256x32xf32, #tpu.memory_space<vmem>>, vector<256x32xf32>
    %4 = arith.addf %2, %3 : vector<256x32xf32>
    %c0_5 = arith.constant 0 : index
    %c0_6 = arith.constant 0 : index
    %5 = vector.load %arg4[%c0_5, %c0_6] : memref<1x32xf32, #tpu.memory_space<vmem>>, vector<1x32xf32>
    %6 = vector.broadcast %5 : vector<1x32xf32> to vector<256x32xf32>
    %7 = arith.mulf %4, %6 : vector<256x32xf32>
    %c0_7 = arith.constant 0 : index
    %c0_8 = arith.constant 0 : index
    %8 = vector.load %arg5[%c0_7, %c0_8] : memref<1x32xf32, #tpu.memory_space<vmem>>, vector<1x32xf32>
    %9 = vector.broadcast %8 : vector<1x32xf32> to vector<256x32xf32>
    %10 = arith.addf %7, %9 : vector<256x32xf32>
    %cst_9 = arith.constant 0.000000e+00 : f32
    %11 = vector.broadcast %cst_9 : f32 to vector<256x32xf32>
    %12 = arith.maximumf %10, %11 : vector<256x32xf32>
    %c0_10 = arith.constant 0 : index
    %c0_11 = arith.constant 0 : index
    %13 = vector.load %arg6[%c0_10, %c0_11] : memref<256x32xf32, #tpu.memory_space<vmem>>, vector<256x32xf32>
    tpu.vector_store %arg6[%c0_10, %c0_11], %12 {strides = array<i32>} : memref<256x32xf32, #tpu.memory_space<vmem>>, vector<256x32xf32>,
    return
  }
  func.func @transform_0(%arg0: i32) -> (i32, i32) {
    %c0_i32 = arith.constant 0 : i32
    %c0_i32_0 = arith.constant 0 : i32
    return %arg0, %c0_i32 : i32, i32
  }
  func.func @transform_1(%arg0: i32) -> (i32, i32) {
    %c0_i32 = arith.constant 0 : i32
    %c0_i32_0 = arith.constant 0 : i32
    %c0_i32_1 = arith.constant 0 : i32
    return %c0_i32, %c0_i32_0 : i32, i32
  }
  func.func @transform_2(%arg0: i32) -> (i32, i32) {
    %c0_i32 = arith.constant 0 : i32
    %c0_i32_0 = arith.constant 0 : i32
    return %arg0, %c0_i32 : i32, i32
  }
  func.func @transform_3(%arg0: i32) -> (i32, i32) {
    %c0_i32 = arith.constant 0 : i32
    %c0_i32_0 = arith.constant 0 : i32
    %c0_i32_1 = arith.constant 0 : i32
    return %c0_i32, %c0_i32_0 : i32, i32
  }
  func.func @transform_4(%arg0: i32) -> (i32, i32) {
    %c0_i32 = arith.constant 0 : i32
    %c0_i32_0 = arith.constant 0 : i32
    %c0_i32_1 = arith.constant 0 : i32
    return %c0_i32, %c0_i32_0 : i32, i32
  }
  func.func @transform_5(%arg0: i32) -> (i32, i32) {
    %c0_i32 = arith.constant 0 : i32
    %c0_i32_0 = arith.constant 0 : i32
    return %arg0, %c0_i32 : i32, i32
  }
}

module attributes {stable_mosaic.version = 11 : i64} {
  func.func @_fused_conv_kernel(%arg0: i32, %arg1: memref<64x32xbf16, #tpu.memory_space<vmem>>, %arg2: memref<32x64xbf16, #tpu.memory_space<vmem>>, %arg3: memref<64x64xf32, #tpu.memory_space<vmem>>) attributes {dimension_semantics = [#tpu.dimension_semantics<parallel>], iteration_bounds = array<i64: 2>, scalar_prefetch = 0 : i64, scratch_operands = 0 : i64, tpu.core_type = #tpu.core_type<tc>, window_params = [{transform_indices = @transform_0, window_bounds = array<i64: 64, 32>}, {pipeline_mode = #tpu.pipeline_mode<synchronous>, transform_indices = @transform_1, window_bounds = array<i64: 32, 64>}, {transform_indices = @transform_2, window_bounds = array<i64: 64, 64>}]} {
    %c0 = arith.constant 0 : index
    %c0_0 = arith.constant 0 : index
    %0 = vector.load %arg1[%c0, %c0_0] : memref<64x32xbf16, #tpu.memory_space<vmem>>, vector<64x32xbf16>
    %c0_1 = arith.constant 0 : index
    %c0_2 = arith.constant 0 : index
    %1 = vector.load %arg2[%c0_1, %c0_2] : memref<32x64xbf16, #tpu.memory_space<vmem>>, vector<32x64xbf16>
    %cst = arith.constant dense<0.000000e+00> : vector<64x64xf32>
    %2 = tpu.matmul %0, %1, %cst {dimension_numbers = #tpu.dot_dimension_numbers<[1], [0], [0], [1], [0, 0, 1, 1], [], []>} : vector<64x32xbf16>, vector<32x64xbf16>, vector<64x64xf32> -> vector<64x64xf32>
    %c0_3 = arith.constant 0 : index
    %c0_4 = arith.constant 0 : index
    %3 = vector.load %arg3[%c0_3, %c0_4] : memref<64x64xf32, #tpu.memory_space<vmem>>, vector<64x64xf32>
    tpu.vector_store %arg3[%c0_3, %c0_4], %2 {strides = array<i32>} : memref<64x64xf32, #tpu.memory_space<vmem>>, vector<64x64xf32>,
    return
  }
  func.func @transform_0(%arg0: i32) -> (i32, i32) {
    %c0_i32 = arith.constant 0 : i32
    %c0_i32_0 = arith.constant 0 : i32
    return %arg0, %c0_i32 : i32, i32
  }
  func.func @transform_1(%arg0: i32) -> (i32, i32) {
    %c0_i32 = arith.constant 0 : i32
    %c0_i32_0 = arith.constant 0 : i32
    %c0_i32_1 = arith.constant 0 : i32
    return %c0_i32, %c0_i32_0 : i32, i32
  }
  func.func @transform_2(%arg0: i32) -> (i32, i32) {
    %c0_i32 = arith.constant 0 : i32
    %c0_i32_0 = arith.constant 0 : i32
    return %arg0, %c0_i32 : i32, i32
  }
}

module attributes {stable_mosaic.version = 11 : i64} {
  func.func @_fused_conv_kernel(%arg0: i32, %arg1: memref<64x288xbf16, #tpu.memory_space<vmem>>, %arg2: memref<288x64xbf16, #tpu.memory_space<vmem>>, %arg3: memref<1x64xf32, #tpu.memory_space<vmem>>, %arg4: memref<1x64xf32, #tpu.memory_space<vmem>>, %arg5: memref<64x64xf32, #tpu.memory_space<vmem>>) attributes {dimension_semantics = [#tpu.dimension_semantics<parallel>], iteration_bounds = array<i64: 2>, scalar_prefetch = 0 : i64, scratch_operands = 0 : i64, tpu.core_type = #tpu.core_type<tc>, window_params = [{transform_indices = @transform_0, window_bounds = array<i64: 64, 288>}, {pipeline_mode = #tpu.pipeline_mode<synchronous>, transform_indices = @transform_1, window_bounds = array<i64: 288, 64>}, {pipeline_mode = #tpu.pipeline_mode<synchronous>, transform_indices = @transform_2, window_bounds = array<i64: 1, 64>}, {pipeline_mode = #tpu.pipeline_mode<synchronous>, transform_indices = @transform_3, window_bounds = array<i64: 1, 64>}, {transform_indices = @transform_4, window_bounds = array<i64: 64, 64>}]} {
    %c0 = arith.constant 0 : index
    %c0_0 = arith.constant 0 : index
    %0 = vector.load %arg1[%c0, %c0_0] : memref<64x288xbf16, #tpu.memory_space<vmem>>, vector<64x288xbf16>
    %c0_1 = arith.constant 0 : index
    %c0_2 = arith.constant 0 : index
    %1 = vector.load %arg2[%c0_1, %c0_2] : memref<288x64xbf16, #tpu.memory_space<vmem>>, vector<288x64xbf16>
    %cst = arith.constant dense<0.000000e+00> : vector<64x64xf32>
    %2 = tpu.matmul %0, %1, %cst {dimension_numbers = #tpu.dot_dimension_numbers<[1], [0], [0], [1], [0, 0, 1, 1], [], []>} : vector<64x288xbf16>, vector<288x64xbf16>, vector<64x64xf32> -> vector<64x64xf32>
    %c0_3 = arith.constant 0 : index
    %c0_4 = arith.constant 0 : index
    %3 = vector.load %arg3[%c0_3, %c0_4] : memref<1x64xf32, #tpu.memory_space<vmem>>, vector<1x64xf32>
    %4 = vector.broadcast %3 : vector<1x64xf32> to vector<64x64xf32>
    %5 = arith.mulf %2, %4 : vector<64x64xf32>
    %c0_5 = arith.constant 0 : index
    %c0_6 = arith.constant 0 : index
    %6 = vector.load %arg4[%c0_5, %c0_6] : memref<1x64xf32, #tpu.memory_space<vmem>>, vector<1x64xf32>
    %7 = vector.broadcast %6 : vector<1x64xf32> to vector<64x64xf32>
    %8 = arith.addf %5, %7 : vector<64x64xf32>
    %cst_7 = arith.constant 0.000000e+00 : f32
    %9 = vector.broadcast %cst_7 : f32 to vector<64x64xf32>
    %10 = arith.maximumf %8, %9 : vector<64x64xf32>
    %c0_8 = arith.constant 0 : index
    %c0_9 = arith.constant 0 : index
    %11 = vector.load %arg5[%c0_8, %c0_9] : memref<64x64xf32, #tpu.memory_space<vmem>>, vector<64x64xf32>
    tpu.vector_store %arg5[%c0_8, %c0_9], %10 {strides = array<i32>} : memref<64x64xf32, #tpu.memory_space<vmem>>, vector<64x64xf32>,
    return
  }
  func.func @transform_0(%arg0: i32) -> (i32, i32) {
    %c0_i32 = arith.constant 0 : i32
    %c0_i32_0 = arith.constant 0 : i32
    return %arg0, %c0_i32 : i32, i32
  }
  func.func @transform_1(%arg0: i32) -> (i32, i32) {
    %c0_i32 = arith.constant 0 : i32
    %c0_i32_0 = arith.constant 0 : i32
    %c0_i32_1 = arith.constant 0 : i32
    return %c0_i32, %c0_i32_0 : i32, i32
  }
  func.func @transform_2(%arg0: i32) -> (i32, i32) {
    %c0_i32 = arith.constant 0 : i32
    %c0_i32_0 = arith.constant 0 : i32
    %c0_i32_1 = arith.constant 0 : i32
    return %c0_i32, %c0_i32_0 : i32, i32
  }
  func.func @transform_3(%arg0: i32) -> (i32, i32) {
    %c0_i32 = arith.constant 0 : i32
    %c0_i32_0 = arith.constant 0 : i32
    %c0_i32_1 = arith.constant 0 : i32
    return %c0_i32, %c0_i32_0 : i32, i32
  }
  func.func @transform_4(%arg0: i32) -> (i32, i32) {
    %c0_i32 = arith.constant 0 : i32
    %c0_i32_0 = arith.constant 0 : i32
    return %arg0, %c0_i32 : i32, i32
  }
}

module attributes {stable_mosaic.version = 11 : i64} {
  func.func @_fused_conv_kernel(%arg0: i32, %arg1: memref<64x576xbf16, #tpu.memory_space<vmem>>, %arg2: memref<576x64xbf16, #tpu.memory_space<vmem>>, %arg3: memref<64x64xf32, #tpu.memory_space<vmem>>, %arg4: memref<1x64xf32, #tpu.memory_space<vmem>>, %arg5: memref<1x64xf32, #tpu.memory_space<vmem>>, %arg6: memref<64x64xf32, #tpu.memory_space<vmem>>) attributes {dimension_semantics = [#tpu.dimension_semantics<parallel>], iteration_bounds = array<i64: 2>, scalar_prefetch = 0 : i64, scratch_operands = 0 : i64, tpu.core_type = #tpu.core_type<tc>, window_params = [{transform_indices = @transform_0, window_bounds = array<i64: 64, 576>}, {pipeline_mode = #tpu.pipeline_mode<synchronous>, transform_indices = @transform_1, window_bounds = array<i64: 576, 64>}, {transform_indices = @transform_2, window_bounds = array<i64: 64, 64>}, {pipeline_mode = #tpu.pipeline_mode<synchronous>, transform_indices = @transform_3, window_bounds = array<i64: 1, 64>}, {pipeline_mode = #tpu.pipeline_mode<synchronous>, transform_indices = @transform_4, window_bounds = array<i64: 1, 64>}, {transform_indices = @transform_5, window_bounds = array<i64: 64, 64>}]} {
    %c0 = arith.constant 0 : index
    %c0_0 = arith.constant 0 : index
    %0 = vector.load %arg1[%c0, %c0_0] : memref<64x576xbf16, #tpu.memory_space<vmem>>, vector<64x576xbf16>
    %c0_1 = arith.constant 0 : index
    %c0_2 = arith.constant 0 : index
    %1 = vector.load %arg2[%c0_1, %c0_2] : memref<576x64xbf16, #tpu.memory_space<vmem>>, vector<576x64xbf16>
    %cst = arith.constant dense<0.000000e+00> : vector<64x64xf32>
    %2 = tpu.matmul %0, %1, %cst {dimension_numbers = #tpu.dot_dimension_numbers<[1], [0], [0], [1], [0, 0, 1, 1], [], []>} : vector<64x576xbf16>, vector<576x64xbf16>, vector<64x64xf32> -> vector<64x64xf32>
    %c0_3 = arith.constant 0 : index
    %c0_4 = arith.constant 0 : index
    %3 = vector.load %arg3[%c0_3, %c0_4] : memref<64x64xf32, #tpu.memory_space<vmem>>, vector<64x64xf32>
    %4 = arith.addf %2, %3 : vector<64x64xf32>
    %c0_5 = arith.constant 0 : index
    %c0_6 = arith.constant 0 : index
    %5 = vector.load %arg4[%c0_5, %c0_6] : memref<1x64xf32, #tpu.memory_space<vmem>>, vector<1x64xf32>
    %6 = vector.broadcast %5 : vector<1x64xf32> to vector<64x64xf32>
    %7 = arith.mulf %4, %6 : vector<64x64xf32>
    %c0_7 = arith.constant 0 : index
    %c0_8 = arith.constant 0 : index
    %8 = vector.load %arg5[%c0_7, %c0_8] : memref<1x64xf32, #tpu.memory_space<vmem>>, vector<1x64xf32>
    %9 = vector.broadcast %8 : vector<1x64xf32> to vector<64x64xf32>
    %10 = arith.addf %7, %9 : vector<64x64xf32>
    %cst_9 = arith.constant 0.000000e+00 : f32
    %11 = vector.broadcast %cst_9 : f32 to vector<64x64xf32>
    %12 = arith.maximumf %10, %11 : vector<64x64xf32>
    %c0_10 = arith.constant 0 : index
    %c0_11 = arith.constant 0 : index
    %13 = vector.load %arg6[%c0_10, %c0_11] : memref<64x64xf32, #tpu.memory_space<vmem>>, vector<64x64xf32>
    tpu.vector_store %arg6[%c0_10, %c0_11], %12 {strides = array<i32>} : memref<64x64xf32, #tpu.memory_space<vmem>>, vector<64x64xf32>,
    return
  }
  func.func @transform_0(%arg0: i32) -> (i32, i32) {
    %c0_i32 = arith.constant 0 : i32
    %c0_i32_0 = arith.constant 0 : i32
    return %arg0, %c0_i32 : i32, i32
  }
  func.func @transform_1(%arg0: i32) -> (i32, i32) {
    %c0_i32 = arith.constant 0 : i32
    %c0_i32_0 = arith.constant 0 : i32
    %c0_i32_1 = arith.constant 0 : i32
    return %c0_i32, %c0_i32_0 : i32, i32
  }
  func.func @transform_2(%arg0: i32) -> (i32, i32) {
    %c0_i32 = arith.constant 0 : i32
    %c0_i32_0 = arith.constant 0 : i32
    return %arg0, %c0_i32 : i32, i32
  }
  func.func @transform_3(%arg0: i32) -> (i32, i32) {
    %c0_i32 = arith.constant 0 : i32
    %c0_i32_0 = arith.constant 0 : i32
    %c0_i32_1 = arith.constant 0 : i32
    return %c0_i32, %c0_i32_0 : i32, i32
  }
  func.func @transform_4(%arg0: i32) -> (i32, i32) {
    %c0_i32 = arith.constant 0 : i32
    %c0_i32_0 = arith.constant 0 : i32
    %c0_i32_1 = arith.constant 0 : i32
    return %c0_i32, %c0_i32_0 : i32, i32
  }
  func.func @transform_5(%arg0: i32) -> (i32, i32) {
    %c0_i32 = arith.constant 0 : i32
    %c0_i32_0 = arith.constant 0 : i32
    return %arg0, %c0_i32 : i32, i32
  }
}

module attributes {stable_mosaic.version = 11 : i64} {
  func.func @_head_kernel(%arg0: i32, %arg1: memref<2x64x64xf32, #tpu.memory_space<vmem>>, %arg2: memref<64x10xf32, #tpu.memory_space<vmem>>, %arg3: memref<1x10xf32, #tpu.memory_space<vmem>>, %arg4: memref<2x10xf32, #tpu.memory_space<vmem>>) attributes {dimension_semantics = [#tpu.dimension_semantics<arbitrary>], iteration_bounds = array<i64: 1>, scalar_prefetch = 0 : i64, scratch_operands = 0 : i64, tpu.core_type = #tpu.core_type<tc>, window_params = [{pipeline_mode = #tpu.pipeline_mode<synchronous>, transform_indices = @transform_0, window_bounds = array<i64: 2, 64, 64>}, {pipeline_mode = #tpu.pipeline_mode<synchronous>, transform_indices = @transform_1, window_bounds = array<i64: 64, 10>}, {pipeline_mode = #tpu.pipeline_mode<synchronous>, transform_indices = @transform_2, window_bounds = array<i64: 1, 10>}, {pipeline_mode = #tpu.pipeline_mode<synchronous>, transform_indices = @transform_3, window_bounds = array<i64: 2, 10>}]} {
    %c0 = arith.constant 0 : index
    %c0_0 = arith.constant 0 : index
    %c0_1 = arith.constant 0 : index
    %0 = vector.load %arg1[%c0, %c0_0, %c0_1] : memref<2x64x64xf32, #tpu.memory_space<vmem>>, vector<2x64x64xf32>
    %cst = arith.constant dense<0.000000e+00> : vector<2x64xf32>
    %1 = vector.multi_reduction <add>, %0, %cst [1] : vector<2x64x64xf32> to vector<2x64xf32>
    %cst_2 = arith.constant 1.562500e-02 : f32
    %2 = vector.broadcast %cst_2 : f32 to vector<2x64xf32>
    %3 = arith.mulf %1, %2 : vector<2x64xf32>
    %c0_3 = arith.constant 0 : index
    %c0_4 = arith.constant 0 : index
    %4 = vector.load %arg2[%c0_3, %c0_4] : memref<64x10xf32, #tpu.memory_space<vmem>>, vector<64x10xf32>
    %cst_5 = arith.constant dense<0.000000e+00> : vector<2x10xf32>
    %5 = tpu.matmul %3, %4, %cst_5 {dimension_numbers = #tpu.dot_dimension_numbers<[1], [0], [0], [1], [0, 0, 1, 1], [], []>} : vector<2x64xf32>, vector<64x10xf32>, vector<2x10xf32> -> vector<2x10xf32>
    %c0_6 = arith.constant 0 : index
    %c0_7 = arith.constant 0 : index
    %6 = vector.load %arg3[%c0_6, %c0_7] : memref<1x10xf32, #tpu.memory_space<vmem>>, vector<1x10xf32>
    %7 = vector.broadcast %6 : vector<1x10xf32> to vector<2x10xf32>
    %8 = arith.addf %5, %7 : vector<2x10xf32>
    %c0_8 = arith.constant 0 : index
    %c0_9 = arith.constant 0 : index
    %9 = vector.load %arg4[%c0_8, %c0_9] : memref<2x10xf32, #tpu.memory_space<vmem>>, vector<2x10xf32>
    tpu.vector_store %arg4[%c0_8, %c0_9], %8 {strides = array<i32>} : memref<2x10xf32, #tpu.memory_space<vmem>>, vector<2x10xf32>,
    return
  }
  func.func @transform_0(%arg0: i32) -> (i32, i32, i32) {
    %c0_i32 = arith.constant 0 : i32
    %c0_i32_0 = arith.constant 0 : i32
    %c0_i32_1 = arith.constant 0 : i32
    %c0_i32_2 = arith.constant 0 : i32
    return %c0_i32, %c0_i32_0, %c0_i32_1 : i32, i32, i32
  }
  func.func @transform_1(%arg0: i32) -> (i32, i32) {
    %c0_i32 = arith.constant 0 : i32
    %c0_i32_0 = arith.constant 0 : i32
    %c0_i32_1 = arith.constant 0 : i32
    return %c0_i32, %c0_i32_0 : i32, i32
  }
  func.func @transform_2(%arg0: i32) -> (i32, i32) {
    %c0_i32 = arith.constant 0 : i32
    %c0_i32_0 = arith.constant 0 : i32
    %c0_i32_1 = arith.constant 0 : i32
    return %c0_i32, %c0_i32_0 : i32, i32
  }
  func.func @transform_3(%arg0: i32) -> (i32, i32) {
    %c0_i32 = arith.constant 0 : i32
    %c0_i32_0 = arith.constant 0 : i32
    %c0_i32_1 = arith.constant 0 : i32
    return %c0_i32, %c0_i32_0 : i32, i32
  }
}

</mosaic_0001>

<llo_original>
// kernel: wide_resnet_forward.10
$region0: #{wide_resnet_forward.10}
  #allocation0 [shape = 'u32[]', space=smem, size = 0x4, offset = 0x4, fixed_abs, tag = 'smem constant byte address 0x4 - core index']
  #allocation1 [shape = 'u32[144,128]{1,0:T(1,128)}', space=vmem, size = 0x12000, scoped, tag = 'internal scratch']
  %s0 = inlined_call_operand.vmem [shape: bf16[2048,32], index: 0, kind: input, shape index: {}]
  %s1 = inlined_call_operand.vmem [shape: bf16[32,16], index: 1, kind: input, shape index: {}]
  %s2 = inlined_call_operand.vmem [shape: f32[1,16], index: 2, kind: input, shape index: {}]
  %s3 = inlined_call_operand.vmem [shape: f32[1,16], index: 3, kind: input, shape index: {}]
  %s4 = inlined_call_operand.vmem [shape: f32[2048,16], index: 4, kind: output, shape index: {0}]
  %s5 = inlined_call_operand.vmem [shape: f32[2048,16], index: 5, kind: output, shape index: {1}]
  %6 = xla_tuple %s4, %s5
  %s7 = sld [smem:[#allocation0]]
  $region57: #{wide_resnet_forward.10} parent=0
    _
  %s9 = ssub.s32 1, %s7
  %s10 = scalar_select 0, %s9, %s7
  loop: start=0, step=1, limit=6
  $region2: #{wide_resnet_forward.10} parent=0 // loop_pre_header
    _
  $region3: #{wide_resnet_forward.10} parent=0 // loop_header
    %s12 = sphi 0, %s16
    %p13 = scmp.ge.s32.totalorder %s12, 6
    %s22 = sphi 0, %s24
    %s25 = sphi 0, %s22
    %s26 = sphi 0, %s25
    %s42 = sphi 0, %s26
    %s46 = sphi 0, %s46
    %s48 = sphi 0, %s46
    %s49 = sphi 0, %s48
    %s63 = sphi 0, %s49
    %s67 = sphi 0, %s67
    %s69 = sphi 0, %s67
    %s70 = sphi 0, %s69
    %s84 = sphi 0, %s70
    %s88 = sphi 0, %s88
    %s90 = sphi 0, %s88
    %s91 = sphi 0, %s90
    %s105 = sphi 0, %s91
    %s111 = sphi 0, %s113
    %s114 = sphi 0, %s111
    %s115 = sphi 0, %s114
    %s131 = sphi 0, %s115
    %s137 = sphi 0, %s139
    %s140 = sphi 0, %s137
    %s141 = sphi 0, %s140
    %s157 = sphi 0, %s141
  $region4: #{wide_resnet_forward.10} parent=0 // loop_header_branch
    %15 = sbr.rel (%p13) target = $region8
  $region5: #{wide_resnet_forward.10} parent=0 // loop_body
    %s17 = ssub.s32 %s12, 1
    %s18 = ssub.s32 %s12, 2
    %s19 = sadd.s32 %s12, 1
    %s20 = ssub.s32 %s12, %s19
    %p21 = scmp.eq.s32.totalorder %s20, 0
    %s23 = sadd.s32 %s22, 1
    %s24 = scalar_select %p21, %s22, %s23
    %p27 = pneg %p21
    %p28 = scmp.eq.s32.totalorder %s12, 3
    %p29 = por %p27, %p28
    %p30 = scmp.ne.s32.totalorder %s22, %s25
    %p31 = scmp.eq.s32.totalorder %s12, 0
    %p32 = por %p30, %p31
    %p33 = scmp.ne.s32.totalorder %s22, %s25
    %p34 = scmp.eq.s32.totalorder %s17, 3
    %p35 = por %p33, %p34
    %p36 = scmp.ne.s32.totalorder %s25, %s26
    %p37 = scmp.eq.s32.totalorder %s17, 0
    %p38 = por %p36, %p37
    %p39 = scmp.ne.s32.totalorder %s25, %s26
    %p40 = scmp.eq.s32.totalorder %s18, 3
    %p41 = por %p39, %p40
    %p43 = scmp.ne.s32.totalorder %s26, %s42
    %p44 = scmp.eq.s32.totalorder %s18, 0
    %p45 = por %p43, %p44
    %s47 = sadd.s32 %s46, 1
    %p50 = scmp.eq.s32.totalorder %s12, 3
    %p51 = scmp.ne.s32.totalorder %s46, %s48
    %p52 = scmp.eq.s32.totalorder %s12, 0
    %p53 = por %p51, %p52
    %p54 = scmp.ne.s32.totalorder %s46, %s48
    %p55 = scmp.eq.s32.totalorder %s17, 3
    %p56 = por %p54, %p55
    %p57 = scmp.ne.s32.totalorder %s48, %s49
    %p58 = scmp.eq.s32.totalorder %s17, 0
    %p59 = por %p57, %p58
    %p60 = scmp.ne.s32.totalorder %s48, %s49
    %p61 = scmp.eq.s32.totalorder %s18, 3
    %p62 = por %p60, %p61
    %p64 = scmp.ne.s32.totalorder %s49, %s63
    %p65 = scmp.eq.s32.totalorder %s18, 0
    %p66 = por %p64, %p65
    %s68 = sadd.s32 %s67, 1
    %p71 = scmp.eq.s32.totalorder %s12, 3
    %p72 = scmp.ne.s32.totalorder %s67, %s69
    %p73 = scmp.eq.s32.totalorder %s12, 0
    %p74 = por %p72, %p73
    %p75 = scmp.ne.s32.totalorder %s67, %s69
    %p76 = scmp.eq.s32.totalorder %s17, 3
    %p77 = por %p75, %p76
    %p78 = scmp.ne.s32.totalorder %s69, %s70
    %p79 = scmp.eq.s32.totalorder %s17, 0
    %p80 = por %p78, %p79
    %p81 = scmp.ne.s32.totalorder %s69, %s70
    %p82 = scmp.eq.s32.totalorder %s18, 3
    %p83 = por %p81, %p82
    %p85 = scmp.ne.s32.totalorder %s70, %s84
    %p86 = scmp.eq.s32.totalorder %s18, 0
    %p87 = por %p85, %p86
    %s89 = sadd.s32 %s88, 1
    %p92 = scmp.eq.s32.totalorder %s12, 3
    %p93 = scmp.ne.s32.totalorder %s88, %s90
    %p94 = scmp.eq.s32.totalorder %s12, 0
    %p95 = por %p93, %p94
    %p96 = scmp.ne.s32.totalorder %s88, %s90
    %p97 = scmp.eq.s32.totalorder %s17, 3
    %p98 = por %p96, %p97
    %p99 = scmp.ne.s32.totalorder %s90, %s91
    %p100 = scmp.eq.s32.totalorder %s17, 0
    %p101 = por %p99, %p100
    %p102 = scmp.ne.s32.totalorder %s90, %s91
    %p103 = scmp.eq.s32.totalorder %s18, 3
    %p104 = por %p102, %p103
    %p106 = scmp.ne.s32.totalorder %s91, %s105
    %p107 = scmp.eq.s32.totalorder %s18, 0
    %p108 = por %p106, %p107
    %s109 = ssub.s32 %s12, %s19
    %p110 = scmp.eq.s32.totalorder %s109, 0
    %s112 = sadd.s32 %s111, 1
    %s113 = scalar_select %p110, %s111, %s112
    %p116 = pneg %p110
    %p117 = scmp.eq.s32.totalorder %s12, 3
    %p118 = por %p116, %p117
    %p119 = scmp.ne.s32.totalorder %s111, %s114
    %p120 = scmp.eq.s32.totalorder %s12, 0
    %p121 = por %p119, %p120
    %p122 = scmp.ne.s32.totalorder %s111, %s114
    %p123 = scmp.eq.s32.totalorder %s17, 3
    %p124 = por %p122, %p123
    %p125 = scmp.ne.s32.totalorder %s114, %s115
    %p126 = scmp.eq.s32.totalorder %s17, 0
    %p127 = por %p125, %p126
    %p128 = scmp.ne.s32.totalorder %s114, %s115
    %p129 = scmp.eq.s32.totalorder %s18, 3
    %p130 = por %p128, %p129
    %p132 = scmp.ne.s32.totalorder %s115, %s131
    %p133 = scmp.eq.s32.totalorder %s18, 0
    %p134 = por %p132, %p133
    %s135 = ssub.s32 %s12, %s19
    %p136 = scmp.eq.s32.totalorder %s135, 0
    %s138 = sadd.s32 %s137, 1
    %s139 = scalar_select %p136, %s137, %s138
    %p142 = pneg %p136
    %p143 = scmp.eq.s32.totalorder %s12, 3
    %p144 = por %p142, %p143
    %p145 = scmp.ne.s32.totalorder %s137, %s140
    %p146 = scmp.eq.s32.totalorder %s12, 0
    %p147 = por %p145, %p146
    %p148 = scmp.ne.s32.totalorder %s137, %s140
    %p149 = scmp.eq.s32.totalorder %s17, 3
    %p150 = por %p148, %p149
    %p151 = scmp.ne.s32.totalorder %s140, %s141
    %p152 = scmp.eq.s32.totalorder %s17, 0
    %p153 = por %p151, %p152
    %p154 = scmp.ne.s32.totalorder %s140, %s141
    %p155 = scmp.eq.s32.totalorder %s18, 3
    %p156 = por %p154, %p155
    %p158 = scmp.ne.s32.totalorder %s141, %s157
    %p159 = scmp.eq.s32.totalorder %s18, 0
    %p160 = por %p158, %p159
    %p161 = scmp.le.s32.totalorder 1, %s12
    %p162 = scmp.lt.s32.totalorder %s12, 5
    %p163 = pnand %p161, %p162
    %p164 = pneg %p163
    // Predicated region
    $region9: #{wide_resnet_forward.10} parent=5 // pred_check
      _
    $region10: #{wide_resnet_forward.10} parent=5 // pred_check_branch
      %166 = sbr.rel (%p163) target = $region12
    $region11: #{wide_resnet_forward.10} parent=5 // pred_region
      %s167 = ssub.s32 %s12, 1
      // Predicated region
      $region13: #{wide_resnet_forward.10} parent=11 // pred_check
        %p168 = pneg %p59
      $region14: #{wide_resnet_forward.10} parent=11 // pred_check_branch
        %170 = sbr.rel (%p168) target = $region16
      $region15: #{wide_resnet_forward.10} parent=11 // pred_region
        _
      $region16: #{wide_resnet_forward.10} parent=11 // pred_fallthru
        _
      // Predicated region
      $region17: #{wide_resnet_forward.10} parent=11 // pred_check
        %p171 = pneg %p80
      $region18: #{wide_resnet_forward.10} parent=11 // pred_check_branch
        %173 = sbr.rel (%p171) target = $region20
      $region19: #{wide_resnet_forward.10} parent=11 // pred_region
        _
      $region20: #{wide_resnet_forward.10} parent=11 // pred_fallthru
        _
      // Predicated region
      $region21: #{wide_resnet_forward.10} parent=11 // pred_check
        %p174 = pneg %p101
      $region22: #{wide_resnet_forward.10} parent=11 // pred_check_branch
        %176 = sbr.rel (%p174) target = $region24
      $region23: #{wide_resnet_forward.10} parent=11 // pred_region
        _
      $region24: #{wide_resnet_forward.10} parent=11 // pred_fallthru
        _
    $region12: #{wide_resnet_forward.10} parent=5 // pred_fallthru
      _
    %p177 = scmp.lt.s32.totalorder %s12, 4
    // Predicated region
    $region25: #{wide_resnet_forward.10} parent=5 // pred_check
      %p178 = pneg %p177
    $region26: #{wide_resnet_forward.10} parent=5 // pred_check_branch
      %180 = sbr.rel (%p178) target = $region28
    $region27: #{wide_resnet_forward.10} parent=5 // pred_region
      // Predicated region
      $region29: #{wide_resnet_forward.10} parent=27 // pred_check
        %p181 = pneg %p32
      $region30: #{wide_resnet_forward.10} parent=27 // pred_check_branch
        %183 = sbr.rel (%p181) target = $region32
      $region31: #{wide_resnet_forward.10} parent=27 // pred_region
        %s184 = smul.u32 64, %s12
        %p185 = scmp.lt.s32.totalorder %s184, 255
        %s186 = scalar_select %p185, %s184, 255
        %s187 = smul.addr %s186, 4
        %s188 = scalar_lea.vmem %s0, %s187
        %s189 = smul.u32 64, %s12
      $region32: #{wide_resnet_forward.10} parent=27 // pred_fallthru
        _
    $region28: #{wide_resnet_forward.10} parent=5 // pred_fallthru
      _
    %p190 = scmp.le.s32.totalorder 1, %s12
    %p191 = scmp.lt.s32.totalorder %s12, 5
    %p192 = pnand %p190, %p191
    %p193 = pneg %p192
    // Predicated region
    $region33: #{wide_resnet_forward.10} parent=5 // pred_check
      _
    $region34: #{wide_resnet_forward.10} parent=5 // pred_check_branch
      %195 = sbr.rel (%p192) target = $region36
    $region35: #{wide_resnet_forward.10} parent=5 // pred_region
      %s196 = ssub.s32 %s12, 1
      %s197 = smul.u32 64, %s17
      %p198 = scmp.lt.s32.totalorder %s197, 255
      %s199 = scalar_select %p198, %s197, 255
      %s200 = smul.addr %s199, 4
      %s201 = scalar_lea.vmem %s0, %s200
      %p202 = pneg %p38
      %p203 = pneg %p35
      %p204 = pneg %p59
      %p205 = pneg %p56
      %p206 = pneg %p80
      %p207 = pneg %p77
      %p208 = pneg %p101
      %p209 = pneg %p98
      %p210 = pneg %p127
      %p211 = pneg %p124
      %s212 = smul.u32 64, %s17
      %p213 = scmp.lt.s32.totalorder %s212, 255
      %s214 = scalar_select %p213, %s212, 255
      %s215 = smul.addr %s214, 8
      %s216 = scalar_lea.vmem %s4, %s215
      %p217 = pneg %p153
      %p218 = pneg %p150
      %s219 = smul.u32 64, %s17
      %p220 = scmp.lt.s32.totalorder %s219, 255
      %s221 = scalar_select %p220, %s219, 255
      %s222 = smul.addr %s221, 8
      %s223 = scalar_lea.vmem %s5, %s222
      %s224 = smul.u32 64, %s17
      %p225 = scmp.lt.s32.totalorder %s224, 255
      %s226 = scalar_select %p225, %s224, 255
      %s227 = smul.addr %s226, 4
      %s228 = scalar_lea.vmem %s0, %s227
      %s229 = smul.u32 64, %s17
      %s230 = smul.u32 64, %s17
      %p231 = scmp.lt.s32.totalorder %s230, 255
      %s232 = scalar_select %p231, %s230, 255
      %s233 = smul.addr %s232, 8
      %s234 = scalar_lea.vmem %s4, %s233
      %s235 = smul.u32 64, %s17
      %s236 = smul.u32 64, %s17
      %p237 = scmp.lt.s32.totalorder %s236, 255
      %s238 = scalar_select %p237, %s236, 255
      %s239 = smul.addr %s238, 8
      %s240 = scalar_lea.vmem %s5, %s239
      %s241 = smul.u32 64, %s17
      %v243 = vld [vmem:[%s228] sm:$0xf]
      %v244 = vld [vmem:[%s228 + $0x4] sm:$0xf]
      %v245 = vld [vmem:[%s228 + $0x8] sm:$0xf]
      %v246 = vld [vmem:[%s228 + $0xc] sm:$0xf]
      %v247 = vld [vmem:[%s228 + $0x10] sm:$0xf]
      %v248 = vld [vmem:[%s228 + $0x14] sm:$0xf]
      %v249 = vld [vmem:[%s228 + $0x18] sm:$0xf]
      %v250 = vld [vmem:[%s228 + $0x1c] sm:$0xf]
      %v251 = vld [vmem:[%s228 + $0x20] sm:$0xf]
      %v252 = vld [vmem:[%s228 + $0x24] sm:$0xf]
      %v253 = vld [vmem:[%s228 + $0x28] sm:$0xf]
      %v254 = vld [vmem:[%s228 + $0x2c] sm:$0xf]
      %v255 = vld [vmem:[%s228 + $0x30] sm:$0xf]
      %v256 = vld [vmem:[%s228 + $0x34] sm:$0xf]
      %v257 = vld [vmem:[%s228 + $0x38] sm:$0xf]
      %v258 = vld [vmem:[%s228 + $0x3c] sm:$0xf]
      %v259 = vld [vmem:[%s228 + $0x40] sm:$0xf]
      %v260 = vld [vmem:[%s228 + $0x44] sm:$0xf]
      %v261 = vld [vmem:[%s228 + $0x48] sm:$0xf]
      %v262 = vld [vmem:[%s228 + $0x4c] sm:$0xf]
      %v263 = vld [vmem:[%s228 + $0x50] sm:$0xf]
      %v264 = vld [vmem:[%s228 + $0x54] sm:$0xf]
      %v265 = vld [vmem:[%s228 + $0x58] sm:$0xf]
      %v266 = vld [vmem:[%s228 + $0x5c] sm:$0xf]
      %v267 = vld [vmem:[%s228 + $0x60] sm:$0xf]
      %v268 = vld [vmem:[%s228 + $0x64] sm:$0xf]
      %v269 = vld [vmem:[%s228 + $0x68] sm:$0xf]
      %v270 = vld [vmem:[%s228 + $0x6c] sm:$0xf]
      %v271 = vld [vmem:[%s228 + $0x70] sm:$0xf]
      %v272 = vld [vmem:[%s228 + $0x74] sm:$0xf]
      %v273 = vld [vmem:[%s228 + $0x78] sm:$0xf]
      %v274 = vld [vmem:[%s228 + $0x7c] sm:$0xf]
      %v275 = vld [vmem:[%s228 + $0x80] sm:$0xf]
      %v276 = vld [vmem:[%s228 + $0x84] sm:$0xf]
      %v277 = vld [vmem:[%s228 + $0x88] sm:$0xf]
      %v278 = vld [vmem:[%s228 + $0x8c] sm:$0xf]
      %v279 = vld [vmem:[%s228 + $0x90] sm:$0xf]
      %v280 = vld [vmem:[%s228 + $0x94] sm:$0xf]
      %v281 = vld [vmem:[%s228 + $0x98] sm:$0xf]
      %v282 = vld [vmem:[%s228 + $0x9c] sm:$0xf]
      %v283 = vld [vmem:[%s228 + $0xa0] sm:$0xf]
      %v284 = vld [vmem:[%s228 + $0xa4] sm:$0xf]
      %v285 = vld [vmem:[%s228 + $0xa8] sm:$0xf]
      %v286 = vld [vmem:[%s228 + $0xac] sm:$0xf]
      %v287 = vld [vmem:[%s228 + $0xb0] sm:$0xf]
      %v288 = vld [vmem:[%s228 + $0xb4] sm:$0xf]
      %v289 = vld [vmem:[%s228 + $0xb8] sm:$0xf]
      %v290 = vld [vmem:[%s228 + $0xbc] sm:$0xf]
      %v291 = vld [vmem:[%s228 + $0xc0] sm:$0xf]
      %v292 = vld [vmem:[%s228 + $0xc4] sm:$0xf]
      %v293 = vld [vmem:[%s228 + $0xc8] sm:$0xf]
      %v294 = vld [vmem:[%s228 + $0xcc] sm:$0xf]
      %v295 = vld [vmem:[%s228 + $0xd0] sm:$0xf]
      %v296 = vld [vmem:[%s228 + $0xd4] sm:$0xf]
      %v297 = vld [vmem:[%s228 + $0xd8] sm:$0xf]
      %v298 = vld [vmem:[%s228 + $0xdc] sm:$0xf]
      %v299 = vld [vmem:[%s228 + $0xe0] sm:$0xf]
      %v300 = vld [vmem:[%s228 + $0xe4] sm:$0xf]
      %v301 = vld [vmem:[%s228 + $0xe8] sm:$0xf]
      %v302 = vld [vmem:[%s228 + $0xec] sm:$0xf]
      %v303 = vld [vmem:[%s228 + $0xf0] sm:$0xf]
      %v304 = vld [vmem:[%s228 + $0xf4] sm:$0xf]
      %v305 = vld [vmem:[%s228 + $0xf8] sm:$0xf]
      %v306 = vld [vmem:[%s228 + $0xfc] sm:$0xf]
      %v307 = vld [vmem:[%s1] sm:$0xf]
      %v308 = vld [vmem:[%s1 + $0x4] sm:$0xf]
      %v309 = vld [vmem:[%s1 + $0x8] sm:$0xf]
      %v310 = vld [vmem:[%s1 + $0xc] sm:$0xf]
      %v375 = vunpack.c.l.b16 %v243
      %v376 = vunpack.c.l.b16 %v244
      %v377 = vunpack.c.l.b16 %v245
      %v378 = vunpack.c.l.b16 %v246
      %v379 = vunpack.c.l.b16 %v247
      %v380 = vunpack.c.l.b16 %v248
      %v381 = vunpack.c.l.b16 %v249
      %v382 = vunpack.c.l.b16 %v250
      %v383 = vunpack.c.l.b16 %v251
      %v384 = vunpack.c.l.b16 %v252
      %v385 = vunpack.c.l.b16 %v253
      %v386 = vunpack.c.l.b16 %v254
      %v387 = vunpack.c.l.b16 %v255
      %v388 = vunpack.c.l.b16 %v256
      %v389 = vunpack.c.l.b16 %v257
      %v390 = vunpack.c.l.b16 %v258
      %v391 = vunpack.c.l.b16 %v259
      %v392 = vunpack.c.l.b16 %v260
      %v393 = vunpack.c.l.b16 %v261
      %v394 = vunpack.c.l.b16 %v262
      %v395 = vunpack.c.l.b16 %v263
      %v396 = vunpack.c.l.b16 %v264
      %v397 = vunpack.c.l.b16 %v265
      %v398 = vunpack.c.l.b16 %v266
      %v399 = vunpack.c.l.b16 %v267
      %v400 = vunpack.c.l.b16 %v268
      %v401 = vunpack.c.l.b16 %v269
      %v402 = vunpack.c.l.b16 %v270
      %v403 = vunpack.c.l.b16 %v271
      %v404 = vunpack.c.l.b16 %v272
      %v405 = vunpack.c.l.b16 %v273
      %v406 = vunpack.c.l.b16 %v274
      %v407 = vunpack.c.l.b16 %v275
      %v408 = vunpack.c.l.b16 %v276
      %v409 = vunpack.c.l.b16 %v277
      %v410 = vunpack.c.l.b16 %v278
      %v411 = vunpack.c.l.b16 %v279
      %v412 = vunpack.c.l.b16 %v280
      %v413 = vunpack.c.l.b16 %v281
      %v414 = vunpack.c.l.b16 %v282
      %v415 = vunpack.c.l.b16 %v283
      %v416 = vunpack.c.l.b16 %v284
      %v417 = vunpack.c.l.b16 %v285
      %v418 = vunpack.c.l.b16 %v286
      %v419 = vunpack.c.l.b16 %v287
      %v420 = vunpack.c.l.b16 %v288
      %v421 = vunpack.c.l.b16 %v289
      %v422 = vunpack.c.l.b16 %v290
      %v423 = vunpack.c.l.b16 %v291
      %v424 = vunpack.c.l.b16 %v292
      %v425 = vunpack.c.l.b16 %v293
      %v426 = vunpack.c.l.b16 %v294
      %v427 = vunpack.c.l.b16 %v295
      %v428 = vunpack.c.l.b16 %v296
      %v429 = vunpack.c.l.b16 %v297
      %v430 = vunpack.c.l.b16 %v298
      %v431 = vunpack.c.l.b16 %v299
      %v432 = vunpack.c.l.b16 %v300
      %v433 = vunpack.c.l.b16 %v301
      %v434 = vunpack.c.l.b16 %v302
      %v435 = vunpack.c.l.b16 %v303
      %v436 = vunpack.c.l.b16 %v304
      %v437 = vunpack.c.l.b16 %v305
      %v438 = vunpack.c.l.b16 %v306
      %v439 = vpack.c.b16 %v376, %v375
      %v440 = vpack.c.b16 %v378, %v377
      %v441 = vpack.c.b16 %v380, %v379
      %v442 = vpack.c.b16 %v382, %v381
      %v443 = vpack.c.b16 %v384, %v383
      %v444 = vpack.c.b16 %v386, %v385
      %v445 = vpack.c.b16 %v388, %v387
      %v446 = vpack.c.b16 %v390, %v389
      %v447 = vpack.c.b16 %v392, %v391
      %v448 = vpack.c.b16 %v394, %v393
      %v449 = vpack.c.b16 %v396, %v395
      %v450 = vpack.c.b16 %v398, %v397
      %v451 = vpack.c.b16 %v400, %v399
      %v452 = vpack.c.b16 %v402, %v401
      %v453 = vpack.c.b16 %v404, %v403
      %v454 = vpack.c.b16 %v406, %v405
      %v455 = vpack.c.b16 %v408, %v407
      %v456 = vpack.c.b16 %v410, %v409
      %v457 = vpack.c.b16 %v412, %v411
      %v458 = vpack.c.b16 %v414, %v413
      %v459 = vpack.c.b16 %v416, %v415
      %v460 = vpack.c.b16 %v418, %v417
      %v461 = vpack.c.b16 %v420, %v419
      %v462 = vpack.c.b16 %v422, %v421
      %v463 = vpack.c.b16 %v424, %v423
      %v464 = vpack.c.b16 %v426, %v425
      %v465 = vpack.c.b16 %v428, %v427
      %v466 = vpack.c.b16 %v430, %v429
      %v467 = vpack.c.b16 %v432, %v431
      %v468 = vpack.c.b16 %v434, %v433
      %v469 = vpack.c.b16 %v436, %v435
      %v470 = vpack.c.b16 %v438, %v437
      %v475 = vunpack.c.l.b16 %v307
      %v476 = vunpack.c.l.b16 %v308
      %v477 = vunpack.c.l.b16 %v309
      %v478 = vunpack.c.l.b16 %v310
      %v479 = vpack.c.b16 %v476, %v475
      %v480 = vpack.c.b16 %v478, %v477
      %vm483 = vcmask 261120
      %v485 = vsel %vm483, %v439, 0
      %v488 = vsel %vm483, %v440, 0
      %v491 = vsel %vm483, %v441, 0
      %v494 = vsel %vm483, %v442, 0
      %v497 = vsel %vm483, %v443, 0
      %v500 = vsel %vm483, %v444, 0
      %v503 = vsel %vm483, %v445, 0
      %v506 = vsel %vm483, %v446, 0
      %v509 = vsel %vm483, %v447, 0
      %v512 = vsel %vm483, %v448, 0
      %v515 = vsel %vm483, %v449, 0
      %v518 = vsel %vm483, %v450, 0
      %v521 = vsel %vm483, %v451, 0
      %v524 = vsel %vm483, %v452, 0
      %v527 = vsel %vm483, %v453, 0
      %v530 = vsel %vm483, %v454, 0
      %v533 = vsel %vm483, %v455, 0
      %v536 = vsel %vm483, %v456, 0
      %v539 = vsel %vm483, %v457, 0
      %v542 = vsel %vm483, %v458, 0
      %v545 = vsel %vm483, %v459, 0
      %v548 = vsel %vm483, %v460, 0
      %v551 = vsel %vm483, %v461, 0
      %v554 = vsel %vm483, %v462, 0
      %v557 = vsel %vm483, %v463, 0
      %v560 = vsel %vm483, %v464, 0
      %v563 = vsel %vm483, %v465, 0
      %v566 = vsel %vm483, %v466, 0
      %v569 = vsel %vm483, %v467, 0
      %v572 = vsel %vm483, %v468, 0
      %v575 = vsel %vm483, %v469, 0
      %v578 = vsel %vm483, %v470, 0
      %580 = vmatprep.subr.bf16.mxu0 0
      %581 = vmatpush1.bf16.msra.mxu0 %v479
      %582 = vmatprep.subr.bf16.mxu0 0
      %583 = vmatpush1.bf16.msra.mxu0 %v480
      %584 = vmatprep.subr.bf16.mxu0 0
      %585 = vmatpush1.bf16.msra.mxu0 0
      %586 = vmatprep.subr.bf16.mxu0 0
      %587 = vmatpush1.bf16.msra.mxu0 0
      %588 = vmatprep.subr.bf16.mxu0 0
      %589 = vmatpush1.bf16.msra.mxu0 0
      %590 = vmatprep.subr.bf16.mxu0 0
      %591 = vmatpush1.bf16.msra.mxu0 0
      %592 = vmatprep.subr.bf16.mxu0 0
      %593 = vmatpush1.bf16.msra.mxu0 0
      %594 = vmatprep.subr.bf16.mxu0 0
      %595 = vmatpush1.bf16.msra.mxu0 0
      %596 = vmatprep.subr.bf16.mxu0 0
      %597 = vmatpush1.bf16.msra.mxu0 0
      %598 = vmatprep.subr.bf16.mxu0 0
      %599 = vmatpush1.bf16.msra.mxu0 0
      %600 = vmatprep.subr.bf16.mxu0 0
      %601 = vmatpush1.bf16.msra.mxu0 0
      %602 = vmatprep.subr.bf16.mxu0 0
      %603 = vmatpush1.bf16.msra.mxu0 0
      %604 = vmatprep.subr.bf16.mxu0 0
      %605 = vmatpush1.bf16.msra.mxu0 0
      %606 = vmatprep.subr.bf16.mxu0 0
      %607 = vmatpush1.bf16.msra.mxu0 0
      %608 = vmatprep.subr.bf16.mxu0 0
      %609 = vmatpush1.bf16.msra.mxu0 0
      %610 = vmatprep.subr.bf16.mxu0 0
      %611 = vmatpush1.bf16.msra.mxu0 0
      %612 = vmatprep.mubr.bf16.mxu0 0
      %613 = vmatmul.mubr.bf16.gmra.mrb[0].mxu0 %v485
      %v614 = vpop.f32.mrb[0].mxu0
      %v615 = vadd.f32 0.0, %v614
      %v616 = vpop.f32.mrb[0].mxu0
      %v617 = vpop.f32.mrb[0].mxu0
      %v618 = vadd.f32 0.0, %v617
      %v619 = vpop.f32.mrb[0].mxu0
      %620 = vmatprep.mubr.bf16.mxu0 0
      %621 = vmatmul.mubr.bf16.gmra.mrb[0].mxu0 %v488
      %v622 = vpop.f32.mrb[0].mxu0
      %v623 = vadd.f32 0.0, %v622
      %v624 = vpop.f32.mrb[0].mxu0
      %v625 = vpop.f32.mrb[0].mxu0
      %v626 = vadd.f32 0.0, %v625
      %v627 = vpop.f32.mrb[0].mxu0
      %628 = vmatprep.mubr.bf16.mxu0 0
      %629 = vmatmul.mubr.bf16.gmra.mrb[0].mxu0 %v491
      %v630 = vpop.f32.mrb[0].mxu0
      %v631 = vadd.f32 0.0, %v630
      %v632 = vpop.f32.mrb[0].mxu0
      %v633 = vpop.f32.mrb[0].mxu0
      %v634 = vadd.f32 0.0, %v633
      %v635 = vpop.f32.mrb[0].mxu0
      %636 = vmatprep.mubr.bf16.mxu0 0
      %637 = vmatmul.mubr.bf16.gmra.mrb[0].mxu0 %v494
      %v638 = vpop.f32.mrb[0].mxu0
      %v639 = vadd.f32 0.0, %v638
      %v640 = vpop.f32.mrb[0].mxu0
      %v641 = vpop.f32.mrb[0].mxu0
      %v642 = vadd.f32 0.0, %v641
      %v643 = vpop.f32.mrb[0].mxu0
      %644 = vmatprep.mubr.bf16.mxu0 0
      %645 = vmatmul.mubr.bf16.gmra.mrb[0].mxu0 %v497
      %v646 = vpop.f32.mrb[0].mxu0
      %v647 = vadd.f32 0.0, %v646
      %v648 = vpop.f32.mrb[0].mxu0
      %v649 = vpop.f32.mrb[0].mxu0
      %v650 = vadd.f32 0.0, %v649
      %v651 = vpop.f32.mrb[0].mxu0
      %652 = vmatprep.mubr.bf16.mxu0 0
      %653 = vmatmul.mubr.bf16.gmra.mrb[0].mxu0 %v500
      %v654 = vpop.f32.mrb[0].mxu0
      %v655 = vadd.f32 0.0, %v654
      %v656 = vpop.f32.mrb[0].mxu0
      %v657 = vpop.f32.mrb[0].mxu0
      %v658 = vadd.f32 0.0, %v657
      %v659 = vpop.f32.mrb[0].mxu0
      %660 = vmatprep.mubr.bf16.mxu0 0
      %661 = vmatmul.mubr.bf16.gmra.mrb[0].mxu0 %v503
      %v662 = vpop.f32.mrb[0].mxu0
      %v663 = vadd.f32 0.0, %v662
      %v664 = vpop.f32.mrb[0].mxu0
      %v665 = vpop.f32.mrb[0].mxu0
      %v666 = vadd.f32 0.0, %v665
      %v667 = vpop.f32.mrb[0].mxu0
      %668 = vmatprep.mubr.bf16.mxu0 0
      %669 = vmatmul.mubr.bf16.gmra.mrb[0].mxu0 %v506
      %v670 = vpop.f32.mrb[0].mxu0
      %v671 = vadd.f32 0.0, %v670
      %v672 = vpop.f32.mrb[0].mxu0
      %v673 = vpop.f32.mrb[0].mxu0
      %v674 = vadd.f32 0.0, %v673
      %v675 = vpop.f32.mrb[0].mxu0
      %676 = vmatprep.mubr.bf16.mxu0 0
      %677 = vmatmul.mubr.bf16.gmra.mrb[0].mxu0 %v509
      %v678 = vpop.f32.mrb[0].mxu0
      %v679 = vadd.f32 0.0, %v678
      %v680 = vpop.f32.mrb[0].mxu0
      %v681 = vpop.f32.mrb[0].mxu0
      %v682 = vadd.f32 0.0, %v681
      %v683 = vpop.f32.mrb[0].mxu0
      %684 = vmatprep.mubr.bf16.mxu0 0
      %685 = vmatmul.mubr.bf16.gmra.mrb[0].mxu0 %v512
      %v686 = vpop.f32.mrb[0].mxu0
      %v687 = vadd.f32 0.0, %v686
      %v688 = vpop.f32.mrb[0].mxu0
      %v689 = vpop.f32.mrb[0].mxu0
      %v690 = vadd.f32 0.0, %v689
      %v691 = vpop.f32.mrb[0].mxu0
      %692 = vmatprep.mubr.bf16.mxu0 0
      %693 = vmatmul.mubr.bf16.gmra.mrb[0].mxu0 %v515
      %v694 = vpop.f32.mrb[0].mxu0
      %v695 = vadd.f32 0.0, %v694
      %v696 = vpop.f32.mrb[0].mxu0
      %v697 = vpop.f32.mrb[0].mxu0
      %v698 = vadd.f32 0.0, %v697
      %v699 = vpop.f32.mrb[0].mxu0
      %700 = vmatprep.mubr.bf16.mxu0 0
      %701 = vmatmul.mubr.bf16.gmra.mrb[0].mxu0 %v518
      %v702 = vpop.f32.mrb[0].mxu0
      %v703 = vadd.f32 0.0, %v702
      %v704 = vpop.f32.mrb[0].mxu0
      %v705 = vpop.f32.mrb[0].mxu0
      %v706 = vadd.f32 0.0, %v705
      %v707 = vpop.f32.mrb[0].mxu0
      %708 = vmatprep.mubr.bf16.mxu0 0
      %709 = vmatmul.mubr.bf16.gmra.mrb[0].mxu0 %v521
      %v710 = vpop.f32.mrb[0].mxu0
      %v711 = vadd.f32 0.0, %v710
      %v712 = vpop.f32.mrb[0].mxu0
      %v713 = vpop.f32.mrb[0].mxu0
      %v714 = vadd.f32 0.0, %v713
      %v715 = vpop.f32.mrb[0].mxu0
      %716 = vmatprep.mubr.bf16.mxu0 0
      %717 = vmatmul.mubr.bf16.gmra.mrb[0].mxu0 %v524
      %v718 = vpop.f32.mrb[0].mxu0
      %v719 = vadd.f32 0.0, %v718
      %v720 = vpop.f32.mrb[0].mxu0
      %v721 = vpop.f32.mrb[0].mxu0
      %v722 = vadd.f32 0.0, %v721
      %v723 = vpop.f32.mrb[0].mxu0
      %724 = vmatprep.mubr.bf16.mxu0 0
      %725 = vmatmul.mubr.bf16.gmra.mrb[0].mxu0 %v527
      %v726 = vpop.f32.mrb[0].mxu0
      %v727 = vadd.f32 0.0, %v726
      %v728 = vpop.f32.mrb[0].mxu0
      %v729 = vpop.f32.mrb[0].mxu0
      %v730 = vadd.f32 0.0, %v729
      %v731 = vpop.f32.mrb[0].mxu0
      %732 = vmatprep.mubr.bf16.mxu0 0
      %733 = vmatmul.mubr.bf16.gmra.mrb[0].mxu0 %v530
      %v734 = vpop.f32.mrb[0].mxu0
      %v735 = vadd.f32 0.0, %v734
      %v736 = vpop.f32.mrb[0].mxu0
      %v737 = vpop.f32.mrb[0].mxu0
      %v738 = vadd.f32 0.0, %v737
      %v739 = vpop.f32.mrb[0].mxu0
      %740 = vmatprep.mubr.bf16.mxu0 0
      %741 = vmatmul.mubr.bf16.gmra.mrb[0].mxu0 %v533
      %v742 = vpop.f32.mrb[0].mxu0
      %v743 = vadd.f32 0.0, %v742
      %v744 = vpop.f32.mrb[0].mxu0
      %v745 = vpop.f32.mrb[0].mxu0
      %v746 = vadd.f32 0.0, %v745
      %v747 = vpop.f32.mrb[0].mxu0
      %748 = vmatprep.mubr.bf16.mxu0 0
      %749 = vmatmul.mubr.bf16.gmra.mrb[0].mxu0 %v536
      %v750 = vpop.f32.mrb[0].mxu0
      %v751 = vadd.f32 0.0, %v750
      %v752 = vpop.f32.mrb[0].mxu0
      %v753 = vpop.f32.mrb[0].mxu0
      %v754 = vadd.f32 0.0, %v753
      %v755 = vpop.f32.mrb[0].mxu0
      %756 = vmatprep.mubr.bf16.mxu0 0
      %757 = vmatmul.mubr.bf16.gmra.mrb[0].mxu0 %v539
      %v758 = vpop.f32.mrb[0].mxu0
      %v759 = vadd.f32 0.0, %v758
      %v760 = vpop.f32.mrb[0].mxu0
      %v761 = vpop.f32.mrb[0].mxu0
      %v762 = vadd.f32 0.0, %v761
      %v763 = vpop.f32.mrb[0].mxu0
      %764 = vmatprep.mubr.bf16.mxu0 0
      %765 = vmatmul.mubr.bf16.gmra.mrb[0].mxu0 %v542
      %v766 = vpop.f32.mrb[0].mxu0
      %v767 = vadd.f32 0.0, %v766
      %v768 = vpop.f32.mrb[0].mxu0
      %v769 = vpop.f32.mrb[0].mxu0
      %v770 = vadd.f32 0.0, %v769
      %v771 = vpop.f32.mrb[0].mxu0
      %772 = vmatprep.mubr.bf16.mxu0 0
      %773 = vmatmul.mubr.bf16.gmra.mrb[0].mxu0 %v545
      %v774 = vpop.f32.mrb[0].mxu0
      %v775 = vadd.f32 0.0, %v774
      %v776 = vpop.f32.mrb[0].mxu0
      %v777 = vpop.f32.mrb[0].mxu0
      %v778 = vadd.f32 0.0, %v777
      %v779 = vpop.f32.mrb[0].mxu0
      %780 = vmatprep.mubr.bf16.mxu0 0
      %781 = vmatmul.mubr.bf16.gmra.mrb[0].mxu0 %v548
      %v782 = vpop.f32.mrb[0].mxu0
      %v783 = vadd.f32 0.0, %v782
      %v784 = vpop.f32.mrb[0].mxu0
      %v785 = vpop.f32.mrb[0].mxu0
      %v786 = vadd.f32 0.0, %v785
      %v787 = vpop.f32.mrb[0].mxu0
      %788 = vmatprep.mubr.bf16.mxu0 0
      %789 = vmatmul.mubr.bf16.gmra.mrb[0].mxu0 %v551
      %v790 = vpop.f32.mrb[0].mxu0
      %v791 = vadd.f32 0.0, %v790
      %v792 = vpop.f32.mrb[0].mxu0
      %v793 = vpop.f32.mrb[0].mxu0
      %v794 = vadd.f32 0.0, %v793
      %v795 = vpop.f32.mrb[0].mxu0
      %796 = vmatprep.mubr.bf16.mxu0 0
      %797 = vmatmul.mubr.bf16.gmra.mrb[0].mxu0 %v554
      %v798 = vpop.f32.mrb[0].mxu0
      %v799 = vadd.f32 0.0, %v798
      %v800 = vpop.f32.mrb[0].mxu0
      %v801 = vpop.f32.mrb[0].mxu0
      %v802 = vadd.f32 0.0, %v801
      %v803 = vpop.f32.mrb[0].mxu0
      %804 = vmatprep.mubr.bf16.mxu0 0
      %805 = vmatmul.mubr.bf16.gmra.mrb[0].mxu0 %v557
      %v806 = vpop.f32.mrb[0].mxu0
      %v807 = vadd.f32 0.0, %v806
      %v808 = vpop.f32.mrb[0].mxu0
      %v809 = vpop.f32.mrb[0].mxu0
      %v810 = vadd.f32 0.0, %v809
      %v811 = vpop.f32.mrb[0].mxu0
      %812 = vmatprep.mubr.bf16.mxu0 0
      %813 = vmatmul.mubr.bf16.gmra.mrb[0].mxu0 %v560
      %v814 = vpop.f32.mrb[0].mxu0
      %v815 = vadd.f32 0.0, %v814
      %v816 = vpop.f32.mrb[0].mxu0
      %v817 = vpop.f32.mrb[0].mxu0
      %v818 = vadd.f32 0.0, %v817
      %v819 = vpop.f32.mrb[0].mxu0
      %820 = vmatprep.mubr.bf16.mxu0 0
      %821 = vmatmul.mubr.bf16.gmra.mrb[0].mxu0 %v563
      %v822 = vpop.f32.mrb[0].mxu0
      %v823 = vadd.f32 0.0, %v822
      %v824 = vpop.f32.mrb[0].mxu0
      %v825 = vpop.f32.mrb[0].mxu0
      %v826 = vadd.f32 0.0, %v825
      %v827 = vpop.f32.mrb[0].mxu0
      %828 = vmatprep.mubr.bf16.mxu0 0
      %829 = vmatmul.mubr.bf16.gmra.mrb[0].mxu0 %v566
      %v830 = vpop.f32.mrb[0].mxu0
      %v831 = vadd.f32 0.0, %v830
      %v832 = vpop.f32.mrb[0].mxu0
      %v833 = vpop.f32.mrb[0].mxu0
      %v834 = vadd.f32 0.0, %v833
      %v835 = vpop.f32.mrb[0].mxu0
      %836 = vmatprep.mubr.bf16.mxu0 0
      %837 = vmatmul.mubr.bf16.gmra.mrb[0].mxu0 %v569
      %v838 = vpop.f32.mrb[0].mxu0
      %v839 = vadd.f32 0.0, %v838
      %v840 = vpop.f32.mrb[0].mxu0
      %v841 = vpop.f32.mrb[0].mxu0
      %v842 = vadd.f32 0.0, %v841
      %v843 = vpop.f32.mrb[0].mxu0
      %844 = vmatprep.mubr.bf16.mxu0 0
      %845 = vmatmul.mubr.bf16.gmra.mrb[0].mxu0 %v572
      %v846 = vpop.f32.mrb[0].mxu0
      %v847 = vadd.f32 0.0, %v846
      %v848 = vpop.f32.mrb[0].mxu0
      %v849 = vpop.f32.mrb[0].mxu0
      %v850 = vadd.f32 0.0, %v849
      %v851 = vpop.f32.mrb[0].mxu0
      %852 = vmatprep.mubr.bf16.mxu0 0
      %853 = vmatmul.mubr.bf16.gmra.mrb[0].mxu0 %v575
      %v854 = vpop.f32.mrb[0].mxu0
      %v855 = vadd.f32 0.0, %v854
      %v856 = vpop.f32.mrb[0].mxu0
      %v857 = vpop.f32.mrb[0].mxu0
      %v858 = vadd.f32 0.0, %v857
      %v859 = vpop.f32.mrb[0].mxu0
      %860 = vmatprep.mubr.bf16.mxu0 0
      %861 = vmatmul.mubr.bf16.gmra.mrb[0].mxu0 %v578
      %v862 = vpop.f32.mrb[0].mxu0
      %v863 = vadd.f32 0.0, %v862
      %v864 = vpop.f32.mrb[0].mxu0
      %v865 = vpop.f32.mrb[0].mxu0
      %v866 = vadd.f32 0.0, %v865
      %v867 = vpop.f32.mrb[0].mxu0
      %868 = vdwg.mxu0
      %vm869 = vcmask 130048
      %870 = vst.msk [vmem:[%s234] sm:$0xff] %vm869, %v615
      %871 = vst.msk [vmem:[%s234 + $0x8] sm:$0xff] %vm869, %v618
      %872 = vst.msk [vmem:[%s234 + $0x10] sm:$0xff] %vm869, %v623
      %873 = vst.msk [vmem:[%s234 + $0x18] sm:$0xff] %vm869, %v626
      %874 = vst.msk [vmem:[%s234 + $0x20] sm:$0xff] %vm869, %v631
      %875 = vst.msk [vmem:[%s234 + $0x28] sm:$0xff] %vm869, %v634
      %876 = vst.msk [vmem:[%s234 + $0x30] sm:$0xff] %vm869, %v639
      %877 = vst.msk [vmem:[%s234 + $0x38] sm:$0xff] %vm869, %v642
      %878 = vst.msk [vmem:[%s234 + $0x40] sm:$0xff] %vm869, %v647
      %879 = vst.msk [vmem:[%s234 + $0x48] sm:$0xff] %vm869, %v650
      %880 = vst.msk [vmem:[%s234 + $0x50] sm:$0xff] %vm869, %v655
      %881 = vst.msk [vmem:[%s234 + $0x58] sm:$0xff] %vm869, %v658
      %882 = vst.msk [vmem:[%s234 + $0x60] sm:$0xff] %vm869, %v663
      %883 = vst.msk [vmem:[%s234 + $0x68] sm:$0xff] %vm869, %v666
      %884 = vst.msk [vmem:[%s234 + $0x70] sm:$0xff] %vm869, %v671
      %885 = vst.msk [vmem:[%s234 + $0x78] sm:$0xff] %vm869, %v674
      %886 = vst.msk [vmem:[%s234 + $0x80] sm:$0xff] %vm869, %v679
      %887 = vst.msk [vmem:[%s234 + $0x88] sm:$0xff] %vm869, %v682
      %888 = vst.msk [vmem:[%s234 + $0x90] sm:$0xff] %vm869, %v687
      %889 = vst.msk [vmem:[%s234 + $0x98] sm:$0xff] %vm869, %v690
      %890 = vst.msk [vmem:[%s234 + $0xa0] sm:$0xff] %vm869, %v695
      %891 = vst.msk [vmem:[%s234 + $0xa8] sm:$0xff] %vm869, %v698
      %892 = vst.msk [vmem:[%s234 + $0xb0] sm:$0xff] %vm869, %v703
      %893 = vst.msk [vmem:[%s234 + $0xb8] sm:$0xff] %vm869, %v706
      %894 = vst.msk [vmem:[%s234 + $0xc0] sm:$0xff] %vm869, %v711
      %895 = vst.msk [vmem:[%s234 + $0xc8] sm:$0xff] %vm869, %v714
      %896 = vst.msk [vmem:[%s234 + $0xd0] sm:$0xff] %vm869, %v719
      %897 = vst.msk [vmem:[%s234 + $0xd8] sm:$0xff] %vm869, %v722
      %898 = vst.msk [vmem:[%s234 + $0xe0] sm:$0xff] %vm869, %v727
      %899 = vst.msk [vmem:[%s234 + $0xe8] sm:$0xff] %vm869, %v730
      %900 = vst.msk [vmem:[%s234 + $0xf0] sm:$0xff] %vm869, %v735
      %901 = vst.msk [vmem:[%s234 + $0xf8] sm:$0xff] %vm869, %v738
      %902 = vst.msk [vmem:[%s234 + $0x100] sm:$0xff] %vm869, %v743
      %903 = vst.msk [vmem:[%s234 + $0x108] sm:$0xff] %vm869, %v746
      %904 = vst.msk [vmem:[%s234 + $0x110] sm:$0xff] %vm869, %v751
      %905 = vst.msk [vmem:[%s234 + $0x118] sm:$0xff] %vm869, %v754
      %906 = vst.msk [vmem:[%s234 + $0x120] sm:$0xff] %vm869, %v759
      %907 = vst.msk [vmem:[%s234 + $0x128] sm:$0xff] %vm869, %v762
      %908 = vst.msk [vmem:[%s234 + $0x130] sm:$0xff] %vm869, %v767
      %909 = vst.msk [vmem:[%s234 + $0x138] sm:$0xff] %vm869, %v770
      %910 = vst.msk [vmem:[%s234 + $0x140] sm:$0xff] %vm869, %v775
      %911 = vst.msk [vmem:[%s234 + $0x148] sm:$0xff] %vm869, %v778
      %912 = vst.msk [vmem:[%s234 + $0x150] sm:$0xff] %vm869, %v783
      %913 = vst.msk [vmem:[%s234 + $0x158] sm:$0xff] %vm869, %v786
      %914 = vst.msk [vmem:[%s234 + $0x160] sm:$0xff] %vm869, %v791
      %915 = vst.msk [vmem:[%s234 + $0x168] sm:$0xff] %vm869, %v794
      %916 = vst.msk [vmem:[%s234 + $0x170] sm:$0xff] %vm869, %v799
      %917 = vst.msk [vmem:[%s234 + $0x178] sm:$0xff] %vm869, %v802
      %918 = vst.msk [vmem:[%s234 + $0x180] sm:$0xff] %vm869, %v807
      %919 = vst.msk [vmem:[%s234 + $0x188] sm:$0xff] %vm869, %v810
      %920 = vst.msk [vmem:[%s234 + $0x190] sm:$0xff] %vm869, %v815
      %921 = vst.msk [vmem:[%s234 + $0x198] sm:$0xff] %vm869, %v818
      %922 = vst.msk [vmem:[%s234 + $0x1a0] sm:$0xff] %vm869, %v823
      %923 = vst.msk [vmem:[%s234 + $0x1a8] sm:$0xff] %vm869, %v826
      %924 = vst.msk [vmem:[%s234 + $0x1b0] sm:$0xff] %vm869, %v831
      %925 = vst.msk [vmem:[%s234 + $0x1b8] sm:$0xff] %vm869, %v834
      %926 = vst.msk [vmem:[%s234 + $0x1c0] sm:$0xff] %vm869, %v839
      %927 = vst.msk [vmem:[%s234 + $0x1c8] sm:$0xff] %vm869, %v842
      %928 = vst.msk [vmem:[%s234 + $0x1d0] sm:$0xff] %vm869, %v847
      %929 = vst.msk [vmem:[%s234 + $0x1d8] sm:$0xff] %vm869, %v850
      %930 = vst.msk [vmem:[%s234 + $0x1e0] sm:$0xff] %vm869, %v855
      %931 = vst.msk [vmem:[%s234 + $0x1e8] sm:$0xff] %vm869, %v858
      %932 = vst.msk [vmem:[%s234 + $0x1f0] sm:$0xff] %vm869, %v863
      %933 = vst.msk [vmem:[%s234 + $0x1f8] sm:$0xff] %vm869, %v866
      %v934 = vld [vmem:[%s2] sm:$0x1]
      %v936 = vlaneseq
      %v937 = vshrl.u32 %v936, 7
      %v938 = vsub.s32 0, %v937
      %v939 = vrot.slane %v934, %v938
      %v941 = vmul.f32 %v615, %v939
      %v942 = vmul.f32 %v618, %v939
      %v943 = vmul.f32 %v623, %v939
      %v944 = vmul.f32 %v626, %v939
      %v945 = vmul.f32 %v631, %v939
      %v946 = vmul.f32 %v634, %v939
      %v947 = vmul.f32 %v639, %v939
      %v948 = vmul.f32 %v642, %v939
      %v949 = vmul.f32 %v647, %v939
      %v950 = vmul.f32 %v650, %v939
      %v951 = vmul.f32 %v655, %v939
      %v952 = vmul.f32 %v658, %v939
      %v953 = vmul.f32 %v663, %v939
      %v954 = vmul.f32 %v666, %v939
      %v955 = vmul.f32 %v671, %v939
      %v956 = vmul.f32 %v674, %v939
      %v957 = vmul.f32 %v679, %v939
      %v958 = vmul.f32 %v682, %v939
      %v959 = vmul.f32 %v687, %v939
      %v960 = vmul.f32 %v690, %v939
      %v961 = vmul.f32 %v695, %v939
      %v962 = vmul.f32 %v698, %v939
      %v963 = vmul.f32 %v703, %v939
      %v964 = vmul.f32 %v706, %v939
      %v965 = vmul.f32 %v711, %v939
      %v966 = vmul.f32 %v714, %v939
      %v967 = vmul.f32 %v719, %v939
      %v968 = vmul.f32 %v722, %v939
      %v969 = vmul.f32 %v727, %v939
      %v970 = vmul.f32 %v730, %v939
      %v971 = vmul.f32 %v735, %v939
      %v972 = vmul.f32 %v738, %v939
      %v973 = vmul.f32 %v743, %v939
      %v974 = vmul.f32 %v746, %v939
      %v975 = vmul.f32 %v751, %v939
      %v976 = vmul.f32 %v754, %v939
      %v977 = vmul.f32 %v759, %v939
      %v978 = vmul.f32 %v762, %v939
      %v979 = vmul.f32 %v767, %v939
      %v980 = vmul.f32 %v770, %v939
      %v981 = vmul.f32 %v775, %v939
      %v982 = vmul.f32 %v778, %v939
      %v983 = vmul.f32 %v783, %v939
      %v984 = vmul.f32 %v786, %v939
      %v985 = vmul.f32 %v791, %v939
      %v986 = vmul.f32 %v794, %v939
      %v987 = vmul.f32 %v799, %v939
      %v988 = vmul.f32 %v802, %v939
      %v989 = vmul.f32 %v807, %v939
      %v990 = vmul.f32 %v810, %v939
      %v991 = vmul.f32 %v815, %v939
      %v992 = vmul.f32 %v818, %v939
      %v993 = vmul.f32 %v823, %v939
      %v994 = vmul.f32 %v826, %v939
      %v995 = vmul.f32 %v831, %v939
      %v996 = vmul.f32 %v834, %v939
      %v997 = vmul.f32 %v839, %v939
      %v998 = vmul.f32 %v842, %v939
      %v999 = vmul.f32 %v847, %v939
      %v1000 = vmul.f32 %v850, %v939
      %v1001 = vmul.f32 %v855, %v939
      %v1002 = vmul.f32 %v858, %v939
      %v1003 = vmul.f32 %v863, %v939
      %v1004 = vmul.f32 %v866, %v939
      %v1005 = vld [vmem:[%s3] sm:$0x1]
      %v1007 = vlaneseq
      %v1008 = vshrl.u32 %v1007, 7
      %v1009 = vsub.s32 0, %v1008
      %v1010 = vrot.slane %v1005, %v1009
      %v1012 = vadd.f32 %v941, %v1010
      %v1013 = vadd.f32 %v942, %v1010
      %v1014 = vadd.f32 %v943, %v1010
      %v1015 = vadd.f32 %v944, %v1010
      %v1016 = vadd.f32 %v945, %v1010
      %v1017 = vadd.f32 %v946, %v1010
      %v1018 = vadd.f32 %v947, %v1010
      %v1019 = vadd.f32 %v948, %v1010
      %v1020 = vadd.f32 %v949, %v1010
      %v1021 = vadd.f32 %v950, %v1010
      %v1022 = vadd.f32 %v951, %v1010
      %v1023 = vadd.f32 %v952, %v1010
      %v1024 = vadd.f32 %v953, %v1010
      %v1025 = vadd.f32 %v954, %v1010
      %v1026 = vadd.f32 %v955, %v1010
      %v1027 = vadd.f32 %v956, %v1010
      %v1028 = vadd.f32 %v957, %v1010
      %v1029 = vadd.f32 %v958, %v1010
      %v1030 = vadd.f32 %v959, %v1010
      %v1031 = vadd.f32 %v960, %v1010
      %v1032 = vadd.f32 %v961, %v1010
      %v1033 = vadd.f32 %v962, %v1010
      %v1034 = vadd.f32 %v963, %v1010
      %v1035 = vadd.f32 %v964, %v1010
      %v1036 = vadd.f32 %v965, %v1010
      %v1037 = vadd.f32 %v966, %v1010
      %v1038 = vadd.f32 %v967, %v1010
      %v1039 = vadd.f32 %v968, %v1010
      %v1040 = vadd.f32 %v969, %v1010
      %v1041 = vadd.f32 %v970, %v1010
      %v1042 = vadd.f32 %v971, %v1010
      %v1043 = vadd.f32 %v972, %v1010
      %v1044 = vadd.f32 %v973, %v1010
      %v1045 = vadd.f32 %v974, %v1010
      %v1046 = vadd.f32 %v975, %v1010
      %v1047 = vadd.f32 %v976, %v1010
      %v1048 = vadd.f32 %v977, %v1010
      %v1049 = vadd.f32 %v978, %v1010
      %v1050 = vadd.f32 %v979, %v1010
      %v1051 = vadd.f32 %v980, %v1010
      %v1052 = vadd.f32 %v981, %v1010
      %v1053 = vadd.f32 %v982, %v1010
      %v1054 = vadd.f32 %v983, %v1010
      %v1055 = vadd.f32 %v984, %v1010
      %v1056 = vadd.f32 %v985, %v1010
      %v1057 = vadd.f32 %v986, %v1010
      %v1058 = vadd.f32 %v987, %v1010
      %v1059 = vadd.f32 %v988, %v1010
      %v1060 = vadd.f32 %v989, %v1010
      %v1061 = vadd.f32 %v990, %v1010
      %v1062 = vadd.f32 %v991, %v1010
      %v1063 = vadd.f32 %v992, %v1010
      %v1064 = vadd.f32 %v993, %v1010
      %v1065 = vadd.f32 %v994, %v1010
      %v1066 = vadd.f32 %v995, %v1010
      %v1067 = vadd.f32 %v996, %v1010
      %v1068 = vadd.f32 %v997, %v1010
      %v1069 = vadd.f32 %v998, %v1010
      %v1070 = vadd.f32 %v999, %v1010
      %v1071 = vadd.f32 %v1000, %v1010
      %v1072 = vadd.f32 %v1001, %v1010
      %v1073 = vadd.f32 %v1002, %v1010
      %v1074 = vadd.f32 %v1003, %v1010
      %v1075 = vadd.f32 %v1004, %v1010
      %v1076 = vmax.f32 %v1012, 0.0
      %v1077 = vmax.f32 %v1013, 0.0
      %v1078 = vmax.f32 %v1014, 0.0
      %v1079 = vmax.f32 %v1015, 0.0
      %v1080 = vmax.f32 %v1016, 0.0
      %v1081 = vmax.f32 %v1017, 0.0
      %v1082 = vmax.f32 %v1018, 0.0
      %v1083 = vmax.f32 %v1019, 0.0
      %v1084 = vmax.f32 %v1020, 0.0
      %v1085 = vmax.f32 %v1021, 0.0
      %v1086 = vmax.f32 %v1022, 0.0
      %v1087 = vmax.f32 %v1023, 0.0
      %v1088 = vmax.f32 %v1024, 0.0
      %v1089 = vmax.f32 %v1025, 0.0
      %v1090 = vmax.f32 %v1026, 0.0
      %v1091 = vmax.f32 %v1027, 0.0
      %v1092 = vmax.f32 %v1028, 0.0
      %v1093 = vmax.f32 %v1029, 0.0
      %v1094 = vmax.f32 %v1030, 0.0
      %v1095 = vmax.f32 %v1031, 0.0
      %v1096 = vmax.f32 %v1032, 0.0
      %v1097 = vmax.f32 %v1033, 0.0
      %v1098 = vmax.f32 %v1034, 0.0
      %v1099 = vmax.f32 %v1035, 0.0
      %v1100 = vmax.f32 %v1036, 0.0
      %v1101 = vmax.f32 %v1037, 0.0
      %v1102 = vmax.f32 %v1038, 0.0
      %v1103 = vmax.f32 %v1039, 0.0
      %v1104 = vmax.f32 %v1040, 0.0
      %v1105 = vmax.f32 %v1041, 0.0
      %v1106 = vmax.f32 %v1042, 0.0
      %v1107 = vmax.f32 %v1043, 0.0
      %v1108 = vmax.f32 %v1044, 0.0
      %v1109 = vmax.f32 %v1045, 0.0
      %v1110 = vmax.f32 %v1046, 0.0
      %v1111 = vmax.f32 %v1047, 0.0
      %v1112 = vmax.f32 %v1048, 0.0
      %v1113 = vmax.f32 %v1049, 0.0
      %v1114 = vmax.f32 %v1050, 0.0
      %v1115 = vmax.f32 %v1051, 0.0
      %v1116 = vmax.f32 %v1052, 0.0
      %v1117 = vmax.f32 %v1053, 0.0
      %v1118 = vmax.f32 %v1054, 0.0
      %v1119 = vmax.f32 %v1055, 0.0
      %v1120 = vmax.f32 %v1056, 0.0
      %v1121 = vmax.f32 %v1057, 0.0
      %v1122 = vmax.f32 %v1058, 0.0
      %v1123 = vmax.f32 %v1059, 0.0
      %v1124 = vmax.f32 %v1060, 0.0
      %v1125 = vmax.f32 %v1061, 0.0
      %v1126 = vmax.f32 %v1062, 0.0
      %v1127 = vmax.f32 %v1063, 0.0
      %v1128 = vmax.f32 %v1064, 0.0
      %v1129 = vmax.f32 %v1065, 0.0
      %v1130 = vmax.f32 %v1066, 0.0
      %v1131 = vmax.f32 %v1067, 0.0
      %v1132 = vmax.f32 %v1068, 0.0
      %v1133 = vmax.f32 %v1069, 0.0
      %v1134 = vmax.f32 %v1070, 0.0
      %v1135 = vmax.f32 %v1071, 0.0
      %v1136 = vmax.f32 %v1072, 0.0
      %v1137 = vmax.f32 %v1073, 0.0
      %v1138 = vmax.f32 %v1074, 0.0
      %v1139 = vmax.f32 %v1075, 0.0
      %1140 = vst.msk [vmem:[%s240] sm:$0xff] %vm869, %v1076
      %1141 = vst.msk [vmem:[%s240 + $0x8] sm:$0xff] %vm869, %v1077
      %1142 = vst.msk [vmem:[%s240 + $0x10] sm:$0xff] %vm869, %v1078
      %1143 = vst.msk [vmem:[%s240 + $0x18] sm:$0xff] %vm869, %v1079
      %1144 = vst.msk [vmem:[%s240 + $0x20] sm:$0xff] %vm869, %v1080
      %1145 = vst.msk [vmem:[%s240 + $0x28] sm:$0xff] %vm869, %v1081
      %1146 = vst.msk [vmem:[%s240 + $0x30] sm:$0xff] %vm869, %v1082
      %1147 = vst.msk [vmem:[%s240 + $0x38] sm:$0xff] %vm869, %v1083
      %1148 = vst.msk [vmem:[%s240 + $0x40] sm:$0xff] %vm869, %v1084
      %1149 = vst.msk [vmem:[%s240 + $0x48] sm:$0xff] %vm869, %v1085
      %1150 = vst.msk [vmem:[%s240 + $0x50] sm:$0xff] %vm869, %v1086
      %1151 = vst.msk [vmem:[%s240 + $0x58] sm:$0xff] %vm869, %v1087
      %1152 = vst.msk [vmem:[%s240 + $0x60] sm:$0xff] %vm869, %v1088
      %1153 = vst.msk [vmem:[%s240 + $0x68] sm:$0xff] %vm869, %v1089
      %1154 = vst.msk [vmem:[%s240 + $0x70] sm:$0xff] %vm869, %v1090
      %1155 = vst.msk [vmem:[%s240 + $0x78] sm:$0xff] %vm869, %v1091
      %1156 = vst.msk [vmem:[%s240 + $0x80] sm:$0xff] %vm869, %v1092
      %1157 = vst.msk [vmem:[%s240 + $0x88] sm:$0xff] %vm869, %v1093
      %1158 = vst.msk [vmem:[%s240 + $0x90] sm:$0xff] %vm869, %v1094
      %1159 = vst.msk [vmem:[%s240 + $0x98] sm:$0xff] %vm869, %v1095
      %1160 = vst.msk [vmem:[%s240 + $0xa0] sm:$0xff] %vm869, %v1096
      %1161 = vst.msk [vmem:[%s240 + $0xa8] sm:$0xff] %vm869, %v1097
      %1162 = vst.msk [vmem:[%s240 + $0xb0] sm:$0xff] %vm869, %v1098
      %1163 = vst.msk [vmem:[%s240 + $0xb8] sm:$0xff] %vm869, %v1099
      %1164 = vst.msk [vmem:[%s240 + $0xc0] sm:$0xff] %vm869, %v1100
      %1165 = vst.msk [vmem:[%s240 + $0xc8] sm:$0xff] %vm869, %v1101
      %1166 = vst.msk [vmem:[%s240 + $0xd0] sm:$0xff] %vm869, %v1102
      %1167 = vst.msk [vmem:[%s240 + $0xd8] sm:$0xff] %vm869, %v1103
      %1168 = vst.msk [vmem:[%s240 + $0xe0] sm:$0xff] %vm869, %v1104
      %1169 = vst.msk [vmem:[%s240 + $0xe8] sm:$0xff] %vm869, %v1105
      %1170 = vst.msk [vmem:[%s240 + $0xf0] sm:$0xff] %vm869, %v1106
      %1171 = vst.msk [vmem:[%s240 + $0xf8] sm:$0xff] %vm869, %v1107
      %1172 = vst.msk [vmem:[%s240 + $0x100] sm:$0xff] %vm869, %v1108
      %1173 = vst.msk [vmem:[%s240 + $0x108] sm:$0xff] %vm869, %v1109
      %1174 = vst.msk [vmem:[%s240 + $0x110] sm:$0xff] %vm869, %v1110
      %1175 = vst.msk [vmem:[%s240 + $0x118] sm:$0xff] %vm869, %v1111
      %1176 = vst.msk [vmem:[%s240 + $0x120] sm:$0xff] %vm869, %v1112
      %1177 = vst.msk [vmem:[%s240 + $0x128] sm:$0xff] %vm869, %v1113
      %1178 = vst.msk [vmem:[%s240 + $0x130] sm:$0xff] %vm869, %v1114
      %1179 = vst.msk [vmem:[%s240 + $0x138] sm:$0xff] %vm869, %v1115
      %1180 = vst.msk [vmem:[%s240 + $0x140] sm:$0xff] %vm869, %v1116
      %1181 = vst.msk [vmem:[%s240 + $0x148] sm:$0xff] %vm869, %v1117
      %1182 = vst.msk [vmem:[%s240 + $0x150] sm:$0xff] %vm869, %v1118
      %1183 = vst.msk [vmem:[%s240 + $0x158] sm:$0xff] %vm869, %v1119
      %1184 = vst.msk [vmem:[%s240 + $0x160] sm:$0xff] %vm869, %v1120
      %1185 = vst.msk [vmem:[%s240 + $0x168] sm:$0xff] %vm869, %v1121
      %1186 = vst.msk [vmem:[%s240 + $0x170] sm:$0xff] %vm869, %v1122
      %1187 = vst.msk [vmem:[%s240 + $0x178] sm:$0xff] %vm869, %v1123
      %1188 = vst.msk [vmem:[%s240 + $0x180] sm:$0xff] %vm869, %v1124
      %1189 = vst.msk [vmem:[%s240 + $0x188] sm:$0xff] %vm869, %v1125
      %1190 = vst.msk [vmem:[%s240 + $0x190] sm:$0xff] %vm869, %v1126
      %1191 = vst.msk [vmem:[%s240 + $0x198] sm:$0xff] %vm869, %v1127
      %1192 = vst.msk [vmem:[%s240 + $0x1a0] sm:$0xff] %vm869, %v1128
      %1193 = vst.msk [vmem:[%s240 + $0x1a8] sm:$0xff] %vm869, %v1129
      %1194 = vst.msk [vmem:[%s240 + $0x1b0] sm:$0xff] %vm869, %v1130
      %1195 = vst.msk [vmem:[%s240 + $0x1b8] sm:$0xff] %vm869, %v1131
      %1196 = vst.msk [vmem:[%s240 + $0x1c0] sm:$0xff] %vm869, %v1132
      %1197 = vst.msk [vmem:[%s240 + $0x1c8] sm:$0xff] %vm869, %v1133
      %1198 = vst.msk [vmem:[%s240 + $0x1d0] sm:$0xff] %vm869, %v1134
      %1199 = vst.msk [vmem:[%s240 + $0x1d8] sm:$0xff] %vm869, %v1135
      %1200 = vst.msk [vmem:[%s240 + $0x1e0] sm:$0xff] %vm869, %v1136
      %1201 = vst.msk [vmem:[%s240 + $0x1e8] sm:$0xff] %vm869, %v1137
      %1202 = vst.msk [vmem:[%s240 + $0x1f0] sm:$0xff] %vm869, %v1138
      %1203 = vst.msk [vmem:[%s240 + $0x1f8] sm:$0xff] %vm869, %v1139
      %s1204 = smul.u32 64, %s17
      %p1205 = scmp.lt.s32.totalorder %s1204, 255
      %s1206 = scalar_select %p1205, %s1204, 255
      %s1207 = smul.addr %s1206, 8
      %s1208 = scalar_lea.vmem %s4, %s1207
      %s1209 = smul.u32 64, %s17
      %p1210 = scmp.lt.s32.totalorder %s1209, 255
      %s1211 = scalar_select %p1210, %s1209, 255
      %s1212 = smul.addr %s1211, 8
      %s1213 = scalar_lea.vmem %s5, %s1212
      // Predicated region
      $region37: #{wide_resnet_forward.10} parent=35 // pred_check
        %p1214 = pneg %p124
      $region38: #{wide_resnet_forward.10} parent=35 // pred_check_branch
        %1216 = sbr.rel (%p1214) target = $region40
      $region39: #{wide_resnet_forward.10} parent=35 // pred_region
        %s1217 = smul.u32 64, %s17
      $region40: #{wide_resnet_forward.10} parent=35 // pred_fallthru
        _
      // Predicated region
      $region41: #{wide_resnet_forward.10} parent=35 // pred_check
        %p1218 = pneg %p150
      $region42: #{wide_resnet_forward.10} parent=35 // pred_check_branch
        %1220 = sbr.rel (%p1218) target = $region44
      $region43: #{wide_resnet_forward.10} parent=35 // pred_region
        %s1221 = smul.u32 64, %s17
      $region44: #{wide_resnet_forward.10} parent=35 // pred_fallthru
        _
    $region36: #{wide_resnet_forward.10} parent=5 // pred_fallthru
      _
    %p1222 = scmp.le.s32.totalorder 2, %s12
    // Predicated region
    $region45: #{wide_resnet_forward.10} parent=5 // pred_check
      %p1223 = pneg %p1222
    $region46: #{wide_resnet_forward.10} parent=5 // pred_check_branch
      %1225 = sbr.rel (%p1223) target = $region48
    $region47: #{wide_resnet_forward.10} parent=5 // pred_region
      %s1226 = ssub.s32 %s12, 2
      // Predicated region
      $region49: #{wide_resnet_forward.10} parent=47 // pred_check
        %p1227 = pneg %p130
      $region50: #{wide_resnet_forward.10} parent=47 // pred_check_branch
        %1229 = sbr.rel (%p1227) target = $region52
      $region51: #{wide_resnet_forward.10} parent=47 // pred_region
        %s1230 = smul.u32 64, %s18
        %p1231 = scmp.lt.s32.totalorder %s1230, 255
        %s1232 = scalar_select %p1231, %s1230, 255
        %s1233 = smul.addr %s1232, 8
        %s1234 = scalar_lea.vmem %s4, %s1233
      $region52: #{wide_resnet_forward.10} parent=47 // pred_fallthru
        _
      // Predicated region
      $region53: #{wide_resnet_forward.10} parent=47 // pred_check
        %p1235 = pneg %p156
      $region54: #{wide_resnet_forward.10} parent=47 // pred_check_branch
        %1237 = sbr.rel (%p1235) target = $region56
      $region55: #{wide_resnet_forward.10} parent=47 // pred_region
        %s1238 = smul.u32 64, %s18
        %p1239 = scmp.lt.s32.totalorder %s1238, 255
        %s1240 = scalar_select %p1239, %s1238, 255
        %s1241 = smul.addr %s1240, 8
        %s1242 = scalar_lea.vmem %s5, %s1241
      $region56: #{wide_resnet_forward.10} parent=47 // pred_fallthru
        _
    $region48: #{wide_resnet_forward.10} parent=5 // pred_fallthru
      _
  $region6: #{wide_resnet_forward.10} parent=0 // loop_footer
    %s16 = sadd.s32 1, %s12
  $region7: #{wide_resnet_forward.10} parent=0 // loop_footer_branch
    %11 = sbr.rel target = $region3
  $region8: #{wide_resnet_forward.10} parent=0 // loop_exit
    _

// kernel: wide_resnet_forward.11
$region0: #{wide_resnet_forward.11}
  #allocation0 [shape = 'u32[]', space=smem, size = 0x4, offset = 0x4, fixed_abs, tag = 'smem constant byte address 0x4 - core index']
  #allocation1 [shape = 'u32[144,128]{1,0:T(1,128)}', space=vmem, size = 0x12000, scoped, tag = 'internal scratch']
  %s0 = inlined_call_operand.vmem [shape: bf16[2048,144], index: 0, kind: input, shape index: {}]
  %s1 = inlined_call_operand.vmem [shape: bf16[144,16], index: 1, kind: input, shape index: {}]
  %s2 = inlined_call_operand.vmem [shape: f32[1,16], index: 2, kind: input, shape index: {}]
  %s3 = inlined_call_operand.vmem [shape: f32[1,16], index: 3, kind: input, shape index: {}]
  %s4 = inlined_call_operand.vmem [shape: f32[2048,16], index: 4, kind: output, shape index: {}]
  %s5 = sld [smem:[#allocation0]]
  $region49: #{wide_resnet_forward.11} parent=0
    _
  %s7 = ssub.s32 1, %s5
  %s8 = scalar_select 0, %s7, %s5
  loop: start=0, step=1, limit=6
  $region2: #{wide_resnet_forward.11} parent=0 // loop_pre_header
    _
  $region3: #{wide_resnet_forward.11} parent=0 // loop_header
    %s10 = sphi 0, %s14
    %p11 = scmp.ge.s32.totalorder %s10, 6
    %s20 = sphi 0, %s22
    %s23 = sphi 0, %s20
    %s24 = sphi 0, %s23
    %s40 = sphi 0, %s24
    %s44 = sphi 0, %s44
    %s46 = sphi 0, %s44
    %s47 = sphi 0, %s46
    %s61 = sphi 0, %s47
    %s65 = sphi 0, %s65
    %s67 = sphi 0, %s65
    %s68 = sphi 0, %s67
    %s82 = sphi 0, %s68
    %s86 = sphi 0, %s86
    %s88 = sphi 0, %s86
    %s89 = sphi 0, %s88
    %s103 = sphi 0, %s89
    %s109 = sphi 0, %s111
    %s112 = sphi 0, %s109
    %s113 = sphi 0, %s112
    %s129 = sphi 0, %s113
  $region4: #{wide_resnet_forward.11} parent=0 // loop_header_branch
    %13 = sbr.rel (%p11) target = $region8
  $region5: #{wide_resnet_forward.11} parent=0 // loop_body
    %s15 = ssub.s32 %s10, 1
    %s16 = ssub.s32 %s10, 2
    %s17 = sadd.s32 %s10, 1
    %s18 = ssub.s32 %s10, %s17
    %p19 = scmp.eq.s32.totalorder %s18, 0
    %s21 = sadd.s32 %s20, 1
    %s22 = scalar_select %p19, %s20, %s21
    %p25 = pneg %p19
    %p26 = scmp.eq.s32.totalorder %s10, 3
    %p27 = por %p25, %p26
    %p28 = scmp.ne.s32.totalorder %s20, %s23
    %p29 = scmp.eq.s32.totalorder %s10, 0
    %p30 = por %p28, %p29
    %p31 = scmp.ne.s32.totalorder %s20, %s23
    %p32 = scmp.eq.s32.totalorder %s15, 3
    %p33 = por %p31, %p32
    %p34 = scmp.ne.s32.totalorder %s23, %s24
    %p35 = scmp.eq.s32.totalorder %s15, 0
    %p36 = por %p34, %p35
    %p37 = scmp.ne.s32.totalorder %s23, %s24
    %p38 = scmp.eq.s32.totalorder %s16, 3
    %p39 = por %p37, %p38
    %p41 = scmp.ne.s32.totalorder %s24, %s40
    %p42 = scmp.eq.s32.totalorder %s16, 0
    %p43 = por %p41, %p42
    %s45 = sadd.s32 %s44, 1
    %p48 = scmp.eq.s32.totalorder %s10, 3
    %p49 = scmp.ne.s32.totalorder %s44, %s46
    %p50 = scmp.eq.s32.totalorder %s10, 0
    %p51 = por %p49, %p50
    %p52 = scmp.ne.s32.totalorder %s44, %s46
    %p53 = scmp.eq.s32.totalorder %s15, 3
    %p54 = por %p52, %p53
    %p55 = scmp.ne.s32.totalorder %s46, %s47
    %p56 = scmp.eq.s32.totalorder %s15, 0
    %p57 = por %p55, %p56
    %p58 = scmp.ne.s32.totalorder %s46, %s47
    %p59 = scmp.eq.s32.totalorder %s16, 3
    %p60 = por %p58, %p59
    %p62 = scmp.ne.s32.totalorder %s47, %s61
    %p63 = scmp.eq.s32.totalorder %s16, 0
    %p64 = por %p62, %p63
    %s66 = sadd.s32 %s65, 1
    %p69 = scmp.eq.s32.totalorder %s10, 3
    %p70 = scmp.ne.s32.totalorder %s65, %s67
    %p71 = scmp.eq.s32.totalorder %s10, 0
    %p72 = por %p70, %p71
    %p73 = scmp.ne.s32.totalorder %s65, %s67
    %p74 = scmp.eq.s32.totalorder %s15, 3
    %p75 = por %p73, %p74
    %p76 = scmp.ne.s32.totalorder %s67, %s68
    %p77 = scmp.eq.s32.totalorder %s15, 0
    %p78 = por %p76, %p77
    %p79 = scmp.ne.s32.totalorder %s67, %s68
    %p80 = scmp.eq.s32.totalorder %s16, 3
    %p81 = por %p79, %p80
    %p83 = scmp.ne.s32.totalorder %s68, %s82
    %p84 = scmp.eq.s32.totalorder %s16, 0
    %p85 = por %p83, %p84
    %s87 = sadd.s32 %s86, 1
    %p90 = scmp.eq.s32.totalorder %s10, 3
    %p91 = scmp.ne.s32.totalorder %s86, %s88
    %p92 = scmp.eq.s32.totalorder %s10, 0
    %p93 = por %p91, %p92
    %p94 = scmp.ne.s32.totalorder %s86, %s88
    %p95 = scmp.eq.s32.totalorder %s15, 3
    %p96 = por %p94, %p95
    %p97 = scmp.ne.s32.totalorder %s88, %s89
    %p98 = scmp.eq.s32.totalorder %s15, 0
    %p99 = por %p97, %p98
    %p100 = scmp.ne.s32.totalorder %s88, %s89
    %p101 = scmp.eq.s32.totalorder %s16, 3
    %p102 = por %p100, %p101
    %p104 = scmp.ne.s32.totalorder %s89, %s103
    %p105 = scmp.eq.s32.totalorder %s16, 0
    %p106 = por %p104, %p105
    %s107 = ssub.s32 %s10, %s17
    %p108 = scmp.eq.s32.totalorder %s107, 0
    %s110 = sadd.s32 %s109, 1
    %s111 = scalar_select %p108, %s109, %s110
    %p114 = pneg %p108
    %p115 = scmp.eq.s32.totalorder %s10, 3
    %p116 = por %p114, %p115
    %p117 = scmp.ne.s32.totalorder %s109, %s112
    %p118 = scmp.eq.s32.totalorder %s10, 0
    %p119 = por %p117, %p118
    %p120 = scmp.ne.s32.totalorder %s109, %s112
    %p121 = scmp.eq.s32.totalorder %s15, 3
    %p122 = por %p120, %p121
    %p123 = scmp.ne.s32.totalorder %s112, %s113
    %p124 = scmp.eq.s32.totalorder %s15, 0
    %p125 = por %p123, %p124
    %p126 = scmp.ne.s32.totalorder %s112, %s113
    %p127 = scmp.eq.s32.totalorder %s16, 3
    %p128 = por %p126, %p127
    %p130 = scmp.ne.s32.totalorder %s113, %s129
    %p131 = scmp.eq.s32.totalorder %s16, 0
    %p132 = por %p130, %p131
    %p133 = scmp.le.s32.totalorder 1, %s10
    %p134 = scmp.lt.s32.totalorder %s10, 5
    %p135 = pnand %p133, %p134
    %p136 = pneg %p135
    // Predicated region
    $region9: #{wide_resnet_forward.11} parent=5 // pred_check
      _
    $region10: #{wide_resnet_forward.11} parent=5 // pred_check_branch
      %138 = sbr.rel (%p135) target = $region12
    $region11: #{wide_resnet_forward.11} parent=5 // pred_region
      %s139 = ssub.s32 %s10, 1
      // Predicated region
      $region13: #{wide_resnet_forward.11} parent=11 // pred_check
        %p140 = pneg %p57
      $region14: #{wide_resnet_forward.11} parent=11 // pred_check_branch
        %142 = sbr.rel (%p140) target = $region16
      $region15: #{wide_resnet_forward.11} parent=11 // pred_region
        _
      $region16: #{wide_resnet_forward.11} parent=11 // pred_fallthru
        _
      // Predicated region
      $region17: #{wide_resnet_forward.11} parent=11 // pred_check
        %p143 = pneg %p78
      $region18: #{wide_resnet_forward.11} parent=11 // pred_check_branch
        %145 = sbr.rel (%p143) target = $region20
      $region19: #{wide_resnet_forward.11} parent=11 // pred_region
        _
      $region20: #{wide_resnet_forward.11} parent=11 // pred_fallthru
        _
      // Predicated region
      $region21: #{wide_resnet_forward.11} parent=11 // pred_check
        %p146 = pneg %p99
      $region22: #{wide_resnet_forward.11} parent=11 // pred_check_branch
        %148 = sbr.rel (%p146) target = $region24
      $region23: #{wide_resnet_forward.11} parent=11 // pred_region
        _
      $region24: #{wide_resnet_forward.11} parent=11 // pred_fallthru
        _
    $region12: #{wide_resnet_forward.11} parent=5 // pred_fallthru
      _
    %p149 = scmp.lt.s32.totalorder %s10, 4
    // Predicated region
    $region25: #{wide_resnet_forward.11} parent=5 // pred_check
      %p150 = pneg %p149
    $region26: #{wide_resnet_forward.11} parent=5 // pred_check_branch
      %152 = sbr.rel (%p150) target = $region28
    $region27: #{wide_resnet_forward.11} parent=5 // pred_region
      // Predicated region
      $region29: #{wide_resnet_forward.11} parent=27 // pred_check
        %p153 = pneg %p30
      $region30: #{wide_resnet_forward.11} parent=27 // pred_check_branch
        %155 = sbr.rel (%p153) target = $region32
      $region31: #{wide_resnet_forward.11} parent=27 // pred_region
        %s156 = smul.u32 64, %s10
        %p157 = scmp.lt.s32.totalorder %s156, 255
        %s158 = scalar_select %p157, %s156, 255
        %s159 = smul.addr %s158, 2
        %s160 = smul.addr %s159, 4
        %s161 = scalar_lea.vmem %s0, %s160
        %s162 = smul.u32 64, %s10
      $region32: #{wide_resnet_forward.11} parent=27 // pred_fallthru
        _
    $region28: #{wide_resnet_forward.11} parent=5 // pred_fallthru
      _
    %p163 = scmp.le.s32.totalorder 1, %s10
    %p164 = scmp.lt.s32.totalorder %s10, 5
    %p165 = pnand %p163, %p164
    %p166 = pneg %p165
    // Predicated region
    $region33: #{wide_resnet_forward.11} parent=5 // pred_check
      _
    $region34: #{wide_resnet_forward.11} parent=5 // pred_check_branch
      %168 = sbr.rel (%p165) target = $region36
    $region35: #{wide_resnet_forward.11} parent=5 // pred_region
      %s169 = ssub.s32 %s10, 1
      %s170 = smul.u32 64, %s15
      %p171 = scmp.lt.s32.totalorder %s170, 255
      %s172 = scalar_select %p171, %s170, 255
      %s173 = smul.addr %s172, 2
      %s174 = smul.addr %s173, 4
      %s175 = scalar_lea.vmem %s0, %s174
      %p176 = pneg %p36
      %p177 = pneg %p33
      %p178 = pneg %p57
      %p179 = pneg %p54
      %p180 = pneg %p78
      %p181 = pneg %p75
      %p182 = pneg %p99
      %p183 = pneg %p96
      %p184 = pneg %p125
      %p185 = pneg %p122
      %s186 = smul.u32 64, %s15
      %p187 = scmp.lt.s32.totalorder %s186, 255
      %s188 = scalar_select %p187, %s186, 255
      %s189 = smul.addr %s188, 8
      %s190 = scalar_lea.vmem %s4, %s189
      %s191 = smul.u32 64, %s15
      %p192 = scmp.lt.s32.totalorder %s191, 255
      %s193 = scalar_select %p192, %s191, 255
      %s194 = smul.addr %s193, 2
      %s195 = smul.addr %s194, 4
      %s196 = scalar_lea.vmem %s0, %s195
      %s197 = smul.u32 64, %s15
      %s198 = smul.u32 64, %s15
      %p199 = scmp.lt.s32.totalorder %s198, 255
      %s200 = scalar_select %p199, %s198, 255
      %s201 = smul.addr %s200, 8
      %s202 = scalar_lea.vmem %s4, %s201
      %s203 = smul.u32 64, %s15
      %v205 = vld [vmem:[%s196] sm:$0xff]
      %v206 = vld [vmem:[%s196 + $0x8] sm:$0xff]
      %v207 = vld [vmem:[%s196 + $0x10] sm:$0xff]
      %v208 = vld [vmem:[%s196 + $0x18] sm:$0xff]
      %v209 = vld [vmem:[%s196 + $0x20] sm:$0xff]
      %v210 = vld [vmem:[%s196 + $0x28] sm:$0xff]
      %v211 = vld [vmem:[%s196 + $0x30] sm:$0xff]
      %v212 = vld [vmem:[%s196 + $0x38] sm:$0xff]
      %v213 = vld [vmem:[%s196 + $0x40] sm:$0xff]
      %v214 = vld [vmem:[%s196 + $0x48] sm:$0xff]
      %v215 = vld [vmem:[%s196 + $0x50] sm:$0xff]
      %v216 = vld [vmem:[%s196 + $0x58] sm:$0xff]
      %v217 = vld [vmem:[%s196 + $0x60] sm:$0xff]
      %v218 = vld [vmem:[%s196 + $0x68] sm:$0xff]
      %v219 = vld [vmem:[%s196 + $0x70] sm:$0xff]
      %v220 = vld [vmem:[%s196 + $0x78] sm:$0xff]
      %v221 = vld [vmem:[%s196 + $0x80] sm:$0xff]
      %v222 = vld [vmem:[%s196 + $0x88] sm:$0xff]
      %v223 = vld [vmem:[%s196 + $0x90] sm:$0xff]
      %v224 = vld [vmem:[%s196 + $0x98] sm:$0xff]
      %v225 = vld [vmem:[%s196 + $0xa0] sm:$0xff]
      %v226 = vld [vmem:[%s196 + $0xa8] sm:$0xff]
      %v227 = vld [vmem:[%s196 + $0xb0] sm:$0xff]
      %v228 = vld [vmem:[%s196 + $0xb8] sm:$0xff]
      %v229 = vld [vmem:[%s196 + $0xc0] sm:$0xff]
      %v230 = vld [vmem:[%s196 + $0xc8] sm:$0xff]
      %v231 = vld [vmem:[%s196 + $0xd0] sm:$0xff]
      %v232 = vld [vmem:[%s196 + $0xd8] sm:$0xff]
      %v233 = vld [vmem:[%s196 + $0xe0] sm:$0xff]
      %v234 = vld [vmem:[%s196 + $0xe8] sm:$0xff]
      %v235 = vld [vmem:[%s196 + $0xf0] sm:$0xff]
      %v236 = vld [vmem:[%s196 + $0xf8] sm:$0xff]
      %v237 = vld [vmem:[%s196 + $0x100] sm:$0xff]
      %v238 = vld [vmem:[%s196 + $0x108] sm:$0xff]
      %v239 = vld [vmem:[%s196 + $0x110] sm:$0xff]
      %v240 = vld [vmem:[%s196 + $0x118] sm:$0xff]
      %v241 = vld [vmem:[%s196 + $0x120] sm:$0xff]
      %v242 = vld [vmem:[%s196 + $0x128] sm:$0xff]
      %v243 = vld [vmem:[%s196 + $0x130] sm:$0xff]
      %v244 = vld [vmem:[%s196 + $0x138] sm:$0xff]
      %v245 = vld [vmem:[%s196 + $0x140] sm:$0xff]
      %v246 = vld [vmem:[%s196 + $0x148] sm:$0xff]
      %v247 = vld [vmem:[%s196 + $0x150] sm:$0xff]
      %v248 = vld [vmem:[%s196 + $0x158] sm:$0xff]
      %v249 = vld [vmem:[%s196 + $0x160] sm:$0xff]
      %v250 = vld [vmem:[%s196 + $0x168] sm:$0xff]
      %v251 = vld [vmem:[%s196 + $0x170] sm:$0xff]
      %v252 = vld [vmem:[%s196 + $0x178] sm:$0xff]
      %v253 = vld [vmem:[%s196 + $0x180] sm:$0xff]
      %v254 = vld [vmem:[%s196 + $0x188] sm:$0xff]
      %v255 = vld [vmem:[%s196 + $0x190] sm:$0xff]
      %v256 = vld [vmem:[%s196 + $0x198] sm:$0xff]
      %v257 = vld [vmem:[%s196 + $0x1a0] sm:$0xff]
      %v258 = vld [vmem:[%s196 + $0x1a8] sm:$0xff]
      %v259 = vld [vmem:[%s196 + $0x1b0] sm:$0xff]
      %v260 = vld [vmem:[%s196 + $0x1b8] sm:$0xff]
      %v261 = vld [vmem:[%s196 + $0x1c0] sm:$0xff]
      %v262 = vld [vmem:[%s196 + $0x1c8] sm:$0xff]
      %v263 = vld [vmem:[%s196 + $0x1d0] sm:$0xff]
      %v264 = vld [vmem:[%s196 + $0x1d8] sm:$0xff]
      %v265 = vld [vmem:[%s196 + $0x1e0] sm:$0xff]
      %v266 = vld [vmem:[%s196 + $0x1e8] sm:$0xff]
      %v267 = vld [vmem:[%s196 + $0x1f0] sm:$0xff]
      %v268 = vld [vmem:[%s196 + $0x1f8] sm:$0xff]
      %v269 = vld [vmem:[%s1] sm:$0xf]
      %v270 = vld [vmem:[%s1 + $0x4] sm:$0xf]
      %v271 = vld [vmem:[%s1 + $0x8] sm:$0xf]
      %v272 = vld [vmem:[%s1 + $0xc] sm:$0xf]
      %v273 = vld [vmem:[%s1 + $0x10] sm:$0xf]
      %v274 = vld [vmem:[%s1 + $0x14] sm:$0xf]
      %v275 = vld [vmem:[%s1 + $0x18] sm:$0xf]
      %v276 = vld [vmem:[%s1 + $0x1c] sm:$0xf]
      %v277 = vld [vmem:[%s1 + $0x20] sm:$0xf]
      %v278 = vld [vmem:[%s1 + $0x24] sm:$0xf]
      %v279 = vld [vmem:[%s1 + $0x28] sm:$0xf]
      %v280 = vld [vmem:[%s1 + $0x2c] sm:$0xf]
      %v281 = vld [vmem:[%s1 + $0x30] sm:$0xf]
      %v282 = vld [vmem:[%s1 + $0x34] sm:$0xf]
      %v283 = vld [vmem:[%s1 + $0x38] sm:$0xf]
      %v284 = vld [vmem:[%s1 + $0x3c] sm:$0xf]
      %v285 = vld [vmem:[%s1 + $0x40] sm:$0xf]
      %v286 = vld [vmem:[%s1 + $0x44] sm:$0xf]
      %v351 = vunpack.c.l.b16 %v205
      %v352 = vunpack.c.h.b16 %v205
      %v353 = vunpack.c.l.b16 %v206
      %v354 = vunpack.c.h.b16 %v206
      %v355 = vunpack.c.l.b16 %v207
      %v356 = vunpack.c.h.b16 %v207
      %v357 = vunpack.c.l.b16 %v208
      %v358 = vunpack.c.h.b16 %v208
      %v359 = vunpack.c.l.b16 %v209
      %v360 = vunpack.c.h.b16 %v209
      %v361 = vunpack.c.l.b16 %v210
      %v362 = vunpack.c.h.b16 %v210
      %v363 = vunpack.c.l.b16 %v211
      %v364 = vunpack.c.h.b16 %v211
      %v365 = vunpack.c.l.b16 %v212
      %v366 = vunpack.c.h.b16 %v212
      %v367 = vunpack.c.l.b16 %v213
      %v368 = vunpack.c.h.b16 %v213
      %v369 = vunpack.c.l.b16 %v214
      %v370 = vunpack.c.h.b16 %v214
      %v371 = vunpack.c.l.b16 %v215
      %v372 = vunpack.c.h.b16 %v215
      %v373 = vunpack.c.l.b16 %v216
      %v374 = vunpack.c.h.b16 %v216
      %v375 = vunpack.c.l.b16 %v217
      %v376 = vunpack.c.h.b16 %v217
      %v377 = vunpack.c.l.b16 %v218
      %v378 = vunpack.c.h.b16 %v218
      %v379 = vunpack.c.l.b16 %v219
      %v380 = vunpack.c.h.b16 %v219
      %v381 = vunpack.c.l.b16 %v220
      %v382 = vunpack.c.h.b16 %v220
      %v383 = vunpack.c.l.b16 %v221
      %v384 = vunpack.c.h.b16 %v221
      %v385 = vunpack.c.l.b16 %v222
      %v386 = vunpack.c.h.b16 %v222
      %v387 = vunpack.c.l.b16 %v223
      %v388 = vunpack.c.h.b16 %v223
      %v389 = vunpack.c.l.b16 %v224
      %v390 = vunpack.c.h.b16 %v224
      %v391 = vunpack.c.l.b16 %v225
      %v392 = vunpack.c.h.b16 %v225
      %v393 = vunpack.c.l.b16 %v226
      %v394 = vunpack.c.h.b16 %v226
      %v395 = vunpack.c.l.b16 %v227
      %v396 = vunpack.c.h.b16 %v227
      %v397 = vunpack.c.l.b16 %v228
      %v398 = vunpack.c.h.b16 %v228
      %v399 = vunpack.c.l.b16 %v229
      %v400 = vunpack.c.h.b16 %v229
      %v401 = vunpack.c.l.b16 %v230
      %v402 = vunpack.c.h.b16 %v230
      %v403 = vunpack.c.l.b16 %v231
      %v404 = vunpack.c.h.b16 %v231
      %v405 = vunpack.c.l.b16 %v232
      %v406 = vunpack.c.h.b16 %v232
      %v407 = vunpack.c.l.b16 %v233
      %v408 = vunpack.c.h.b16 %v233
      %v409 = vunpack.c.l.b16 %v234
      %v410 = vunpack.c.h.b16 %v234
      %v411 = vunpack.c.l.b16 %v235
      %v412 = vunpack.c.h.b16 %v235
      %v413 = vunpack.c.l.b16 %v236
      %v414 = vunpack.c.h.b16 %v236
      %v415 = vunpack.c.l.b16 %v237
      %v416 = vunpack.c.h.b16 %v237
      %v417 = vunpack.c.l.b16 %v238
      %v418 = vunpack.c.h.b16 %v238
      %v419 = vunpack.c.l.b16 %v239
      %v420 = vunpack.c.h.b16 %v239
      %v421 = vunpack.c.l.b16 %v240
      %v422 = vunpack.c.h.b16 %v240
      %v423 = vunpack.c.l.b16 %v241
      %v424 = vunpack.c.h.b16 %v241
      %v425 = vunpack.c.l.b16 %v242
      %v426 = vunpack.c.h.b16 %v242
      %v427 = vunpack.c.l.b16 %v243
      %v428 = vunpack.c.h.b16 %v243
      %v429 = vunpack.c.l.b16 %v244
      %v430 = vunpack.c.h.b16 %v244
      %v431 = vunpack.c.l.b16 %v245
      %v432 = vunpack.c.h.b16 %v245
      %v433 = vunpack.c.l.b16 %v246
      %v434 = vunpack.c.h.b16 %v246
      %v435 = vunpack.c.l.b16 %v247
      %v436 = vunpack.c.h.b16 %v247
      %v437 = vunpack.c.l.b16 %v248
      %v438 = vunpack.c.h.b16 %v248
      %v439 = vunpack.c.l.b16 %v249
      %v440 = vunpack.c.h.b16 %v249
      %v441 = vunpack.c.l.b16 %v250
      %v442 = vunpack.c.h.b16 %v250
      %v443 = vunpack.c.l.b16 %v251
      %v444 = vunpack.c.h.b16 %v251
      %v445 = vunpack.c.l.b16 %v252
      %v446 = vunpack.c.h.b16 %v252
      %v447 = vunpack.c.l.b16 %v253
      %v448 = vunpack.c.h.b16 %v253
      %v449 = vunpack.c.l.b16 %v254
      %v450 = vunpack.c.h.b16 %v254
      %v451 = vunpack.c.l.b16 %v255
      %v452 = vunpack.c.h.b16 %v255
      %v453 = vunpack.c.l.b16 %v256
      %v454 = vunpack.c.h.b16 %v256
      %v455 = vunpack.c.l.b16 %v257
      %v456 = vunpack.c.h.b16 %v257
      %v457 = vunpack.c.l.b16 %v258
      %v458 = vunpack.c.h.b16 %v258
      %v459 = vunpack.c.l.b16 %v259
      %v460 = vunpack.c.h.b16 %v259
      %v461 = vunpack.c.l.b16 %v260
      %v462 = vunpack.c.h.b16 %v260
      %v463 = vunpack.c.l.b16 %v261
      %v464 = vunpack.c.h.b16 %v261
      %v465 = vunpack.c.l.b16 %v262
      %v466 = vunpack.c.h.b16 %v262
      %v467 = vunpack.c.l.b16 %v263
      %v468 = vunpack.c.h.b16 %v263
      %v469 = vunpack.c.l.b16 %v264
      %v470 = vunpack.c.h.b16 %v264
      %v471 = vunpack.c.l.b16 %v265
      %v472 = vunpack.c.h.b16 %v265
      %v473 = vunpack.c.l.b16 %v266
      %v474 = vunpack.c.h.b16 %v266
      %v475 = vunpack.c.l.b16 %v267
      %v476 = vunpack.c.h.b16 %v267
      %v477 = vunpack.c.l.b16 %v268
      %v478 = vunpack.c.h.b16 %v268
      %v479 = vpack.c.b16 %v353, %v351
      %v480 = vpack.c.b16 %v354, %v352
      %v481 = vpack.c.b16 %v357, %v355
      %v482 = vpack.c.b16 %v358, %v356
      %v483 = vpack.c.b16 %v361, %v359
      %v484 = vpack.c.b16 %v362, %v360
      %v485 = vpack.c.b16 %v365, %v363
      %v486 = vpack.c.b16 %v366, %v364
      %v487 = vpack.c.b16 %v369, %v367
      %v488 = vpack.c.b16 %v370, %v368
      %v489 = vpack.c.b16 %v373, %v371
      %v490 = vpack.c.b16 %v374, %v372
      %v491 = vpack.c.b16 %v377, %v375
      %v492 = vpack.c.b16 %v378, %v376
      %v493 = vpack.c.b16 %v381, %v379
      %v494 = vpack.c.b16 %v382, %v380
      %v495 = vpack.c.b16 %v385, %v383
      %v496 = vpack.c.b16 %v386, %v384
      %v497 = vpack.c.b16 %v389, %v387
      %v498 = vpack.c.b16 %v390, %v388
      %v499 = vpack.c.b16 %v393, %v391
      %v500 = vpack.c.b16 %v394, %v392
      %v501 = vpack.c.b16 %v397, %v395
      %v502 = vpack.c.b16 %v398, %v396
      %v503 = vpack.c.b16 %v401, %v399
      %v504 = vpack.c.b16 %v402, %v400
      %v505 = vpack.c.b16 %v405, %v403
      %v506 = vpack.c.b16 %v406, %v404
      %v507 = vpack.c.b16 %v409, %v407
      %v508 = vpack.c.b16 %v410, %v408
      %v509 = vpack.c.b16 %v413, %v411
      %v510 = vpack.c.b16 %v414, %v412
      %v511 = vpack.c.b16 %v417, %v415
      %v512 = vpack.c.b16 %v418, %v416
      %v513 = vpack.c.b16 %v421, %v419
      %v514 = vpack.c.b16 %v422, %v420
      %v515 = vpack.c.b16 %v425, %v423
      %v516 = vpack.c.b16 %v426, %v424
      %v517 = vpack.c.b16 %v429, %v427
      %v518 = vpack.c.b16 %v430, %v428
      %v519 = vpack.c.b16 %v433, %v431
      %v520 = vpack.c.b16 %v434, %v432
      %v521 = vpack.c.b16 %v437, %v435
      %v522 = vpack.c.b16 %v438, %v436
      %v523 = vpack.c.b16 %v441, %v439
      %v524 = vpack.c.b16 %v442, %v440
      %v525 = vpack.c.b16 %v445, %v443
      %v526 = vpack.c.b16 %v446, %v444
      %v527 = vpack.c.b16 %v449, %v447
      %v528 = vpack.c.b16 %v450, %v448
      %v529 = vpack.c.b16 %v453, %v451
      %v530 = vpack.c.b16 %v454, %v452
      %v531 = vpack.c.b16 %v457, %v455
      %v532 = vpack.c.b16 %v458, %v456
      %v533 = vpack.c.b16 %v461, %v459
      %v534 = vpack.c.b16 %v462, %v460
      %v535 = vpack.c.b16 %v465, %v463
      %v536 = vpack.c.b16 %v466, %v464
      %v537 = vpack.c.b16 %v469, %v467
      %v538 = vpack.c.b16 %v470, %v468
      %v539 = vpack.c.b16 %v473, %v471
      %v540 = vpack.c.b16 %v474, %v472
      %v541 = vpack.c.b16 %v477, %v475
      %v542 = vpack.c.b16 %v478, %v476
      %v593 = vunpack.c.l.b16 %v269
      %v594 = vunpack.c.l.b16 %v270
      %v595 = vunpack.c.l.b16 %v271
      %v596 = vunpack.c.l.b16 %v272
      %v597 = vunpack.c.l.b16 %v273
      %v598 = vunpack.c.l.b16 %v274
      %v599 = vunpack.c.l.b16 %v275
      %v600 = vunpack.c.l.b16 %v276
      %v601 = vunpack.c.l.b16 %v277
      %v602 = vunpack.c.l.b16 %v278
      %v603 = vunpack.c.l.b16 %v279
      %v604 = vunpack.c.l.b16 %v280
      %v605 = vunpack.c.l.b16 %v281
      %v606 = vunpack.c.l.b16 %v282
      %v607 = vunpack.c.l.b16 %v283
      %v608 = vunpack.c.l.b16 %v284
      %v609 = vunpack.c.l.b16 %v285
      %v610 = vunpack.c.l.b16 %v286
      %v611 = vpack.c.b16 %v594, %v593
      %v612 = vpack.c.b16 %v596, %v595
      %v613 = vpack.c.b16 %v598, %v597
      %v614 = vpack.c.b16 %v600, %v599
      %v615 = vpack.c.b16 %v602, %v601
      %v616 = vpack.c.b16 %v604, %v603
      %v617 = vpack.c.b16 %v606, %v605
      %v618 = vpack.c.b16 %v608, %v607
      %v619 = vpack.c.b16 %v610, %v609
      %vm629 = vcmask 130048
      %v631 = vsel %vm629, %v480, 0
      %v634 = vsel %vm629, %v482, 0
      %v637 = vsel %vm629, %v484, 0
      %v640 = vsel %vm629, %v486, 0
      %v643 = vsel %vm629, %v488, 0
      %v646 = vsel %vm629, %v490, 0
      %v649 = vsel %vm629, %v492, 0
      %v652 = vsel %vm629, %v494, 0
      %v655 = vsel %vm629, %v496, 0
      %v658 = vsel %vm629, %v498, 0
      %v661 = vsel %vm629, %v500, 0
      %v664 = vsel %vm629, %v502, 0
      %v667 = vsel %vm629, %v504, 0
      %v670 = vsel %vm629, %v506, 0
      %v673 = vsel %vm629, %v508, 0
      %v676 = vsel %vm629, %v510, 0
      %v679 = vsel %vm629, %v512, 0
      %v682 = vsel %vm629, %v514, 0
      %v685 = vsel %vm629, %v516, 0
      %v688 = vsel %vm629, %v518, 0
      %v691 = vsel %vm629, %v520, 0
      %v694 = vsel %vm629, %v522, 0
      %v697 = vsel %vm629, %v524, 0
      %v700 = vsel %vm629, %v526, 0
      %v703 = vsel %vm629, %v528, 0
      %v706 = vsel %vm629, %v530, 0
      %v709 = vsel %vm629, %v532, 0
      %v712 = vsel %vm629, %v534, 0
      %v715 = vsel %vm629, %v536, 0
      %v718 = vsel %vm629, %v538, 0
      %v721 = vsel %vm629, %v540, 0
      %v724 = vsel %vm629, %v542, 0
      %726 = vmatprep.subr.bf16.mxu0 0
      %727 = vmatpush1.bf16.msra.mxu0 %v611
      %728 = vmatprep.subr.bf16.mxu0 0
      %729 = vmatpush1.bf16.msra.mxu0 %v612
      %730 = vmatprep.subr.bf16.mxu0 0
      %731 = vmatpush1.bf16.msra.mxu0 %v613
      %732 = vmatprep.subr.bf16.mxu0 0
      %733 = vmatpush1.bf16.msra.mxu0 %v614
      %734 = vmatprep.subr.bf16.mxu0 0
      %735 = vmatpush1.bf16.msra.mxu0 %v615
      %736 = vmatprep.subr.bf16.mxu0 0
      %737 = vmatpush1.bf16.msra.mxu0 %v616
      %738 = vmatprep.subr.bf16.mxu0 0
      %739 = vmatpush1.bf16.msra.mxu0 %v617
      %740 = vmatprep.subr.bf16.mxu0 0
      %741 = vmatpush1.bf16.msra.mxu0 %v618
      %742 = vmatprep.subr.bf16.mxu0 0
      %743 = vmatpush1.bf16.msra.mxu0 %v619
      %744 = vmatprep.subr.bf16.mxu0 0
      %745 = vmatpush1.bf16.msra.mxu0 0
      %746 = vmatprep.subr.bf16.mxu0 0
      %747 = vmatpush1.bf16.msra.mxu0 0
      %748 = vmatprep.subr.bf16.mxu0 0
      %749 = vmatpush1.bf16.msra.mxu0 0
      %750 = vmatprep.subr.bf16.mxu0 0
      %751 = vmatpush1.bf16.msra.mxu0 0
      %752 = vmatprep.subr.bf16.mxu0 0
      %753 = vmatpush1.bf16.msra.mxu0 0
      %754 = vmatprep.subr.bf16.mxu0 0
      %755 = vmatpush1.bf16.msra.mxu0 0
      %756 = vmatprep.subr.bf16.mxu0 0
      %757 = vmatpush1.bf16.msra.mxu0 0
      %758 = vmatprep.mubr.bf16.mxu0 %v631
      %759 = vmatmul.mubr.bf16.gmra.mrb[0].mxu0 %v479
      %v760 = vpop.f32.mrb[0].mxu0
      %v761 = vadd.f32 0.0, %v760
      %v762 = vpop.f32.mrb[0].mxu0
      %v763 = vpop.f32.mrb[0].mxu0
      %v764 = vadd.f32 0.0, %v763
      %v765 = vpop.f32.mrb[0].mxu0
      %766 = vmatprep.mubr.bf16.mxu0 %v634
      %767 = vmatmul.mubr.bf16.gmra.mrb[0].mxu0 %v481
      %v768 = vpop.f32.mrb[0].mxu0
      %v769 = vadd.f32 0.0, %v768
      %v770 = vpop.f32.mrb[0].mxu0
      %v771 = vpop.f32.mrb[0].mxu0
      %v772 = vadd.f32 0.0, %v771
      %v773 = vpop.f32.mrb[0].mxu0
      %774 = vmatprep.mubr.bf16.mxu0 %v637
      %775 = vmatmul.mubr.bf16.gmra.mrb[0].mxu0 %v483
      %v776 = vpop.f32.mrb[0].mxu0
      %v777 = vadd.f32 0.0, %v776
      %v778 = vpop.f32.mrb[0].mxu0
      %v779 = vpop.f32.mrb[0].mxu0
      %v780 = vadd.f32 0.0, %v779
      %v781 = vpop.f32.mrb[0].mxu0
      %782 = vmatprep.mubr.bf16.mxu0 %v640
      %783 = vmatmul.mubr.bf16.gmra.mrb[0].mxu0 %v485
      %v784 = vpop.f32.mrb[0].mxu0
      %v785 = vadd.f32 0.0, %v784
      %v786 = vpop.f32.mrb[0].mxu0
      %v787 = vpop.f32.mrb[0].mxu0
      %v788 = vadd.f32 0.0, %v787
      %v789 = vpop.f32.mrb[0].mxu0
      %790 = vmatprep.mubr.bf16.mxu0 %v643
      %791 = vmatmul.mubr.bf16.gmra.mrb[0].mxu0 %v487
      %v792 = vpop.f32.mrb[0].mxu0
      %v793 = vadd.f32 0.0, %v792
      %v794 = vpop.f32.mrb[0].mxu0
      %v795 = vpop.f32.mrb[0].mxu0
      %v796 = vadd.f32 0.0, %v795
      %v797 = vpop.f32.mrb[0].mxu0
      %798 = vmatprep.mubr.bf16.mxu0 %v646
      %799 = vmatmul.mubr.bf16.gmra.mrb[0].mxu0 %v489
      %v800 = vpop.f32.mrb[0].mxu0
      %v801 = vadd.f32 0.0, %v800
      %v802 = vpop.f32.mrb[0].mxu0
      %v803 = vpop.f32.mrb[0].mxu0
      %v804 = vadd.f32 0.0, %v803
      %v805 = vpop.f32.mrb[0].mxu0
      %806 = vmatprep.mubr.bf16.mxu0 %v649
      %807 = vmatmul.mubr.bf16.gmra.mrb[0].mxu0 %v491
      %v808 = vpop.f32.mrb[0].mxu0
      %v809 = vadd.f32 0.0, %v808
      %v810 = vpop.f32.mrb[0].mxu0
      %v811 = vpop.f32.mrb[0].mxu0
      %v812 = vadd.f32 0.0, %v811
      %v813 = vpop.f32.mrb[0].mxu0
      %814 = vmatprep.mubr.bf16.mxu0 %v652
      %815 = vmatmul.mubr.bf16.gmra.mrb[0].mxu0 %v493
      %v816 = vpop.f32.mrb[0].mxu0
      %v817 = vadd.f32 0.0, %v816
      %v818 = vpop.f32.mrb[0].mxu0
      %v819 = vpop.f32.mrb[0].mxu0
      %v820 = vadd.f32 0.0, %v819
      %v821 = vpop.f32.mrb[0].mxu0
      %822 = vmatprep.mubr.bf16.mxu0 %v655
      %823 = vmatmul.mubr.bf16.gmra.mrb[0].mxu0 %v495
      %v824 = vpop.f32.mrb[0].mxu0
      %v825 = vadd.f32 0.0, %v824
      %v826 = vpop.f32.mrb[0].mxu0
      %v827 = vpop.f32.mrb[0].mxu0
      %v828 = vadd.f32 0.0, %v827
      %v829 = vpop.f32.mrb[0].mxu0
      %830 = vmatprep.mubr.bf16.mxu0 %v658
      %831 = vmatmul.mubr.bf16.gmra.mrb[0].mxu0 %v497
      %v832 = vpop.f32.mrb[0].mxu0
      %v833 = vadd.f32 0.0, %v832
      %v834 = vpop.f32.mrb[0].mxu0
      %v835 = vpop.f32.mrb[0].mxu0
      %v836 = vadd.f32 0.0, %v835
      %v837 = vpop.f32.mrb[0].mxu0
      %838 = vmatprep.mubr.bf16.mxu0 %v661
      %839 = vmatmul.mubr.bf16.gmra.mrb[0].mxu0 %v499
      %v840 = vpop.f32.mrb[0].mxu0
      %v841 = vadd.f32 0.0, %v840
      %v842 = vpop.f32.mrb[0].mxu0
      %v843 = vpop.f32.mrb[0].mxu0
      %v844 = vadd.f32 0.0, %v843
      %v845 = vpop.f32.mrb[0].mxu0
      %846 = vmatprep.mubr.bf16.mxu0 %v664
      %847 = vmatmul.mubr.bf16.gmra.mrb[0].mxu0 %v501
      %v848 = vpop.f32.mrb[0].mxu0
      %v849 = vadd.f32 0.0, %v848
      %v850 = vpop.f32.mrb[0].mxu0
      %v851 = vpop.f32.mrb[0].mxu0
      %v852 = vadd.f32 0.0, %v851
      %v853 = vpop.f32.mrb[0].mxu0
      %854 = vmatprep.mubr.bf16.mxu0 %v667
      %855 = vmatmul.mubr.bf16.gmra.mrb[0].mxu0 %v503
      %v856 = vpop.f32.mrb[0].mxu0
      %v857 = vadd.f32 0.0, %v856
      %v858 = vpop.f32.mrb[0].mxu0
      %v859 = vpop.f32.mrb[0].mxu0
      %v860 = vadd.f32 0.0, %v859
      %v861 = vpop.f32.mrb[0].mxu0
      %862 = vmatprep.mubr.bf16.mxu0 %v670
      %863 = vmatmul.mubr.bf16.gmra.mrb[0].mxu0 %v505
      %v864 = vpop.f32.mrb[0].mxu0
      %v865 = vadd.f32 0.0, %v864
      %v866 = vpop.f32.mrb[0].mxu0
      %v867 = vpop.f32.mrb[0].mxu0
      %v868 = vadd.f32 0.0, %v867
      %v869 = vpop.f32.mrb[0].mxu0
      %870 = vmatprep.mubr.bf16.mxu0 %v673
      %871 = vmatmul.mubr.bf16.gmra.mrb[0].mxu0 %v507
      %v872 = vpop.f32.mrb[0].mxu0
      %v873 = vadd.f32 0.0, %v872
      %v874 = vpop.f32.mrb[0].mxu0
      %v875 = vpop.f32.mrb[0].mxu0
      %v876 = vadd.f32 0.0, %v875
      %v877 = vpop.f32.mrb[0].mxu0
      %878 = vmatprep.mubr.bf16.mxu0 %v676
      %879 = vmatmul.mubr.bf16.gmra.mrb[0].mxu0 %v509
      %v880 = vpop.f32.mrb[0].mxu0
      %v881 = vadd.f32 0.0, %v880
      %v882 = vpop.f32.mrb[0].mxu0
      %v883 = vpop.f32.mrb[0].mxu0
      %v884 = vadd.f32 0.0, %v883
      %v885 = vpop.f32.mrb[0].mxu0
      %886 = vmatprep.mubr.bf16.mxu0 %v679
      %887 = vmatmul.mubr.bf16.gmra.mrb[0].mxu0 %v511
      %v888 = vpop.f32.mrb[0].mxu0
      %v889 = vadd.f32 0.0, %v888
      %v890 = vpop.f32.mrb[0].mxu0
      %v891 = vpop.f32.mrb[0].mxu0
      %v892 = vadd.f32 0.0, %v891
      %v893 = vpop.f32.mrb[0].mxu0
      %894 = vmatprep.mubr.bf16.mxu0 %v682
      %895 = vmatmul.mubr.bf16.gmra.mrb[0].mxu0 %v513
      %v896 = vpop.f32.mrb[0].mxu0
      %v897 = vadd.f32 0.0, %v896
      %v898 = vpop.f32.mrb[0].mxu0
      %v899 = vpop.f32.mrb[0].mxu0
      %v900 = vadd.f32 0.0, %v899
      %v901 = vpop.f32.mrb[0].mxu0
      %902 = vmatprep.mubr.bf16.mxu0 %v685
      %903 = vmatmul.mubr.bf16.gmra.mrb[0].mxu0 %v515
      %v904 = vpop.f32.mrb[0].mxu0
      %v905 = vadd.f32 0.0, %v904
      %v906 = vpop.f32.mrb[0].mxu0
      %v907 = vpop.f32.mrb[0].mxu0
      %v908 = vadd.f32 0.0, %v907
      %v909 = vpop.f32.mrb[0].mxu0
      %910 = vmatprep.mubr.bf16.mxu0 %v688
      %911 = vmatmul.mubr.bf16.gmra.mrb[0].mxu0 %v517
      %v912 = vpop.f32.mrb[0].mxu0
      %v913 = vadd.f32 0.0, %v912
      %v914 = vpop.f32.mrb[0].mxu0
      %v915 = vpop.f32.mrb[0].mxu0
      %v916 = vadd.f32 0.0, %v915
      %v917 = vpop.f32.mrb[0].mxu0
      %918 = vmatprep.mubr.bf16.mxu0 %v691
      %919 = vmatmul.mubr.bf16.gmra.mrb[0].mxu0 %v519
      %v920 = vpop.f32.mrb[0].mxu0
      %v921 = vadd.f32 0.0, %v920
      %v922 = vpop.f32.mrb[0].mxu0
      %v923 = vpop.f32.mrb[0].mxu0
      %v924 = vadd.f32 0.0, %v923
      %v925 = vpop.f32.mrb[0].mxu0
      %926 = vmatprep.mubr.bf16.mxu0 %v694
      %927 = vmatmul.mubr.bf16.gmra.mrb[0].mxu0 %v521
      %v928 = vpop.f32.mrb[0].mxu0
      %v929 = vadd.f32 0.0, %v928
      %v930 = vpop.f32.mrb[0].mxu0
      %v931 = vpop.f32.mrb[0].mxu0
      %v932 = vadd.f32 0.0, %v931
      %v933 = vpop.f32.mrb[0].mxu0
      %934 = vmatprep.mubr.bf16.mxu0 %v697
      %935 = vmatmul.mubr.bf16.gmra.mrb[0].mxu0 %v523
      %v936 = vpop.f32.mrb[0].mxu0
      %v937 = vadd.f32 0.0, %v936
      %v938 = vpop.f32.mrb[0].mxu0
      %v939 = vpop.f32.mrb[0].mxu0
      %v940 = vadd.f32 0.0, %v939
      %v941 = vpop.f32.mrb[0].mxu0
      %942 = vmatprep.mubr.bf16.mxu0 %v700
      %943 = vmatmul.mubr.bf16.gmra.mrb[0].mxu0 %v525
      %v944 = vpop.f32.mrb[0].mxu0
      %v945 = vadd.f32 0.0, %v944
      %v946 = vpop.f32.mrb[0].mxu0
      %v947 = vpop.f32.mrb[0].mxu0
      %v948 = vadd.f32 0.0, %v947
      %v949 = vpop.f32.mrb[0].mxu0
      %950 = vmatprep.mubr.bf16.mxu0 %v703
      %951 = vmatmul.mubr.bf16.gmra.mrb[0].mxu0 %v527
      %v952 = vpop.f32.mrb[0].mxu0
      %v953 = vadd.f32 0.0, %v952
      %v954 = vpop.f32.mrb[0].mxu0
      %v955 = vpop.f32.mrb[0].mxu0
      %v956 = vadd.f32 0.0, %v955
      %v957 = vpop.f32.mrb[0].mxu0
      %958 = vmatprep.mubr.bf16.mxu0 %v706
      %959 = vmatmul.mubr.bf16.gmra.mrb[0].mxu0 %v529
      %v960 = vpop.f32.mrb[0].mxu0
      %v961 = vadd.f32 0.0, %v960
      %v962 = vpop.f32.mrb[0].mxu0
      %v963 = vpop.f32.mrb[0].mxu0
      %v964 = vadd.f32 0.0, %v963
      %v965 = vpop.f32.mrb[0].mxu0
      %966 = vmatprep.mubr.bf16.mxu0 %v709
      %967 = vmatmul.mubr.bf16.gmra.mrb[0].mxu0 %v531
      %v968 = vpop.f32.mrb[0].mxu0
      %v969 = vadd.f32 0.0, %v968
      %v970 = vpop.f32.mrb[0].mxu0
      %v971 = vpop.f32.mrb[0].mxu0
      %v972 = vadd.f32 0.0, %v971
      %v973 = vpop.f32.mrb[0].mxu0
      %974 = vmatprep.mubr.bf16.mxu0 %v712
      %975 = vmatmul.mubr.bf16.gmra.mrb[0].mxu0 %v533
      %v976 = vpop.f32.mrb[0].mxu0
      %v977 = vadd.f32 0.0, %v976
      %v978 = vpop.f32.mrb[0].mxu0
      %v979 = vpop.f32.mrb[0].mxu0
      %v980 = vadd.f32 0.0, %v979
      %v981 = vpop.f32.mrb[0].mxu0
      %982 = vmatprep.mubr.bf16.mxu0 %v715
      %983 = vmatmul.mubr.bf16.gmra.mrb[0].mxu0 %v535
      %v984 = vpop.f32.mrb[0].mxu0
      %v985 = vadd.f32 0.0, %v984
      %v986 = vpop.f32.mrb[0].mxu0
      %v987 = vpop.f32.mrb[0].mxu0
      %v988 = vadd.f32 0.0, %v987
      %v989 = vpop.f32.mrb[0].mxu0
      %990 = vmatprep.mubr.bf16.mxu0 %v718
      %991 = vmatmul.mubr.bf16.gmra.mrb[0].mxu0 %v537
      %v992 = vpop.f32.mrb[0].mxu0
      %v993 = vadd.f32 0.0, %v992
      %v994 = vpop.f32.mrb[0].mxu0
      %v995 = vpop.f32.mrb[0].mxu0
      %v996 = vadd.f32 0.0, %v995
      %v997 = vpop.f32.mrb[0].mxu0
      %998 = vmatprep.mubr.bf16.mxu0 %v721
      %999 = vmatmul.mubr.bf16.gmra.mrb[0].mxu0 %v539
      %v1000 = vpop.f32.mrb[0].mxu0
      %v1001 = vadd.f32 0.0, %v1000
      %v1002 = vpop.f32.mrb[0].mxu0
      %v1003 = vpop.f32.mrb[0].mxu0
      %v1004 = vadd.f32 0.0, %v1003
      %v1005 = vpop.f32.mrb[0].mxu0
      %1006 = vmatprep.mubr.bf16.mxu0 %v724
      %1007 = vmatmul.mubr.bf16.gmra.mrb[0].mxu0 %v541
      %v1008 = vpop.f32.mrb[0].mxu0
      %v1009 = vadd.f32 0.0, %v1008
      %v1010 = vpop.f32.mrb[0].mxu0
      %v1011 = vpop.f32.mrb[0].mxu0
      %v1012 = vadd.f32 0.0, %v1011
      %v1013 = vpop.f32.mrb[0].mxu0
      %1014 = vdwg.mxu0
      %v1015 = vld [vmem:[%s2] sm:$0x1]
      %v1017 = vlaneseq
      %v1018 = vshrl.u32 %v1017, 7
      %v1019 = vsub.s32 0, %v1018
      %v1020 = vrot.slane %v1015, %v1019
      %v1022 = vmul.f32 %v761, %v1020
      %v1023 = vmul.f32 %v764, %v1020
      %v1024 = vmul.f32 %v769, %v1020
      %v1025 = vmul.f32 %v772, %v1020
      %v1026 = vmul.f32 %v777, %v1020
      %v1027 = vmul.f32 %v780, %v1020
      %v1028 = vmul.f32 %v785, %v1020
      %v1029 = vmul.f32 %v788, %v1020
      %v1030 = vmul.f32 %v793, %v1020
      %v1031 = vmul.f32 %v796, %v1020
      %v1032 = vmul.f32 %v801, %v1020
      %v1033 = vmul.f32 %v804, %v1020
      %v1034 = vmul.f32 %v809, %v1020
      %v1035 = vmul.f32 %v812, %v1020
      %v1036 = vmul.f32 %v817, %v1020
      %v1037 = vmul.f32 %v820, %v1020
      %v1038 = vmul.f32 %v825, %v1020
      %v1039 = vmul.f32 %v828, %v1020
      %v1040 = vmul.f32 %v833, %v1020
      %v1041 = vmul.f32 %v836, %v1020
      %v1042 = vmul.f32 %v841, %v1020
      %v1043 = vmul.f32 %v844, %v1020
      %v1044 = vmul.f32 %v849, %v1020
      %v1045 = vmul.f32 %v852, %v1020
      %v1046 = vmul.f32 %v857, %v1020
      %v1047 = vmul.f32 %v860, %v1020
      %v1048 = vmul.f32 %v865, %v1020
      %v1049 = vmul.f32 %v868, %v1020
      %v1050 = vmul.f32 %v873, %v1020
      %v1051 = vmul.f32 %v876, %v1020
      %v1052 = vmul.f32 %v881, %v1020
      %v1053 = vmul.f32 %v884, %v1020
      %v1054 = vmul.f32 %v889, %v1020
      %v1055 = vmul.f32 %v892, %v1020
      %v1056 = vmul.f32 %v897, %v1020
      %v1057 = vmul.f32 %v900, %v1020
      %v1058 = vmul.f32 %v905, %v1020
      %v1059 = vmul.f32 %v908, %v1020
      %v1060 = vmul.f32 %v913, %v1020
      %v1061 = vmul.f32 %v916, %v1020
      %v1062 = vmul.f32 %v921, %v1020
      %v1063 = vmul.f32 %v924, %v1020
      %v1064 = vmul.f32 %v929, %v1020
      %v1065 = vmul.f32 %v932, %v1020
      %v1066 = vmul.f32 %v937, %v1020
      %v1067 = vmul.f32 %v940, %v1020
      %v1068 = vmul.f32 %v945, %v1020
      %v1069 = vmul.f32 %v948, %v1020
      %v1070 = vmul.f32 %v953, %v1020
      %v1071 = vmul.f32 %v956, %v1020
      %v1072 = vmul.f32 %v961, %v1020
      %v1073 = vmul.f32 %v964, %v1020
      %v1074 = vmul.f32 %v969, %v1020
      %v1075 = vmul.f32 %v972, %v1020
      %v1076 = vmul.f32 %v977, %v1020
      %v1077 = vmul.f32 %v980, %v1020
      %v1078 = vmul.f32 %v985, %v1020
      %v1079 = vmul.f32 %v988, %v1020
      %v1080 = vmul.f32 %v993, %v1020
      %v1081 = vmul.f32 %v996, %v1020
      %v1082 = vmul.f32 %v1001, %v1020
      %v1083 = vmul.f32 %v1004, %v1020
      %v1084 = vmul.f32 %v1009, %v1020
      %v1085 = vmul.f32 %v1012, %v1020
      %v1086 = vld [vmem:[%s3] sm:$0x1]
      %v1088 = vlaneseq
      %v1089 = vshrl.u32 %v1088, 7
      %v1090 = vsub.s32 0, %v1089
      %v1091 = vrot.slane %v1086, %v1090
      %v1093 = vadd.f32 %v1022, %v1091
      %v1094 = vadd.f32 %v1023, %v1091
      %v1095 = vadd.f32 %v1024, %v1091
      %v1096 = vadd.f32 %v1025, %v1091
      %v1097 = vadd.f32 %v1026, %v1091
      %v1098 = vadd.f32 %v1027, %v1091
      %v1099 = vadd.f32 %v1028, %v1091
      %v1100 = vadd.f32 %v1029, %v1091
      %v1101 = vadd.f32 %v1030, %v1091
      %v1102 = vadd.f32 %v1031, %v1091
      %v1103 = vadd.f32 %v1032, %v1091
      %v1104 = vadd.f32 %v1033, %v1091
      %v1105 = vadd.f32 %v1034, %v1091
      %v1106 = vadd.f32 %v1035, %v1091
      %v1107 = vadd.f32 %v1036, %v1091
      %v1108 = vadd.f32 %v1037, %v1091
      %v1109 = vadd.f32 %v1038, %v1091
      %v1110 = vadd.f32 %v1039, %v1091
      %v1111 = vadd.f32 %v1040, %v1091
      %v1112 = vadd.f32 %v1041, %v1091
      %v1113 = vadd.f32 %v1042, %v1091
      %v1114 = vadd.f32 %v1043, %v1091
      %v1115 = vadd.f32 %v1044, %v1091
      %v1116 = vadd.f32 %v1045, %v1091
      %v1117 = vadd.f32 %v1046, %v1091
      %v1118 = vadd.f32 %v1047, %v1091
      %v1119 = vadd.f32 %v1048, %v1091
      %v1120 = vadd.f32 %v1049, %v1091
      %v1121 = vadd.f32 %v1050, %v1091
      %v1122 = vadd.f32 %v1051, %v1091
      %v1123 = vadd.f32 %v1052, %v1091
      %v1124 = vadd.f32 %v1053, %v1091
      %v1125 = vadd.f32 %v1054, %v1091
      %v1126 = vadd.f32 %v1055, %v1091
      %v1127 = vadd.f32 %v1056, %v1091
      %v1128 = vadd.f32 %v1057, %v1091
      %v1129 = vadd.f32 %v1058, %v1091
      %v1130 = vadd.f32 %v1059, %v1091
      %v1131 = vadd.f32 %v1060, %v1091
      %v1132 = vadd.f32 %v1061, %v1091
      %v1133 = vadd.f32 %v1062, %v1091
      %v1134 = vadd.f32 %v1063, %v1091
      %v1135 = vadd.f32 %v1064, %v1091
      %v1136 = vadd.f32 %v1065, %v1091
      %v1137 = vadd.f32 %v1066, %v1091
      %v1138 = vadd.f32 %v1067, %v1091
      %v1139 = vadd.f32 %v1068, %v1091
      %v1140 = vadd.f32 %v1069, %v1091
      %v1141 = vadd.f32 %v1070, %v1091
      %v1142 = vadd.f32 %v1071, %v1091
      %v1143 = vadd.f32 %v1072, %v1091
      %v1144 = vadd.f32 %v1073, %v1091
      %v1145 = vadd.f32 %v1074, %v1091
      %v1146 = vadd.f32 %v1075, %v1091
      %v1147 = vadd.f32 %v1076, %v1091
      %v1148 = vadd.f32 %v1077, %v1091
      %v1149 = vadd.f32 %v1078, %v1091
      %v1150 = vadd.f32 %v1079, %v1091
      %v1151 = vadd.f32 %v1080, %v1091
      %v1152 = vadd.f32 %v1081, %v1091
      %v1153 = vadd.f32 %v1082, %v1091
      %v1154 = vadd.f32 %v1083, %v1091
      %v1155 = vadd.f32 %v1084, %v1091
      %v1156 = vadd.f32 %v1085, %v1091
      %v1157 = vmax.f32 %v1093, 0.0
      %v1158 = vmax.f32 %v1094, 0.0
      %v1159 = vmax.f32 %v1095, 0.0
      %v1160 = vmax.f32 %v1096, 0.0
      %v1161 = vmax.f32 %v1097, 0.0
      %v1162 = vmax.f32 %v1098, 0.0
      %v1163 = vmax.f32 %v1099, 0.0
      %v1164 = vmax.f32 %v1100, 0.0
      %v1165 = vmax.f32 %v1101, 0.0
      %v1166 = vmax.f32 %v1102, 0.0
      %v1167 = vmax.f32 %v1103, 0.0
      %v1168 = vmax.f32 %v1104, 0.0
      %v1169 = vmax.f32 %v1105, 0.0
      %v1170 = vmax.f32 %v1106, 0.0
      %v1171 = vmax.f32 %v1107, 0.0
      %v1172 = vmax.f32 %v1108, 0.0
      %v1173 = vmax.f32 %v1109, 0.0
      %v1174 = vmax.f32 %v1110, 0.0
      %v1175 = vmax.f32 %v1111, 0.0
      %v1176 = vmax.f32 %v1112, 0.0
      %v1177 = vmax.f32 %v1113, 0.0
      %v1178 = vmax.f32 %v1114, 0.0
      %v1179 = vmax.f32 %v1115, 0.0
      %v1180 = vmax.f32 %v1116, 0.0
      %v1181 = vmax.f32 %v1117, 0.0
      %v1182 = vmax.f32 %v1118, 0.0
      %v1183 = vmax.f32 %v1119, 0.0
      %v1184 = vmax.f32 %v1120, 0.0
      %v1185 = vmax.f32 %v1121, 0.0
      %v1186 = vmax.f32 %v1122, 0.0
      %v1187 = vmax.f32 %v1123, 0.0
      %v1188 = vmax.f32 %v1124, 0.0
      %v1189 = vmax.f32 %v1125, 0.0
      %v1190 = vmax.f32 %v1126, 0.0
      %v1191 = vmax.f32 %v1127, 0.0
      %v1192 = vmax.f32 %v1128, 0.0
      %v1193 = vmax.f32 %v1129, 0.0
      %v1194 = vmax.f32 %v1130, 0.0
      %v1195 = vmax.f32 %v1131, 0.0
      %v1196 = vmax.f32 %v1132, 0.0
      %v1197 = vmax.f32 %v1133, 0.0
      %v1198 = vmax.f32 %v1134, 0.0
      %v1199 = vmax.f32 %v1135, 0.0
      %v1200 = vmax.f32 %v1136, 0.0
      %v1201 = vmax.f32 %v1137, 0.0
      %v1202 = vmax.f32 %v1138, 0.0
      %v1203 = vmax.f32 %v1139, 0.0
      %v1204 = vmax.f32 %v1140, 0.0
      %v1205 = vmax.f32 %v1141, 0.0
      %v1206 = vmax.f32 %v1142, 0.0
      %v1207 = vmax.f32 %v1143, 0.0
      %v1208 = vmax.f32 %v1144, 0.0
      %v1209 = vmax.f32 %v1145, 0.0
      %v1210 = vmax.f32 %v1146, 0.0
      %v1211 = vmax.f32 %v1147, 0.0
      %v1212 = vmax.f32 %v1148, 0.0
      %v1213 = vmax.f32 %v1149, 0.0
      %v1214 = vmax.f32 %v1150, 0.0
      %v1215 = vmax.f32 %v1151, 0.0
      %v1216 = vmax.f32 %v1152, 0.0
      %v1217 = vmax.f32 %v1153, 0.0
      %v1218 = vmax.f32 %v1154, 0.0
      %v1219 = vmax.f32 %v1155, 0.0
      %v1220 = vmax.f32 %v1156, 0.0
      %1221 = vst.msk [vmem:[%s202] sm:$0xff] %vm629, %v1157
      %1222 = vst.msk [vmem:[%s202 + $0x8] sm:$0xff] %vm629, %v1158
      %1223 = vst.msk [vmem:[%s202 + $0x10] sm:$0xff] %vm629, %v1159
      %1224 = vst.msk [vmem:[%s202 + $0x18] sm:$0xff] %vm629, %v1160
      %1225 = vst.msk [vmem:[%s202 + $0x20] sm:$0xff] %vm629, %v1161
      %1226 = vst.msk [vmem:[%s202 + $0x28] sm:$0xff] %vm629, %v1162
      %1227 = vst.msk [vmem:[%s202 + $0x30] sm:$0xff] %vm629, %v1163
      %1228 = vst.msk [vmem:[%s202 + $0x38] sm:$0xff] %vm629, %v1164
      %1229 = vst.msk [vmem:[%s202 + $0x40] sm:$0xff] %vm629, %v1165
      %1230 = vst.msk [vmem:[%s202 + $0x48] sm:$0xff] %vm629, %v1166
      %1231 = vst.msk [vmem:[%s202 + $0x50] sm:$0xff] %vm629, %v1167
      %1232 = vst.msk [vmem:[%s202 + $0x58] sm:$0xff] %vm629, %v1168
      %1233 = vst.msk [vmem:[%s202 + $0x60] sm:$0xff] %vm629, %v1169
      %1234 = vst.msk [vmem:[%s202 + $0x68] sm:$0xff] %vm629, %v1170
      %1235 = vst.msk [vmem:[%s202 + $0x70] sm:$0xff] %vm629, %v1171
      %1236 = vst.msk [vmem:[%s202 + $0x78] sm:$0xff] %vm629, %v1172
      %1237 = vst.msk [vmem:[%s202 + $0x80] sm:$0xff] %vm629, %v1173
      %1238 = vst.msk [vmem:[%s202 + $0x88] sm:$0xff] %vm629, %v1174
      %1239 = vst.msk [vmem:[%s202 + $0x90] sm:$0xff] %vm629, %v1175
      %1240 = vst.msk [vmem:[%s202 + $0x98] sm:$0xff] %vm629, %v1176
      %1241 = vst.msk [vmem:[%s202 + $0xa0] sm:$0xff] %vm629, %v1177
      %1242 = vst.msk [vmem:[%s202 + $0xa8] sm:$0xff] %vm629, %v1178
      %1243 = vst.msk [vmem:[%s202 + $0xb0] sm:$0xff] %vm629, %v1179
      %1244 = vst.msk [vmem:[%s202 + $0xb8] sm:$0xff] %vm629, %v1180
      %1245 = vst.msk [vmem:[%s202 + $0xc0] sm:$0xff] %vm629, %v1181
      %1246 = vst.msk [vmem:[%s202 + $0xc8] sm:$0xff] %vm629, %v1182
      %1247 = vst.msk [vmem:[%s202 + $0xd0] sm:$0xff] %vm629, %v1183
      %1248 = vst.msk [vmem:[%s202 + $0xd8] sm:$0xff] %vm629, %v1184
      %1249 = vst.msk [vmem:[%s202 + $0xe0] sm:$0xff] %vm629, %v1185
      %1250 = vst.msk [vmem:[%s202 + $0xe8] sm:$0xff] %vm629, %v1186
      %1251 = vst.msk [vmem:[%s202 + $0xf0] sm:$0xff] %vm629, %v1187
      %1252 = vst.msk [vmem:[%s202 + $0xf8] sm:$0xff] %vm629, %v1188
      %1253 = vst.msk [vmem:[%s202 + $0x100] sm:$0xff] %vm629, %v1189
      %1254 = vst.msk [vmem:[%s202 + $0x108] sm:$0xff] %vm629, %v1190
      %1255 = vst.msk [vmem:[%s202 + $0x110] sm:$0xff] %vm629, %v1191
      %1256 = vst.msk [vmem:[%s202 + $0x118] sm:$0xff] %vm629, %v1192
      %1257 = vst.msk [vmem:[%s202 + $0x120] sm:$0xff] %vm629, %v1193
      %1258 = vst.msk [vmem:[%s202 + $0x128] sm:$0xff] %vm629, %v1194
      %1259 = vst.msk [vmem:[%s202 + $0x130] sm:$0xff] %vm629, %v1195
      %1260 = vst.msk [vmem:[%s202 + $0x138] sm:$0xff] %vm629, %v1196
      %1261 = vst.msk [vmem:[%s202 + $0x140] sm:$0xff] %vm629, %v1197
      %1262 = vst.msk [vmem:[%s202 + $0x148] sm:$0xff] %vm629, %v1198
      %1263 = vst.msk [vmem:[%s202 + $0x150] sm:$0xff] %vm629, %v1199
      %1264 = vst.msk [vmem:[%s202 + $0x158] sm:$0xff] %vm629, %v1200
      %1265 = vst.msk [vmem:[%s202 + $0x160] sm:$0xff] %vm629, %v1201
      %1266 = vst.msk [vmem:[%s202 + $0x168] sm:$0xff] %vm629, %v1202
      %1267 = vst.msk [vmem:[%s202 + $0x170] sm:$0xff] %vm629, %v1203
      %1268 = vst.msk [vmem:[%s202 + $0x178] sm:$0xff] %vm629, %v1204
      %1269 = vst.msk [vmem:[%s202 + $0x180] sm:$0xff] %vm629, %v1205
      %1270 = vst.msk [vmem:[%s202 + $0x188] sm:$0xff] %vm629, %v1206
      %1271 = vst.msk [vmem:[%s202 + $0x190] sm:$0xff] %vm629, %v1207
      %1272 = vst.msk [vmem:[%s202 + $0x198] sm:$0xff] %vm629, %v1208
      %1273 = vst.msk [vmem:[%s202 + $0x1a0] sm:$0xff] %vm629, %v1209
      %1274 = vst.msk [vmem:[%s202 + $0x1a8] sm:$0xff] %vm629, %v1210
      %1275 = vst.msk [vmem:[%s202 + $0x1b0] sm:$0xff] %vm629, %v1211
      %1276 = vst.msk [vmem:[%s202 + $0x1b8] sm:$0xff] %vm629, %v1212
      %1277 = vst.msk [vmem:[%s202 + $0x1c0] sm:$0xff] %vm629, %v1213
      %1278 = vst.msk [vmem:[%s202 + $0x1c8] sm:$0xff] %vm629, %v1214
      %1279 = vst.msk [vmem:[%s202 + $0x1d0] sm:$0xff] %vm629, %v1215
      %1280 = vst.msk [vmem:[%s202 + $0x1d8] sm:$0xff] %vm629, %v1216
      %1281 = vst.msk [vmem:[%s202 + $0x1e0] sm:$0xff] %vm629, %v1217
      %1282 = vst.msk [vmem:[%s202 + $0x1e8] sm:$0xff] %vm629, %v1218
      %1283 = vst.msk [vmem:[%s202 + $0x1f0] sm:$0xff] %vm629, %v1219
      %1284 = vst.msk [vmem:[%s202 + $0x1f8] sm:$0xff] %vm629, %v1220
      %s1285 = smul.u32 64, %s15
      %p1286 = scmp.lt.s32.totalorder %s1285, 255
      %s1287 = scalar_select %p1286, %s1285, 255
      %s1288 = smul.addr %s1287, 8
      %s1289 = scalar_lea.vmem %s4, %s1288
      // Predicated region
      $region37: #{wide_resnet_forward.11} parent=35 // pred_check
        %p1290 = pneg %p122
      $region38: #{wide_resnet_forward.11} parent=35 // pred_check_branch
        %1292 = sbr.rel (%p1290) target = $region40
      $region39: #{wide_resnet_forward.11} parent=35 // pred_region
        %s1293 = smul.u32 64, %s15
      $region40: #{wide_resnet_forward.11} parent=35 // pred_fallthru
        _
    $region36: #{wide_resnet_forward.11} parent=5 // pred_fallthru
      _
    %p1294 = scmp.le.s32.totalorder 2, %s10
    // Predicated region
    $region41: #{wide_resnet_forward.11} parent=5 // pred_check
      %p1295 = pneg %p1294
    $region42: #{wide_resnet_forward.11} parent=5 // pred_check_branch
      %1297 = sbr.rel (%p1295) target = $region44
    $region43: #{wide_resnet_forward.11} parent=5 // pred_region
      %s1298 = ssub.s32 %s10, 2
      // Predicated region
      $region45: #{wide_resnet_forward.11} parent=43 // pred_check
        %p1299 = pneg %p128
      $region46: #{wide_resnet_forward.11} parent=43 // pred_check_branch
        %1301 = sbr.rel (%p1299) target = $region48
      $region47: #{wide_resnet_forward.11} parent=43 // pred_region
        %s1302 = smul.u32 64, %s16
        %p1303 = scmp.lt.s32.totalorder %s1302, 255
        %s1304 = scalar_select %p1303, %s1302, 255
        %s1305 = smul.addr %s1304, 8
        %s1306 = scalar_lea.vmem %s4, %s1305
      $region48: #{wide_resnet_forward.11} parent=43 // pred_fallthru
        _
    $region44: #{wide_resnet_forward.11} parent=5 // pred_fallthru
      _
  $region6: #{wide_resnet_forward.11} parent=0 // loop_footer
    %s14 = sadd.s32 1, %s10
  $region7: #{wide_resnet_forward.11} parent=0 // loop_footer_branch
    %9 = sbr.rel target = $region3
  $region8: #{wide_resnet_forward.11} parent=0 // loop_exit
    _

// kernel: wide_resnet_forward.12
$region0: #{wide_resnet_forward.12}
  #allocation0 [shape = 'u32[]', space=smem, size = 0x4, offset = 0x4, fixed_abs, tag = 'smem constant byte address 0x4 - core index']
  #allocation1 [shape = 'u32[144,128]{1,0:T(1,128)}', space=vmem, size = 0x12000, scoped, tag = 'internal scratch']
  %s0 = inlined_call_operand.vmem [shape: bf16[2048,144], index: 0, kind: input, shape index: {}]
  %s1 = inlined_call_operand.vmem [shape: bf16[144,16], index: 1, kind: input, shape index: {}]
  %s2 = inlined_call_operand.vmem [shape: f32[2048,16], index: 2, kind: input, shape index: {}]
  %s3 = inlined_call_operand.vmem [shape: f32[1,16], index: 3, kind: input, shape index: {}]
  %s4 = inlined_call_operand.vmem [shape: f32[1,16], index: 4, kind: input, shape index: {}]
  %s5 = inlined_call_operand.vmem [shape: f32[2048,16], index: 5, kind: output, shape index: {}]
  %s6 = sld [smem:[#allocation0]]
  $region53: #{wide_resnet_forward.12} parent=0
    _
  %s8 = ssub.s32 1, %s6
  %s9 = scalar_select 0, %s8, %s6
  loop: start=0, step=1, limit=6
  $region2: #{wide_resnet_forward.12} parent=0 // loop_pre_header
    _
  $region3: #{wide_resnet_forward.12} parent=0 // loop_header
    %s11 = sphi 0, %s15
    %p12 = scmp.ge.s32.totalorder %s11, 6
    %s21 = sphi 0, %s23
    %s24 = sphi 0, %s21
    %s25 = sphi 0, %s24
    %s41 = sphi 0, %s25
    %s45 = sphi 0, %s45
    %s47 = sphi 0, %s45
    %s48 = sphi 0, %s47
    %s62 = sphi 0, %s48
    %s68 = sphi 0, %s70
    %s71 = sphi 0, %s68
    %s72 = sphi 0, %s71
    %s88 = sphi 0, %s72
    %s92 = sphi 0, %s92
    %s94 = sphi 0, %s92
    %s95 = sphi 0, %s94
    %s109 = sphi 0, %s95
    %s113 = sphi 0, %s113
    %s115 = sphi 0, %s113
    %s116 = sphi 0, %s115
    %s130 = sphi 0, %s116
    %s136 = sphi 0, %s138
    %s139 = sphi 0, %s136
    %s140 = sphi 0, %s139
    %s156 = sphi 0, %s140
  $region4: #{wide_resnet_forward.12} parent=0 // loop_header_branch
    %14 = sbr.rel (%p12) target = $region8
  $region5: #{wide_resnet_forward.12} parent=0 // loop_body
    %s16 = ssub.s32 %s11, 1
    %s17 = ssub.s32 %s11, 2
    %s18 = sadd.s32 %s11, 1
    %s19 = ssub.s32 %s11, %s18
    %p20 = scmp.eq.s32.totalorder %s19, 0
    %s22 = sadd.s32 %s21, 1
    %s23 = scalar_select %p20, %s21, %s22
    %p26 = pneg %p20
    %p27 = scmp.eq.s32.totalorder %s11, 3
    %p28 = por %p26, %p27
    %p29 = scmp.ne.s32.totalorder %s21, %s24
    %p30 = scmp.eq.s32.totalorder %s11, 0
    %p31 = por %p29, %p30
    %p32 = scmp.ne.s32.totalorder %s21, %s24
    %p33 = scmp.eq.s32.totalorder %s16, 3
    %p34 = por %p32, %p33
    %p35 = scmp.ne.s32.totalorder %s24, %s25
    %p36 = scmp.eq.s32.totalorder %s16, 0
    %p37 = por %p35, %p36
    %p38 = scmp.ne.s32.totalorder %s24, %s25
    %p39 = scmp.eq.s32.totalorder %s17, 3
    %p40 = por %p38, %p39
    %p42 = scmp.ne.s32.totalorder %s25, %s41
    %p43 = scmp.eq.s32.totalorder %s17, 0
    %p44 = por %p42, %p43
    %s46 = sadd.s32 %s45, 1
    %p49 = scmp.eq.s32.totalorder %s11, 3
    %p50 = scmp.ne.s32.totalorder %s45, %s47
    %p51 = scmp.eq.s32.totalorder %s11, 0
    %p52 = por %p50, %p51
    %p53 = scmp.ne.s32.totalorder %s45, %s47
    %p54 = scmp.eq.s32.totalorder %s16, 3
    %p55 = por %p53, %p54
    %p56 = scmp.ne.s32.totalorder %s47, %s48
    %p57 = scmp.eq.s32.totalorder %s16, 0
    %p58 = por %p56, %p57
    %p59 = scmp.ne.s32.totalorder %s47, %s48
    %p60 = scmp.eq.s32.totalorder %s17, 3
    %p61 = por %p59, %p60
    %p63 = scmp.ne.s32.totalorder %s48, %s62
    %p64 = scmp.eq.s32.totalorder %s17, 0
    %p65 = por %p63, %p64
    %s66 = ssub.s32 %s11, %s18
    %p67 = scmp.eq.s32.totalorder %s66, 0
    %s69 = sadd.s32 %s68, 1
    %s70 = scalar_select %p67, %s68, %s69
    %p73 = pneg %p67
    %p74 = scmp.eq.s32.totalorder %s11, 3
    %p75 = por %p73, %p74
    %p76 = scmp.ne.s32.totalorder %s68, %s71
    %p77 = scmp.eq.s32.totalorder %s11, 0
    %p78 = por %p76, %p77
    %p79 = scmp.ne.s32.totalorder %s68, %s71
    %p80 = scmp.eq.s32.totalorder %s16, 3
    %p81 = por %p79, %p80
    %p82 = scmp.ne.s32.totalorder %s71, %s72
    %p83 = scmp.eq.s32.totalorder %s16, 0
    %p84 = por %p82, %p83
    %p85 = scmp.ne.s32.totalorder %s71, %s72
    %p86 = scmp.eq.s32.totalorder %s17, 3
    %p87 = por %p85, %p86
    %p89 = scmp.ne.s32.totalorder %s72, %s88
    %p90 = scmp.eq.s32.totalorder %s17, 0
    %p91 = por %p89, %p90
    %s93 = sadd.s32 %s92, 1
    %p96 = scmp.eq.s32.totalorder %s11, 3
    %p97 = scmp.ne.s32.totalorder %s92, %s94
    %p98 = scmp.eq.s32.totalorder %s11, 0
    %p99 = por %p97, %p98
    %p100 = scmp.ne.s32.totalorder %s92, %s94
    %p101 = scmp.eq.s32.totalorder %s16, 3
    %p102 = por %p100, %p101
    %p103 = scmp.ne.s32.totalorder %s94, %s95
    %p104 = scmp.eq.s32.totalorder %s16, 0
    %p105 = por %p103, %p104
    %p106 = scmp.ne.s32.totalorder %s94, %s95
    %p107 = scmp.eq.s32.totalorder %s17, 3
    %p108 = por %p106, %p107
    %p110 = scmp.ne.s32.totalorder %s95, %s109
    %p111 = scmp.eq.s32.totalorder %s17, 0
    %p112 = por %p110, %p111
    %s114 = sadd.s32 %s113, 1
    %p117 = scmp.eq.s32.totalorder %s11, 3
    %p118 = scmp.ne.s32.totalorder %s113, %s115
    %p119 = scmp.eq.s32.totalorder %s11, 0
    %p120 = por %p118, %p119
    %p121 = scmp.ne.s32.totalorder %s113, %s115
    %p122 = scmp.eq.s32.totalorder %s16, 3
    %p123 = por %p121, %p122
    %p124 = scmp.ne.s32.totalorder %s115, %s116
    %p125 = scmp.eq.s32.totalorder %s16, 0
    %p126 = por %p124, %p125
    %p127 = scmp.ne.s32.totalorder %s115, %s116
    %p128 = scmp.eq.s32.totalorder %s17, 3
    %p129 = por %p127, %p128
    %p131 = scmp.ne.s32.totalorder %s116, %s130
    %p132 = scmp.eq.s32.totalorder %s17, 0
    %p133 = por %p131, %p132
    %s134 = ssub.s32 %s11, %s18
    %p135 = scmp.eq.s32.totalorder %s134, 0
    %s137 = sadd.s32 %s136, 1
    %s138 = scalar_select %p135, %s136, %s137
    %p141 = pneg %p135
    %p142 = scmp.eq.s32.totalorder %s11, 3
    %p143 = por %p141, %p142
    %p144 = scmp.ne.s32.totalorder %s136, %s139
    %p145 = scmp.eq.s32.totalorder %s11, 0
    %p146 = por %p144, %p145
    %p147 = scmp.ne.s32.totalorder %s136, %s139
    %p148 = scmp.eq.s32.totalorder %s16, 3
    %p149 = por %p147, %p148
    %p150 = scmp.ne.s32.totalorder %s139, %s140
    %p151 = scmp.eq.s32.totalorder %s16, 0
    %p152 = por %p150, %p151
    %p153 = scmp.ne.s32.totalorder %s139, %s140
    %p154 = scmp.eq.s32.totalorder %s17, 3
    %p155 = por %p153, %p154
    %p157 = scmp.ne.s32.totalorder %s140, %s156
    %p158 = scmp.eq.s32.totalorder %s17, 0
    %p159 = por %p157, %p158
    %p160 = scmp.le.s32.totalorder 1, %s11
    %p161 = scmp.lt.s32.totalorder %s11, 5
    %p162 = pnand %p160, %p161
    %p163 = pneg %p162
    // Predicated region
    $region9: #{wide_resnet_forward.12} parent=5 // pred_check
      _
    $region10: #{wide_resnet_forward.12} parent=5 // pred_check_branch
      %165 = sbr.rel (%p162) target = $region12
    $region11: #{wide_resnet_forward.12} parent=5 // pred_region
      %s166 = ssub.s32 %s11, 1
      // Predicated region
      $region13: #{wide_resnet_forward.12} parent=11 // pred_check
        %p167 = pneg %p58
      $region14: #{wide_resnet_forward.12} parent=11 // pred_check_branch
        %169 = sbr.rel (%p167) target = $region16
      $region15: #{wide_resnet_forward.12} parent=11 // pred_region
        _
      $region16: #{wide_resnet_forward.12} parent=11 // pred_fallthru
        _
      // Predicated region
      $region17: #{wide_resnet_forward.12} parent=11 // pred_check
        %p170 = pneg %p105
      $region18: #{wide_resnet_forward.12} parent=11 // pred_check_branch
        %172 = sbr.rel (%p170) target = $region20
      $region19: #{wide_resnet_forward.12} parent=11 // pred_region
        _
      $region20: #{wide_resnet_forward.12} parent=11 // pred_fallthru
        _
      // Predicated region
      $region21: #{wide_resnet_forward.12} parent=11 // pred_check
        %p173 = pneg %p126
      $region22: #{wide_resnet_forward.12} parent=11 // pred_check_branch
        %175 = sbr.rel (%p173) target = $region24
      $region23: #{wide_resnet_forward.12} parent=11 // pred_region
        _
      $region24: #{wide_resnet_forward.12} parent=11 // pred_fallthru
        _
    $region12: #{wide_resnet_forward.12} parent=5 // pred_fallthru
      _
    %p176 = scmp.lt.s32.totalorder %s11, 4
    // Predicated region
    $region25: #{wide_resnet_forward.12} parent=5 // pred_check
      %p177 = pneg %p176
    $region26: #{wide_resnet_forward.12} parent=5 // pred_check_branch
      %179 = sbr.rel (%p177) target = $region28
    $region27: #{wide_resnet_forward.12} parent=5 // pred_region
      // Predicated region
      $region29: #{wide_resnet_forward.12} parent=27 // pred_check
        %p180 = pneg %p31
      $region30: #{wide_resnet_forward.12} parent=27 // pred_check_branch
        %182 = sbr.rel (%p180) target = $region32
      $region31: #{wide_resnet_forward.12} parent=27 // pred_region
        %s183 = smul.u32 64, %s11
        %p184 = scmp.lt.s32.totalorder %s183, 255
        %s185 = scalar_select %p184, %s183, 255
        %s186 = smul.addr %s185, 2
        %s187 = smul.addr %s186, 4
        %s188 = scalar_lea.vmem %s0, %s187
        %s189 = smul.u32 64, %s11
      $region32: #{wide_resnet_forward.12} parent=27 // pred_fallthru
        _
      // Predicated region
      $region33: #{wide_resnet_forward.12} parent=27 // pred_check
        %p190 = pneg %p78
      $region34: #{wide_resnet_forward.12} parent=27 // pred_check_branch
        %192 = sbr.rel (%p190) target = $region36
      $region35: #{wide_resnet_forward.12} parent=27 // pred_region
        %s193 = smul.u32 64, %s11
        %p194 = scmp.lt.s32.totalorder %s193, 255
        %s195 = scalar_select %p194, %s193, 255
        %s196 = smul.addr %s195, 8
        %s197 = scalar_lea.vmem %s2, %s196
        %s198 = smul.u32 64, %s11
      $region36: #{wide_resnet_forward.12} parent=27 // pred_fallthru
        _
    $region28: #{wide_resnet_forward.12} parent=5 // pred_fallthru
      _
    %p199 = scmp.le.s32.totalorder 1, %s11
    %p200 = scmp.lt.s32.totalorder %s11, 5
    %p201 = pnand %p199, %p200
    %p202 = pneg %p201
    // Predicated region
    $region37: #{wide_resnet_forward.12} parent=5 // pred_check
      _
    $region38: #{wide_resnet_forward.12} parent=5 // pred_check_branch
      %204 = sbr.rel (%p201) target = $region40
    $region39: #{wide_resnet_forward.12} parent=5 // pred_region
      %s205 = ssub.s32 %s11, 1
      %s206 = smul.u32 64, %s16
      %p207 = scmp.lt.s32.totalorder %s206, 255
      %s208 = scalar_select %p207, %s206, 255
      %s209 = smul.addr %s208, 2
      %s210 = smul.addr %s209, 4
      %s211 = scalar_lea.vmem %s0, %s210
      %p212 = pneg %p37
      %p213 = pneg %p34
      %p214 = pneg %p58
      %p215 = pneg %p55
      %s216 = smul.u32 64, %s16
      %p217 = scmp.lt.s32.totalorder %s216, 255
      %s218 = scalar_select %p217, %s216, 255
      %s219 = smul.addr %s218, 8
      %s220 = scalar_lea.vmem %s2, %s219
      %p221 = pneg %p84
      %p222 = pneg %p81
      %p223 = pneg %p105
      %p224 = pneg %p102
      %p225 = pneg %p126
      %p226 = pneg %p123
      %p227 = pneg %p152
      %p228 = pneg %p149
      %s229 = smul.u32 64, %s16
      %p230 = scmp.lt.s32.totalorder %s229, 255
      %s231 = scalar_select %p230, %s229, 255
      %s232 = smul.addr %s231, 8
      %s233 = scalar_lea.vmem %s5, %s232
      %s234 = smul.u32 64, %s16
      %p235 = scmp.lt.s32.totalorder %s234, 255
      %s236 = scalar_select %p235, %s234, 255
      %s237 = smul.addr %s236, 2
      %s238 = smul.addr %s237, 4
      %s239 = scalar_lea.vmem %s0, %s238
      %s240 = smul.u32 64, %s16
      %s241 = smul.u32 64, %s16
      %p242 = scmp.lt.s32.totalorder %s241, 255
      %s243 = scalar_select %p242, %s241, 255
      %s244 = smul.addr %s243, 8
      %s245 = scalar_lea.vmem %s2, %s244
      %s246 = smul.u32 64, %s16
      %s247 = smul.u32 64, %s16
      %p248 = scmp.lt.s32.totalorder %s247, 255
      %s249 = scalar_select %p248, %s247, 255
      %s250 = smul.addr %s249, 8
      %s251 = scalar_lea.vmem %s5, %s250
      %s252 = smul.u32 64, %s16
      %v254 = vld [vmem:[%s239] sm:$0xff]
      %v255 = vld [vmem:[%s239 + $0x8] sm:$0xff]
      %v256 = vld [vmem:[%s239 + $0x10] sm:$0xff]
      %v257 = vld [vmem:[%s239 + $0x18] sm:$0xff]
      %v258 = vld [vmem:[%s239 + $0x20] sm:$0xff]
      %v259 = vld [vmem:[%s239 + $0x28] sm:$0xff]
      %v260 = vld [vmem:[%s239 + $0x30] sm:$0xff]
      %v261 = vld [vmem:[%s239 + $0x38] sm:$0xff]
      %v262 = vld [vmem:[%s239 + $0x40] sm:$0xff]
      %v263 = vld [vmem:[%s239 + $0x48] sm:$0xff]
      %v264 = vld [vmem:[%s239 + $0x50] sm:$0xff]
      %v265 = vld [vmem:[%s239 + $0x58] sm:$0xff]
      %v266 = vld [vmem:[%s239 + $0x60] sm:$0xff]
      %v267 = vld [vmem:[%s239 + $0x68] sm:$0xff]
      %v268 = vld [vmem:[%s239 + $0x70] sm:$0xff]
      %v269 = vld [vmem:[%s239 + $0x78] sm:$0xff]
      %v270 = vld [vmem:[%s239 + $0x80] sm:$0xff]
      %v271 = vld [vmem:[%s239 + $0x88] sm:$0xff]
      %v272 = vld [vmem:[%s239 + $0x90] sm:$0xff]
      %v273 = vld [vmem:[%s239 + $0x98] sm:$0xff]
      %v274 = vld [vmem:[%s239 + $0xa0] sm:$0xff]
      %v275 = vld [vmem:[%s239 + $0xa8] sm:$0xff]
      %v276 = vld [vmem:[%s239 + $0xb0] sm:$0xff]
      %v277 = vld [vmem:[%s239 + $0xb8] sm:$0xff]
      %v278 = vld [vmem:[%s239 + $0xc0] sm:$0xff]
      %v279 = vld [vmem:[%s239 + $0xc8] sm:$0xff]
      %v280 = vld [vmem:[%s239 + $0xd0] sm:$0xff]
      %v281 = vld [vmem:[%s239 + $0xd8] sm:$0xff]
      %v282 = vld [vmem:[%s239 + $0xe0] sm:$0xff]
      %v283 = vld [vmem:[%s239 + $0xe8] sm:$0xff]
      %v284 = vld [vmem:[%s239 + $0xf0] sm:$0xff]
      %v285 = vld [vmem:[%s239 + $0xf8] sm:$0xff]
      %v286 = vld [vmem:[%s239 + $0x100] sm:$0xff]
      %v287 = vld [vmem:[%s239 + $0x108] sm:$0xff]
      %v288 = vld [vmem:[%s239 + $0x110] sm:$0xff]
      %v289 = vld [vmem:[%s239 + $0x118] sm:$0xff]
      %v290 = vld [vmem:[%s239 + $0x120] sm:$0xff]
      %v291 = vld [vmem:[%s239 + $0x128] sm:$0xff]
      %v292 = vld [vmem:[%s239 + $0x130] sm:$0xff]
      %v293 = vld [vmem:[%s239 + $0x138] sm:$0xff]
      %v294 = vld [vmem:[%s239 + $0x140] sm:$0xff]
      %v295 = vld [vmem:[%s239 + $0x148] sm:$0xff]
      %v296 = vld [vmem:[%s239 + $0x150] sm:$0xff]
      %v297 = vld [vmem:[%s239 + $0x158] sm:$0xff]
      %v298 = vld [vmem:[%s239 + $0x160] sm:$0xff]
      %v299 = vld [vmem:[%s239 + $0x168] sm:$0xff]
      %v300 = vld [vmem:[%s239 + $0x170] sm:$0xff]
      %v301 = vld [vmem:[%s239 + $0x178] sm:$0xff]
      %v302 = vld [vmem:[%s239 + $0x180] sm:$0xff]
      %v303 = vld [vmem:[%s239 + $0x188] sm:$0xff]
      %v304 = vld [vmem:[%s239 + $0x190] sm:$0xff]
      %v305 = vld [vmem:[%s239 + $0x198] sm:$0xff]
      %v306 = vld [vmem:[%s239 + $0x1a0] sm:$0xff]
      %v307 = vld [vmem:[%s239 + $0x1a8] sm:$0xff]
      %v308 = vld [vmem:[%s239 + $0x1b0] sm:$0xff]
      %v309 = vld [vmem:[%s239 + $0x1b8] sm:$0xff]
      %v310 = vld [vmem:[%s239 + $0x1c0] sm:$0xff]
      %v311 = vld [vmem:[%s239 + $0x1c8] sm:$0xff]
      %v312 = vld [vmem:[%s239 + $0x1d0] sm:$0xff]
      %v313 = vld [vmem:[%s239 + $0x1d8] sm:$0xff]
      %v314 = vld [vmem:[%s239 + $0x1e0] sm:$0xff]
      %v315 = vld [vmem:[%s239 + $0x1e8] sm:$0xff]
      %v316 = vld [vmem:[%s239 + $0x1f0] sm:$0xff]
      %v317 = vld [vmem:[%s239 + $0x1f8] sm:$0xff]
      %v318 = vld [vmem:[%s1] sm:$0xf]
      %v319 = vld [vmem:[%s1 + $0x4] sm:$0xf]
      %v320 = vld [vmem:[%s1 + $0x8] sm:$0xf]
      %v321 = vld [vmem:[%s1 + $0xc] sm:$0xf]
      %v322 = vld [vmem:[%s1 + $0x10] sm:$0xf]
      %v323 = vld [vmem:[%s1 + $0x14] sm:$0xf]
      %v324 = vld [vmem:[%s1 + $0x18] sm:$0xf]
      %v325 = vld [vmem:[%s1 + $0x1c] sm:$0xf]
      %v326 = vld [vmem:[%s1 + $0x20] sm:$0xf]
      %v327 = vld [vmem:[%s1 + $0x24] sm:$0xf]
      %v328 = vld [vmem:[%s1 + $0x28] sm:$0xf]
      %v329 = vld [vmem:[%s1 + $0x2c] sm:$0xf]
      %v330 = vld [vmem:[%s1 + $0x30] sm:$0xf]
      %v331 = vld [vmem:[%s1 + $0x34] sm:$0xf]
      %v332 = vld [vmem:[%s1 + $0x38] sm:$0xf]
      %v333 = vld [vmem:[%s1 + $0x3c] sm:$0xf]
      %v334 = vld [vmem:[%s1 + $0x40] sm:$0xf]
      %v335 = vld [vmem:[%s1 + $0x44] sm:$0xf]
      %v336 = vld [vmem:[%s245] sm:$0xff]
      %v337 = vld [vmem:[%s245 + $0x8] sm:$0xff]
      %v338 = vld [vmem:[%s245 + $0x10] sm:$0xff]
      %v339 = vld [vmem:[%s245 + $0x18] sm:$0xff]
      %v340 = vld [vmem:[%s245 + $0x20] sm:$0xff]
      %v341 = vld [vmem:[%s245 + $0x28] sm:$0xff]
      %v342 = vld [vmem:[%s245 + $0x30] sm:$0xff]
      %v343 = vld [vmem:[%s245 + $0x38] sm:$0xff]
      %v344 = vld [vmem:[%s245 + $0x40] sm:$0xff]
      %v345 = vld [vmem:[%s245 + $0x48] sm:$0xff]
      %v346 = vld [vmem:[%s245 + $0x50] sm:$0xff]
      %v347 = vld [vmem:[%s245 + $0x58] sm:$0xff]
      %v348 = vld [vmem:[%s245 + $0x60] sm:$0xff]
      %v349 = vld [vmem:[%s245 + $0x68] sm:$0xff]
      %v350 = vld [vmem:[%s245 + $0x70] sm:$0xff]
      %v351 = vld [vmem:[%s245 + $0x78] sm:$0xff]
      %v352 = vld [vmem:[%s245 + $0x80] sm:$0xff]
      %v353 = vld [vmem:[%s245 + $0x88] sm:$0xff]
      %v354 = vld [vmem:[%s245 + $0x90] sm:$0xff]
      %v355 = vld [vmem:[%s245 + $0x98] sm:$0xff]
      %v356 = vld [vmem:[%s245 + $0xa0] sm:$0xff]
      %v357 = vld [vmem:[%s245 + $0xa8] sm:$0xff]
      %v358 = vld [vmem:[%s245 + $0xb0] sm:$0xff]
      %v359 = vld [vmem:[%s245 + $0xb8] sm:$0xff]
      %v360 = vld [vmem:[%s245 + $0xc0] sm:$0xff]
      %v361 = vld [vmem:[%s245 + $0xc8] sm:$0xff]
      %v362 = vld [vmem:[%s245 + $0xd0] sm:$0xff]
      %v363 = vld [vmem:[%s245 + $0xd8] sm:$0xff]
      %v364 = vld [vmem:[%s245 + $0xe0] sm:$0xff]
      %v365 = vld [vmem:[%s245 + $0xe8] sm:$0xff]
      %v366 = vld [vmem:[%s245 + $0xf0] sm:$0xff]
      %v367 = vld [vmem:[%s245 + $0xf8] sm:$0xff]
      %v368 = vld [vmem:[%s245 + $0x100] sm:$0xff]
      %v369 = vld [vmem:[%s245 + $0x108] sm:$0xff]
      %v370 = vld [vmem:[%s245 + $0x110] sm:$0xff]
      %v371 = vld [vmem:[%s245 + $0x118] sm:$0xff]
      %v372 = vld [vmem:[%s245 + $0x120] sm:$0xff]
      %v373 = vld [vmem:[%s245 + $0x128] sm:$0xff]
      %v374 = vld [vmem:[%s245 + $0x130] sm:$0xff]
      %v375 = vld [vmem:[%s245 + $0x138] sm:$0xff]
      %v376 = vld [vmem:[%s245 + $0x140] sm:$0xff]
      %v377 = vld [vmem:[%s245 + $0x148] sm:$0xff]
      %v378 = vld [vmem:[%s245 + $0x150] sm:$0xff]
      %v379 = vld [vmem:[%s245 + $0x158] sm:$0xff]
      %v380 = vld [vmem:[%s245 + $0x160] sm:$0xff]
      %v381 = vld [vmem:[%s245 + $0x168] sm:$0xff]
      %v382 = vld [vmem:[%s245 + $0x170] sm:$0xff]
      %v383 = vld [vmem:[%s245 + $0x178] sm:$0xff]
      %v384 = vld [vmem:[%s245 + $0x180] sm:$0xff]
      %v385 = vld [vmem:[%s245 + $0x188] sm:$0xff]
      %v386 = vld [vmem:[%s245 + $0x190] sm:$0xff]
      %v387 = vld [vmem:[%s245 + $0x198] sm:$0xff]
      %v388 = vld [vmem:[%s245 + $0x1a0] sm:$0xff]
      %v389 = vld [vmem:[%s245 + $0x1a8] sm:$0xff]
      %v390 = vld [vmem:[%s245 + $0x1b0] sm:$0xff]
      %v391 = vld [vmem:[%s245 + $0x1b8] sm:$0xff]
      %v392 = vld [vmem:[%s245 + $0x1c0] sm:$0xff]
      %v393 = vld [vmem:[%s245 + $0x1c8] sm:$0xff]
      %v394 = vld [vmem:[%s245 + $0x1d0] sm:$0xff]
      %v395 = vld [vmem:[%s245 + $0x1d8] sm:$0xff]
      %v396 = vld [vmem:[%s245 + $0x1e0] sm:$0xff]
      %v397 = vld [vmem:[%s245 + $0x1e8] sm:$0xff]
      %v398 = vld [vmem:[%s245 + $0x1f0] sm:$0xff]
      %v399 = vld [vmem:[%s245 + $0x1f8] sm:$0xff]
      %v464 = vunpack.c.l.b16 %v254
      %v465 = vunpack.c.h.b16 %v254
      %v466 = vunpack.c.l.b16 %v255
      %v467 = vunpack.c.h.b16 %v255
      %v468 = vunpack.c.l.b16 %v256
      %v469 = vunpack.c.h.b16 %v256
      %v470 = vunpack.c.l.b16 %v257
      %v471 = vunpack.c.h.b16 %v257
      %v472 = vunpack.c.l.b16 %v258
      %v473 = vunpack.c.h.b16 %v258
      %v474 = vunpack.c.l.b16 %v259
      %v475 = vunpack.c.h.b16 %v259
      %v476 = vunpack.c.l.b16 %v260
      %v477 = vunpack.c.h.b16 %v260
      %v478 = vunpack.c.l.b16 %v261
      %v479 = vunpack.c.h.b16 %v261
      %v480 = vunpack.c.l.b16 %v262
      %v481 = vunpack.c.h.b16 %v262
      %v482 = vunpack.c.l.b16 %v263
      %v483 = vunpack.c.h.b16 %v263
      %v484 = vunpack.c.l.b16 %v264
      %v485 = vunpack.c.h.b16 %v264
      %v486 = vunpack.c.l.b16 %v265
      %v487 = vunpack.c.h.b16 %v265
      %v488 = vunpack.c.l.b16 %v266
      %v489 = vunpack.c.h.b16 %v266
      %v490 = vunpack.c.l.b16 %v267
      %v491 = vunpack.c.h.b16 %v267
      %v492 = vunpack.c.l.b16 %v268
      %v493 = vunpack.c.h.b16 %v268
      %v494 = vunpack.c.l.b16 %v269
      %v495 = vunpack.c.h.b16 %v269
      %v496 = vunpack.c.l.b16 %v270
      %v497 = vunpack.c.h.b16 %v270
      %v498 = vunpack.c.l.b16 %v271
      %v499 = vunpack.c.h.b16 %v271
      %v500 = vunpack.c.l.b16 %v272
      %v501 = vunpack.c.h.b16 %v272
      %v502 = vunpack.c.l.b16 %v273
      %v503 = vunpack.c.h.b16 %v273
      %v504 = vunpack.c.l.b16 %v274
      %v505 = vunpack.c.h.b16 %v274
      %v506 = vunpack.c.l.b16 %v275
      %v507 = vunpack.c.h.b16 %v275
      %v508 = vunpack.c.l.b16 %v276
      %v509 = vunpack.c.h.b16 %v276
      %v510 = vunpack.c.l.b16 %v277
      %v511 = vunpack.c.h.b16 %v277
      %v512 = vunpack.c.l.b16 %v278
      %v513 = vunpack.c.h.b16 %v278
      %v514 = vunpack.c.l.b16 %v279
      %v515 = vunpack.c.h.b16 %v279
      %v516 = vunpack.c.l.b16 %v280
      %v517 = vunpack.c.h.b16 %v280
      %v518 = vunpack.c.l.b16 %v281
      %v519 = vunpack.c.h.b16 %v281
      %v520 = vunpack.c.l.b16 %v282
      %v521 = vunpack.c.h.b16 %v282
      %v522 = vunpack.c.l.b16 %v283
      %v523 = vunpack.c.h.b16 %v283
      %v524 = vunpack.c.l.b16 %v284
      %v525 = vunpack.c.h.b16 %v284
      %v526 = vunpack.c.l.b16 %v285
      %v527 = vunpack.c.h.b16 %v285
      %v528 = vunpack.c.l.b16 %v286
      %v529 = vunpack.c.h.b16 %v286
      %v530 = vunpack.c.l.b16 %v287
      %v531 = vunpack.c.h.b16 %v287
      %v532 = vunpack.c.l.b16 %v288
      %v533 = vunpack.c.h.b16 %v288
      %v534 = vunpack.c.l.b16 %v289
      %v535 = vunpack.c.h.b16 %v289
      %v536 = vunpack.c.l.b16 %v290
      %v537 = vunpack.c.h.b16 %v290
      %v538 = vunpack.c.l.b16 %v291
      %v539 = vunpack.c.h.b16 %v291
      %v540 = vunpack.c.l.b16 %v292
      %v541 = vunpack.c.h.b16 %v292
      %v542 = vunpack.c.l.b16 %v293
      %v543 = vunpack.c.h.b16 %v293
      %v544 = vunpack.c.l.b16 %v294
      %v545 = vunpack.c.h.b16 %v294
      %v546 = vunpack.c.l.b16 %v295
      %v547 = vunpack.c.h.b16 %v295
      %v548 = vunpack.c.l.b16 %v296
      %v549 = vunpack.c.h.b16 %v296
      %v550 = vunpack.c.l.b16 %v297
      %v551 = vunpack.c.h.b16 %v297
      %v552 = vunpack.c.l.b16 %v298
      %v553 = vunpack.c.h.b16 %v298
      %v554 = vunpack.c.l.b16 %v299
      %v555 = vunpack.c.h.b16 %v299
      %v556 = vunpack.c.l.b16 %v300
      %v557 = vunpack.c.h.b16 %v300
      %v558 = vunpack.c.l.b16 %v301
      %v559 = vunpack.c.h.b16 %v301
      %v560 = vunpack.c.l.b16 %v302
      %v561 = vunpack.c.h.b16 %v302
      %v562 = vunpack.c.l.b16 %v303
      %v563 = vunpack.c.h.b16 %v303
      %v564 = vunpack.c.l.b16 %v304
      %v565 = vunpack.c.h.b16 %v304
      %v566 = vunpack.c.l.b16 %v305
      %v567 = vunpack.c.h.b16 %v305
      %v568 = vunpack.c.l.b16 %v306
      %v569 = vunpack.c.h.b16 %v306
      %v570 = vunpack.c.l.b16 %v307
      %v571 = vunpack.c.h.b16 %v307
      %v572 = vunpack.c.l.b16 %v308
      %v573 = vunpack.c.h.b16 %v308
      %v574 = vunpack.c.l.b16 %v309
      %v575 = vunpack.c.h.b16 %v309
      %v576 = vunpack.c.l.b16 %v310
      %v577 = vunpack.c.h.b16 %v310
      %v578 = vunpack.c.l.b16 %v311
      %v579 = vunpack.c.h.b16 %v311
      %v580 = vunpack.c.l.b16 %v312
      %v581 = vunpack.c.h.b16 %v312
      %v582 = vunpack.c.l.b16 %v313
      %v583 = vunpack.c.h.b16 %v313
      %v584 = vunpack.c.l.b16 %v314
      %v585 = vunpack.c.h.b16 %v314
      %v586 = vunpack.c.l.b16 %v315
      %v587 = vunpack.c.h.b16 %v315
      %v588 = vunpack.c.l.b16 %v316
      %v589 = vunpack.c.h.b16 %v316
      %v590 = vunpack.c.l.b16 %v317
      %v591 = vunpack.c.h.b16 %v317
      %v592 = vpack.c.b16 %v466, %v464
      %v593 = vpack.c.b16 %v467, %v465
      %v594 = vpack.c.b16 %v470, %v468
      %v595 = vpack.c.b16 %v471, %v469
      %v596 = vpack.c.b16 %v474, %v472
      %v597 = vpack.c.b16 %v475, %v473
      %v598 = vpack.c.b16 %v478, %v476
      %v599 = vpack.c.b16 %v479, %v477
      %v600 = vpack.c.b16 %v482, %v480
      %v601 = vpack.c.b16 %v483, %v481
      %v602 = vpack.c.b16 %v486, %v484
      %v603 = vpack.c.b16 %v487, %v485
      %v604 = vpack.c.b16 %v490, %v488
      %v605 = vpack.c.b16 %v491, %v489
      %v606 = vpack.c.b16 %v494, %v492
      %v607 = vpack.c.b16 %v495, %v493
      %v608 = vpack.c.b16 %v498, %v496
      %v609 = vpack.c.b16 %v499, %v497
      %v610 = vpack.c.b16 %v502, %v500
      %v611 = vpack.c.b16 %v503, %v501
      %v612 = vpack.c.b16 %v506, %v504
      %v613 = vpack.c.b16 %v507, %v505
      %v614 = vpack.c.b16 %v510, %v508
      %v615 = vpack.c.b16 %v511, %v509
      %v616 = vpack.c.b16 %v514, %v512
      %v617 = vpack.c.b16 %v515, %v513
      %v618 = vpack.c.b16 %v518, %v516
      %v619 = vpack.c.b16 %v519, %v517
      %v620 = vpack.c.b16 %v522, %v520
      %v621 = vpack.c.b16 %v523, %v521
      %v622 = vpack.c.b16 %v526, %v524
      %v623 = vpack.c.b16 %v527, %v525
      %v624 = vpack.c.b16 %v530, %v528
      %v625 = vpack.c.b16 %v531, %v529
      %v626 = vpack.c.b16 %v534, %v532
      %v627 = vpack.c.b16 %v535, %v533
      %v628 = vpack.c.b16 %v538, %v536
      %v629 = vpack.c.b16 %v539, %v537
      %v630 = vpack.c.b16 %v542, %v540
      %v631 = vpack.c.b16 %v543, %v541
      %v632 = vpack.c.b16 %v546, %v544
      %v633 = vpack.c.b16 %v547, %v545
      %v634 = vpack.c.b16 %v550, %v548
      %v635 = vpack.c.b16 %v551, %v549
      %v636 = vpack.c.b16 %v554, %v552
      %v637 = vpack.c.b16 %v555, %v553
      %v638 = vpack.c.b16 %v558, %v556
      %v639 = vpack.c.b16 %v559, %v557
      %v640 = vpack.c.b16 %v562, %v560
      %v641 = vpack.c.b16 %v563, %v561
      %v642 = vpack.c.b16 %v566, %v564
      %v643 = vpack.c.b16 %v567, %v565
      %v644 = vpack.c.b16 %v570, %v568
      %v645 = vpack.c.b16 %v571, %v569
      %v646 = vpack.c.b16 %v574, %v572
      %v647 = vpack.c.b16 %v575, %v573
      %v648 = vpack.c.b16 %v578, %v576
      %v649 = vpack.c.b16 %v579, %v577
      %v650 = vpack.c.b16 %v582, %v580
      %v651 = vpack.c.b16 %v583, %v581
      %v652 = vpack.c.b16 %v586, %v584
      %v653 = vpack.c.b16 %v587, %v585
      %v654 = vpack.c.b16 %v590, %v588
      %v655 = vpack.c.b16 %v591, %v589
      %v706 = vunpack.c.l.b16 %v318
      %v707 = vunpack.c.l.b16 %v319
      %v708 = vunpack.c.l.b16 %v320
      %v709 = vunpack.c.l.b16 %v321
      %v710 = vunpack.c.l.b16 %v322
      %v711 = vunpack.c.l.b16 %v323
      %v712 = vunpack.c.l.b16 %v324
      %v713 = vunpack.c.l.b16 %v325
      %v714 = vunpack.c.l.b16 %v326
      %v715 = vunpack.c.l.b16 %v327
      %v716 = vunpack.c.l.b16 %v328
      %v717 = vunpack.c.l.b16 %v329
      %v718 = vunpack.c.l.b16 %v330
      %v719 = vunpack.c.l.b16 %v331
      %v720 = vunpack.c.l.b16 %v332
      %v721 = vunpack.c.l.b16 %v333
      %v722 = vunpack.c.l.b16 %v334
      %v723 = vunpack.c.l.b16 %v335
      %v724 = vpack.c.b16 %v707, %v706
      %v725 = vpack.c.b16 %v709, %v708
      %v726 = vpack.c.b16 %v711, %v710
      %v727 = vpack.c.b16 %v713, %v712
      %v728 = vpack.c.b16 %v715, %v714
      %v729 = vpack.c.b16 %v717, %v716
      %v730 = vpack.c.b16 %v719, %v718
      %v731 = vpack.c.b16 %v721, %v720
      %v732 = vpack.c.b16 %v723, %v722
      %vm742 = vcmask 130048
      %v744 = vsel %vm742, %v593, 0
      %v747 = vsel %vm742, %v595, 0
      %v750 = vsel %vm742, %v597, 0
      %v753 = vsel %vm742, %v599, 0
      %v756 = vsel %vm742, %v601, 0
      %v759 = vsel %vm742, %v603, 0
      %v762 = vsel %vm742, %v605, 0
      %v765 = vsel %vm742, %v607, 0
      %v768 = vsel %vm742, %v609, 0
      %v771 = vsel %vm742, %v611, 0
      %v774 = vsel %vm742, %v613, 0
      %v777 = vsel %vm742, %v615, 0
      %v780 = vsel %vm742, %v617, 0
      %v783 = vsel %vm742, %v619, 0
      %v786 = vsel %vm742, %v621, 0
      %v789 = vsel %vm742, %v623, 0
      %v792 = vsel %vm742, %v625, 0
      %v795 = vsel %vm742, %v627, 0
      %v798 = vsel %vm742, %v629, 0
      %v801 = vsel %vm742, %v631, 0
      %v804 = vsel %vm742, %v633, 0
      %v807 = vsel %vm742, %v635, 0
      %v810 = vsel %vm742, %v637, 0
      %v813 = vsel %vm742, %v639, 0
      %v816 = vsel %vm742, %v641, 0
      %v819 = vsel %vm742, %v643, 0
      %v822 = vsel %vm742, %v645, 0
      %v825 = vsel %vm742, %v647, 0
      %v828 = vsel %vm742, %v649, 0
      %v831 = vsel %vm742, %v651, 0
      %v834 = vsel %vm742, %v653, 0
      %v837 = vsel %vm742, %v655, 0
      %839 = vmatprep.subr.bf16.mxu0 0
      %840 = vmatpush1.bf16.msra.mxu0 %v724
      %841 = vmatprep.subr.bf16.mxu0 0
      %842 = vmatpush1.bf16.msra.mxu0 %v725
      %843 = vmatprep.subr.bf16.mxu0 0
      %844 = vmatpush1.bf16.msra.mxu0 %v726
      %845 = vmatprep.subr.bf16.mxu0 0
      %846 = vmatpush1.bf16.msra.mxu0 %v727
      %847 = vmatprep.subr.bf16.mxu0 0
      %848 = vmatpush1.bf16.msra.mxu0 %v728
      %849 = vmatprep.subr.bf16.mxu0 0
      %850 = vmatpush1.bf16.msra.mxu0 %v729
      %851 = vmatprep.subr.bf16.mxu0 0
      %852 = vmatpush1.bf16.msra.mxu0 %v730
      %853 = vmatprep.subr.bf16.mxu0 0
      %854 = vmatpush1.bf16.msra.mxu0 %v731
      %855 = vmatprep.subr.bf16.mxu0 0
      %856 = vmatpush1.bf16.msra.mxu0 %v732
      %857 = vmatprep.subr.bf16.mxu0 0
      %858 = vmatpush1.bf16.msra.mxu0 0
      %859 = vmatprep.subr.bf16.mxu0 0
      %860 = vmatpush1.bf16.msra.mxu0 0
      %861 = vmatprep.subr.bf16.mxu0 0
      %862 = vmatpush1.bf16.msra.mxu0 0
      %863 = vmatprep.subr.bf16.mxu0 0
      %864 = vmatpush1.bf16.msra.mxu0 0
      %865 = vmatprep.subr.bf16.mxu0 0
      %866 = vmatpush1.bf16.msra.mxu0 0
      %867 = vmatprep.subr.bf16.mxu0 0
      %868 = vmatpush1.bf16.msra.mxu0 0
      %869 = vmatprep.subr.bf16.mxu0 0
      %870 = vmatpush1.bf16.msra.mxu0 0
      %871 = vmatprep.mubr.bf16.mxu0 %v744
      %872 = vmatmul.mubr.bf16.gmra.mrb[0].mxu0 %v592
      %v873 = vpop.f32.mrb[0].mxu0
      %v874 = vadd.f32 %v336, %v873
      %v875 = vpop.f32.mrb[0].mxu0
      %v876 = vpop.f32.mrb[0].mxu0
      %v877 = vadd.f32 %v337, %v876
      %v878 = vpop.f32.mrb[0].mxu0
      %879 = vmatprep.mubr.bf16.mxu0 %v747
      %880 = vmatmul.mubr.bf16.gmra.mrb[0].mxu0 %v594
      %v881 = vpop.f32.mrb[0].mxu0
      %v882 = vadd.f32 %v338, %v881
      %v883 = vpop.f32.mrb[0].mxu0
      %v884 = vpop.f32.mrb[0].mxu0
      %v885 = vadd.f32 %v339, %v884
      %v886 = vpop.f32.mrb[0].mxu0
      %887 = vmatprep.mubr.bf16.mxu0 %v750
      %888 = vmatmul.mubr.bf16.gmra.mrb[0].mxu0 %v596
      %v889 = vpop.f32.mrb[0].mxu0
      %v890 = vadd.f32 %v340, %v889
      %v891 = vpop.f32.mrb[0].mxu0
      %v892 = vpop.f32.mrb[0].mxu0
      %v893 = vadd.f32 %v341, %v892
      %v894 = vpop.f32.mrb[0].mxu0
      %895 = vmatprep.mubr.bf16.mxu0 %v753
      %896 = vmatmul.mubr.bf16.gmra.mrb[0].mxu0 %v598
      %v897 = vpop.f32.mrb[0].mxu0
      %v898 = vadd.f32 %v342, %v897
      %v899 = vpop.f32.mrb[0].mxu0
      %v900 = vpop.f32.mrb[0].mxu0
      %v901 = vadd.f32 %v343, %v900
      %v902 = vpop.f32.mrb[0].mxu0
      %903 = vmatprep.mubr.bf16.mxu0 %v756
      %904 = vmatmul.mubr.bf16.gmra.mrb[0].mxu0 %v600
      %v905 = vpop.f32.mrb[0].mxu0
      %v906 = vadd.f32 %v344, %v905
      %v907 = vpop.f32.mrb[0].mxu0
      %v908 = vpop.f32.mrb[0].mxu0
      %v909 = vadd.f32 %v345, %v908
      %v910 = vpop.f32.mrb[0].mxu0
      %911 = vmatprep.mubr.bf16.mxu0 %v759
      %912 = vmatmul.mubr.bf16.gmra.mrb[0].mxu0 %v602
      %v913 = vpop.f32.mrb[0].mxu0
      %v914 = vadd.f32 %v346, %v913
      %v915 = vpop.f32.mrb[0].mxu0
      %v916 = vpop.f32.mrb[0].mxu0
      %v917 = vadd.f32 %v347, %v916
      %v918 = vpop.f32.mrb[0].mxu0
      %919 = vmatprep.mubr.bf16.mxu0 %v762
      %920 = vmatmul.mubr.bf16.gmra.mrb[0].mxu0 %v604
      %v921 = vpop.f32.mrb[0].mxu0
      %v922 = vadd.f32 %v348, %v921
      %v923 = vpop.f32.mrb[0].mxu0
      %v924 = vpop.f32.mrb[0].mxu0
      %v925 = vadd.f32 %v349, %v924
      %v926 = vpop.f32.mrb[0].mxu0
      %927 = vmatprep.mubr.bf16.mxu0 %v765
      %928 = vmatmul.mubr.bf16.gmra.mrb[0].mxu0 %v606
      %v929 = vpop.f32.mrb[0].mxu0
      %v930 = vadd.f32 %v350, %v929
      %v931 = vpop.f32.mrb[0].mxu0
      %v932 = vpop.f32.mrb[0].mxu0
      %v933 = vadd.f32 %v351, %v932
      %v934 = vpop.f32.mrb[0].mxu0
      %935 = vmatprep.mubr.bf16.mxu0 %v768
      %936 = vmatmul.mubr.bf16.gmra.mrb[0].mxu0 %v608
      %v937 = vpop.f32.mrb[0].mxu0
      %v938 = vadd.f32 %v352, %v937
      %v939 = vpop.f32.mrb[0].mxu0
      %v940 = vpop.f32.mrb[0].mxu0
      %v941 = vadd.f32 %v353, %v940
      %v942 = vpop.f32.mrb[0].mxu0
      %943 = vmatprep.mubr.bf16.mxu0 %v771
      %944 = vmatmul.mubr.bf16.gmra.mrb[0].mxu0 %v610
      %v945 = vpop.f32.mrb[0].mxu0
      %v946 = vadd.f32 %v354, %v945
      %v947 = vpop.f32.mrb[0].mxu0
      %v948 = vpop.f32.mrb[0].mxu0
      %v949 = vadd.f32 %v355, %v948
      %v950 = vpop.f32.mrb[0].mxu0
      %951 = vmatprep.mubr.bf16.mxu0 %v774
      %952 = vmatmul.mubr.bf16.gmra.mrb[0].mxu0 %v612
      %v953 = vpop.f32.mrb[0].mxu0
      %v954 = vadd.f32 %v356, %v953
      %v955 = vpop.f32.mrb[0].mxu0
      %v956 = vpop.f32.mrb[0].mxu0
      %v957 = vadd.f32 %v357, %v956
      %v958 = vpop.f32.mrb[0].mxu0
      %959 = vmatprep.mubr.bf16.mxu0 %v777
      %960 = vmatmul.mubr.bf16.gmra.mrb[0].mxu0 %v614
      %v961 = vpop.f32.mrb[0].mxu0
      %v962 = vadd.f32 %v358, %v961
      %v963 = vpop.f32.mrb[0].mxu0
      %v964 = vpop.f32.mrb[0].mxu0
      %v965 = vadd.f32 %v359, %v964
      %v966 = vpop.f32.mrb[0].mxu0
      %967 = vmatprep.mubr.bf16.mxu0 %v780
      %968 = vmatmul.mubr.bf16.gmra.mrb[0].mxu0 %v616
      %v969 = vpop.f32.mrb[0].mxu0
      %v970 = vadd.f32 %v360, %v969
      %v971 = vpop.f32.mrb[0].mxu0
      %v972 = vpop.f32.mrb[0].mxu0
      %v973 = vadd.f32 %v361, %v972
      %v974 = vpop.f32.mrb[0].mxu0
      %975 = vmatprep.mubr.bf16.mxu0 %v783
      %976 = vmatmul.mubr.bf16.gmra.mrb[0].mxu0 %v618
      %v977 = vpop.f32.mrb[0].mxu0
      %v978 = vadd.f32 %v362, %v977
      %v979 = vpop.f32.mrb[0].mxu0
      %v980 = vpop.f32.mrb[0].mxu0
      %v981 = vadd.f32 %v363, %v980
      %v982 = vpop.f32.mrb[0].mxu0
      %983 = vmatprep.mubr.bf16.mxu0 %v786
      %984 = vmatmul.mubr.bf16.gmra.mrb[0].mxu0 %v620
      %v985 = vpop.f32.mrb[0].mxu0
      %v986 = vadd.f32 %v364, %v985
      %v987 = vpop.f32.mrb[0].mxu0
      %v988 = vpop.f32.mrb[0].mxu0
      %v989 = vadd.f32 %v365, %v988
      %v990 = vpop.f32.mrb[0].mxu0
      %991 = vmatprep.mubr.bf16.mxu0 %v789
      %992 = vmatmul.mubr.bf16.gmra.mrb[0].mxu0 %v622
      %v993 = vpop.f32.mrb[0].mxu0
      %v994 = vadd.f32 %v366, %v993
      %v995 = vpop.f32.mrb[0].mxu0
      %v996 = vpop.f32.mrb[0].mxu0
      %v997 = vadd.f32 %v367, %v996
      %v998 = vpop.f32.mrb[0].mxu0
      %999 = vmatprep.mubr.bf16.mxu0 %v792
      %1000 = vmatmul.mubr.bf16.gmra.mrb[0].mxu0 %v624
      %v1001 = vpop.f32.mrb[0].mxu0
      %v1002 = vadd.f32 %v368, %v1001
      %v1003 = vpop.f32.mrb[0].mxu0
      %v1004 = vpop.f32.mrb[0].mxu0
      %v1005 = vadd.f32 %v369, %v1004
      %v1006 = vpop.f32.mrb[0].mxu0
      %1007 = vmatprep.mubr.bf16.mxu0 %v795
      %1008 = vmatmul.mubr.bf16.gmra.mrb[0].mxu0 %v626
      %v1009 = vpop.f32.mrb[0].mxu0
      %v1010 = vadd.f32 %v370, %v1009
      %v1011 = vpop.f32.mrb[0].mxu0
      %v1012 = vpop.f32.mrb[0].mxu0
      %v1013 = vadd.f32 %v371, %v1012
      %v1014 = vpop.f32.mrb[0].mxu0
      %1015 = vmatprep.mubr.bf16.mxu0 %v798
      %1016 = vmatmul.mubr.bf16.gmra.mrb[0].mxu0 %v628
      %v1017 = vpop.f32.mrb[0].mxu0
      %v1018 = vadd.f32 %v372, %v1017
      %v1019 = vpop.f32.mrb[0].mxu0
      %v1020 = vpop.f32.mrb[0].mxu0
      %v1021 = vadd.f32 %v373, %v1020
      %v1022 = vpop.f32.mrb[0].mxu0
      %1023 = vmatprep.mubr.bf16.mxu0 %v801
      %1024 = vmatmul.mubr.bf16.gmra.mrb[0].mxu0 %v630
      %v1025 = vpop.f32.mrb[0].mxu0
      %v1026 = vadd.f32 %v374, %v1025
      %v1027 = vpop.f32.mrb[0].mxu0
      %v1028 = vpop.f32.mrb[0].mxu0
      %v1029 = vadd.f32 %v375, %v1028
      %v1030 = vpop.f32.mrb[0].mxu0
      %1031 = vmatprep.mubr.bf16.mxu0 %v804
      %1032 = vmatmul.mubr.bf16.gmra.mrb[0].mxu0 %v632
      %v1033 = vpop.f32.mrb[0].mxu0
      %v1034 = vadd.f32 %v376, %v1033
      %v1035 = vpop.f32.mrb[0].mxu0
      %v1036 = vpop.f32.mrb[0].mxu0
      %v1037 = vadd.f32 %v377, %v1036
      %v1038 = vpop.f32.mrb[0].mxu0
      %1039 = vmatprep.mubr.bf16.mxu0 %v807
      %1040 = vmatmul.mubr.bf16.gmra.mrb[0].mxu0 %v634
      %v1041 = vpop.f32.mrb[0].mxu0
      %v1042 = vadd.f32 %v378, %v1041
      %v1043 = vpop.f32.mrb[0].mxu0
      %v1044 = vpop.f32.mrb[0].mxu0
      %v1045 = vadd.f32 %v379, %v1044
      %v1046 = vpop.f32.mrb[0].mxu0
      %1047 = vmatprep.mubr.bf16.mxu0 %v810
      %1048 = vmatmul.mubr.bf16.gmra.mrb[0].mxu0 %v636
      %v1049 = vpop.f32.mrb[0].mxu0
      %v1050 = vadd.f32 %v380, %v1049
      %v1051 = vpop.f32.mrb[0].mxu0
      %v1052 = vpop.f32.mrb[0].mxu0
      %v1053 = vadd.f32 %v381, %v1052
      %v1054 = vpop.f32.mrb[0].mxu0
      %1055 = vmatprep.mubr.bf16.mxu0 %v813
      %1056 = vmatmul.mubr.bf16.gmra.mrb[0].mxu0 %v638
      %v1057 = vpop.f32.mrb[0].mxu0
      %v1058 = vadd.f32 %v382, %v1057
      %v1059 = vpop.f32.mrb[0].mxu0
      %v1060 = vpop.f32.mrb[0].mxu0
      %v1061 = vadd.f32 %v383, %v1060
      %v1062 = vpop.f32.mrb[0].mxu0
      %1063 = vmatprep.mubr.bf16.mxu0 %v816
      %1064 = vmatmul.mubr.bf16.gmra.mrb[0].mxu0 %v640
      %v1065 = vpop.f32.mrb[0].mxu0
      %v1066 = vadd.f32 %v384, %v1065
      %v1067 = vpop.f32.mrb[0].mxu0
      %v1068 = vpop.f32.mrb[0].mxu0
      %v1069 = vadd.f32 %v385, %v1068
      %v1070 = vpop.f32.mrb[0].mxu0
      %1071 = vmatprep.mubr.bf16.mxu0 %v819
      %1072 = vmatmul.mubr.bf16.gmra.mrb[0].mxu0 %v642
      %v1073 = vpop.f32.mrb[0].mxu0
      %v1074 = vadd.f32 %v386, %v1073
      %v1075 = vpop.f32.mrb[0].mxu0
      %v1076 = vpop.f32.mrb[0].mxu0
      %v1077 = vadd.f32 %v387, %v1076
      %v1078 = vpop.f32.mrb[0].mxu0
      %1079 = vmatprep.mubr.bf16.mxu0 %v822
      %1080 = vmatmul.mubr.bf16.gmra.mrb[0].mxu0 %v644
      %v1081 = vpop.f32.mrb[0].mxu0
      %v1082 = vadd.f32 %v388, %v1081
      %v1083 = vpop.f32.mrb[0].mxu0
      %v1084 = vpop.f32.mrb[0].mxu0
      %v1085 = vadd.f32 %v389, %v1084
      %v1086 = vpop.f32.mrb[0].mxu0
      %1087 = vmatprep.mubr.bf16.mxu0 %v825
      %1088 = vmatmul.mubr.bf16.gmra.mrb[0].mxu0 %v646
      %v1089 = vpop.f32.mrb[0].mxu0
      %v1090 = vadd.f32 %v390, %v1089
      %v1091 = vpop.f32.mrb[0].mxu0
      %v1092 = vpop.f32.mrb[0].mxu0
      %v1093 = vadd.f32 %v391, %v1092
      %v1094 = vpop.f32.mrb[0].mxu0
      %1095 = vmatprep.mubr.bf16.mxu0 %v828
      %1096 = vmatmul.mubr.bf16.gmra.mrb[0].mxu0 %v648
      %v1097 = vpop.f32.mrb[0].mxu0
      %v1098 = vadd.f32 %v392, %v1097
      %v1099 = vpop.f32.mrb[0].mxu0
      %v1100 = vpop.f32.mrb[0].mxu0
      %v1101 = vadd.f32 %v393, %v1100
      %v1102 = vpop.f32.mrb[0].mxu0
      %1103 = vmatprep.mubr.bf16.mxu0 %v831
      %1104 = vmatmul.mubr.bf16.gmra.mrb[0].mxu0 %v650
      %v1105 = vpop.f32.mrb[0].mxu0
      %v1106 = vadd.f32 %v394, %v1105
      %v1107 = vpop.f32.mrb[0].mxu0
      %v1108 = vpop.f32.mrb[0].mxu0
      %v1109 = vadd.f32 %v395, %v1108
      %v1110 = vpop.f32.mrb[0].mxu0
      %1111 = vmatprep.mubr.bf16.mxu0 %v834
      %1112 = vmatmul.mubr.bf16.gmra.mrb[0].mxu0 %v652
      %v1113 = vpop.f32.mrb[0].mxu0
      %v1114 = vadd.f32 %v396, %v1113
      %v1115 = vpop.f32.mrb[0].mxu0
      %v1116 = vpop.f32.mrb[0].mxu0
      %v1117 = vadd.f32 %v397, %v1116
      %v1118 = vpop.f32.mrb[0].mxu0
      %1119 = vmatprep.mubr.bf16.mxu0 %v837
      %1120 = vmatmul.mubr.bf16.gmra.mrb[0].mxu0 %v654
      %v1121 = vpop.f32.mrb[0].mxu0
      %v1122 = vadd.f32 %v398, %v1121
      %v1123 = vpop.f32.mrb[0].mxu0
      %v1124 = vpop.f32.mrb[0].mxu0
      %v1125 = vadd.f32 %v399, %v1124
      %v1126 = vpop.f32.mrb[0].mxu0
      %1127 = vdwg.mxu0
      %v1128 = vld [vmem:[%s3] sm:$0x1]
      %v1130 = vlaneseq
      %v1131 = vshrl.u32 %v1130, 7
      %v1132 = vsub.s32 0, %v1131
      %v1133 = vrot.slane %v1128, %v1132
      %v1135 = vmul.f32 %v874, %v1133
      %v1136 = vmul.f32 %v877, %v1133
      %v1137 = vmul.f32 %v882, %v1133
      %v1138 = vmul.f32 %v885, %v1133
      %v1139 = vmul.f32 %v890, %v1133
      %v1140 = vmul.f32 %v893, %v1133
      %v1141 = vmul.f32 %v898, %v1133
      %v1142 = vmul.f32 %v901, %v1133
      %v1143 = vmul.f32 %v906, %v1133
      %v1144 = vmul.f32 %v909, %v1133
      %v1145 = vmul.f32 %v914, %v1133
      %v1146 = vmul.f32 %v917, %v1133
      %v1147 = vmul.f32 %v922, %v1133
      %v1148 = vmul.f32 %v925, %v1133
      %v1149 = vmul.f32 %v930, %v1133
      %v1150 = vmul.f32 %v933, %v1133
      %v1151 = vmul.f32 %v938, %v1133
      %v1152 = vmul.f32 %v941, %v1133
      %v1153 = vmul.f32 %v946, %v1133
      %v1154 = vmul.f32 %v949, %v1133
      %v1155 = vmul.f32 %v954, %v1133
      %v1156 = vmul.f32 %v957, %v1133
      %v1157 = vmul.f32 %v962, %v1133
      %v1158 = vmul.f32 %v965, %v1133
      %v1159 = vmul.f32 %v970, %v1133
      %v1160 = vmul.f32 %v973, %v1133
      %v1161 = vmul.f32 %v978, %v1133
      %v1162 = vmul.f32 %v981, %v1133
      %v1163 = vmul.f32 %v986, %v1133
      %v1164 = vmul.f32 %v989, %v1133
      %v1165 = vmul.f32 %v994, %v1133
      %v1166 = vmul.f32 %v997, %v1133
      %v1167 = vmul.f32 %v1002, %v1133
      %v1168 = vmul.f32 %v1005, %v1133
      %v1169 = vmul.f32 %v1010, %v1133
      %v1170 = vmul.f32 %v1013, %v1133
      %v1171 = vmul.f32 %v1018, %v1133
      %v1172 = vmul.f32 %v1021, %v1133
      %v1173 = vmul.f32 %v1026, %v1133
      %v1174 = vmul.f32 %v1029, %v1133
      %v1175 = vmul.f32 %v1034, %v1133
      %v1176 = vmul.f32 %v1037, %v1133
      %v1177 = vmul.f32 %v1042, %v1133
      %v1178 = vmul.f32 %v1045, %v1133
      %v1179 = vmul.f32 %v1050, %v1133
      %v1180 = vmul.f32 %v1053, %v1133
      %v1181 = vmul.f32 %v1058, %v1133
      %v1182 = vmul.f32 %v1061, %v1133
      %v1183 = vmul.f32 %v1066, %v1133
      %v1184 = vmul.f32 %v1069, %v1133
      %v1185 = vmul.f32 %v1074, %v1133
      %v1186 = vmul.f32 %v1077, %v1133
      %v1187 = vmul.f32 %v1082, %v1133
      %v1188 = vmul.f32 %v1085, %v1133
      %v1189 = vmul.f32 %v1090, %v1133
      %v1190 = vmul.f32 %v1093, %v1133
      %v1191 = vmul.f32 %v1098, %v1133
      %v1192 = vmul.f32 %v1101, %v1133
      %v1193 = vmul.f32 %v1106, %v1133
      %v1194 = vmul.f32 %v1109, %v1133
      %v1195 = vmul.f32 %v1114, %v1133
      %v1196 = vmul.f32 %v1117, %v1133
      %v1197 = vmul.f32 %v1122, %v1133
      %v1198 = vmul.f32 %v1125, %v1133
      %v1199 = vld [vmem:[%s4] sm:$0x1]
      %v1201 = vlaneseq
      %v1202 = vshrl.u32 %v1201, 7
      %v1203 = vsub.s32 0, %v1202
      %v1204 = vrot.slane %v1199, %v1203
      %v1206 = vadd.f32 %v1135, %v1204
      %v1207 = vadd.f32 %v1136, %v1204
      %v1208 = vadd.f32 %v1137, %v1204
      %v1209 = vadd.f32 %v1138, %v1204
      %v1210 = vadd.f32 %v1139, %v1204
      %v1211 = vadd.f32 %v1140, %v1204
      %v1212 = vadd.f32 %v1141, %v1204
      %v1213 = vadd.f32 %v1142, %v1204
      %v1214 = vadd.f32 %v1143, %v1204
      %v1215 = vadd.f32 %v1144, %v1204
      %v1216 = vadd.f32 %v1145, %v1204
      %v1217 = vadd.f32 %v1146, %v1204
      %v1218 = vadd.f32 %v1147, %v1204
      %v1219 = vadd.f32 %v1148, %v1204
      %v1220 = vadd.f32 %v1149, %v1204
      %v1221 = vadd.f32 %v1150, %v1204
      %v1222 = vadd.f32 %v1151, %v1204
      %v1223 = vadd.f32 %v1152, %v1204
      %v1224 = vadd.f32 %v1153, %v1204
      %v1225 = vadd.f32 %v1154, %v1204
      %v1226 = vadd.f32 %v1155, %v1204
      %v1227 = vadd.f32 %v1156, %v1204
      %v1228 = vadd.f32 %v1157, %v1204
      %v1229 = vadd.f32 %v1158, %v1204
      %v1230 = vadd.f32 %v1159, %v1204
      %v1231 = vadd.f32 %v1160, %v1204
      %v1232 = vadd.f32 %v1161, %v1204
      %v1233 = vadd.f32 %v1162, %v1204
      %v1234 = vadd.f32 %v1163, %v1204
      %v1235 = vadd.f32 %v1164, %v1204
      %v1236 = vadd.f32 %v1165, %v1204
      %v1237 = vadd.f32 %v1166, %v1204
      %v1238 = vadd.f32 %v1167, %v1204
      %v1239 = vadd.f32 %v1168, %v1204
      %v1240 = vadd.f32 %v1169, %v1204
      %v1241 = vadd.f32 %v1170, %v1204
      %v1242 = vadd.f32 %v1171, %v1204
      %v1243 = vadd.f32 %v1172, %v1204
      %v1244 = vadd.f32 %v1173, %v1204
      %v1245 = vadd.f32 %v1174, %v1204
      %v1246 = vadd.f32 %v1175, %v1204
      %v1247 = vadd.f32 %v1176, %v1204
      %v1248 = vadd.f32 %v1177, %v1204
      %v1249 = vadd.f32 %v1178, %v1204
      %v1250 = vadd.f32 %v1179, %v1204
      %v1251 = vadd.f32 %v1180, %v1204
      %v1252 = vadd.f32 %v1181, %v1204
      %v1253 = vadd.f32 %v1182, %v1204
      %v1254 = vadd.f32 %v1183, %v1204
      %v1255 = vadd.f32 %v1184, %v1204
      %v1256 = vadd.f32 %v1185, %v1204
      %v1257 = vadd.f32 %v1186, %v1204
      %v1258 = vadd.f32 %v1187, %v1204
      %v1259 = vadd.f32 %v1188, %v1204
      %v1260 = vadd.f32 %v1189, %v1204
      %v1261 = vadd.f32 %v1190, %v1204
      %v1262 = vadd.f32 %v1191, %v1204
      %v1263 = vadd.f32 %v1192, %v1204
      %v1264 = vadd.f32 %v1193, %v1204
      %v1265 = vadd.f32 %v1194, %v1204
      %v1266 = vadd.f32 %v1195, %v1204
      %v1267 = vadd.f32 %v1196, %v1204
      %v1268 = vadd.f32 %v1197, %v1204
      %v1269 = vadd.f32 %v1198, %v1204
      %v1270 = vmax.f32 %v1206, 0.0
      %v1271 = vmax.f32 %v1207, 0.0
      %v1272 = vmax.f32 %v1208, 0.0
      %v1273 = vmax.f32 %v1209, 0.0
      %v1274 = vmax.f32 %v1210, 0.0
      %v1275 = vmax.f32 %v1211, 0.0
      %v1276 = vmax.f32 %v1212, 0.0
      %v1277 = vmax.f32 %v1213, 0.0
      %v1278 = vmax.f32 %v1214, 0.0
      %v1279 = vmax.f32 %v1215, 0.0
      %v1280 = vmax.f32 %v1216, 0.0
      %v1281 = vmax.f32 %v1217, 0.0
      %v1282 = vmax.f32 %v1218, 0.0
      %v1283 = vmax.f32 %v1219, 0.0
      %v1284 = vmax.f32 %v1220, 0.0
      %v1285 = vmax.f32 %v1221, 0.0
      %v1286 = vmax.f32 %v1222, 0.0
      %v1287 = vmax.f32 %v1223, 0.0
      %v1288 = vmax.f32 %v1224, 0.0
      %v1289 = vmax.f32 %v1225, 0.0
      %v1290 = vmax.f32 %v1226, 0.0
      %v1291 = vmax.f32 %v1227, 0.0
      %v1292 = vmax.f32 %v1228, 0.0
      %v1293 = vmax.f32 %v1229, 0.0
      %v1294 = vmax.f32 %v1230, 0.0
      %v1295 = vmax.f32 %v1231, 0.0
      %v1296 = vmax.f32 %v1232, 0.0
      %v1297 = vmax.f32 %v1233, 0.0
      %v1298 = vmax.f32 %v1234, 0.0
      %v1299 = vmax.f32 %v1235, 0.0
      %v1300 = vmax.f32 %v1236, 0.0
      %v1301 = vmax.f32 %v1237, 0.0
      %v1302 = vmax.f32 %v1238, 0.0
      %v1303 = vmax.f32 %v1239, 0.0
      %v1304 = vmax.f32 %v1240, 0.0
      %v1305 = vmax.f32 %v1241, 0.0
      %v1306 = vmax.f32 %v1242, 0.0
      %v1307 = vmax.f32 %v1243, 0.0
      %v1308 = vmax.f32 %v1244, 0.0
      %v1309 = vmax.f32 %v1245, 0.0
      %v1310 = vmax.f32 %v1246, 0.0
      %v1311 = vmax.f32 %v1247, 0.0
      %v1312 = vmax.f32 %v1248, 0.0
      %v1313 = vmax.f32 %v1249, 0.0
      %v1314 = vmax.f32 %v1250, 0.0
      %v1315 = vmax.f32 %v1251, 0.0
      %v1316 = vmax.f32 %v1252, 0.0
      %v1317 = vmax.f32 %v1253, 0.0
      %v1318 = vmax.f32 %v1254, 0.0
      %v1319 = vmax.f32 %v1255, 0.0
      %v1320 = vmax.f32 %v1256, 0.0
      %v1321 = vmax.f32 %v1257, 0.0
      %v1322 = vmax.f32 %v1258, 0.0
      %v1323 = vmax.f32 %v1259, 0.0
      %v1324 = vmax.f32 %v1260, 0.0
      %v1325 = vmax.f32 %v1261, 0.0
      %v1326 = vmax.f32 %v1262, 0.0
      %v1327 = vmax.f32 %v1263, 0.0
      %v1328 = vmax.f32 %v1264, 0.0
      %v1329 = vmax.f32 %v1265, 0.0
      %v1330 = vmax.f32 %v1266, 0.0
      %v1331 = vmax.f32 %v1267, 0.0
      %v1332 = vmax.f32 %v1268, 0.0
      %v1333 = vmax.f32 %v1269, 0.0
      %1334 = vst.msk [vmem:[%s251] sm:$0xff] %vm742, %v1270
      %1335 = vst.msk [vmem:[%s251 + $0x8] sm:$0xff] %vm742, %v1271
      %1336 = vst.msk [vmem:[%s251 + $0x10] sm:$0xff] %vm742, %v1272
      %1337 = vst.msk [vmem:[%s251 + $0x18] sm:$0xff] %vm742, %v1273
      %1338 = vst.msk [vmem:[%s251 + $0x20] sm:$0xff] %vm742, %v1274
      %1339 = vst.msk [vmem:[%s251 + $0x28] sm:$0xff] %vm742, %v1275
      %1340 = vst.msk [vmem:[%s251 + $0x30] sm:$0xff] %vm742, %v1276
      %1341 = vst.msk [vmem:[%s251 + $0x38] sm:$0xff] %vm742, %v1277
      %1342 = vst.msk [vmem:[%s251 + $0x40] sm:$0xff] %vm742, %v1278
      %1343 = vst.msk [vmem:[%s251 + $0x48] sm:$0xff] %vm742, %v1279
      %1344 = vst.msk [vmem:[%s251 + $0x50] sm:$0xff] %vm742, %v1280
      %1345 = vst.msk [vmem:[%s251 + $0x58] sm:$0xff] %vm742, %v1281
      %1346 = vst.msk [vmem:[%s251 + $0x60] sm:$0xff] %vm742, %v1282
      %1347 = vst.msk [vmem:[%s251 + $0x68] sm:$0xff] %vm742, %v1283
      %1348 = vst.msk [vmem:[%s251 + $0x70] sm:$0xff] %vm742, %v1284
      %1349 = vst.msk [vmem:[%s251 + $0x78] sm:$0xff] %vm742, %v1285
      %1350 = vst.msk [vmem:[%s251 + $0x80] sm:$0xff] %vm742, %v1286
      %1351 = vst.msk [vmem:[%s251 + $0x88] sm:$0xff] %vm742, %v1287
      %1352 = vst.msk [vmem:[%s251 + $0x90] sm:$0xff] %vm742, %v1288
      %1353 = vst.msk [vmem:[%s251 + $0x98] sm:$0xff] %vm742, %v1289
      %1354 = vst.msk [vmem:[%s251 + $0xa0] sm:$0xff] %vm742, %v1290
      %1355 = vst.msk [vmem:[%s251 + $0xa8] sm:$0xff] %vm742, %v1291
      %1356 = vst.msk [vmem:[%s251 + $0xb0] sm:$0xff] %vm742, %v1292
      %1357 = vst.msk [vmem:[%s251 + $0xb8] sm:$0xff] %vm742, %v1293
      %1358 = vst.msk [vmem:[%s251 + $0xc0] sm:$0xff] %vm742, %v1294
      %1359 = vst.msk [vmem:[%s251 + $0xc8] sm:$0xff] %vm742, %v1295
      %1360 = vst.msk [vmem:[%s251 + $0xd0] sm:$0xff] %vm742, %v1296
      %1361 = vst.msk [vmem:[%s251 + $0xd8] sm:$0xff] %vm742, %v1297
      %1362 = vst.msk [vmem:[%s251 + $0xe0] sm:$0xff] %vm742, %v1298
      %1363 = vst.msk [vmem:[%s251 + $0xe8] sm:$0xff] %vm742, %v1299
      %1364 = vst.msk [vmem:[%s251 + $0xf0] sm:$0xff] %vm742, %v1300
      %1365 = vst.msk [vmem:[%s251 + $0xf8] sm:$0xff] %vm742, %v1301
      %1366 = vst.msk [vmem:[%s251 + $0x100] sm:$0xff] %vm742, %v1302
      %1367 = vst.msk [vmem:[%s251 + $0x108] sm:$0xff] %vm742, %v1303
      %1368 = vst.msk [vmem:[%s251 + $0x110] sm:$0xff] %vm742, %v1304
      %1369 = vst.msk [vmem:[%s251 + $0x118] sm:$0xff] %vm742, %v1305
      %1370 = vst.msk [vmem:[%s251 + $0x120] sm:$0xff] %vm742, %v1306
      %1371 = vst.msk [vmem:[%s251 + $0x128] sm:$0xff] %vm742, %v1307
      %1372 = vst.msk [vmem:[%s251 + $0x130] sm:$0xff] %vm742, %v1308
      %1373 = vst.msk [vmem:[%s251 + $0x138] sm:$0xff] %vm742, %v1309
      %1374 = vst.msk [vmem:[%s251 + $0x140] sm:$0xff] %vm742, %v1310
      %1375 = vst.msk [vmem:[%s251 + $0x148] sm:$0xff] %vm742, %v1311
      %1376 = vst.msk [vmem:[%s251 + $0x150] sm:$0xff] %vm742, %v1312
      %1377 = vst.msk [vmem:[%s251 + $0x158] sm:$0xff] %vm742, %v1313
      %1378 = vst.msk [vmem:[%s251 + $0x160] sm:$0xff] %vm742, %v1314
      %1379 = vst.msk [vmem:[%s251 + $0x168] sm:$0xff] %vm742, %v1315
      %1380 = vst.msk [vmem:[%s251 + $0x170] sm:$0xff] %vm742, %v1316
      %1381 = vst.msk [vmem:[%s251 + $0x178] sm:$0xff] %vm742, %v1317
      %1382 = vst.msk [vmem:[%s251 + $0x180] sm:$0xff] %vm742, %v1318
      %1383 = vst.msk [vmem:[%s251 + $0x188] sm:$0xff] %vm742, %v1319
      %1384 = vst.msk [vmem:[%s251 + $0x190] sm:$0xff] %vm742, %v1320
      %1385 = vst.msk [vmem:[%s251 + $0x198] sm:$0xff] %vm742, %v1321
      %1386 = vst.msk [vmem:[%s251 + $0x1a0] sm:$0xff] %vm742, %v1322
      %1387 = vst.msk [vmem:[%s251 + $0x1a8] sm:$0xff] %vm742, %v1323
      %1388 = vst.msk [vmem:[%s251 + $0x1b0] sm:$0xff] %vm742, %v1324
      %1389 = vst.msk [vmem:[%s251 + $0x1b8] sm:$0xff] %vm742, %v1325
      %1390 = vst.msk [vmem:[%s251 + $0x1c0] sm:$0xff] %vm742, %v1326
      %1391 = vst.msk [vmem:[%s251 + $0x1c8] sm:$0xff] %vm742, %v1327
      %1392 = vst.msk [vmem:[%s251 + $0x1d0] sm:$0xff] %vm742, %v1328
      %1393 = vst.msk [vmem:[%s251 + $0x1d8] sm:$0xff] %vm742, %v1329
      %1394 = vst.msk [vmem:[%s251 + $0x1e0] sm:$0xff] %vm742, %v1330
      %1395 = vst.msk [vmem:[%s251 + $0x1e8] sm:$0xff] %vm742, %v1331
      %1396 = vst.msk [vmem:[%s251 + $0x1f0] sm:$0xff] %vm742, %v1332
      %1397 = vst.msk [vmem:[%s251 + $0x1f8] sm:$0xff] %vm742, %v1333
      %s1398 = smul.u32 64, %s16
      %p1399 = scmp.lt.s32.totalorder %s1398, 255
      %s1400 = scalar_select %p1399, %s1398, 255
      %s1401 = smul.addr %s1400, 8
      %s1402 = scalar_lea.vmem %s5, %s1401
      // Predicated region
      $region41: #{wide_resnet_forward.12} parent=39 // pred_check
        %p1403 = pneg %p149
      $region42: #{wide_resnet_forward.12} parent=39 // pred_check_branch
        %1405 = sbr.rel (%p1403) target = $region44
      $region43: #{wide_resnet_forward.12} parent=39 // pred_region
        %s1406 = smul.u32 64, %s16
      $region44: #{wide_resnet_forward.12} parent=39 // pred_fallthru
        _
    $region40: #{wide_resnet_forward.12} parent=5 // pred_fallthru
      _
    %p1407 = scmp.le.s32.totalorder 2, %s11
    // Predicated region
    $region45: #{wide_resnet_forward.12} parent=5 // pred_check
      %p1408 = pneg %p1407
    $region46: #{wide_resnet_forward.12} parent=5 // pred_check_branch
      %1410 = sbr.rel (%p1408) target = $region48
    $region47: #{wide_resnet_forward.12} parent=5 // pred_region
      %s1411 = ssub.s32 %s11, 2
      // Predicated region
      $region49: #{wide_resnet_forward.12} parent=47 // pred_check
        %p1412 = pneg %p155
      $region50: #{wide_resnet_forward.12} parent=47 // pred_check_branch
        %1414 = sbr.rel (%p1412) target = $region52
      $region51: #{wide_resnet_forward.12} parent=47 // pred_region
        %s1415 = smul.u32 64, %s17
        %p1416 = scmp.lt.s32.totalorder %s1415, 255
        %s1417 = scalar_select %p1416, %s1415, 255
        %s1418 = smul.addr %s1417, 8
        %s1419 = scalar_lea.vmem %s5, %s1418
      $region52: #{wide_resnet_forward.12} parent=47 // pred_fallthru
        _
    $region48: #{wide_resnet_forward.12} parent=5 // pred_fallthru
      _
  $region6: #{wide_resnet_forward.12} parent=0 // loop_footer
    %s15 = sadd.s32 1, %s11
  $region7: #{wide_resnet_forward.12} parent=0 // loop_footer_branch
    %10 = sbr.rel target = $region3
  $region8: #{wide_resnet_forward.12} parent=0 // loop_exit
    _

// kernel: wide_resnet_forward.14
$region0: #{wide_resnet_forward.14}
  #allocation0 [shape = 'u32[]', space=smem, size = 0x4, offset = 0x4, fixed_abs, tag = 'smem constant byte address 0x4 - core index']
  #allocation1 [shape = 'u32[144,128]{1,0:T(1,128)}', space=vmem, size = 0x12000, scoped, tag = 'internal scratch']
  %s0 = inlined_call_operand.vmem [shape: bf16[512,16], index: 0, kind: input, shape index: {}]
  %s1 = inlined_call_operand.vmem [shape: bf16[16,32], index: 1, kind: input, shape index: {}]
  %s2 = inlined_call_operand.vmem [shape: f32[512,32], index: 2, kind: output, shape index: {}]
  %s3 = sld [smem:[#allocation0]]
  $region41: #{wide_resnet_forward.14} parent=0
    _
  %s5 = ssub.s32 1, %s3
  %s6 = scalar_select 0, %s5, %s3
  loop: start=0, step=1, limit=4
  $region2: #{wide_resnet_forward.14} parent=0 // loop_pre_header
    _
  $region3: #{wide_resnet_forward.14} parent=0 // loop_header
    %s8 = sphi 0, %s12
    %p9 = scmp.ge.s32.totalorder %s8, 4
    %s18 = sphi 0, %s20
    %s21 = sphi 0, %s18
    %s22 = sphi 0, %s21
    %s38 = sphi 0, %s22
    %s42 = sphi 0, %s42
    %s44 = sphi 0, %s42
    %s45 = sphi 0, %s44
    %s59 = sphi 0, %s45
    %s65 = sphi 0, %s67
    %s68 = sphi 0, %s65
    %s69 = sphi 0, %s68
    %s85 = sphi 0, %s69
  $region4: #{wide_resnet_forward.14} parent=0 // loop_header_branch
    %11 = sbr.rel (%p9) target = $region8
  $region5: #{wide_resnet_forward.14} parent=0 // loop_body
    %s13 = ssub.s32 %s8, 1
    %s14 = ssub.s32 %s8, 2
    %s15 = sadd.s32 %s8, 1
    %s16 = ssub.s32 %s8, %s15
    %p17 = scmp.eq.s32.totalorder %s16, 0
    %s19 = sadd.s32 %s18, 1
    %s20 = scalar_select %p17, %s18, %s19
    %p23 = pneg %p17
    %p24 = scmp.eq.s32.totalorder %s8, 1
    %p25 = por %p23, %p24
    %p26 = scmp.ne.s32.totalorder %s18, %s21
    %p27 = scmp.eq.s32.totalorder %s8, 0
    %p28 = por %p26, %p27
    %p29 = scmp.ne.s32.totalorder %s18, %s21
    %p30 = scmp.eq.s32.totalorder %s13, 1
    %p31 = por %p29, %p30
    %p32 = scmp.ne.s32.totalorder %s21, %s22
    %p33 = scmp.eq.s32.totalorder %s13, 0
    %p34 = por %p32, %p33
    %p35 = scmp.ne.s32.totalorder %s21, %s22
    %p36 = scmp.eq.s32.totalorder %s14, 1
    %p37 = por %p35, %p36
    %p39 = scmp.ne.s32.totalorder %s22, %s38
    %p40 = scmp.eq.s32.totalorder %s14, 0
    %p41 = por %p39, %p40
    %s43 = sadd.s32 %s42, 1
    %p46 = scmp.eq.s32.totalorder %s8, 1
    %p47 = scmp.ne.s32.totalorder %s42, %s44
    %p48 = scmp.eq.s32.totalorder %s8, 0
    %p49 = por %p47, %p48
    %p50 = scmp.ne.s32.totalorder %s42, %s44
    %p51 = scmp.eq.s32.totalorder %s13, 1
    %p52 = por %p50, %p51
    %p53 = scmp.ne.s32.totalorder %s44, %s45
    %p54 = scmp.eq.s32.totalorder %s13, 0
    %p55 = por %p53, %p54
    %p56 = scmp.ne.s32.totalorder %s44, %s45
    %p57 = scmp.eq.s32.totalorder %s14, 1
    %p58 = por %p56, %p57
    %p60 = scmp.ne.s32.totalorder %s45, %s59
    %p61 = scmp.eq.s32.totalorder %s14, 0
    %p62 = por %p60, %p61
    %s63 = ssub.s32 %s8, %s15
    %p64 = scmp.eq.s32.totalorder %s63, 0
    %s66 = sadd.s32 %s65, 1
    %s67 = scalar_select %p64, %s65, %s66
    %p70 = pneg %p64
    %p71 = scmp.eq.s32.totalorder %s8, 1
    %p72 = por %p70, %p71
    %p73 = scmp.ne.s32.totalorder %s65, %s68
    %p74 = scmp.eq.s32.totalorder %s8, 0
    %p75 = por %p73, %p74
    %p76 = scmp.ne.s32.totalorder %s65, %s68
    %p77 = scmp.eq.s32.totalorder %s13, 1
    %p78 = por %p76, %p77
    %p79 = scmp.ne.s32.totalorder %s68, %s69
    %p80 = scmp.eq.s32.totalorder %s13, 0
    %p81 = por %p79, %p80
    %p82 = scmp.ne.s32.totalorder %s68, %s69
    %p83 = scmp.eq.s32.totalorder %s14, 1
    %p84 = por %p82, %p83
    %p86 = scmp.ne.s32.totalorder %s69, %s85
    %p87 = scmp.eq.s32.totalorder %s14, 0
    %p88 = por %p86, %p87
    %p89 = scmp.le.s32.totalorder 1, %s8
    %p90 = scmp.lt.s32.totalorder %s8, 3
    %p91 = pnand %p89, %p90
    %p92 = pneg %p91
    // Predicated region
    $region9: #{wide_resnet_forward.14} parent=5 // pred_check
      _
    $region10: #{wide_resnet_forward.14} parent=5 // pred_check_branch
      %94 = sbr.rel (%p91) target = $region12
    $region11: #{wide_resnet_forward.14} parent=5 // pred_region
      %s95 = ssub.s32 %s8, 1
      // Predicated region
      $region13: #{wide_resnet_forward.14} parent=11 // pred_check
        %p96 = pneg %p55
      $region14: #{wide_resnet_forward.14} parent=11 // pred_check_branch
        %98 = sbr.rel (%p96) target = $region16
      $region15: #{wide_resnet_forward.14} parent=11 // pred_region
        _
      $region16: #{wide_resnet_forward.14} parent=11 // pred_fallthru
        _
    $region12: #{wide_resnet_forward.14} parent=5 // pred_fallthru
      _
    %p99 = scmp.lt.s32.totalorder %s8, 2
    // Predicated region
    $region17: #{wide_resnet_forward.14} parent=5 // pred_check
      %p100 = pneg %p99
    $region18: #{wide_resnet_forward.14} parent=5 // pred_check_branch
      %102 = sbr.rel (%p100) target = $region20
    $region19: #{wide_resnet_forward.14} parent=5 // pred_region
      // Predicated region
      $region21: #{wide_resnet_forward.14} parent=19 // pred_check
        %p103 = pneg %p28
      $region22: #{wide_resnet_forward.14} parent=19 // pred_check_branch
        %105 = sbr.rel (%p103) target = $region24
      $region23: #{wide_resnet_forward.14} parent=19 // pred_region
        %s106 = smul.u32 32, %s8
        %p107 = scmp.lt.s32.totalorder %s106, 63
        %s108 = scalar_select %p107, %s106, 63
        %s109 = smul.addr %s108, 4
        %s110 = scalar_lea.vmem %s0, %s109
        %s111 = smul.u32 32, %s8
      $region24: #{wide_resnet_forward.14} parent=19 // pred_fallthru
        _
    $region20: #{wide_resnet_forward.14} parent=5 // pred_fallthru
      _
    %p112 = scmp.le.s32.totalorder 1, %s8
    %p113 = scmp.lt.s32.totalorder %s8, 3
    %p114 = pnand %p112, %p113
    %p115 = pneg %p114
    // Predicated region
    $region25: #{wide_resnet_forward.14} parent=5 // pred_check
      _
    $region26: #{wide_resnet_forward.14} parent=5 // pred_check_branch
      %117 = sbr.rel (%p114) target = $region28
    $region27: #{wide_resnet_forward.14} parent=5 // pred_region
      %s118 = ssub.s32 %s8, 1
      %s119 = smul.u32 32, %s13
      %p120 = scmp.lt.s32.totalorder %s119, 63
      %s121 = scalar_select %p120, %s119, 63
      %s122 = smul.addr %s121, 4
      %s123 = scalar_lea.vmem %s0, %s122
      %p124 = pneg %p34
      %p125 = pneg %p31
      %p126 = pneg %p55
      %p127 = pneg %p52
      %p128 = pneg %p81
      %p129 = pneg %p78
      %s130 = smul.u32 32, %s13
      %p131 = scmp.lt.s32.totalorder %s130, 63
      %s132 = scalar_select %p131, %s130, 63
      %s133 = smul.addr %s132, 8
      %s134 = scalar_lea.vmem %s2, %s133
      %s135 = smul.u32 32, %s13
      %p136 = scmp.lt.s32.totalorder %s135, 63
      %s137 = scalar_select %p136, %s135, 63
      %s138 = smul.addr %s137, 4
      %s139 = scalar_lea.vmem %s0, %s138
      %s140 = smul.u32 32, %s13
      %s141 = smul.u32 32, %s13
      %p142 = scmp.lt.s32.totalorder %s141, 63
      %s143 = scalar_select %p142, %s141, 63
      %s144 = smul.addr %s143, 8
      %s145 = scalar_lea.vmem %s2, %s144
      %s146 = smul.u32 32, %s13
      %v148 = vld [vmem:[%s139] sm:$0xf]
      %v149 = vld [vmem:[%s139 + $0x4] sm:$0xf]
      %v150 = vld [vmem:[%s139 + $0x8] sm:$0xf]
      %v151 = vld [vmem:[%s139 + $0xc] sm:$0xf]
      %v152 = vld [vmem:[%s139 + $0x10] sm:$0xf]
      %v153 = vld [vmem:[%s139 + $0x14] sm:$0xf]
      %v154 = vld [vmem:[%s139 + $0x18] sm:$0xf]
      %v155 = vld [vmem:[%s139 + $0x1c] sm:$0xf]
      %v156 = vld [vmem:[%s139 + $0x20] sm:$0xf]
      %v157 = vld [vmem:[%s139 + $0x24] sm:$0xf]
      %v158 = vld [vmem:[%s139 + $0x28] sm:$0xf]
      %v159 = vld [vmem:[%s139 + $0x2c] sm:$0xf]
      %v160 = vld [vmem:[%s139 + $0x30] sm:$0xf]
      %v161 = vld [vmem:[%s139 + $0x34] sm:$0xf]
      %v162 = vld [vmem:[%s139 + $0x38] sm:$0xf]
      %v163 = vld [vmem:[%s139 + $0x3c] sm:$0xf]
      %v164 = vld [vmem:[%s139 + $0x40] sm:$0xf]
      %v165 = vld [vmem:[%s139 + $0x44] sm:$0xf]
      %v166 = vld [vmem:[%s139 + $0x48] sm:$0xf]
      %v167 = vld [vmem:[%s139 + $0x4c] sm:$0xf]
      %v168 = vld [vmem:[%s139 + $0x50] sm:$0xf]
      %v169 = vld [vmem:[%s139 + $0x54] sm:$0xf]
      %v170 = vld [vmem:[%s139 + $0x58] sm:$0xf]
      %v171 = vld [vmem:[%s139 + $0x5c] sm:$0xf]
      %v172 = vld [vmem:[%s139 + $0x60] sm:$0xf]
      %v173 = vld [vmem:[%s139 + $0x64] sm:$0xf]
      %v174 = vld [vmem:[%s139 + $0x68] sm:$0xf]
      %v175 = vld [vmem:[%s139 + $0x6c] sm:$0xf]
      %v176 = vld [vmem:[%s139 + $0x70] sm:$0xf]
      %v177 = vld [vmem:[%s139 + $0x74] sm:$0xf]
      %v178 = vld [vmem:[%s139 + $0x78] sm:$0xf]
      %v179 = vld [vmem:[%s139 + $0x7c] sm:$0xf]
      %v180 = vld [vmem:[%s1] sm:$0xf]
      %v181 = vld [vmem:[%s1 + $0x4] sm:$0xf]
      %v214 = vunpack.c.l.b16 %v148
      %v215 = vunpack.c.l.b16 %v149
      %v216 = vunpack.c.l.b16 %v150
      %v217 = vunpack.c.l.b16 %v151
      %v218 = vunpack.c.l.b16 %v152
      %v219 = vunpack.c.l.b16 %v153
      %v220 = vunpack.c.l.b16 %v154
      %v221 = vunpack.c.l.b16 %v155
      %v222 = vunpack.c.l.b16 %v156
      %v223 = vunpack.c.l.b16 %v157
      %v224 = vunpack.c.l.b16 %v158
      %v225 = vunpack.c.l.b16 %v159
      %v226 = vunpack.c.l.b16 %v160
      %v227 = vunpack.c.l.b16 %v161
      %v228 = vunpack.c.l.b16 %v162
      %v229 = vunpack.c.l.b16 %v163
      %v230 = vunpack.c.l.b16 %v164
      %v231 = vunpack.c.l.b16 %v165
      %v232 = vunpack.c.l.b16 %v166
      %v233 = vunpack.c.l.b16 %v167
      %v234 = vunpack.c.l.b16 %v168
      %v235 = vunpack.c.l.b16 %v169
      %v236 = vunpack.c.l.b16 %v170
      %v237 = vunpack.c.l.b16 %v171
      %v238 = vunpack.c.l.b16 %v172
      %v239 = vunpack.c.l.b16 %v173
      %v240 = vunpack.c.l.b16 %v174
      %v241 = vunpack.c.l.b16 %v175
      %v242 = vunpack.c.l.b16 %v176
      %v243 = vunpack.c.l.b16 %v177
      %v244 = vunpack.c.l.b16 %v178
      %v245 = vunpack.c.l.b16 %v179
      %v246 = vpack.c.b16 %v215, %v214
      %v247 = vpack.c.b16 %v217, %v216
      %v248 = vpack.c.b16 %v219, %v218
      %v249 = vpack.c.b16 %v221, %v220
      %v250 = vpack.c.b16 %v223, %v222
      %v251 = vpack.c.b16 %v225, %v224
      %v252 = vpack.c.b16 %v227, %v226
      %v253 = vpack.c.b16 %v229, %v228
      %v254 = vpack.c.b16 %v231, %v230
      %v255 = vpack.c.b16 %v233, %v232
      %v256 = vpack.c.b16 %v235, %v234
      %v257 = vpack.c.b16 %v237, %v236
      %v258 = vpack.c.b16 %v239, %v238
      %v259 = vpack.c.b16 %v241, %v240
      %v260 = vpack.c.b16 %v243, %v242
      %v261 = vpack.c.b16 %v245, %v244
      %v264 = vunpack.c.l.b16 %v180
      %v265 = vunpack.c.l.b16 %v181
      %v266 = vpack.c.b16 %v265, %v264
      %vm268 = vcmask 130048
      %v270 = vsel %vm268, %v246, 0
      %v273 = vsel %vm268, %v247, 0
      %v276 = vsel %vm268, %v248, 0
      %v279 = vsel %vm268, %v249, 0
      %v282 = vsel %vm268, %v250, 0
      %v285 = vsel %vm268, %v251, 0
      %v288 = vsel %vm268, %v252, 0
      %v291 = vsel %vm268, %v253, 0
      %v294 = vsel %vm268, %v254, 0
      %v297 = vsel %vm268, %v255, 0
      %v300 = vsel %vm268, %v256, 0
      %v303 = vsel %vm268, %v257, 0
      %v306 = vsel %vm268, %v258, 0
      %v309 = vsel %vm268, %v259, 0
      %v312 = vsel %vm268, %v260, 0
      %v315 = vsel %vm268, %v261, 0
      %317 = vmatprep.subr.bf16.mxu0 0
      %318 = vmatpush1.bf16.msra.mxu0 %v266
      %319 = vmatprep.subr.bf16.mxu0 0
      %320 = vmatpush1.bf16.msra.mxu0 0
      %321 = vmatprep.subr.bf16.mxu0 0
      %322 = vmatpush1.bf16.msra.mxu0 0
      %323 = vmatprep.subr.bf16.mxu0 0
      %324 = vmatpush1.bf16.msra.mxu0 0
      %325 = vmatprep.subr.bf16.mxu0 0
      %326 = vmatpush1.bf16.msra.mxu0 0
      %327 = vmatprep.subr.bf16.mxu0 0
      %328 = vmatpush1.bf16.msra.mxu0 0
      %329 = vmatprep.subr.bf16.mxu0 0
      %330 = vmatpush1.bf16.msra.mxu0 0
      %331 = vmatprep.subr.bf16.mxu0 0
      %332 = vmatpush1.bf16.msra.mxu0 0
      %333 = vmatprep.subr.bf16.mxu0 0
      %334 = vmatpush1.bf16.msra.mxu0 0
      %335 = vmatprep.subr.bf16.mxu0 0
      %336 = vmatpush1.bf16.msra.mxu0 0
      %337 = vmatprep.subr.bf16.mxu0 0
      %338 = vmatpush1.bf16.msra.mxu0 0
      %339 = vmatprep.subr.bf16.mxu0 0
      %340 = vmatpush1.bf16.msra.mxu0 0
      %341 = vmatprep.subr.bf16.mxu0 0
      %342 = vmatpush1.bf16.msra.mxu0 0
      %343 = vmatprep.subr.bf16.mxu0 0
      %344 = vmatpush1.bf16.msra.mxu0 0
      %345 = vmatprep.subr.bf16.mxu0 0
      %346 = vmatpush1.bf16.msra.mxu0 0
      %347 = vmatprep.subr.bf16.mxu0 0
      %348 = vmatpush1.bf16.msra.mxu0 0
      %349 = vmatprep.mubr.bf16.mxu0 0
      %350 = vmatmul.mubr.bf16.gmra.mrb[0].mxu0 %v270
      %v351 = vpop.f32.mrb[0].mxu0
      %v352 = vadd.f32 0.0, %v351
      %v353 = vpop.f32.mrb[0].mxu0
      %v354 = vpop.f32.mrb[0].mxu0
      %v355 = vadd.f32 0.0, %v354
      %v356 = vpop.f32.mrb[0].mxu0
      %357 = vmatprep.mubr.bf16.mxu0 0
      %358 = vmatmul.mubr.bf16.gmra.mrb[0].mxu0 %v273
      %v359 = vpop.f32.mrb[0].mxu0
      %v360 = vadd.f32 0.0, %v359
      %v361 = vpop.f32.mrb[0].mxu0
      %v362 = vpop.f32.mrb[0].mxu0
      %v363 = vadd.f32 0.0, %v362
      %v364 = vpop.f32.mrb[0].mxu0
      %365 = vmatprep.mubr.bf16.mxu0 0
      %366 = vmatmul.mubr.bf16.gmra.mrb[0].mxu0 %v276
      %v367 = vpop.f32.mrb[0].mxu0
      %v368 = vadd.f32 0.0, %v367
      %v369 = vpop.f32.mrb[0].mxu0
      %v370 = vpop.f32.mrb[0].mxu0
      %v371 = vadd.f32 0.0, %v370
      %v372 = vpop.f32.mrb[0].mxu0
      %373 = vmatprep.mubr.bf16.mxu0 0
      %374 = vmatmul.mubr.bf16.gmra.mrb[0].mxu0 %v279
      %v375 = vpop.f32.mrb[0].mxu0
      %v376 = vadd.f32 0.0, %v375
      %v377 = vpop.f32.mrb[0].mxu0
      %v378 = vpop.f32.mrb[0].mxu0
      %v379 = vadd.f32 0.0, %v378
      %v380 = vpop.f32.mrb[0].mxu0
      %381 = vmatprep.mubr.bf16.mxu0 0
      %382 = vmatmul.mubr.bf16.gmra.mrb[0].mxu0 %v282
      %v383 = vpop.f32.mrb[0].mxu0
      %v384 = vadd.f32 0.0, %v383
      %v385 = vpop.f32.mrb[0].mxu0
      %v386 = vpop.f32.mrb[0].mxu0
      %v387 = vadd.f32 0.0, %v386
      %v388 = vpop.f32.mrb[0].mxu0
      %389 = vmatprep.mubr.bf16.mxu0 0
      %390 = vmatmul.mubr.bf16.gmra.mrb[0].mxu0 %v285
      %v391 = vpop.f32.mrb[0].mxu0
      %v392 = vadd.f32 0.0, %v391
      %v393 = vpop.f32.mrb[0].mxu0
      %v394 = vpop.f32.mrb[0].mxu0
      %v395 = vadd.f32 0.0, %v394
      %v396 = vpop.f32.mrb[0].mxu0
      %397 = vmatprep.mubr.bf16.mxu0 0
      %398 = vmatmul.mubr.bf16.gmra.mrb[0].mxu0 %v288
      %v399 = vpop.f32.mrb[0].mxu0
      %v400 = vadd.f32 0.0, %v399
      %v401 = vpop.f32.mrb[0].mxu0
      %v402 = vpop.f32.mrb[0].mxu0
      %v403 = vadd.f32 0.0, %v402
      %v404 = vpop.f32.mrb[0].mxu0
      %405 = vmatprep.mubr.bf16.mxu0 0
      %406 = vmatmul.mubr.bf16.gmra.mrb[0].mxu0 %v291
      %v407 = vpop.f32.mrb[0].mxu0
      %v408 = vadd.f32 0.0, %v407
      %v409 = vpop.f32.mrb[0].mxu0
      %v410 = vpop.f32.mrb[0].mxu0
      %v411 = vadd.f32 0.0, %v410
      %v412 = vpop.f32.mrb[0].mxu0
      %413 = vmatprep.mubr.bf16.mxu0 0
      %414 = vmatmul.mubr.bf16.gmra.mrb[0].mxu0 %v294
      %v415 = vpop.f32.mrb[0].mxu0
      %v416 = vadd.f32 0.0, %v415
      %v417 = vpop.f32.mrb[0].mxu0
      %v418 = vpop.f32.mrb[0].mxu0
      %v419 = vadd.f32 0.0, %v418
      %v420 = vpop.f32.mrb[0].mxu0
      %421 = vmatprep.mubr.bf16.mxu0 0
      %422 = vmatmul.mubr.bf16.gmra.mrb[0].mxu0 %v297
      %v423 = vpop.f32.mrb[0].mxu0
      %v424 = vadd.f32 0.0, %v423
      %v425 = vpop.f32.mrb[0].mxu0
      %v426 = vpop.f32.mrb[0].mxu0
      %v427 = vadd.f32 0.0, %v426
      %v428 = vpop.f32.mrb[0].mxu0
      %429 = vmatprep.mubr.bf16.mxu0 0
      %430 = vmatmul.mubr.bf16.gmra.mrb[0].mxu0 %v300
      %v431 = vpop.f32.mrb[0].mxu0
      %v432 = vadd.f32 0.0, %v431
      %v433 = vpop.f32.mrb[0].mxu0
      %v434 = vpop.f32.mrb[0].mxu0
      %v435 = vadd.f32 0.0, %v434
      %v436 = vpop.f32.mrb[0].mxu0
      %437 = vmatprep.mubr.bf16.mxu0 0
      %438 = vmatmul.mubr.bf16.gmra.mrb[0].mxu0 %v303
      %v439 = vpop.f32.mrb[0].mxu0
      %v440 = vadd.f32 0.0, %v439
      %v441 = vpop.f32.mrb[0].mxu0
      %v442 = vpop.f32.mrb[0].mxu0
      %v443 = vadd.f32 0.0, %v442
      %v444 = vpop.f32.mrb[0].mxu0
      %445 = vmatprep.mubr.bf16.mxu0 0
      %446 = vmatmul.mubr.bf16.gmra.mrb[0].mxu0 %v306
      %v447 = vpop.f32.mrb[0].mxu0
      %v448 = vadd.f32 0.0, %v447
      %v449 = vpop.f32.mrb[0].mxu0
      %v450 = vpop.f32.mrb[0].mxu0
      %v451 = vadd.f32 0.0, %v450
      %v452 = vpop.f32.mrb[0].mxu0
      %453 = vmatprep.mubr.bf16.mxu0 0
      %454 = vmatmul.mubr.bf16.gmra.mrb[0].mxu0 %v309
      %v455 = vpop.f32.mrb[0].mxu0
      %v456 = vadd.f32 0.0, %v455
      %v457 = vpop.f32.mrb[0].mxu0
      %v458 = vpop.f32.mrb[0].mxu0
      %v459 = vadd.f32 0.0, %v458
      %v460 = vpop.f32.mrb[0].mxu0
      %461 = vmatprep.mubr.bf16.mxu0 0
      %462 = vmatmul.mubr.bf16.gmra.mrb[0].mxu0 %v312
      %v463 = vpop.f32.mrb[0].mxu0
      %v464 = vadd.f32 0.0, %v463
      %v465 = vpop.f32.mrb[0].mxu0
      %v466 = vpop.f32.mrb[0].mxu0
      %v467 = vadd.f32 0.0, %v466
      %v468 = vpop.f32.mrb[0].mxu0
      %469 = vmatprep.mubr.bf16.mxu0 0
      %470 = vmatmul.mubr.bf16.gmra.mrb[0].mxu0 %v315
      %v471 = vpop.f32.mrb[0].mxu0
      %v472 = vadd.f32 0.0, %v471
      %v473 = vpop.f32.mrb[0].mxu0
      %v474 = vpop.f32.mrb[0].mxu0
      %v475 = vadd.f32 0.0, %v474
      %v476 = vpop.f32.mrb[0].mxu0
      %477 = vdwg.mxu0
      %vm478 = vcmask 261120
      %479 = vst.msk [vmem:[%s145] sm:$0xff] %vm478, %v352
      %480 = vst.msk [vmem:[%s145 + $0x8] sm:$0xff] %vm478, %v355
      %481 = vst.msk [vmem:[%s145 + $0x10] sm:$0xff] %vm478, %v360
      %482 = vst.msk [vmem:[%s145 + $0x18] sm:$0xff] %vm478, %v363
      %483 = vst.msk [vmem:[%s145 + $0x20] sm:$0xff] %vm478, %v368
      %484 = vst.msk [vmem:[%s145 + $0x28] sm:$0xff] %vm478, %v371
      %485 = vst.msk [vmem:[%s145 + $0x30] sm:$0xff] %vm478, %v376
      %486 = vst.msk [vmem:[%s145 + $0x38] sm:$0xff] %vm478, %v379
      %487 = vst.msk [vmem:[%s145 + $0x40] sm:$0xff] %vm478, %v384
      %488 = vst.msk [vmem:[%s145 + $0x48] sm:$0xff] %vm478, %v387
      %489 = vst.msk [vmem:[%s145 + $0x50] sm:$0xff] %vm478, %v392
      %490 = vst.msk [vmem:[%s145 + $0x58] sm:$0xff] %vm478, %v395
      %491 = vst.msk [vmem:[%s145 + $0x60] sm:$0xff] %vm478, %v400
      %492 = vst.msk [vmem:[%s145 + $0x68] sm:$0xff] %vm478, %v403
      %493 = vst.msk [vmem:[%s145 + $0x70] sm:$0xff] %vm478, %v408
      %494 = vst.msk [vmem:[%s145 + $0x78] sm:$0xff] %vm478, %v411
      %495 = vst.msk [vmem:[%s145 + $0x80] sm:$0xff] %vm478, %v416
      %496 = vst.msk [vmem:[%s145 + $0x88] sm:$0xff] %vm478, %v419
      %497 = vst.msk [vmem:[%s145 + $0x90] sm:$0xff] %vm478, %v424
      %498 = vst.msk [vmem:[%s145 + $0x98] sm:$0xff] %vm478, %v427
      %499 = vst.msk [vmem:[%s145 + $0xa0] sm:$0xff] %vm478, %v432
      %500 = vst.msk [vmem:[%s145 + $0xa8] sm:$0xff] %vm478, %v435
      %501 = vst.msk [vmem:[%s145 + $0xb0] sm:$0xff] %vm478, %v440
      %502 = vst.msk [vmem:[%s145 + $0xb8] sm:$0xff] %vm478, %v443
      %503 = vst.msk [vmem:[%s145 + $0xc0] sm:$0xff] %vm478, %v448
      %504 = vst.msk [vmem:[%s145 + $0xc8] sm:$0xff] %vm478, %v451
      %505 = vst.msk [vmem:[%s145 + $0xd0] sm:$0xff] %vm478, %v456
      %506 = vst.msk [vmem:[%s145 + $0xd8] sm:$0xff] %vm478, %v459
      %507 = vst.msk [vmem:[%s145 + $0xe0] sm:$0xff] %vm478, %v464
      %508 = vst.msk [vmem:[%s145 + $0xe8] sm:$0xff] %vm478, %v467
      %509 = vst.msk [vmem:[%s145 + $0xf0] sm:$0xff] %vm478, %v472
      %510 = vst.msk [vmem:[%s145 + $0xf8] sm:$0xff] %vm478, %v475
      %s511 = smul.u32 32, %s13
      %p512 = scmp.lt.s32.totalorder %s511, 63
      %s513 = scalar_select %p512, %s511, 63
      %s514 = smul.addr %s513, 8
      %s515 = scalar_lea.vmem %s2, %s514
      // Predicated region
      $region29: #{wide_resnet_forward.14} parent=27 // pred_check
        %p516 = pneg %p78
      $region30: #{wide_resnet_forward.14} parent=27 // pred_check_branch
        %518 = sbr.rel (%p516) target = $region32
      $region31: #{wide_resnet_forward.14} parent=27 // pred_region
        %s519 = smul.u32 32, %s13
      $region32: #{wide_resnet_forward.14} parent=27 // pred_fallthru
        _
    $region28: #{wide_resnet_forward.14} parent=5 // pred_fallthru
      _
    %p520 = scmp.le.s32.totalorder 2, %s8
    // Predicated region
    $region33: #{wide_resnet_forward.14} parent=5 // pred_check
      %p521 = pneg %p520
    $region34: #{wide_resnet_forward.14} parent=5 // pred_check_branch
      %523 = sbr.rel (%p521) target = $region36
    $region35: #{wide_resnet_forward.14} parent=5 // pred_region
      %s524 = ssub.s32 %s8, 2
      // Predicated region
      $region37: #{wide_resnet_forward.14} parent=35 // pred_check
        %p525 = pneg %p84
      $region38: #{wide_resnet_forward.14} parent=35 // pred_check_branch
        %527 = sbr.rel (%p525) target = $region40
      $region39: #{wide_resnet_forward.14} parent=35 // pred_region
        %s528 = smul.u32 32, %s14
        %p529 = scmp.lt.s32.totalorder %s528, 63
        %s530 = scalar_select %p529, %s528, 63
        %s531 = smul.addr %s530, 8
        %s532 = scalar_lea.vmem %s2, %s531
      $region40: #{wide_resnet_forward.14} parent=35 // pred_fallthru
        _
    $region36: #{wide_resnet_forward.14} parent=5 // pred_fallthru
      _
  $region6: #{wide_resnet_forward.14} parent=0 // loop_footer
    %s12 = sadd.s32 1, %s8
  $region7: #{wide_resnet_forward.14} parent=0 // loop_footer_branch
    %7 = sbr.rel target = $region3
  $region8: #{wide_resnet_forward.14} parent=0 // loop_exit
    _

// kernel: wide_resnet_forward.13
$region0: #{wide_resnet_forward.13}
  #allocation0 [shape = 'u32[]', space=smem, size = 0x4, offset = 0x4, fixed_abs, tag = 'smem constant byte address 0x4 - core index']
  #allocation1 [shape = 'u32[144,128]{1,0:T(1,128)}', space=vmem, size = 0x12000, scoped, tag = 'internal scratch']
  %s0 = inlined_call_operand.vmem [shape: bf16[512,144], index: 0, kind: input, shape index: {}]
  %s1 = inlined_call_operand.vmem [shape: bf16[144,32], index: 1, kind: input, shape index: {}]
  %s2 = inlined_call_operand.vmem [shape: f32[1,32], index: 2, kind: input, shape index: {}]
  %s3 = inlined_call_operand.vmem [shape: f32[1,32], index: 3, kind: input, shape index: {}]
  %s4 = inlined_call_operand.vmem [shape: f32[512,32], index: 4, kind: output, shape index: {}]
  %s5 = sld [smem:[#allocation0]]
  $region49: #{wide_resnet_forward.13} parent=0
    _
  %s7 = ssub.s32 1, %s5
  %s8 = scalar_select 0, %s7, %s5
  loop: start=0, step=1, limit=4
  $region2: #{wide_resnet_forward.13} parent=0 // loop_pre_header
    _
  $region3: #{wide_resnet_forward.13} parent=0 // loop_header
    %s10 = sphi 0, %s14
    %p11 = scmp.ge.s32.totalorder %s10, 4
    %s20 = sphi 0, %s22
    %s23 = sphi 0, %s20
    %s24 = sphi 0, %s23
    %s40 = sphi 0, %s24
    %s44 = sphi 0, %s44
    %s46 = sphi 0, %s44
    %s47 = sphi 0, %s46
    %s61 = sphi 0, %s47
    %s65 = sphi 0, %s65
    %s67 = sphi 0, %s65
    %s68 = sphi 0, %s67
    %s82 = sphi 0, %s68
    %s86 = sphi 0, %s86
    %s88 = sphi 0, %s86
    %s89 = sphi 0, %s88
    %s103 = sphi 0, %s89
    %s109 = sphi 0, %s111
    %s112 = sphi 0, %s109
    %s113 = sphi 0, %s112
    %s129 = sphi 0, %s113
  $region4: #{wide_resnet_forward.13} parent=0 // loop_header_branch
    %13 = sbr.rel (%p11) target = $region8
  $region5: #{wide_resnet_forward.13} parent=0 // loop_body
    %s15 = ssub.s32 %s10, 1
    %s16 = ssub.s32 %s10, 2
    %s17 = sadd.s32 %s10, 1
    %s18 = ssub.s32 %s10, %s17
    %p19 = scmp.eq.s32.totalorder %s18, 0
    %s21 = sadd.s32 %s20, 1
    %s22 = scalar_select %p19, %s20, %s21
    %p25 = pneg %p19
    %p26 = scmp.eq.s32.totalorder %s10, 1
    %p27 = por %p25, %p26
    %p28 = scmp.ne.s32.totalorder %s20, %s23
    %p29 = scmp.eq.s32.totalorder %s10, 0
    %p30 = por %p28, %p29
    %p31 = scmp.ne.s32.totalorder %s20, %s23
    %p32 = scmp.eq.s32.totalorder %s15, 1
    %p33 = por %p31, %p32
    %p34 = scmp.ne.s32.totalorder %s23, %s24
    %p35 = scmp.eq.s32.totalorder %s15, 0
    %p36 = por %p34, %p35
    %p37 = scmp.ne.s32.totalorder %s23, %s24
    %p38 = scmp.eq.s32.totalorder %s16, 1
    %p39 = por %p37, %p38
    %p41 = scmp.ne.s32.totalorder %s24, %s40
    %p42 = scmp.eq.s32.totalorder %s16, 0
    %p43 = por %p41, %p42
    %s45 = sadd.s32 %s44, 1
    %p48 = scmp.eq.s32.totalorder %s10, 1
    %p49 = scmp.ne.s32.totalorder %s44, %s46
    %p50 = scmp.eq.s32.totalorder %s10, 0
    %p51 = por %p49, %p50
    %p52 = scmp.ne.s32.totalorder %s44, %s46
    %p53 = scmp.eq.s32.totalorder %s15, 1
    %p54 = por %p52, %p53
    %p55 = scmp.ne.s32.totalorder %s46, %s47
    %p56 = scmp.eq.s32.totalorder %s15, 0
    %p57 = por %p55, %p56
    %p58 = scmp.ne.s32.totalorder %s46, %s47
    %p59 = scmp.eq.s32.totalorder %s16, 1
    %p60 = por %p58, %p59
    %p62 = scmp.ne.s32.totalorder %s47, %s61
    %p63 = scmp.eq.s32.totalorder %s16, 0
    %p64 = por %p62, %p63
    %s66 = sadd.s32 %s65, 1
    %p69 = scmp.eq.s32.totalorder %s10, 1
    %p70 = scmp.ne.s32.totalorder %s65, %s67
    %p71 = scmp.eq.s32.totalorder %s10, 0
    %p72 = por %p70, %p71
    %p73 = scmp.ne.s32.totalorder %s65, %s67
    %p74 = scmp.eq.s32.totalorder %s15, 1
    %p75 = por %p73, %p74
    %p76 = scmp.ne.s32.totalorder %s67, %s68
    %p77 = scmp.eq.s32.totalorder %s15, 0
    %p78 = por %p76, %p77
    %p79 = scmp.ne.s32.totalorder %s67, %s68
    %p80 = scmp.eq.s32.totalorder %s16, 1
    %p81 = por %p79, %p80
    %p83 = scmp.ne.s32.totalorder %s68, %s82
    %p84 = scmp.eq.s32.totalorder %s16, 0
    %p85 = por %p83, %p84
    %s87 = sadd.s32 %s86, 1
    %p90 = scmp.eq.s32.totalorder %s10, 1
    %p91 = scmp.ne.s32.totalorder %s86, %s88
    %p92 = scmp.eq.s32.totalorder %s10, 0
    %p93 = por %p91, %p92
    %p94 = scmp.ne.s32.totalorder %s86, %s88
    %p95 = scmp.eq.s32.totalorder %s15, 1
    %p96 = por %p94, %p95
    %p97 = scmp.ne.s32.totalorder %s88, %s89
    %p98 = scmp.eq.s32.totalorder %s15, 0
    %p99 = por %p97, %p98
    %p100 = scmp.ne.s32.totalorder %s88, %s89
    %p101 = scmp.eq.s32.totalorder %s16, 1
    %p102 = por %p100, %p101
    %p104 = scmp.ne.s32.totalorder %s89, %s103
    %p105 = scmp.eq.s32.totalorder %s16, 0
    %p106 = por %p104, %p105
    %s107 = ssub.s32 %s10, %s17
    %p108 = scmp.eq.s32.totalorder %s107, 0
    %s110 = sadd.s32 %s109, 1
    %s111 = scalar_select %p108, %s109, %s110
    %p114 = pneg %p108
    %p115 = scmp.eq.s32.totalorder %s10, 1
    %p116 = por %p114, %p115
    %p117 = scmp.ne.s32.totalorder %s109, %s112
    %p118 = scmp.eq.s32.totalorder %s10, 0
    %p119 = por %p117, %p118
    %p120 = scmp.ne.s32.totalorder %s109, %s112
    %p121 = scmp.eq.s32.totalorder %s15, 1
    %p122 = por %p120, %p121
    %p123 = scmp.ne.s32.totalorder %s112, %s113
    %p124 = scmp.eq.s32.totalorder %s15, 0
    %p125 = por %p123, %p124
    %p126 = scmp.ne.s32.totalorder %s112, %s113
    %p127 = scmp.eq.s32.totalorder %s16, 1
    %p128 = por %p126, %p127
    %p130 = scmp.ne.s32.totalorder %s113, %s129
    %p131 = scmp.eq.s32.totalorder %s16, 0
    %p132 = por %p130, %p131
    %p133 = scmp.le.s32.totalorder 1, %s10
    %p134 = scmp.lt.s32.totalorder %s10, 3
    %p135 = pnand %p133, %p134
    %p136 = pneg %p135
    // Predicated region
    $region9: #{wide_resnet_forward.13} parent=5 // pred_check
      _
    $region10: #{wide_resnet_forward.13} parent=5 // pred_check_branch
      %138 = sbr.rel (%p135) target = $region12
    $region11: #{wide_resnet_forward.13} parent=5 // pred_region
      %s139 = ssub.s32 %s10, 1
      // Predicated region
      $region13: #{wide_resnet_forward.13} parent=11 // pred_check
        %p140 = pneg %p57
      $region14: #{wide_resnet_forward.13} parent=11 // pred_check_branch
        %142 = sbr.rel (%p140) target = $region16
      $region15: #{wide_resnet_forward.13} parent=11 // pred_region
        _
      $region16: #{wide_resnet_forward.13} parent=11 // pred_fallthru
        _
      // Predicated region
      $region17: #{wide_resnet_forward.13} parent=11 // pred_check
        %p143 = pneg %p78
      $region18: #{wide_resnet_forward.13} parent=11 // pred_check_branch
        %145 = sbr.rel (%p143) target = $region20
      $region19: #{wide_resnet_forward.13} parent=11 // pred_region
        _
      $region20: #{wide_resnet_forward.13} parent=11 // pred_fallthru
        _
      // Predicated region
      $region21: #{wide_resnet_forward.13} parent=11 // pred_check
        %p146 = pneg %p99
      $region22: #{wide_resnet_forward.13} parent=11 // pred_check_branch
        %148 = sbr.rel (%p146) target = $region24
      $region23: #{wide_resnet_forward.13} parent=11 // pred_region
        _
      $region24: #{wide_resnet_forward.13} parent=11 // pred_fallthru
        _
    $region12: #{wide_resnet_forward.13} parent=5 // pred_fallthru
      _
    %p149 = scmp.lt.s32.totalorder %s10, 2
    // Predicated region
    $region25: #{wide_resnet_forward.13} parent=5 // pred_check
      %p150 = pneg %p149
    $region26: #{wide_resnet_forward.13} parent=5 // pred_check_branch
      %152 = sbr.rel (%p150) target = $region28
    $region27: #{wide_resnet_forward.13} parent=5 // pred_region
      // Predicated region
      $region29: #{wide_resnet_forward.13} parent=27 // pred_check
        %p153 = pneg %p30
      $region30: #{wide_resnet_forward.13} parent=27 // pred_check_branch
        %155 = sbr.rel (%p153) target = $region32
      $region31: #{wide_resnet_forward.13} parent=27 // pred_region
        %s156 = smul.u32 32, %s10
        %p157 = scmp.lt.s32.totalorder %s156, 63
        %s158 = scalar_select %p157, %s156, 63
        %s159 = smul.addr %s158, 2
        %s160 = smul.addr %s159, 4
        %s161 = scalar_lea.vmem %s0, %s160
        %s162 = smul.u32 32, %s10
      $region32: #{wide_resnet_forward.13} parent=27 // pred_fallthru
        _
    $region28: #{wide_resnet_forward.13} parent=5 // pred_fallthru
      _
    %p163 = scmp.le.s32.totalorder 1, %s10
    %p164 = scmp.lt.s32.totalorder %s10, 3
    %p165 = pnand %p163, %p164
    %p166 = pneg %p165
    // Predicated region
    $region33: #{wide_resnet_forward.13} parent=5 // pred_check
      _
    $region34: #{wide_resnet_forward.13} parent=5 // pred_check_branch
      %168 = sbr.rel (%p165) target = $region36
    $region35: #{wide_resnet_forward.13} parent=5 // pred_region
      %s169 = ssub.s32 %s10, 1
      %s170 = smul.u32 32, %s15
      %p171 = scmp.lt.s32.totalorder %s170, 63
      %s172 = scalar_select %p171, %s170, 63
      %s173 = smul.addr %s172, 2
      %s174 = smul.addr %s173, 4
      %s175 = scalar_lea.vmem %s0, %s174
      %p176 = pneg %p36
      %p177 = pneg %p33
      %p178 = pneg %p57
      %p179 = pneg %p54
      %p180 = pneg %p78
      %p181 = pneg %p75
      %p182 = pneg %p99
      %p183 = pneg %p96
      %p184 = pneg %p125
      %p185 = pneg %p122
      %s186 = smul.u32 32, %s15
      %p187 = scmp.lt.s32.totalorder %s186, 63
      %s188 = scalar_select %p187, %s186, 63
      %s189 = smul.addr %s188, 8
      %s190 = scalar_lea.vmem %s4, %s189
      %s191 = smul.u32 32, %s15
      %p192 = scmp.lt.s32.totalorder %s191, 63
      %s193 = scalar_select %p192, %s191, 63
      %s194 = smul.addr %s193, 2
      %s195 = smul.addr %s194, 4
      %s196 = scalar_lea.vmem %s0, %s195
      %s197 = smul.u32 32, %s15
      %s198 = smul.u32 32, %s15
      %p199 = scmp.lt.s32.totalorder %s198, 63
      %s200 = scalar_select %p199, %s198, 63
      %s201 = smul.addr %s200, 8
      %s202 = scalar_lea.vmem %s4, %s201
      %s203 = smul.u32 32, %s15
      %v205 = vld [vmem:[%s196] sm:$0xff]
      %v206 = vld [vmem:[%s196 + $0x8] sm:$0xff]
      %v207 = vld [vmem:[%s196 + $0x10] sm:$0xff]
      %v208 = vld [vmem:[%s196 + $0x18] sm:$0xff]
      %v209 = vld [vmem:[%s196 + $0x20] sm:$0xff]
      %v210 = vld [vmem:[%s196 + $0x28] sm:$0xff]
      %v211 = vld [vmem:[%s196 + $0x30] sm:$0xff]
      %v212 = vld [vmem:[%s196 + $0x38] sm:$0xff]
      %v213 = vld [vmem:[%s196 + $0x40] sm:$0xff]
      %v214 = vld [vmem:[%s196 + $0x48] sm:$0xff]
      %v215 = vld [vmem:[%s196 + $0x50] sm:$0xff]
      %v216 = vld [vmem:[%s196 + $0x58] sm:$0xff]
      %v217 = vld [vmem:[%s196 + $0x60] sm:$0xff]
      %v218 = vld [vmem:[%s196 + $0x68] sm:$0xff]
      %v219 = vld [vmem:[%s196 + $0x70] sm:$0xff]
      %v220 = vld [vmem:[%s196 + $0x78] sm:$0xff]
      %v221 = vld [vmem:[%s196 + $0x80] sm:$0xff]
      %v222 = vld [vmem:[%s196 + $0x88] sm:$0xff]
      %v223 = vld [vmem:[%s196 + $0x90] sm:$0xff]
      %v224 = vld [vmem:[%s196 + $0x98] sm:$0xff]
      %v225 = vld [vmem:[%s196 + $0xa0] sm:$0xff]
      %v226 = vld [vmem:[%s196 + $0xa8] sm:$0xff]
      %v227 = vld [vmem:[%s196 + $0xb0] sm:$0xff]
      %v228 = vld [vmem:[%s196 + $0xb8] sm:$0xff]
      %v229 = vld [vmem:[%s196 + $0xc0] sm:$0xff]
      %v230 = vld [vmem:[%s196 + $0xc8] sm:$0xff]
      %v231 = vld [vmem:[%s196 + $0xd0] sm:$0xff]
      %v232 = vld [vmem:[%s196 + $0xd8] sm:$0xff]
      %v233 = vld [vmem:[%s196 + $0xe0] sm:$0xff]
      %v234 = vld [vmem:[%s196 + $0xe8] sm:$0xff]
      %v235 = vld [vmem:[%s196 + $0xf0] sm:$0xff]
      %v236 = vld [vmem:[%s196 + $0xf8] sm:$0xff]
      %v237 = vld [vmem:[%s1] sm:$0xf]
      %v238 = vld [vmem:[%s1 + $0x4] sm:$0xf]
      %v239 = vld [vmem:[%s1 + $0x8] sm:$0xf]
      %v240 = vld [vmem:[%s1 + $0xc] sm:$0xf]
      %v241 = vld [vmem:[%s1 + $0x10] sm:$0xf]
      %v242 = vld [vmem:[%s1 + $0x14] sm:$0xf]
      %v243 = vld [vmem:[%s1 + $0x18] sm:$0xf]
      %v244 = vld [vmem:[%s1 + $0x1c] sm:$0xf]
      %v245 = vld [vmem:[%s1 + $0x20] sm:$0xf]
      %v246 = vld [vmem:[%s1 + $0x24] sm:$0xf]
      %v247 = vld [vmem:[%s1 + $0x28] sm:$0xf]
      %v248 = vld [vmem:[%s1 + $0x2c] sm:$0xf]
      %v249 = vld [vmem:[%s1 + $0x30] sm:$0xf]
      %v250 = vld [vmem:[%s1 + $0x34] sm:$0xf]
      %v251 = vld [vmem:[%s1 + $0x38] sm:$0xf]
      %v252 = vld [vmem:[%s1 + $0x3c] sm:$0xf]
      %v253 = vld [vmem:[%s1 + $0x40] sm:$0xf]
      %v254 = vld [vmem:[%s1 + $0x44] sm:$0xf]
      %v287 = vunpack.c.l.b16 %v205
      %v288 = vunpack.c.h.b16 %v205
      %v289 = vunpack.c.l.b16 %v206
      %v290 = vunpack.c.h.b16 %v206
      %v291 = vunpack.c.l.b16 %v207
      %v292 = vunpack.c.h.b16 %v207
      %v293 = vunpack.c.l.b16 %v208
      %v294 = vunpack.c.h.b16 %v208
      %v295 = vunpack.c.l.b16 %v209
      %v296 = vunpack.c.h.b16 %v209
      %v297 = vunpack.c.l.b16 %v210
      %v298 = vunpack.c.h.b16 %v210
      %v299 = vunpack.c.l.b16 %v211
      %v300 = vunpack.c.h.b16 %v211
      %v301 = vunpack.c.l.b16 %v212
      %v302 = vunpack.c.h.b16 %v212
      %v303 = vunpack.c.l.b16 %v213
      %v304 = vunpack.c.h.b16 %v213
      %v305 = vunpack.c.l.b16 %v214
      %v306 = vunpack.c.h.b16 %v214
      %v307 = vunpack.c.l.b16 %v215
      %v308 = vunpack.c.h.b16 %v215
      %v309 = vunpack.c.l.b16 %v216
      %v310 = vunpack.c.h.b16 %v216
      %v311 = vunpack.c.l.b16 %v217
      %v312 = vunpack.c.h.b16 %v217
      %v313 = vunpack.c.l.b16 %v218
      %v314 = vunpack.c.h.b16 %v218
      %v315 = vunpack.c.l.b16 %v219
      %v316 = vunpack.c.h.b16 %v219
      %v317 = vunpack.c.l.b16 %v220
      %v318 = vunpack.c.h.b16 %v220
      %v319 = vunpack.c.l.b16 %v221
      %v320 = vunpack.c.h.b16 %v221
      %v321 = vunpack.c.l.b16 %v222
      %v322 = vunpack.c.h.b16 %v222
      %v323 = vunpack.c.l.b16 %v223
      %v324 = vunpack.c.h.b16 %v223
      %v325 = vunpack.c.l.b16 %v224
      %v326 = vunpack.c.h.b16 %v224
      %v327 = vunpack.c.l.b16 %v225
      %v328 = vunpack.c.h.b16 %v225
      %v329 = vunpack.c.l.b16 %v226
      %v330 = vunpack.c.h.b16 %v226
      %v331 = vunpack.c.l.b16 %v227
      %v332 = vunpack.c.h.b16 %v227
      %v333 = vunpack.c.l.b16 %v228
      %v334 = vunpack.c.h.b16 %v228
      %v335 = vunpack.c.l.b16 %v229
      %v336 = vunpack.c.h.b16 %v229
      %v337 = vunpack.c.l.b16 %v230
      %v338 = vunpack.c.h.b16 %v230
      %v339 = vunpack.c.l.b16 %v231
      %v340 = vunpack.c.h.b16 %v231
      %v341 = vunpack.c.l.b16 %v232
      %v342 = vunpack.c.h.b16 %v232
      %v343 = vunpack.c.l.b16 %v233
      %v344 = vunpack.c.h.b16 %v233
      %v345 = vunpack.c.l.b16 %v234
      %v346 = vunpack.c.h.b16 %v234
      %v347 = vunpack.c.l.b16 %v235
      %v348 = vunpack.c.h.b16 %v235
      %v349 = vunpack.c.l.b16 %v236
      %v350 = vunpack.c.h.b16 %v236
      %v351 = vpack.c.b16 %v289, %v287
      %v352 = vpack.c.b16 %v290, %v288
      %v353 = vpack.c.b16 %v293, %v291
      %v354 = vpack.c.b16 %v294, %v292
      %v355 = vpack.c.b16 %v297, %v295
      %v356 = vpack.c.b16 %v298, %v296
      %v357 = vpack.c.b16 %v301, %v299
      %v358 = vpack.c.b16 %v302, %v300
      %v359 = vpack.c.b16 %v305, %v303
      %v360 = vpack.c.b16 %v306, %v304
      %v361 = vpack.c.b16 %v309, %v307
      %v362 = vpack.c.b16 %v310, %v308
      %v363 = vpack.c.b16 %v313, %v311
      %v364 = vpack.c.b16 %v314, %v312
      %v365 = vpack.c.b16 %v317, %v315
      %v366 = vpack.c.b16 %v318, %v316
      %v367 = vpack.c.b16 %v321, %v319
      %v368 = vpack.c.b16 %v322, %v320
      %v369 = vpack.c.b16 %v325, %v323
      %v370 = vpack.c.b16 %v326, %v324
      %v371 = vpack.c.b16 %v329, %v327
      %v372 = vpack.c.b16 %v330, %v328
      %v373 = vpack.c.b16 %v333, %v331
      %v374 = vpack.c.b16 %v334, %v332
      %v375 = vpack.c.b16 %v337, %v335
      %v376 = vpack.c.b16 %v338, %v336
      %v377 = vpack.c.b16 %v341, %v339
      %v378 = vpack.c.b16 %v342, %v340
      %v379 = vpack.c.b16 %v345, %v343
      %v380 = vpack.c.b16 %v346, %v344
      %v381 = vpack.c.b16 %v349, %v347
      %v382 = vpack.c.b16 %v350, %v348
      %v417 = vunpack.c.l.b16 %v237
      %v418 = vunpack.c.l.b16 %v238
      %v419 = vunpack.c.l.b16 %v239
      %v420 = vunpack.c.l.b16 %v240
      %v421 = vunpack.c.l.b16 %v241
      %v422 = vunpack.c.l.b16 %v242
      %v423 = vunpack.c.l.b16 %v243
      %v424 = vunpack.c.l.b16 %v244
      %v425 = vunpack.c.l.b16 %v245
      %v426 = vunpack.c.l.b16 %v246
      %v427 = vunpack.c.l.b16 %v247
      %v428 = vunpack.c.l.b16 %v248
      %v429 = vunpack.c.l.b16 %v249
      %v430 = vunpack.c.l.b16 %v250
      %v431 = vunpack.c.l.b16 %v251
      %v432 = vunpack.c.l.b16 %v252
      %v433 = vunpack.c.l.b16 %v253
      %v434 = vunpack.c.l.b16 %v254
      %v435 = vpack.c.b16 %v418, %v417
      %v436 = vpack.c.b16 %v420, %v419
      %v437 = vpack.c.b16 %v422, %v421
      %v438 = vpack.c.b16 %v424, %v423
      %v439 = vpack.c.b16 %v426, %v425
      %v440 = vpack.c.b16 %v428, %v427
      %v441 = vpack.c.b16 %v430, %v429
      %v442 = vpack.c.b16 %v432, %v431
      %v443 = vpack.c.b16 %v434, %v433
      %vm453 = vcmask 130048
      %v455 = vsel %vm453, %v352, 0
      %v458 = vsel %vm453, %v354, 0
      %v461 = vsel %vm453, %v356, 0
      %v464 = vsel %vm453, %v358, 0
      %v467 = vsel %vm453, %v360, 0
      %v470 = vsel %vm453, %v362, 0
      %v473 = vsel %vm453, %v364, 0
      %v476 = vsel %vm453, %v366, 0
      %v479 = vsel %vm453, %v368, 0
      %v482 = vsel %vm453, %v370, 0
      %v485 = vsel %vm453, %v372, 0
      %v488 = vsel %vm453, %v374, 0
      %v491 = vsel %vm453, %v376, 0
      %v494 = vsel %vm453, %v378, 0
      %v497 = vsel %vm453, %v380, 0
      %v500 = vsel %vm453, %v382, 0
      %502 = vmatprep.subr.bf16.mxu0 0
      %503 = vmatpush1.bf16.msra.mxu0 %v435
      %504 = vmatprep.subr.bf16.mxu0 0
      %505 = vmatpush1.bf16.msra.mxu0 %v436
      %506 = vmatprep.subr.bf16.mxu0 0
      %507 = vmatpush1.bf16.msra.mxu0 %v437
      %508 = vmatprep.subr.bf16.mxu0 0
      %509 = vmatpush1.bf16.msra.mxu0 %v438
      %510 = vmatprep.subr.bf16.mxu0 0
      %511 = vmatpush1.bf16.msra.mxu0 %v439
      %512 = vmatprep.subr.bf16.mxu0 0
      %513 = vmatpush1.bf16.msra.mxu0 %v440
      %514 = vmatprep.subr.bf16.mxu0 0
      %515 = vmatpush1.bf16.msra.mxu0 %v441
      %516 = vmatprep.subr.bf16.mxu0 0
      %517 = vmatpush1.bf16.msra.mxu0 %v442
      %518 = vmatprep.subr.bf16.mxu0 0
      %519 = vmatpush1.bf16.msra.mxu0 %v443
      %520 = vmatprep.subr.bf16.mxu0 0
      %521 = vmatpush1.bf16.msra.mxu0 0
      %522 = vmatprep.subr.bf16.mxu0 0
      %523 = vmatpush1.bf16.msra.mxu0 0
      %524 = vmatprep.subr.bf16.mxu0 0
      %525 = vmatpush1.bf16.msra.mxu0 0
      %526 = vmatprep.subr.bf16.mxu0 0
      %527 = vmatpush1.bf16.msra.mxu0 0
      %528 = vmatprep.subr.bf16.mxu0 0
      %529 = vmatpush1.bf16.msra.mxu0 0
      %530 = vmatprep.subr.bf16.mxu0 0
      %531 = vmatpush1.bf16.msra.mxu0 0
      %532 = vmatprep.subr.bf16.mxu0 0
      %533 = vmatpush1.bf16.msra.mxu0 0
      %534 = vmatprep.mubr.bf16.mxu0 %v455
      %535 = vmatmul.mubr.bf16.gmra.mrb[0].mxu0 %v351
      %v536 = vpop.f32.mrb[0].mxu0
      %v537 = vadd.f32 0.0, %v536
      %v538 = vpop.f32.mrb[0].mxu0
      %v539 = vpop.f32.mrb[0].mxu0
      %v540 = vadd.f32 0.0, %v539
      %v541 = vpop.f32.mrb[0].mxu0
      %542 = vmatprep.mubr.bf16.mxu0 %v458
      %543 = vmatmul.mubr.bf16.gmra.mrb[0].mxu0 %v353
      %v544 = vpop.f32.mrb[0].mxu0
      %v545 = vadd.f32 0.0, %v544
      %v546 = vpop.f32.mrb[0].mxu0
      %v547 = vpop.f32.mrb[0].mxu0
      %v548 = vadd.f32 0.0, %v547
      %v549 = vpop.f32.mrb[0].mxu0
      %550 = vmatprep.mubr.bf16.mxu0 %v461
      %551 = vmatmul.mubr.bf16.gmra.mrb[0].mxu0 %v355
      %v552 = vpop.f32.mrb[0].mxu0
      %v553 = vadd.f32 0.0, %v552
      %v554 = vpop.f32.mrb[0].mxu0
      %v555 = vpop.f32.mrb[0].mxu0
      %v556 = vadd.f32 0.0, %v555
      %v557 = vpop.f32.mrb[0].mxu0
      %558 = vmatprep.mubr.bf16.mxu0 %v464
      %559 = vmatmul.mubr.bf16.gmra.mrb[0].mxu0 %v357
      %v560 = vpop.f32.mrb[0].mxu0
      %v561 = vadd.f32 0.0, %v560
      %v562 = vpop.f32.mrb[0].mxu0
      %v563 = vpop.f32.mrb[0].mxu0
      %v564 = vadd.f32 0.0, %v563
      %v565 = vpop.f32.mrb[0].mxu0
      %566 = vmatprep.mubr.bf16.mxu0 %v467
      %567 = vmatmul.mubr.bf16.gmra.mrb[0].mxu0 %v359
      %v568 = vpop.f32.mrb[0].mxu0
      %v569 = vadd.f32 0.0, %v568
      %v570 = vpop.f32.mrb[0].mxu0
      %v571 = vpop.f32.mrb[0].mxu0
      %v572 = vadd.f32 0.0, %v571
      %v573 = vpop.f32.mrb[0].mxu0
      %574 = vmatprep.mubr.bf16.mxu0 %v470
      %575 = vmatmul.mubr.bf16.gmra.mrb[0].mxu0 %v361
      %v576 = vpop.f32.mrb[0].mxu0
      %v577 = vadd.f32 0.0, %v576
      %v578 = vpop.f32.mrb[0].mxu0
      %v579 = vpop.f32.mrb[0].mxu0
      %v580 = vadd.f32 0.0, %v579
      %v581 = vpop.f32.mrb[0].mxu0
      %582 = vmatprep.mubr.bf16.mxu0 %v473
      %583 = vmatmul.mubr.bf16.gmra.mrb[0].mxu0 %v363
      %v584 = vpop.f32.mrb[0].mxu0
      %v585 = vadd.f32 0.0, %v584
      %v586 = vpop.f32.mrb[0].mxu0
      %v587 = vpop.f32.mrb[0].mxu0
      %v588 = vadd.f32 0.0, %v587
      %v589 = vpop.f32.mrb[0].mxu0
      %590 = vmatprep.mubr.bf16.mxu0 %v476
      %591 = vmatmul.mubr.bf16.gmra.mrb[0].mxu0 %v365
      %v592 = vpop.f32.mrb[0].mxu0
      %v593 = vadd.f32 0.0, %v592
      %v594 = vpop.f32.mrb[0].mxu0
      %v595 = vpop.f32.mrb[0].mxu0
      %v596 = vadd.f32 0.0, %v595
      %v597 = vpop.f32.mrb[0].mxu0
      %598 = vmatprep.mubr.bf16.mxu0 %v479
      %599 = vmatmul.mubr.bf16.gmra.mrb[0].mxu0 %v367
      %v600 = vpop.f32.mrb[0].mxu0
      %v601 = vadd.f32 0.0, %v600
      %v602 = vpop.f32.mrb[0].mxu0
      %v603 = vpop.f32.mrb[0].mxu0
      %v604 = vadd.f32 0.0, %v603
      %v605 = vpop.f32.mrb[0].mxu0
      %606 = vmatprep.mubr.bf16.mxu0 %v482
      %607 = vmatmul.mubr.bf16.gmra.mrb[0].mxu0 %v369
      %v608 = vpop.f32.mrb[0].mxu0
      %v609 = vadd.f32 0.0, %v608
      %v610 = vpop.f32.mrb[0].mxu0
      %v611 = vpop.f32.mrb[0].mxu0
      %v612 = vadd.f32 0.0, %v611
      %v613 = vpop.f32.mrb[0].mxu0
      %614 = vmatprep.mubr.bf16.mxu0 %v485
      %615 = vmatmul.mubr.bf16.gmra.mrb[0].mxu0 %v371
      %v616 = vpop.f32.mrb[0].mxu0
      %v617 = vadd.f32 0.0, %v616
      %v618 = vpop.f32.mrb[0].mxu0
      %v619 = vpop.f32.mrb[0].mxu0
      %v620 = vadd.f32 0.0, %v619
      %v621 = vpop.f32.mrb[0].mxu0
      %622 = vmatprep.mubr.bf16.mxu0 %v488
      %623 = vmatmul.mubr.bf16.gmra.mrb[0].mxu0 %v373
      %v624 = vpop.f32.mrb[0].mxu0
      %v625 = vadd.f32 0.0, %v624
      %v626 = vpop.f32.mrb[0].mxu0
      %v627 = vpop.f32.mrb[0].mxu0
      %v628 = vadd.f32 0.0, %v627
      %v629 = vpop.f32.mrb[0].mxu0
      %630 = vmatprep.mubr.bf16.mxu0 %v491
      %631 = vmatmul.mubr.bf16.gmra.mrb[0].mxu0 %v375
      %v632 = vpop.f32.mrb[0].mxu0
      %v633 = vadd.f32 0.0, %v632
      %v634 = vpop.f32.mrb[0].mxu0
      %v635 = vpop.f32.mrb[0].mxu0
      %v636 = vadd.f32 0.0, %v635
      %v637 = vpop.f32.mrb[0].mxu0
      %638 = vmatprep.mubr.bf16.mxu0 %v494
      %639 = vmatmul.mubr.bf16.gmra.mrb[0].mxu0 %v377
      %v640 = vpop.f32.mrb[0].mxu0
      %v641 = vadd.f32 0.0, %v640
      %v642 = vpop.f32.mrb[0].mxu0
      %v643 = vpop.f32.mrb[0].mxu0
      %v644 = vadd.f32 0.0, %v643
      %v645 = vpop.f32.mrb[0].mxu0
      %646 = vmatprep.mubr.bf16.mxu0 %v497
      %647 = vmatmul.mubr.bf16.gmra.mrb[0].mxu0 %v379
      %v648 = vpop.f32.mrb[0].mxu0
      %v649 = vadd.f32 0.0, %v648
      %v650 = vpop.f32.mrb[0].mxu0
      %v651 = vpop.f32.mrb[0].mxu0
      %v652 = vadd.f32 0.0, %v651
      %v653 = vpop.f32.mrb[0].mxu0
      %654 = vmatprep.mubr.bf16.mxu0 %v500
      %655 = vmatmul.mubr.bf16.gmra.mrb[0].mxu0 %v381
      %v656 = vpop.f32.mrb[0].mxu0
      %v657 = vadd.f32 0.0, %v656
      %v658 = vpop.f32.mrb[0].mxu0
      %v659 = vpop.f32.mrb[0].mxu0
      %v660 = vadd.f32 0.0, %v659
      %v661 = vpop.f32.mrb[0].mxu0
      %662 = vdwg.mxu0
      %v663 = vld [vmem:[%s2] sm:$0x1]
      %v665 = vlaneseq
      %v666 = vshrl.u32 %v665, 7
      %v667 = vsub.s32 0, %v666
      %v668 = vrot.slane %v663, %v667
      %v670 = vmul.f32 %v537, %v668
      %v671 = vmul.f32 %v540, %v668
      %v672 = vmul.f32 %v545, %v668
      %v673 = vmul.f32 %v548, %v668
      %v674 = vmul.f32 %v553, %v668
      %v675 = vmul.f32 %v556, %v668
      %v676 = vmul.f32 %v561, %v668
      %v677 = vmul.f32 %v564, %v668
      %v678 = vmul.f32 %v569, %v668
      %v679 = vmul.f32 %v572, %v668
      %v680 = vmul.f32 %v577, %v668
      %v681 = vmul.f32 %v580, %v668
      %v682 = vmul.f32 %v585, %v668
      %v683 = vmul.f32 %v588, %v668
      %v684 = vmul.f32 %v593, %v668
      %v685 = vmul.f32 %v596, %v668
      %v686 = vmul.f32 %v601, %v668
      %v687 = vmul.f32 %v604, %v668
      %v688 = vmul.f32 %v609, %v668
      %v689 = vmul.f32 %v612, %v668
      %v690 = vmul.f32 %v617, %v668
      %v691 = vmul.f32 %v620, %v668
      %v692 = vmul.f32 %v625, %v668
      %v693 = vmul.f32 %v628, %v668
      %v694 = vmul.f32 %v633, %v668
      %v695 = vmul.f32 %v636, %v668
      %v696 = vmul.f32 %v641, %v668
      %v697 = vmul.f32 %v644, %v668
      %v698 = vmul.f32 %v649, %v668
      %v699 = vmul.f32 %v652, %v668
      %v700 = vmul.f32 %v657, %v668
      %v701 = vmul.f32 %v660, %v668
      %v702 = vld [vmem:[%s3] sm:$0x1]
      %v704 = vlaneseq
      %v705 = vshrl.u32 %v704, 7
      %v706 = vsub.s32 0, %v705
      %v707 = vrot.slane %v702, %v706
      %v709 = vadd.f32 %v670, %v707
      %v710 = vadd.f32 %v671, %v707
      %v711 = vadd.f32 %v672, %v707
      %v712 = vadd.f32 %v673, %v707
      %v713 = vadd.f32 %v674, %v707
      %v714 = vadd.f32 %v675, %v707
      %v715 = vadd.f32 %v676, %v707
      %v716 = vadd.f32 %v677, %v707
      %v717 = vadd.f32 %v678, %v707
      %v718 = vadd.f32 %v679, %v707
      %v719 = vadd.f32 %v680, %v707
      %v720 = vadd.f32 %v681, %v707
      %v721 = vadd.f32 %v682, %v707
      %v722 = vadd.f32 %v683, %v707
      %v723 = vadd.f32 %v684, %v707
      %v724 = vadd.f32 %v685, %v707
      %v725 = vadd.f32 %v686, %v707
      %v726 = vadd.f32 %v687, %v707
      %v727 = vadd.f32 %v688, %v707
      %v728 = vadd.f32 %v689, %v707
      %v729 = vadd.f32 %v690, %v707
      %v730 = vadd.f32 %v691, %v707
      %v731 = vadd.f32 %v692, %v707
      %v732 = vadd.f32 %v693, %v707
      %v733 = vadd.f32 %v694, %v707
      %v734 = vadd.f32 %v695, %v707
      %v735 = vadd.f32 %v696, %v707
      %v736 = vadd.f32 %v697, %v707
      %v737 = vadd.f32 %v698, %v707
      %v738 = vadd.f32 %v699, %v707
      %v739 = vadd.f32 %v700, %v707
      %v740 = vadd.f32 %v701, %v707
      %v741 = vmax.f32 %v709, 0.0
      %v742 = vmax.f32 %v710, 0.0
      %v743 = vmax.f32 %v711, 0.0
      %v744 = vmax.f32 %v712, 0.0
      %v745 = vmax.f32 %v713, 0.0
      %v746 = vmax.f32 %v714, 0.0
      %v747 = vmax.f32 %v715, 0.0
      %v748 = vmax.f32 %v716, 0.0
      %v749 = vmax.f32 %v717, 0.0
      %v750 = vmax.f32 %v718, 0.0
      %v751 = vmax.f32 %v719, 0.0
      %v752 = vmax.f32 %v720, 0.0
      %v753 = vmax.f32 %v721, 0.0
      %v754 = vmax.f32 %v722, 0.0
      %v755 = vmax.f32 %v723, 0.0
      %v756 = vmax.f32 %v724, 0.0
      %v757 = vmax.f32 %v725, 0.0
      %v758 = vmax.f32 %v726, 0.0
      %v759 = vmax.f32 %v727, 0.0
      %v760 = vmax.f32 %v728, 0.0
      %v761 = vmax.f32 %v729, 0.0
      %v762 = vmax.f32 %v730, 0.0
      %v763 = vmax.f32 %v731, 0.0
      %v764 = vmax.f32 %v732, 0.0
      %v765 = vmax.f32 %v733, 0.0
      %v766 = vmax.f32 %v734, 0.0
      %v767 = vmax.f32 %v735, 0.0
      %v768 = vmax.f32 %v736, 0.0
      %v769 = vmax.f32 %v737, 0.0
      %v770 = vmax.f32 %v738, 0.0
      %v771 = vmax.f32 %v739, 0.0
      %v772 = vmax.f32 %v740, 0.0
      %vm773 = vcmask 261120
      %774 = vst.msk [vmem:[%s202] sm:$0xff] %vm773, %v741
      %775 = vst.msk [vmem:[%s202 + $0x8] sm:$0xff] %vm773, %v742
      %776 = vst.msk [vmem:[%s202 + $0x10] sm:$0xff] %vm773, %v743
      %777 = vst.msk [vmem:[%s202 + $0x18] sm:$0xff] %vm773, %v744
      %778 = vst.msk [vmem:[%s202 + $0x20] sm:$0xff] %vm773, %v745
      %779 = vst.msk [vmem:[%s202 + $0x28] sm:$0xff] %vm773, %v746
      %780 = vst.msk [vmem:[%s202 + $0x30] sm:$0xff] %vm773, %v747
      %781 = vst.msk [vmem:[%s202 + $0x38] sm:$0xff] %vm773, %v748
      %782 = vst.msk [vmem:[%s202 + $0x40] sm:$0xff] %vm773, %v749
      %783 = vst.msk [vmem:[%s202 + $0x48] sm:$0xff] %vm773, %v750
      %784 = vst.msk [vmem:[%s202 + $0x50] sm:$0xff] %vm773, %v751
      %785 = vst.msk [vmem:[%s202 + $0x58] sm:$0xff] %vm773, %v752
      %786 = vst.msk [vmem:[%s202 + $0x60] sm:$0xff] %vm773, %v753
      %787 = vst.msk [vmem:[%s202 + $0x68] sm:$0xff] %vm773, %v754
      %788 = vst.msk [vmem:[%s202 + $0x70] sm:$0xff] %vm773, %v755
      %789 = vst.msk [vmem:[%s202 + $0x78] sm:$0xff] %vm773, %v756
      %790 = vst.msk [vmem:[%s202 + $0x80] sm:$0xff] %vm773, %v757
      %791 = vst.msk [vmem:[%s202 + $0x88] sm:$0xff] %vm773, %v758
      %792 = vst.msk [vmem:[%s202 + $0x90] sm:$0xff] %vm773, %v759
      %793 = vst.msk [vmem:[%s202 + $0x98] sm:$0xff] %vm773, %v760
      %794 = vst.msk [vmem:[%s202 + $0xa0] sm:$0xff] %vm773, %v761
      %795 = vst.msk [vmem:[%s202 + $0xa8] sm:$0xff] %vm773, %v762
      %796 = vst.msk [vmem:[%s202 + $0xb0] sm:$0xff] %vm773, %v763
      %797 = vst.msk [vmem:[%s202 + $0xb8] sm:$0xff] %vm773, %v764
      %798 = vst.msk [vmem:[%s202 + $0xc0] sm:$0xff] %vm773, %v765
      %799 = vst.msk [vmem:[%s202 + $0xc8] sm:$0xff] %vm773, %v766
      %800 = vst.msk [vmem:[%s202 + $0xd0] sm:$0xff] %vm773, %v767
      %801 = vst.msk [vmem:[%s202 + $0xd8] sm:$0xff] %vm773, %v768
      %802 = vst.msk [vmem:[%s202 + $0xe0] sm:$0xff] %vm773, %v769
      %803 = vst.msk [vmem:[%s202 + $0xe8] sm:$0xff] %vm773, %v770
      %804 = vst.msk [vmem:[%s202 + $0xf0] sm:$0xff] %vm773, %v771
      %805 = vst.msk [vmem:[%s202 + $0xf8] sm:$0xff] %vm773, %v772
      %s806 = smul.u32 32, %s15
      %p807 = scmp.lt.s32.totalorder %s806, 63
      %s808 = scalar_select %p807, %s806, 63
      %s809 = smul.addr %s808, 8
      %s810 = scalar_lea.vmem %s4, %s809
      // Predicated region
      $region37: #{wide_resnet_forward.13} parent=35 // pred_check
        %p811 = pneg %p122
      $region38: #{wide_resnet_forward.13} parent=35 // pred_check_branch
        %813 = sbr.rel (%p811) target = $region40
      $region39: #{wide_resnet_forward.13} parent=35 // pred_region
        %s814 = smul.u32 32, %s15
      $region40: #{wide_resnet_forward.13} parent=35 // pred_fallthru
        _
    $region36: #{wide_resnet_forward.13} parent=5 // pred_fallthru
      _
    %p815 = scmp.le.s32.totalorder 2, %s10
    // Predicated region
    $region41: #{wide_resnet_forward.13} parent=5 // pred_check
      %p816 = pneg %p815
    $region42: #{wide_resnet_forward.13} parent=5 // pred_check_branch
      %818 = sbr.rel (%p816) target = $region44
    $region43: #{wide_resnet_forward.13} parent=5 // pred_region
      %s819 = ssub.s32 %s10, 2
      // Predicated region
      $region45: #{wide_resnet_forward.13} parent=43 // pred_check
        %p820 = pneg %p128
      $region46: #{wide_resnet_forward.13} parent=43 // pred_check_branch
        %822 = sbr.rel (%p820) target = $region48
      $region47: #{wide_resnet_forward.13} parent=43 // pred_region
        %s823 = smul.u32 32, %s16
        %p824 = scmp.lt.s32.totalorder %s823, 63
        %s825 = scalar_select %p824, %s823, 63
        %s826 = smul.addr %s825, 8
        %s827 = scalar_lea.vmem %s4, %s826
      $region48: #{wide_resnet_forward.13} parent=43 // pred_fallthru
        _
    $region44: #{wide_resnet_forward.13} parent=5 // pred_fallthru
      _
  $region6: #{wide_resnet_forward.13} parent=0 // loop_footer
    %s14 = sadd.s32 1, %s10
  $region7: #{wide_resnet_forward.13} parent=0 // loop_footer_branch
    %9 = sbr.rel target = $region3
  $region8: #{wide_resnet_forward.13} parent=0 // loop_exit
    _

// kernel: wide_resnet_forward.15
$region0: #{wide_resnet_forward.15}
  #allocation0 [shape = 'u32[]', space=smem, size = 0x4, offset = 0x4, fixed_abs, tag = 'smem constant byte address 0x4 - core index']
  #allocation1 [shape = 'u32[144,128]{1,0:T(1,128)}', space=vmem, size = 0x12000, scoped, tag = 'internal scratch']
  %s0 = inlined_call_operand.vmem [shape: bf16[512,288], index: 0, kind: input, shape index: {}]
  %s1 = inlined_call_operand.vmem [shape: bf16[288,32], index: 1, kind: input, shape index: {}]
  %s2 = inlined_call_operand.vmem [shape: f32[512,32], index: 2, kind: input, shape index: {}]
  %s3 = inlined_call_operand.vmem [shape: f32[1,32], index: 3, kind: input, shape index: {}]
  %s4 = inlined_call_operand.vmem [shape: f32[1,32], index: 4, kind: input, shape index: {}]
  %s5 = inlined_call_operand.vmem [shape: f32[512,32], index: 5, kind: output, shape index: {}]
  %s6 = sld [smem:[#allocation0]]
  $region53: #{wide_resnet_forward.15} parent=0
    _
  %s8 = ssub.s32 1, %s6
  %s9 = scalar_select 0, %s8, %s6
  loop: start=0, step=1, limit=4
  $region2: #{wide_resnet_forward.15} parent=0 // loop_pre_header
    _
  $region3: #{wide_resnet_forward.15} parent=0 // loop_header
    %s11 = sphi 0, %s15
    %p12 = scmp.ge.s32.totalorder %s11, 4
    %s21 = sphi 0, %s23
    %s24 = sphi 0, %s21
    %s25 = sphi 0, %s24
    %s41 = sphi 0, %s25
    %s45 = sphi 0, %s45
    %s47 = sphi 0, %s45
    %s48 = sphi 0, %s47
    %s62 = sphi 0, %s48
    %s68 = sphi 0, %s70
    %s71 = sphi 0, %s68
    %s72 = sphi 0, %s71
    %s88 = sphi 0, %s72
    %s92 = sphi 0, %s92
    %s94 = sphi 0, %s92
    %s95 = sphi 0, %s94
    %s109 = sphi 0, %s95
    %s113 = sphi 0, %s113
    %s115 = sphi 0, %s113
    %s116 = sphi 0, %s115
    %s130 = sphi 0, %s116
    %s136 = sphi 0, %s138
    %s139 = sphi 0, %s136
    %s140 = sphi 0, %s139
    %s156 = sphi 0, %s140
  $region4: #{wide_resnet_forward.15} parent=0 // loop_header_branch
    %14 = sbr.rel (%p12) target = $region8
  $region5: #{wide_resnet_forward.15} parent=0 // loop_body
    %s16 = ssub.s32 %s11, 1
    %s17 = ssub.s32 %s11, 2
    %s18 = sadd.s32 %s11, 1
    %s19 = ssub.s32 %s11, %s18
    %p20 = scmp.eq.s32.totalorder %s19, 0
    %s22 = sadd.s32 %s21, 1
    %s23 = scalar_select %p20, %s21, %s22
    %p26 = pneg %p20
    %p27 = scmp.eq.s32.totalorder %s11, 1
    %p28 = por %p26, %p27
    %p29 = scmp.ne.s32.totalorder %s21, %s24
    %p30 = scmp.eq.s32.totalorder %s11, 0
    %p31 = por %p29, %p30
    %p32 = scmp.ne.s32.totalorder %s21, %s24
    %p33 = scmp.eq.s32.totalorder %s16, 1
    %p34 = por %p32, %p33
    %p35 = scmp.ne.s32.totalorder %s24, %s25
    %p36 = scmp.eq.s32.totalorder %s16, 0
    %p37 = por %p35, %p36
    %p38 = scmp.ne.s32.totalorder %s24, %s25
    %p39 = scmp.eq.s32.totalorder %s17, 1
    %p40 = por %p38, %p39
    %p42 = scmp.ne.s32.totalorder %s25, %s41
    %p43 = scmp.eq.s32.totalorder %s17, 0
    %p44 = por %p42, %p43
    %s46 = sadd.s32 %s45, 1
    %p49 = scmp.eq.s32.totalorder %s11, 1
    %p50 = scmp.ne.s32.totalorder %s45, %s47
    %p51 = scmp.eq.s32.totalorder %s11, 0
    %p52 = por %p50, %p51
    %p53 = scmp.ne.s32.totalorder %s45, %s47
    %p54 = scmp.eq.s32.totalorder %s16, 1
    %p55 = por %p53, %p54
    %p56 = scmp.ne.s32.totalorder %s47, %s48
    %p57 = scmp.eq.s32.totalorder %s16, 0
    %p58 = por %p56, %p57
    %p59 = scmp.ne.s32.totalorder %s47, %s48
    %p60 = scmp.eq.s32.totalorder %s17, 1
    %p61 = por %p59, %p60
    %p63 = scmp.ne.s32.totalorder %s48, %s62
    %p64 = scmp.eq.s32.totalorder %s17, 0
    %p65 = por %p63, %p64
    %s66 = ssub.s32 %s11, %s18
    %p67 = scmp.eq.s32.totalorder %s66, 0
    %s69 = sadd.s32 %s68, 1
    %s70 = scalar_select %p67, %s68, %s69
    %p73 = pneg %p67
    %p74 = scmp.eq.s32.totalorder %s11, 1
    %p75 = por %p73, %p74
    %p76 = scmp.ne.s32.totalorder %s68, %s71
    %p77 = scmp.eq.s32.totalorder %s11, 0
    %p78 = por %p76, %p77
    %p79 = scmp.ne.s32.totalorder %s68, %s71
    %p80 = scmp.eq.s32.totalorder %s16, 1
    %p81 = por %p79, %p80
    %p82 = scmp.ne.s32.totalorder %s71, %s72
    %p83 = scmp.eq.s32.totalorder %s16, 0
    %p84 = por %p82, %p83
    %p85 = scmp.ne.s32.totalorder %s71, %s72
    %p86 = scmp.eq.s32.totalorder %s17, 1
    %p87 = por %p85, %p86
    %p89 = scmp.ne.s32.totalorder %s72, %s88
    %p90 = scmp.eq.s32.totalorder %s17, 0
    %p91 = por %p89, %p90
    %s93 = sadd.s32 %s92, 1
    %p96 = scmp.eq.s32.totalorder %s11, 1
    %p97 = scmp.ne.s32.totalorder %s92, %s94
    %p98 = scmp.eq.s32.totalorder %s11, 0
    %p99 = por %p97, %p98
    %p100 = scmp.ne.s32.totalorder %s92, %s94
    %p101 = scmp.eq.s32.totalorder %s16, 1
    %p102 = por %p100, %p101
    %p103 = scmp.ne.s32.totalorder %s94, %s95
    %p104 = scmp.eq.s32.totalorder %s16, 0
    %p105 = por %p103, %p104
    %p106 = scmp.ne.s32.totalorder %s94, %s95
    %p107 = scmp.eq.s32.totalorder %s17, 1
    %p108 = por %p106, %p107
    %p110 = scmp.ne.s32.totalorder %s95, %s109
    %p111 = scmp.eq.s32.totalorder %s17, 0
    %p112 = por %p110, %p111
    %s114 = sadd.s32 %s113, 1
    %p117 = scmp.eq.s32.totalorder %s11, 1
    %p118 = scmp.ne.s32.totalorder %s113, %s115
    %p119 = scmp.eq.s32.totalorder %s11, 0
    %p120 = por %p118, %p119
    %p121 = scmp.ne.s32.totalorder %s113, %s115
    %p122 = scmp.eq.s32.totalorder %s16, 1
    %p123 = por %p121, %p122
    %p124 = scmp.ne.s32.totalorder %s115, %s116
    %p125 = scmp.eq.s32.totalorder %s16, 0
    %p126 = por %p124, %p125
    %p127 = scmp.ne.s32.totalorder %s115, %s116
    %p128 = scmp.eq.s32.totalorder %s17, 1
    %p129 = por %p127, %p128
    %p131 = scmp.ne.s32.totalorder %s116, %s130
    %p132 = scmp.eq.s32.totalorder %s17, 0
    %p133 = por %p131, %p132
    %s134 = ssub.s32 %s11, %s18
    %p135 = scmp.eq.s32.totalorder %s134, 0
    %s137 = sadd.s32 %s136, 1
    %s138 = scalar_select %p135, %s136, %s137
    %p141 = pneg %p135
    %p142 = scmp.eq.s32.totalorder %s11, 1
    %p143 = por %p141, %p142
    %p144 = scmp.ne.s32.totalorder %s136, %s139
    %p145 = scmp.eq.s32.totalorder %s11, 0
    %p146 = por %p144, %p145
    %p147 = scmp.ne.s32.totalorder %s136, %s139
    %p148 = scmp.eq.s32.totalorder %s16, 1
    %p149 = por %p147, %p148
    %p150 = scmp.ne.s32.totalorder %s139, %s140
    %p151 = scmp.eq.s32.totalorder %s16, 0
    %p152 = por %p150, %p151
    %p153 = scmp.ne.s32.totalorder %s139, %s140
    %p154 = scmp.eq.s32.totalorder %s17, 1
    %p155 = por %p153, %p154
    %p157 = scmp.ne.s32.totalorder %s140, %s156
    %p158 = scmp.eq.s32.totalorder %s17, 0
    %p159 = por %p157, %p158
    %p160 = scmp.le.s32.totalorder 1, %s11
    %p161 = scmp.lt.s32.totalorder %s11, 3
    %p162 = pnand %p160, %p161
    %p163 = pneg %p162
    // Predicated region
    $region9: #{wide_resnet_forward.15} parent=5 // pred_check
      _
    $region10: #{wide_resnet_forward.15} parent=5 // pred_check_branch
      %165 = sbr.rel (%p162) target = $region12
    $region11: #{wide_resnet_forward.15} parent=5 // pred_region
      %s166 = ssub.s32 %s11, 1
      // Predicated region
      $region13: #{wide_resnet_forward.15} parent=11 // pred_check
        %p167 = pneg %p58
      $region14: #{wide_resnet_forward.15} parent=11 // pred_check_branch
        %169 = sbr.rel (%p167) target = $region16
      $region15: #{wide_resnet_forward.15} parent=11 // pred_region
        _
      $region16: #{wide_resnet_forward.15} parent=11 // pred_fallthru
        _
      // Predicated region
      $region17: #{wide_resnet_forward.15} parent=11 // pred_check
        %p170 = pneg %p105
      $region18: #{wide_resnet_forward.15} parent=11 // pred_check_branch
        %172 = sbr.rel (%p170) target = $region20
      $region19: #{wide_resnet_forward.15} parent=11 // pred_region
        _
      $region20: #{wide_resnet_forward.15} parent=11 // pred_fallthru
        _
      // Predicated region
      $region21: #{wide_resnet_forward.15} parent=11 // pred_check
        %p173 = pneg %p126
      $region22: #{wide_resnet_forward.15} parent=11 // pred_check_branch
        %175 = sbr.rel (%p173) target = $region24
      $region23: #{wide_resnet_forward.15} parent=11 // pred_region
        _
      $region24: #{wide_resnet_forward.15} parent=11 // pred_fallthru
        _
    $region12: #{wide_resnet_forward.15} parent=5 // pred_fallthru
      _
    %p176 = scmp.lt.s32.totalorder %s11, 2
    // Predicated region
    $region25: #{wide_resnet_forward.15} parent=5 // pred_check
      %p177 = pneg %p176
    $region26: #{wide_resnet_forward.15} parent=5 // pred_check_branch
      %179 = sbr.rel (%p177) target = $region28
    $region27: #{wide_resnet_forward.15} parent=5 // pred_region
      // Predicated region
      $region29: #{wide_resnet_forward.15} parent=27 // pred_check
        %p180 = pneg %p31
      $region30: #{wide_resnet_forward.15} parent=27 // pred_check_branch
        %182 = sbr.rel (%p180) target = $region32
      $region31: #{wide_resnet_forward.15} parent=27 // pred_region
        %s183 = smul.u32 32, %s11
        %p184 = scmp.lt.s32.totalorder %s183, 63
        %s185 = scalar_select %p184, %s183, 63
        %s186 = smul.addr %s185, 3
        %s187 = smul.addr %s186, 4
        %s188 = scalar_lea.vmem %s0, %s187
        %s189 = smul.u32 32, %s11
      $region32: #{wide_resnet_forward.15} parent=27 // pred_fallthru
        _
      // Predicated region
      $region33: #{wide_resnet_forward.15} parent=27 // pred_check
        %p190 = pneg %p78
      $region34: #{wide_resnet_forward.15} parent=27 // pred_check_branch
        %192 = sbr.rel (%p190) target = $region36
      $region35: #{wide_resnet_forward.15} parent=27 // pred_region
        %s193 = smul.u32 32, %s11
        %p194 = scmp.lt.s32.totalorder %s193, 63
        %s195 = scalar_select %p194, %s193, 63
        %s196 = smul.addr %s195, 8
        %s197 = scalar_lea.vmem %s2, %s196
        %s198 = smul.u32 32, %s11
      $region36: #{wide_resnet_forward.15} parent=27 // pred_fallthru
        _
    $region28: #{wide_resnet_forward.15} parent=5 // pred_fallthru
      _
    %p199 = scmp.le.s32.totalorder 1, %s11
    %p200 = scmp.lt.s32.totalorder %s11, 3
    %p201 = pnand %p199, %p200
    %p202 = pneg %p201
    // Predicated region
    $region37: #{wide_resnet_forward.15} parent=5 // pred_check
      _
    $region38: #{wide_resnet_forward.15} parent=5 // pred_check_branch
      %204 = sbr.rel (%p201) target = $region40
    $region39: #{wide_resnet_forward.15} parent=5 // pred_region
      %s205 = ssub.s32 %s11, 1
      %s206 = smul.u32 32, %s16
      %p207 = scmp.lt.s32.totalorder %s206, 63
      %s208 = scalar_select %p207, %s206, 63
      %s209 = smul.addr %s208, 3
      %s210 = smul.addr %s209, 4
      %s211 = scalar_lea.vmem %s0, %s210
      %p212 = pneg %p37
      %p213 = pneg %p34
      %p214 = pneg %p58
      %p215 = pneg %p55
      %s216 = smul.u32 32, %s16
      %p217 = scmp.lt.s32.totalorder %s216, 63
      %s218 = scalar_select %p217, %s216, 63
      %s219 = smul.addr %s218, 8
      %s220 = scalar_lea.vmem %s2, %s219
      %p221 = pneg %p84
      %p222 = pneg %p81
      %p223 = pneg %p105
      %p224 = pneg %p102
      %p225 = pneg %p126
      %p226 = pneg %p123
      %p227 = pneg %p152
      %p228 = pneg %p149
      %s229 = smul.u32 32, %s16
      %p230 = scmp.lt.s32.totalorder %s229, 63
      %s231 = scalar_select %p230, %s229, 63
      %s232 = smul.addr %s231, 8
      %s233 = scalar_lea.vmem %s5, %s232
      %s234 = smul.u32 32, %s16
      %p235 = scmp.lt.s32.totalorder %s234, 63
      %s236 = scalar_select %p235, %s234, 63
      %s237 = smul.addr %s236, 3
      %s238 = smul.addr %s237, 4
      %s239 = scalar_lea.vmem %s0, %s238
      %s240 = smul.u32 32, %s16
      %s241 = smul.u32 32, %s16
      %p242 = scmp.lt.s32.totalorder %s241, 63
      %s243 = scalar_select %p242, %s241, 63
      %s244 = smul.addr %s243, 8
      %s245 = scalar_lea.vmem %s2, %s244
      %s246 = smul.u32 32, %s16
      %s247 = smul.u32 32, %s16
      %p248 = scmp.lt.s32.totalorder %s247, 63
      %s249 = scalar_select %p248, %s247, 63
      %s250 = smul.addr %s249, 8
      %s251 = scalar_lea.vmem %s5, %s250
      %s252 = smul.u32 32, %s16
      %v254 = vld [vmem:[%s239] sm:$0xff]
      %v255 = vld [vmem:[%s239 + $0x8] sm:$0xf]
      %v256 = vld [vmem:[%s239 + $0xc] sm:$0xff]
      %v257 = vld [vmem:[%s239 + $0x14] sm:$0xf]
      %v258 = vld [vmem:[%s239 + $0x18] sm:$0xff]
      %v259 = vld [vmem:[%s239 + $0x20] sm:$0xf]
      %v260 = vld [vmem:[%s239 + $0x24] sm:$0xff]
      %v261 = vld [vmem:[%s239 + $0x2c] sm:$0xf]
      %v262 = vld [vmem:[%s239 + $0x30] sm:$0xff]
      %v263 = vld [vmem:[%s239 + $0x38] sm:$0xf]
      %v264 = vld [vmem:[%s239 + $0x3c] sm:$0xff]
      %v265 = vld [vmem:[%s239 + $0x44] sm:$0xf]
      %v266 = vld [vmem:[%s239 + $0x48] sm:$0xff]
      %v267 = vld [vmem:[%s239 + $0x50] sm:$0xf]
      %v268 = vld [vmem:[%s239 + $0x54] sm:$0xff]
      %v269 = vld [vmem:[%s239 + $0x5c] sm:$0xf]
      %v270 = vld [vmem:[%s239 + $0x60] sm:$0xff]
      %v271 = vld [vmem:[%s239 + $0x68] sm:$0xf]
      %v272 = vld [vmem:[%s239 + $0x6c] sm:$0xff]
      %v273 = vld [vmem:[%s239 + $0x74] sm:$0xf]
      %v274 = vld [vmem:[%s239 + $0x78] sm:$0xff]
      %v275 = vld [vmem:[%s239 + $0x80] sm:$0xf]
      %v276 = vld [vmem:[%s239 + $0x84] sm:$0xff]
      %v277 = vld [vmem:[%s239 + $0x8c] sm:$0xf]
      %v278 = vld [vmem:[%s239 + $0x90] sm:$0xff]
      %v279 = vld [vmem:[%s239 + $0x98] sm:$0xf]
      %v280 = vld [vmem:[%s239 + $0x9c] sm:$0xff]
      %v281 = vld [vmem:[%s239 + $0xa4] sm:$0xf]
      %v282 = vld [vmem:[%s239 + $0xa8] sm:$0xff]
      %v283 = vld [vmem:[%s239 + $0xb0] sm:$0xf]
      %v284 = vld [vmem:[%s239 + $0xb4] sm:$0xff]
      %v285 = vld [vmem:[%s239 + $0xbc] sm:$0xf]
      %v286 = vld [vmem:[%s239 + $0xc0] sm:$0xff]
      %v287 = vld [vmem:[%s239 + $0xc8] sm:$0xf]
      %v288 = vld [vmem:[%s239 + $0xcc] sm:$0xff]
      %v289 = vld [vmem:[%s239 + $0xd4] sm:$0xf]
      %v290 = vld [vmem:[%s239 + $0xd8] sm:$0xff]
      %v291 = vld [vmem:[%s239 + $0xe0] sm:$0xf]
      %v292 = vld [vmem:[%s239 + $0xe4] sm:$0xff]
      %v293 = vld [vmem:[%s239 + $0xec] sm:$0xf]
      %v294 = vld [vmem:[%s239 + $0xf0] sm:$0xff]
      %v295 = vld [vmem:[%s239 + $0xf8] sm:$0xf]
      %v296 = vld [vmem:[%s239 + $0xfc] sm:$0xff]
      %v297 = vld [vmem:[%s239 + $0x104] sm:$0xf]
      %v298 = vld [vmem:[%s239 + $0x108] sm:$0xff]
      %v299 = vld [vmem:[%s239 + $0x110] sm:$0xf]
      %v300 = vld [vmem:[%s239 + $0x114] sm:$0xff]
      %v301 = vld [vmem:[%s239 + $0x11c] sm:$0xf]
      %v302 = vld [vmem:[%s239 + $0x120] sm:$0xff]
      %v303 = vld [vmem:[%s239 + $0x128] sm:$0xf]
      %v304 = vld [vmem:[%s239 + $0x12c] sm:$0xff]
      %v305 = vld [vmem:[%s239 + $0x134] sm:$0xf]
      %v306 = vld [vmem:[%s239 + $0x138] sm:$0xff]
      %v307 = vld [vmem:[%s239 + $0x140] sm:$0xf]
      %v308 = vld [vmem:[%s239 + $0x144] sm:$0xff]
      %v309 = vld [vmem:[%s239 + $0x14c] sm:$0xf]
      %v310 = vld [vmem:[%s239 + $0x150] sm:$0xff]
      %v311 = vld [vmem:[%s239 + $0x158] sm:$0xf]
      %v312 = vld [vmem:[%s239 + $0x15c] sm:$0xff]
      %v313 = vld [vmem:[%s239 + $0x164] sm:$0xf]
      %v314 = vld [vmem:[%s239 + $0x168] sm:$0xff]
      %v315 = vld [vmem:[%s239 + $0x170] sm:$0xf]
      %v316 = vld [vmem:[%s239 + $0x174] sm:$0xff]
      %v317 = vld [vmem:[%s239 + $0x17c] sm:$0xf]
      %v318 = vld [vmem:[%s1] sm:$0xf]
      %v319 = vld [vmem:[%s1 + $0x4] sm:$0xf]
      %v320 = vld [vmem:[%s1 + $0x8] sm:$0xf]
      %v321 = vld [vmem:[%s1 + $0xc] sm:$0xf]
      %v322 = vld [vmem:[%s1 + $0x10] sm:$0xf]
      %v323 = vld [vmem:[%s1 + $0x14] sm:$0xf]
      %v324 = vld [vmem:[%s1 + $0x18] sm:$0xf]
      %v325 = vld [vmem:[%s1 + $0x1c] sm:$0xf]
      %v326 = vld [vmem:[%s1 + $0x20] sm:$0xf]
      %v327 = vld [vmem:[%s1 + $0x24] sm:$0xf]
      %v328 = vld [vmem:[%s1 + $0x28] sm:$0xf]
      %v329 = vld [vmem:[%s1 + $0x2c] sm:$0xf]
      %v330 = vld [vmem:[%s1 + $0x30] sm:$0xf]
      %v331 = vld [vmem:[%s1 + $0x34] sm:$0xf]
      %v332 = vld [vmem:[%s1 + $0x38] sm:$0xf]
      %v333 = vld [vmem:[%s1 + $0x3c] sm:$0xf]
      %v334 = vld [vmem:[%s1 + $0x40] sm:$0xf]
      %v335 = vld [vmem:[%s1 + $0x44] sm:$0xf]
      %v336 = vld [vmem:[%s1 + $0x48] sm:$0xf]
      %v337 = vld [vmem:[%s1 + $0x4c] sm:$0xf]
      %v338 = vld [vmem:[%s1 + $0x50] sm:$0xf]
      %v339 = vld [vmem:[%s1 + $0x54] sm:$0xf]
      %v340 = vld [vmem:[%s1 + $0x58] sm:$0xf]
      %v341 = vld [vmem:[%s1 + $0x5c] sm:$0xf]
      %v342 = vld [vmem:[%s1 + $0x60] sm:$0xf]
      %v343 = vld [vmem:[%s1 + $0x64] sm:$0xf]
      %v344 = vld [vmem:[%s1 + $0x68] sm:$0xf]
      %v345 = vld [vmem:[%s1 + $0x6c] sm:$0xf]
      %v346 = vld [vmem:[%s1 + $0x70] sm:$0xf]
      %v347 = vld [vmem:[%s1 + $0x74] sm:$0xf]
      %v348 = vld [vmem:[%s1 + $0x78] sm:$0xf]
      %v349 = vld [vmem:[%s1 + $0x7c] sm:$0xf]
      %v350 = vld [vmem:[%s1 + $0x80] sm:$0xf]
      %v351 = vld [vmem:[%s1 + $0x84] sm:$0xf]
      %v352 = vld [vmem:[%s1 + $0x88] sm:$0xf]
      %v353 = vld [vmem:[%s1 + $0x8c] sm:$0xf]
      %v354 = vld [vmem:[%s245] sm:$0xff]
      %v355 = vld [vmem:[%s245 + $0x8] sm:$0xff]
      %v356 = vld [vmem:[%s245 + $0x10] sm:$0xff]
      %v357 = vld [vmem:[%s245 + $0x18] sm:$0xff]
      %v358 = vld [vmem:[%s245 + $0x20] sm:$0xff]
      %v359 = vld [vmem:[%s245 + $0x28] sm:$0xff]
      %v360 = vld [vmem:[%s245 + $0x30] sm:$0xff]
      %v361 = vld [vmem:[%s245 + $0x38] sm:$0xff]
      %v362 = vld [vmem:[%s245 + $0x40] sm:$0xff]
      %v363 = vld [vmem:[%s245 + $0x48] sm:$0xff]
      %v364 = vld [vmem:[%s245 + $0x50] sm:$0xff]
      %v365 = vld [vmem:[%s245 + $0x58] sm:$0xff]
      %v366 = vld [vmem:[%s245 + $0x60] sm:$0xff]
      %v367 = vld [vmem:[%s245 + $0x68] sm:$0xff]
      %v368 = vld [vmem:[%s245 + $0x70] sm:$0xff]
      %v369 = vld [vmem:[%s245 + $0x78] sm:$0xff]
      %v370 = vld [vmem:[%s245 + $0x80] sm:$0xff]
      %v371 = vld [vmem:[%s245 + $0x88] sm:$0xff]
      %v372 = vld [vmem:[%s245 + $0x90] sm:$0xff]
      %v373 = vld [vmem:[%s245 + $0x98] sm:$0xff]
      %v374 = vld [vmem:[%s245 + $0xa0] sm:$0xff]
      %v375 = vld [vmem:[%s245 + $0xa8] sm:$0xff]
      %v376 = vld [vmem:[%s245 + $0xb0] sm:$0xff]
      %v377 = vld [vmem:[%s245 + $0xb8] sm:$0xff]
      %v378 = vld [vmem:[%s245 + $0xc0] sm:$0xff]
      %v379 = vld [vmem:[%s245 + $0xc8] sm:$0xff]
      %v380 = vld [vmem:[%s245 + $0xd0] sm:$0xff]
      %v381 = vld [vmem:[%s245 + $0xd8] sm:$0xff]
      %v382 = vld [vmem:[%s245 + $0xe0] sm:$0xff]
      %v383 = vld [vmem:[%s245 + $0xe8] sm:$0xff]
      %v384 = vld [vmem:[%s245 + $0xf0] sm:$0xff]
      %v385 = vld [vmem:[%s245 + $0xf8] sm:$0xff]
      %v450 = vunpack.c.l.b16 %v254
      %v451 = vunpack.c.h.b16 %v254
      %v452 = vunpack.c.l.b16 %v255
      %v453 = vunpack.c.l.b16 %v256
      %v454 = vunpack.c.h.b16 %v256
      %v455 = vunpack.c.l.b16 %v257
      %v456 = vunpack.c.l.b16 %v258
      %v457 = vunpack.c.h.b16 %v258
      %v458 = vunpack.c.l.b16 %v259
      %v459 = vunpack.c.l.b16 %v260
      %v460 = vunpack.c.h.b16 %v260
      %v461 = vunpack.c.l.b16 %v261
      %v462 = vunpack.c.l.b16 %v262
      %v463 = vunpack.c.h.b16 %v262
      %v464 = vunpack.c.l.b16 %v263
      %v465 = vunpack.c.l.b16 %v264
      %v466 = vunpack.c.h.b16 %v264
      %v467 = vunpack.c.l.b16 %v265
      %v468 = vunpack.c.l.b16 %v266
      %v469 = vunpack.c.h.b16 %v266
      %v470 = vunpack.c.l.b16 %v267
      %v471 = vunpack.c.l.b16 %v268
      %v472 = vunpack.c.h.b16 %v268
      %v473 = vunpack.c.l.b16 %v269
      %v474 = vunpack.c.l.b16 %v270
      %v475 = vunpack.c.h.b16 %v270
      %v476 = vunpack.c.l.b16 %v271
      %v477 = vunpack.c.l.b16 %v272
      %v478 = vunpack.c.h.b16 %v272
      %v479 = vunpack.c.l.b16 %v273
      %v480 = vunpack.c.l.b16 %v274
      %v481 = vunpack.c.h.b16 %v274
      %v482 = vunpack.c.l.b16 %v275
      %v483 = vunpack.c.l.b16 %v276
      %v484 = vunpack.c.h.b16 %v276
      %v485 = vunpack.c.l.b16 %v277
      %v486 = vunpack.c.l.b16 %v278
      %v487 = vunpack.c.h.b16 %v278
      %v488 = vunpack.c.l.b16 %v279
      %v489 = vunpack.c.l.b16 %v280
      %v490 = vunpack.c.h.b16 %v280
      %v491 = vunpack.c.l.b16 %v281
      %v492 = vunpack.c.l.b16 %v282
      %v493 = vunpack.c.h.b16 %v282
      %v494 = vunpack.c.l.b16 %v283
      %v495 = vunpack.c.l.b16 %v284
      %v496 = vunpack.c.h.b16 %v284
      %v497 = vunpack.c.l.b16 %v285
      %v498 = vunpack.c.l.b16 %v286
      %v499 = vunpack.c.h.b16 %v286
      %v500 = vunpack.c.l.b16 %v287
      %v501 = vunpack.c.l.b16 %v288
      %v502 = vunpack.c.h.b16 %v288
      %v503 = vunpack.c.l.b16 %v289
      %v504 = vunpack.c.l.b16 %v290
      %v505 = vunpack.c.h.b16 %v290
      %v506 = vunpack.c.l.b16 %v291
      %v507 = vunpack.c.l.b16 %v292
      %v508 = vunpack.c.h.b16 %v292
      %v509 = vunpack.c.l.b16 %v293
      %v510 = vunpack.c.l.b16 %v294
      %v511 = vunpack.c.h.b16 %v294
      %v512 = vunpack.c.l.b16 %v295
      %v513 = vunpack.c.l.b16 %v296
      %v514 = vunpack.c.h.b16 %v296
      %v515 = vunpack.c.l.b16 %v297
      %v516 = vunpack.c.l.b16 %v298
      %v517 = vunpack.c.h.b16 %v298
      %v518 = vunpack.c.l.b16 %v299
      %v519 = vunpack.c.l.b16 %v300
      %v520 = vunpack.c.h.b16 %v300
      %v521 = vunpack.c.l.b16 %v301
      %v522 = vunpack.c.l.b16 %v302
      %v523 = vunpack.c.h.b16 %v302
      %v524 = vunpack.c.l.b16 %v303
      %v525 = vunpack.c.l.b16 %v304
      %v526 = vunpack.c.h.b16 %v304
      %v527 = vunpack.c.l.b16 %v305
      %v528 = vunpack.c.l.b16 %v306
      %v529 = vunpack.c.h.b16 %v306
      %v530 = vunpack.c.l.b16 %v307
      %v531 = vunpack.c.l.b16 %v308
      %v532 = vunpack.c.h.b16 %v308
      %v533 = vunpack.c.l.b16 %v309
      %v534 = vunpack.c.l.b16 %v310
      %v535 = vunpack.c.h.b16 %v310
      %v536 = vunpack.c.l.b16 %v311
      %v537 = vunpack.c.l.b16 %v312
      %v538 = vunpack.c.h.b16 %v312
      %v539 = vunpack.c.l.b16 %v313
      %v540 = vunpack.c.l.b16 %v314
      %v541 = vunpack.c.h.b16 %v314
      %v542 = vunpack.c.l.b16 %v315
      %v543 = vunpack.c.l.b16 %v316
      %v544 = vunpack.c.h.b16 %v316
      %v545 = vunpack.c.l.b16 %v317
      %v546 = vpack.c.b16 %v453, %v450
      %v547 = vpack.c.b16 %v454, %v451
      %v548 = vpack.c.b16 %v455, %v452
      %v549 = vpack.c.b16 %v459, %v456
      %v550 = vpack.c.b16 %v460, %v457
      %v551 = vpack.c.b16 %v461, %v458
      %v552 = vpack.c.b16 %v465, %v462
      %v553 = vpack.c.b16 %v466, %v463
      %v554 = vpack.c.b16 %v467, %v464
      %v555 = vpack.c.b16 %v471, %v468
      %v556 = vpack.c.b16 %v472, %v469
      %v557 = vpack.c.b16 %v473, %v470
      %v558 = vpack.c.b16 %v477, %v474
      %v559 = vpack.c.b16 %v478, %v475
      %v560 = vpack.c.b16 %v479, %v476
      %v561 = vpack.c.b16 %v483, %v480
      %v562 = vpack.c.b16 %v484, %v481
      %v563 = vpack.c.b16 %v485, %v482
      %v564 = vpack.c.b16 %v489, %v486
      %v565 = vpack.c.b16 %v490, %v487
      %v566 = vpack.c.b16 %v491, %v488
      %v567 = vpack.c.b16 %v495, %v492
      %v568 = vpack.c.b16 %v496, %v493
      %v569 = vpack.c.b16 %v497, %v494
      %v570 = vpack.c.b16 %v501, %v498
      %v571 = vpack.c.b16 %v502, %v499
      %v572 = vpack.c.b16 %v503, %v500
      %v573 = vpack.c.b16 %v507, %v504
      %v574 = vpack.c.b16 %v508, %v505
      %v575 = vpack.c.b16 %v509, %v506
      %v576 = vpack.c.b16 %v513, %v510
      %v577 = vpack.c.b16 %v514, %v511
      %v578 = vpack.c.b16 %v515, %v512
      %v579 = vpack.c.b16 %v519, %v516
      %v580 = vpack.c.b16 %v520, %v517
      %v581 = vpack.c.b16 %v521, %v518
      %v582 = vpack.c.b16 %v525, %v522
      %v583 = vpack.c.b16 %v526, %v523
      %v584 = vpack.c.b16 %v527, %v524
      %v585 = vpack.c.b16 %v531, %v528
      %v586 = vpack.c.b16 %v532, %v529
      %v587 = vpack.c.b16 %v533, %v530
      %v588 = vpack.c.b16 %v537, %v534
      %v589 = vpack.c.b16 %v538, %v535
      %v590 = vpack.c.b16 %v539, %v536
      %v591 = vpack.c.b16 %v543, %v540
      %v592 = vpack.c.b16 %v544, %v541
      %v593 = vpack.c.b16 %v545, %v542
      %v662 = vunpack.c.l.b16 %v318
      %v663 = vunpack.c.l.b16 %v319
      %v664 = vunpack.c.l.b16 %v320
      %v665 = vunpack.c.l.b16 %v321
      %v666 = vunpack.c.l.b16 %v322
      %v667 = vunpack.c.l.b16 %v323
      %v668 = vunpack.c.l.b16 %v324
      %v669 = vunpack.c.l.b16 %v325
      %v670 = vunpack.c.l.b16 %v326
      %v671 = vunpack.c.l.b16 %v327
      %v672 = vunpack.c.l.b16 %v328
      %v673 = vunpack.c.l.b16 %v329
      %v674 = vunpack.c.l.b16 %v330
      %v675 = vunpack.c.l.b16 %v331
      %v676 = vunpack.c.l.b16 %v332
      %v677 = vunpack.c.l.b16 %v333
      %v678 = vunpack.c.l.b16 %v334
      %v679 = vunpack.c.l.b16 %v335
      %v680 = vunpack.c.l.b16 %v336
      %v681 = vunpack.c.l.b16 %v337
      %v682 = vunpack.c.l.b16 %v338
      %v683 = vunpack.c.l.b16 %v339
      %v684 = vunpack.c.l.b16 %v340
      %v685 = vunpack.c.l.b16 %v341
      %v686 = vunpack.c.l.b16 %v342
      %v687 = vunpack.c.l.b16 %v343
      %v688 = vunpack.c.l.b16 %v344
      %v689 = vunpack.c.l.b16 %v345
      %v690 = vunpack.c.l.b16 %v346
      %v691 = vunpack.c.l.b16 %v347
      %v692 = vunpack.c.l.b16 %v348
      %v693 = vunpack.c.l.b16 %v349
      %v694 = vunpack.c.l.b16 %v350
      %v695 = vunpack.c.l.b16 %v351
      %v696 = vunpack.c.l.b16 %v352
      %v697 = vunpack.c.l.b16 %v353
      %v698 = vpack.c.b16 %v663, %v662
      %v699 = vpack.c.b16 %v665, %v664
      %v700 = vpack.c.b16 %v667, %v666
      %v701 = vpack.c.b16 %v669, %v668
      %v702 = vpack.c.b16 %v671, %v670
      %v703 = vpack.c.b16 %v673, %v672
      %v704 = vpack.c.b16 %v675, %v674
      %v705 = vpack.c.b16 %v677, %v676
      %v706 = vpack.c.b16 %v679, %v678
      %v707 = vpack.c.b16 %v681, %v680
      %v708 = vpack.c.b16 %v683, %v682
      %v709 = vpack.c.b16 %v685, %v684
      %v710 = vpack.c.b16 %v687, %v686
      %v711 = vpack.c.b16 %v689, %v688
      %v712 = vpack.c.b16 %v691, %v690
      %v713 = vpack.c.b16 %v693, %v692
      %v714 = vpack.c.b16 %v695, %v694
      %v715 = vpack.c.b16 %v697, %v696
      %vm734 = vcmask 261120
      %v736 = vsel %vm734, %v548, 0
      %v739 = vsel %vm734, %v551, 0
      %v742 = vsel %vm734, %v554, 0
      %v745 = vsel %vm734, %v557, 0
      %v748 = vsel %vm734, %v560, 0
      %v751 = vsel %vm734, %v563, 0
      %v754 = vsel %vm734, %v566, 0
      %v757 = vsel %vm734, %v569, 0
      %v760 = vsel %vm734, %v572, 0
      %v763 = vsel %vm734, %v575, 0
      %v766 = vsel %vm734, %v578, 0
      %v769 = vsel %vm734, %v581, 0
      %v772 = vsel %vm734, %v584, 0
      %v775 = vsel %vm734, %v587, 0
      %v778 = vsel %vm734, %v590, 0
      %v781 = vsel %vm734, %v593, 0
      %783 = vmatprep.subr.bf16.mxu0 0
      %784 = vmatpush1.bf16.msra.mxu0 %v698
      %785 = vmatprep.subr.bf16.mxu0 0
      %786 = vmatpush1.bf16.msra.mxu0 %v699
      %787 = vmatprep.subr.bf16.mxu0 0
      %788 = vmatpush1.bf16.msra.mxu0 %v700
      %789 = vmatprep.subr.bf16.mxu0 0
      %790 = vmatpush1.bf16.msra.mxu0 %v701
      %791 = vmatprep.subr.bf16.mxu0 0
      %792 = vmatpush1.bf16.msra.mxu0 %v702
      %793 = vmatprep.subr.bf16.mxu0 0
      %794 = vmatpush1.bf16.msra.mxu0 %v703
      %795 = vmatprep.subr.bf16.mxu0 0
      %796 = vmatpush1.bf16.msra.mxu0 %v704
      %797 = vmatprep.subr.bf16.mxu0 0
      %798 = vmatpush1.bf16.msra.mxu0 %v705
      %799 = vmatprep.subr.bf16.mxu0 0
      %800 = vmatpush1.bf16.msra.mxu0 %v706
      %801 = vmatprep.subr.bf16.mxu0 0
      %802 = vmatpush1.bf16.msra.mxu0 %v707
      %803 = vmatprep.subr.bf16.mxu0 0
      %804 = vmatpush1.bf16.msra.mxu0 %v708
      %805 = vmatprep.subr.bf16.mxu0 0
      %806 = vmatpush1.bf16.msra.mxu0 %v709
      %807 = vmatprep.subr.bf16.mxu0 0
      %808 = vmatpush1.bf16.msra.mxu0 %v710
      %809 = vmatprep.subr.bf16.mxu0 0
      %810 = vmatpush1.bf16.msra.mxu0 %v711
      %811 = vmatprep.subr.bf16.mxu0 0
      %812 = vmatpush1.bf16.msra.mxu0 %v712
      %813 = vmatprep.subr.bf16.mxu0 0
      %814 = vmatpush1.bf16.msra.mxu0 %v713
      %815 = vmatprep.mubr.bf16.mxu0 %v547
      %816 = vmatmul.mubr.bf16.gmra.mrb[0].mxu0 %v546
      %v817 = vpop.f32.mrb[0].mxu0
      %v818 = vadd.f32 %v354, %v817
      %v819 = vpop.f32.mrb[0].mxu0
      %v820 = vpop.f32.mrb[0].mxu0
      %v821 = vadd.f32 %v355, %v820
      %v822 = vpop.f32.mrb[0].mxu0
      %823 = vmatprep.mubr.bf16.mxu0 %v550
      %824 = vmatmul.mubr.bf16.gmra.mrb[0].mxu0 %v549
      %v825 = vpop.f32.mrb[0].mxu0
      %v826 = vadd.f32 %v356, %v825
      %v827 = vpop.f32.mrb[0].mxu0
      %v828 = vpop.f32.mrb[0].mxu0
      %v829 = vadd.f32 %v357, %v828
      %v830 = vpop.f32.mrb[0].mxu0
      %831 = vmatprep.mubr.bf16.mxu0 %v553
      %832 = vmatmul.mubr.bf16.gmra.mrb[0].mxu0 %v552
      %v833 = vpop.f32.mrb[0].mxu0
      %v834 = vadd.f32 %v358, %v833
      %v835 = vpop.f32.mrb[0].mxu0
      %v836 = vpop.f32.mrb[0].mxu0
      %v837 = vadd.f32 %v359, %v836
      %v838 = vpop.f32.mrb[0].mxu0
      %839 = vmatprep.mubr.bf16.mxu0 %v556
      %840 = vmatmul.mubr.bf16.gmra.mrb[0].mxu0 %v555
      %v841 = vpop.f32.mrb[0].mxu0
      %v842 = vadd.f32 %v360, %v841
      %v843 = vpop.f32.mrb[0].mxu0
      %v844 = vpop.f32.mrb[0].mxu0
      %v845 = vadd.f32 %v361, %v844
      %v846 = vpop.f32.mrb[0].mxu0
      %847 = vmatprep.mubr.bf16.mxu0 %v559
      %848 = vmatmul.mubr.bf16.gmra.mrb[0].mxu0 %v558
      %v849 = vpop.f32.mrb[0].mxu0
      %v850 = vadd.f32 %v362, %v849
      %v851 = vpop.f32.mrb[0].mxu0
      %v852 = vpop.f32.mrb[0].mxu0
      %v853 = vadd.f32 %v363, %v852
      %v854 = vpop.f32.mrb[0].mxu0
      %855 = vmatprep.mubr.bf16.mxu0 %v562
      %856 = vmatmul.mubr.bf16.gmra.mrb[0].mxu0 %v561
      %v857 = vpop.f32.mrb[0].mxu0
      %v858 = vadd.f32 %v364, %v857
      %v859 = vpop.f32.mrb[0].mxu0
      %v860 = vpop.f32.mrb[0].mxu0
      %v861 = vadd.f32 %v365, %v860
      %v862 = vpop.f32.mrb[0].mxu0
      %863 = vmatprep.mubr.bf16.mxu0 %v565
      %864 = vmatmul.mubr.bf16.gmra.mrb[0].mxu0 %v564
      %v865 = vpop.f32.mrb[0].mxu0
      %v866 = vadd.f32 %v366, %v865
      %v867 = vpop.f32.mrb[0].mxu0
      %v868 = vpop.f32.mrb[0].mxu0
      %v869 = vadd.f32 %v367, %v868
      %v870 = vpop.f32.mrb[0].mxu0
      %871 = vmatprep.mubr.bf16.mxu0 %v568
      %872 = vmatmul.mubr.bf16.gmra.mrb[0].mxu0 %v567
      %v873 = vpop.f32.mrb[0].mxu0
      %v874 = vadd.f32 %v368, %v873
      %v875 = vpop.f32.mrb[0].mxu0
      %v876 = vpop.f32.mrb[0].mxu0
      %v877 = vadd.f32 %v369, %v876
      %v878 = vpop.f32.mrb[0].mxu0
      %879 = vmatprep.mubr.bf16.mxu0 %v571
      %880 = vmatmul.mubr.bf16.gmra.mrb[0].mxu0 %v570
      %v881 = vpop.f32.mrb[0].mxu0
      %v882 = vadd.f32 %v370, %v881
      %v883 = vpop.f32.mrb[0].mxu0
      %v884 = vpop.f32.mrb[0].mxu0
      %v885 = vadd.f32 %v371, %v884
      %v886 = vpop.f32.mrb[0].mxu0
      %887 = vmatprep.mubr.bf16.mxu0 %v574
      %888 = vmatmul.mubr.bf16.gmra.mrb[0].mxu0 %v573
      %v889 = vpop.f32.mrb[0].mxu0
      %v890 = vadd.f32 %v372, %v889
      %v891 = vpop.f32.mrb[0].mxu0
      %v892 = vpop.f32.mrb[0].mxu0
      %v893 = vadd.f32 %v373, %v892
      %v894 = vpop.f32.mrb[0].mxu0
      %895 = vmatprep.mubr.bf16.mxu0 %v577
      %896 = vmatmul.mubr.bf16.gmra.mrb[0].mxu0 %v576
      %v897 = vpop.f32.mrb[0].mxu0
      %v898 = vadd.f32 %v374, %v897
      %v899 = vpop.f32.mrb[0].mxu0
      %v900 = vpop.f32.mrb[0].mxu0
      %v901 = vadd.f32 %v375, %v900
      %v902 = vpop.f32.mrb[0].mxu0
      %903 = vmatprep.mubr.bf16.mxu0 %v580
      %904 = vmatmul.mubr.bf16.gmra.mrb[0].mxu0 %v579
      %v905 = vpop.f32.mrb[0].mxu0
      %v906 = vadd.f32 %v376, %v905
      %v907 = vpop.f32.mrb[0].mxu0
      %v908 = vpop.f32.mrb[0].mxu0
      %v909 = vadd.f32 %v377, %v908
      %v910 = vpop.f32.mrb[0].mxu0
      %911 = vmatprep.mubr.bf16.mxu0 %v583
      %912 = vmatmul.mubr.bf16.gmra.mrb[0].mxu0 %v582
      %v913 = vpop.f32.mrb[0].mxu0
      %v914 = vadd.f32 %v378, %v913
      %v915 = vpop.f32.mrb[0].mxu0
      %v916 = vpop.f32.mrb[0].mxu0
      %v917 = vadd.f32 %v379, %v916
      %v918 = vpop.f32.mrb[0].mxu0
      %919 = vmatprep.mubr.bf16.mxu0 %v586
      %920 = vmatmul.mubr.bf16.gmra.mrb[0].mxu0 %v585
      %v921 = vpop.f32.mrb[0].mxu0
      %v922 = vadd.f32 %v380, %v921
      %v923 = vpop.f32.mrb[0].mxu0
      %v924 = vpop.f32.mrb[0].mxu0
      %v925 = vadd.f32 %v381, %v924
      %v926 = vpop.f32.mrb[0].mxu0
      %927 = vmatprep.mubr.bf16.mxu0 %v589
      %928 = vmatmul.mubr.bf16.gmra.mrb[0].mxu0 %v588
      %v929 = vpop.f32.mrb[0].mxu0
      %v930 = vadd.f32 %v382, %v929
      %v931 = vpop.f32.mrb[0].mxu0
      %v932 = vpop.f32.mrb[0].mxu0
      %v933 = vadd.f32 %v383, %v932
      %v934 = vpop.f32.mrb[0].mxu0
      %935 = vmatprep.mubr.bf16.mxu0 %v592
      %936 = vmatmul.mubr.bf16.gmra.mrb[0].mxu0 %v591
      %v937 = vpop.f32.mrb[0].mxu0
      %v938 = vadd.f32 %v384, %v937
      %v939 = vpop.f32.mrb[0].mxu0
      %v940 = vpop.f32.mrb[0].mxu0
      %v941 = vadd.f32 %v385, %v940
      %v942 = vpop.f32.mrb[0].mxu0
      %943 = vdwg.mxu0
      %944 = vmatprep.subr.bf16.mxu0 0
      %945 = vmatpush1.bf16.msra.mxu0 %v714
      %946 = vmatprep.subr.bf16.mxu0 0
      %947 = vmatpush1.bf16.msra.mxu0 %v715
      %948 = vmatprep.subr.bf16.mxu0 0
      %949 = vmatpush1.bf16.msra.mxu0 0
      %950 = vmatprep.subr.bf16.mxu0 0
      %951 = vmatpush1.bf16.msra.mxu0 0
      %952 = vmatprep.subr.bf16.mxu0 0
      %953 = vmatpush1.bf16.msra.mxu0 0
      %954 = vmatprep.subr.bf16.mxu0 0
      %955 = vmatpush1.bf16.msra.mxu0 0
      %956 = vmatprep.subr.bf16.mxu0 0
      %957 = vmatpush1.bf16.msra.mxu0 0
      %958 = vmatprep.subr.bf16.mxu0 0
      %959 = vmatpush1.bf16.msra.mxu0 0
      %960 = vmatprep.subr.bf16.mxu0 0
      %961 = vmatpush1.bf16.msra.mxu0 0
      %962 = vmatprep.subr.bf16.mxu0 0
      %963 = vmatpush1.bf16.msra.mxu0 0
      %964 = vmatprep.subr.bf16.mxu0 0
      %965 = vmatpush1.bf16.msra.mxu0 0
      %966 = vmatprep.subr.bf16.mxu0 0
      %967 = vmatpush1.bf16.msra.mxu0 0
      %968 = vmatprep.subr.bf16.mxu0 0
      %969 = vmatpush1.bf16.msra.mxu0 0
      %970 = vmatprep.subr.bf16.mxu0 0
      %971 = vmatpush1.bf16.msra.mxu0 0
      %972 = vmatprep.subr.bf16.mxu0 0
      %973 = vmatpush1.bf16.msra.mxu0 0
      %974 = vmatprep.subr.bf16.mxu0 0
      %975 = vmatpush1.bf16.msra.mxu0 0
      %976 = vmatprep.mubr.bf16.mxu0 0
      %977 = vmatmul.mubr.bf16.gmra.mrb[0].mxu0 %v736
      %v978 = vpop.f32.mrb[0].mxu0
      %v979 = vadd.f32 %v818, %v978
      %v980 = vpop.f32.mrb[0].mxu0
      %v981 = vpop.f32.mrb[0].mxu0
      %v982 = vadd.f32 %v821, %v981
      %v983 = vpop.f32.mrb[0].mxu0
      %984 = vmatprep.mubr.bf16.mxu0 0
      %985 = vmatmul.mubr.bf16.gmra.mrb[0].mxu0 %v739
      %v986 = vpop.f32.mrb[0].mxu0
      %v987 = vadd.f32 %v826, %v986
      %v988 = vpop.f32.mrb[0].mxu0
      %v989 = vpop.f32.mrb[0].mxu0
      %v990 = vadd.f32 %v829, %v989
      %v991 = vpop.f32.mrb[0].mxu0
      %992 = vmatprep.mubr.bf16.mxu0 0
      %993 = vmatmul.mubr.bf16.gmra.mrb[0].mxu0 %v742
      %v994 = vpop.f32.mrb[0].mxu0
      %v995 = vadd.f32 %v834, %v994
      %v996 = vpop.f32.mrb[0].mxu0
      %v997 = vpop.f32.mrb[0].mxu0
      %v998 = vadd.f32 %v837, %v997
      %v999 = vpop.f32.mrb[0].mxu0
      %1000 = vmatprep.mubr.bf16.mxu0 0
      %1001 = vmatmul.mubr.bf16.gmra.mrb[0].mxu0 %v745
      %v1002 = vpop.f32.mrb[0].mxu0
      %v1003 = vadd.f32 %v842, %v1002
      %v1004 = vpop.f32.mrb[0].mxu0
      %v1005 = vpop.f32.mrb[0].mxu0
      %v1006 = vadd.f32 %v845, %v1005
      %v1007 = vpop.f32.mrb[0].mxu0
      %1008 = vmatprep.mubr.bf16.mxu0 0
      %1009 = vmatmul.mubr.bf16.gmra.mrb[0].mxu0 %v748
      %v1010 = vpop.f32.mrb[0].mxu0
      %v1011 = vadd.f32 %v850, %v1010
      %v1012 = vpop.f32.mrb[0].mxu0
      %v1013 = vpop.f32.mrb[0].mxu0
      %v1014 = vadd.f32 %v853, %v1013
      %v1015 = vpop.f32.mrb[0].mxu0
      %1016 = vmatprep.mubr.bf16.mxu0 0
      %1017 = vmatmul.mubr.bf16.gmra.mrb[0].mxu0 %v751
      %v1018 = vpop.f32.mrb[0].mxu0
      %v1019 = vadd.f32 %v858, %v1018
      %v1020 = vpop.f32.mrb[0].mxu0
      %v1021 = vpop.f32.mrb[0].mxu0
      %v1022 = vadd.f32 %v861, %v1021
      %v1023 = vpop.f32.mrb[0].mxu0
      %1024 = vmatprep.mubr.bf16.mxu0 0
      %1025 = vmatmul.mubr.bf16.gmra.mrb[0].mxu0 %v754
      %v1026 = vpop.f32.mrb[0].mxu0
      %v1027 = vadd.f32 %v866, %v1026
      %v1028 = vpop.f32.mrb[0].mxu0
      %v1029 = vpop.f32.mrb[0].mxu0
      %v1030 = vadd.f32 %v869, %v1029
      %v1031 = vpop.f32.mrb[0].mxu0
      %1032 = vmatprep.mubr.bf16.mxu0 0
      %1033 = vmatmul.mubr.bf16.gmra.mrb[0].mxu0 %v757
      %v1034 = vpop.f32.mrb[0].mxu0
      %v1035 = vadd.f32 %v874, %v1034
      %v1036 = vpop.f32.mrb[0].mxu0
      %v1037 = vpop.f32.mrb[0].mxu0
      %v1038 = vadd.f32 %v877, %v1037
      %v1039 = vpop.f32.mrb[0].mxu0
      %1040 = vmatprep.mubr.bf16.mxu0 0
      %1041 = vmatmul.mubr.bf16.gmra.mrb[0].mxu0 %v760
      %v1042 = vpop.f32.mrb[0].mxu0
      %v1043 = vadd.f32 %v882, %v1042
      %v1044 = vpop.f32.mrb[0].mxu0
      %v1045 = vpop.f32.mrb[0].mxu0
      %v1046 = vadd.f32 %v885, %v1045
      %v1047 = vpop.f32.mrb[0].mxu0
      %1048 = vmatprep.mubr.bf16.mxu0 0
      %1049 = vmatmul.mubr.bf16.gmra.mrb[0].mxu0 %v763
      %v1050 = vpop.f32.mrb[0].mxu0
      %v1051 = vadd.f32 %v890, %v1050
      %v1052 = vpop.f32.mrb[0].mxu0
      %v1053 = vpop.f32.mrb[0].mxu0
      %v1054 = vadd.f32 %v893, %v1053
      %v1055 = vpop.f32.mrb[0].mxu0
      %1056 = vmatprep.mubr.bf16.mxu0 0
      %1057 = vmatmul.mubr.bf16.gmra.mrb[0].mxu0 %v766
      %v1058 = vpop.f32.mrb[0].mxu0
      %v1059 = vadd.f32 %v898, %v1058
      %v1060 = vpop.f32.mrb[0].mxu0
      %v1061 = vpop.f32.mrb[0].mxu0
      %v1062 = vadd.f32 %v901, %v1061
      %v1063 = vpop.f32.mrb[0].mxu0
      %1064 = vmatprep.mubr.bf16.mxu0 0
      %1065 = vmatmul.mubr.bf16.gmra.mrb[0].mxu0 %v769
      %v1066 = vpop.f32.mrb[0].mxu0
      %v1067 = vadd.f32 %v906, %v1066
      %v1068 = vpop.f32.mrb[0].mxu0
      %v1069 = vpop.f32.mrb[0].mxu0
      %v1070 = vadd.f32 %v909, %v1069
      %v1071 = vpop.f32.mrb[0].mxu0
      %1072 = vmatprep.mubr.bf16.mxu0 0
      %1073 = vmatmul.mubr.bf16.gmra.mrb[0].mxu0 %v772
      %v1074 = vpop.f32.mrb[0].mxu0
      %v1075 = vadd.f32 %v914, %v1074
      %v1076 = vpop.f32.mrb[0].mxu0
      %v1077 = vpop.f32.mrb[0].mxu0
      %v1078 = vadd.f32 %v917, %v1077
      %v1079 = vpop.f32.mrb[0].mxu0
      %1080 = vmatprep.mubr.bf16.mxu0 0
      %1081 = vmatmul.mubr.bf16.gmra.mrb[0].mxu0 %v775
      %v1082 = vpop.f32.mrb[0].mxu0
      %v1083 = vadd.f32 %v922, %v1082
      %v1084 = vpop.f32.mrb[0].mxu0
      %v1085 = vpop.f32.mrb[0].mxu0
      %v1086 = vadd.f32 %v925, %v1085
      %v1087 = vpop.f32.mrb[0].mxu0
      %1088 = vmatprep.mubr.bf16.mxu0 0
      %1089 = vmatmul.mubr.bf16.gmra.mrb[0].mxu0 %v778
      %v1090 = vpop.f32.mrb[0].mxu0
      %v1091 = vadd.f32 %v930, %v1090
      %v1092 = vpop.f32.mrb[0].mxu0
      %v1093 = vpop.f32.mrb[0].mxu0
      %v1094 = vadd.f32 %v933, %v1093
      %v1095 = vpop.f32.mrb[0].mxu0
      %1096 = vmatprep.mubr.bf16.mxu0 0
      %1097 = vmatmul.mubr.bf16.gmra.mrb[0].mxu0 %v781
      %v1098 = vpop.f32.mrb[0].mxu0
      %v1099 = vadd.f32 %v938, %v1098
      %v1100 = vpop.f32.mrb[0].mxu0
      %v1101 = vpop.f32.mrb[0].mxu0
      %v1102 = vadd.f32 %v941, %v1101
      %v1103 = vpop.f32.mrb[0].mxu0
      %1104 = vdwg.mxu0
      %v1105 = vld [vmem:[%s3] sm:$0x1]
      %v1107 = vlaneseq
      %v1108 = vshrl.u32 %v1107, 7
      %v1109 = vsub.s32 0, %v1108
      %v1110 = vrot.slane %v1105, %v1109
      %v1112 = vmul.f32 %v979, %v1110
      %v1113 = vmul.f32 %v982, %v1110
      %v1114 = vmul.f32 %v987, %v1110
      %v1115 = vmul.f32 %v990, %v1110
      %v1116 = vmul.f32 %v995, %v1110
      %v1117 = vmul.f32 %v998, %v1110
      %v1118 = vmul.f32 %v1003, %v1110
      %v1119 = vmul.f32 %v1006, %v1110
      %v1120 = vmul.f32 %v1011, %v1110
      %v1121 = vmul.f32 %v1014, %v1110
      %v1122 = vmul.f32 %v1019, %v1110
      %v1123 = vmul.f32 %v1022, %v1110
      %v1124 = vmul.f32 %v1027, %v1110
      %v1125 = vmul.f32 %v1030, %v1110
      %v1126 = vmul.f32 %v1035, %v1110
      %v1127 = vmul.f32 %v1038, %v1110
      %v1128 = vmul.f32 %v1043, %v1110
      %v1129 = vmul.f32 %v1046, %v1110
      %v1130 = vmul.f32 %v1051, %v1110
      %v1131 = vmul.f32 %v1054, %v1110
      %v1132 = vmul.f32 %v1059, %v1110
      %v1133 = vmul.f32 %v1062, %v1110
      %v1134 = vmul.f32 %v1067, %v1110
      %v1135 = vmul.f32 %v1070, %v1110
      %v1136 = vmul.f32 %v1075, %v1110
      %v1137 = vmul.f32 %v1078, %v1110
      %v1138 = vmul.f32 %v1083, %v1110
      %v1139 = vmul.f32 %v1086, %v1110
      %v1140 = vmul.f32 %v1091, %v1110
      %v1141 = vmul.f32 %v1094, %v1110
      %v1142 = vmul.f32 %v1099, %v1110
      %v1143 = vmul.f32 %v1102, %v1110
      %v1144 = vld [vmem:[%s4] sm:$0x1]
      %v1146 = vlaneseq
      %v1147 = vshrl.u32 %v1146, 7
      %v1148 = vsub.s32 0, %v1147
      %v1149 = vrot.slane %v1144, %v1148
      %v1151 = vadd.f32 %v1112, %v1149
      %v1152 = vadd.f32 %v1113, %v1149
      %v1153 = vadd.f32 %v1114, %v1149
      %v1154 = vadd.f32 %v1115, %v1149
      %v1155 = vadd.f32 %v1116, %v1149
      %v1156 = vadd.f32 %v1117, %v1149
      %v1157 = vadd.f32 %v1118, %v1149
      %v1158 = vadd.f32 %v1119, %v1149
      %v1159 = vadd.f32 %v1120, %v1149
      %v1160 = vadd.f32 %v1121, %v1149
      %v1161 = vadd.f32 %v1122, %v1149
      %v1162 = vadd.f32 %v1123, %v1149
      %v1163 = vadd.f32 %v1124, %v1149
      %v1164 = vadd.f32 %v1125, %v1149
      %v1165 = vadd.f32 %v1126, %v1149
      %v1166 = vadd.f32 %v1127, %v1149
      %v1167 = vadd.f32 %v1128, %v1149
      %v1168 = vadd.f32 %v1129, %v1149
      %v1169 = vadd.f32 %v1130, %v1149
      %v1170 = vadd.f32 %v1131, %v1149
      %v1171 = vadd.f32 %v1132, %v1149
      %v1172 = vadd.f32 %v1133, %v1149
      %v1173 = vadd.f32 %v1134, %v1149
      %v1174 = vadd.f32 %v1135, %v1149
      %v1175 = vadd.f32 %v1136, %v1149
      %v1176 = vadd.f32 %v1137, %v1149
      %v1177 = vadd.f32 %v1138, %v1149
      %v1178 = vadd.f32 %v1139, %v1149
      %v1179 = vadd.f32 %v1140, %v1149
      %v1180 = vadd.f32 %v1141, %v1149
      %v1181 = vadd.f32 %v1142, %v1149
      %v1182 = vadd.f32 %v1143, %v1149
      %v1183 = vmax.f32 %v1151, 0.0
      %v1184 = vmax.f32 %v1152, 0.0
      %v1185 = vmax.f32 %v1153, 0.0
      %v1186 = vmax.f32 %v1154, 0.0
      %v1187 = vmax.f32 %v1155, 0.0
      %v1188 = vmax.f32 %v1156, 0.0
      %v1189 = vmax.f32 %v1157, 0.0
      %v1190 = vmax.f32 %v1158, 0.0
      %v1191 = vmax.f32 %v1159, 0.0
      %v1192 = vmax.f32 %v1160, 0.0
      %v1193 = vmax.f32 %v1161, 0.0
      %v1194 = vmax.f32 %v1162, 0.0
      %v1195 = vmax.f32 %v1163, 0.0
      %v1196 = vmax.f32 %v1164, 0.0
      %v1197 = vmax.f32 %v1165, 0.0
      %v1198 = vmax.f32 %v1166, 0.0
      %v1199 = vmax.f32 %v1167, 0.0
      %v1200 = vmax.f32 %v1168, 0.0
      %v1201 = vmax.f32 %v1169, 0.0
      %v1202 = vmax.f32 %v1170, 0.0
      %v1203 = vmax.f32 %v1171, 0.0
      %v1204 = vmax.f32 %v1172, 0.0
      %v1205 = vmax.f32 %v1173, 0.0
      %v1206 = vmax.f32 %v1174, 0.0
      %v1207 = vmax.f32 %v1175, 0.0
      %v1208 = vmax.f32 %v1176, 0.0
      %v1209 = vmax.f32 %v1177, 0.0
      %v1210 = vmax.f32 %v1178, 0.0
      %v1211 = vmax.f32 %v1179, 0.0
      %v1212 = vmax.f32 %v1180, 0.0
      %v1213 = vmax.f32 %v1181, 0.0
      %v1214 = vmax.f32 %v1182, 0.0
      %1215 = vst.msk [vmem:[%s251] sm:$0xff] %vm734, %v1183
      %1216 = vst.msk [vmem:[%s251 + $0x8] sm:$0xff] %vm734, %v1184
      %1217 = vst.msk [vmem:[%s251 + $0x10] sm:$0xff] %vm734, %v1185
      %1218 = vst.msk [vmem:[%s251 + $0x18] sm:$0xff] %vm734, %v1186
      %1219 = vst.msk [vmem:[%s251 + $0x20] sm:$0xff] %vm734, %v1187
      %1220 = vst.msk [vmem:[%s251 + $0x28] sm:$0xff] %vm734, %v1188
      %1221 = vst.msk [vmem:[%s251 + $0x30] sm:$0xff] %vm734, %v1189
      %1222 = vst.msk [vmem:[%s251 + $0x38] sm:$0xff] %vm734, %v1190
      %1223 = vst.msk [vmem:[%s251 + $0x40] sm:$0xff] %vm734, %v1191
      %1224 = vst.msk [vmem:[%s251 + $0x48] sm:$0xff] %vm734, %v1192
      %1225 = vst.msk [vmem:[%s251 + $0x50] sm:$0xff] %vm734, %v1193
      %1226 = vst.msk [vmem:[%s251 + $0x58] sm:$0xff] %vm734, %v1194
      %1227 = vst.msk [vmem:[%s251 + $0x60] sm:$0xff] %vm734, %v1195
      %1228 = vst.msk [vmem:[%s251 + $0x68] sm:$0xff] %vm734, %v1196
      %1229 = vst.msk [vmem:[%s251 + $0x70] sm:$0xff] %vm734, %v1197
      %1230 = vst.msk [vmem:[%s251 + $0x78] sm:$0xff] %vm734, %v1198
      %1231 = vst.msk [vmem:[%s251 + $0x80] sm:$0xff] %vm734, %v1199
      %1232 = vst.msk [vmem:[%s251 + $0x88] sm:$0xff] %vm734, %v1200
      %1233 = vst.msk [vmem:[%s251 + $0x90] sm:$0xff] %vm734, %v1201
      %1234 = vst.msk [vmem:[%s251 + $0x98] sm:$0xff] %vm734, %v1202
      %1235 = vst.msk [vmem:[%s251 + $0xa0] sm:$0xff] %vm734, %v1203
      %1236 = vst.msk [vmem:[%s251 + $0xa8] sm:$0xff] %vm734, %v1204
      %1237 = vst.msk [vmem:[%s251 + $0xb0] sm:$0xff] %vm734, %v1205
      %1238 = vst.msk [vmem:[%s251 + $0xb8] sm:$0xff] %vm734, %v1206
      %1239 = vst.msk [vmem:[%s251 + $0xc0] sm:$0xff] %vm734, %v1207
      %1240 = vst.msk [vmem:[%s251 + $0xc8] sm:$0xff] %vm734, %v1208
      %1241 = vst.msk [vmem:[%s251 + $0xd0] sm:$0xff] %vm734, %v1209
      %1242 = vst.msk [vmem:[%s251 + $0xd8] sm:$0xff] %vm734, %v1210
      %1243 = vst.msk [vmem:[%s251 + $0xe0] sm:$0xff] %vm734, %v1211
      %1244 = vst.msk [vmem:[%s251 + $0xe8] sm:$0xff] %vm734, %v1212
      %1245 = vst.msk [vmem:[%s251 + $0xf0] sm:$0xff] %vm734, %v1213
      %1246 = vst.msk [vmem:[%s251 + $0xf8] sm:$0xff] %vm734, %v1214
      %s1247 = smul.u32 32, %s16
      %p1248 = scmp.lt.s32.totalorder %s1247, 63
      %s1249 = scalar_select %p1248, %s1247, 63
      %s1250 = smul.addr %s1249, 8
      %s1251 = scalar_lea.vmem %s5, %s1250
      // Predicated region
      $region41: #{wide_resnet_forward.15} parent=39 // pred_check
        %p1252 = pneg %p149
      $region42: #{wide_resnet_forward.15} parent=39 // pred_check_branch
        %1254 = sbr.rel (%p1252) target = $region44
      $region43: #{wide_resnet_forward.15} parent=39 // pred_region
        %s1255 = smul.u32 32, %s16
      $region44: #{wide_resnet_forward.15} parent=39 // pred_fallthru
        _
    $region40: #{wide_resnet_forward.15} parent=5 // pred_fallthru
      _
    %p1256 = scmp.le.s32.totalorder 2, %s11
    // Predicated region
    $region45: #{wide_resnet_forward.15} parent=5 // pred_check
      %p1257 = pneg %p1256
    $region46: #{wide_resnet_forward.15} parent=5 // pred_check_branch
      %1259 = sbr.rel (%p1257) target = $region48
    $region47: #{wide_resnet_forward.15} parent=5 // pred_region
      %s1260 = ssub.s32 %s11, 2
      // Predicated region
      $region49: #{wide_resnet_forward.15} parent=47 // pred_check
        %p1261 = pneg %p155
      $region50: #{wide_resnet_forward.15} parent=47 // pred_check_branch
        %1263 = sbr.rel (%p1261) target = $region52
      $region51: #{wide_resnet_forward.15} parent=47 // pred_region
        %s1264 = smul.u32 32, %s17
        %p1265 = scmp.lt.s32.totalorder %s1264, 63
        %s1266 = scalar_select %p1265, %s1264, 63
        %s1267 = smul.addr %s1266, 8
        %s1268 = scalar_lea.vmem %s5, %s1267
      $region52: #{wide_resnet_forward.15} parent=47 // pred_fallthru
        _
    $region48: #{wide_resnet_forward.15} parent=5 // pred_fallthru
      _
  $region6: #{wide_resnet_forward.15} parent=0 // loop_footer
    %s15 = sadd.s32 1, %s11
  $region7: #{wide_resnet_forward.15} parent=0 // loop_footer_branch
    %10 = sbr.rel target = $region3
  $region8: #{wide_resnet_forward.15} parent=0 // loop_exit
    _

// kernel: wide_resnet_forward.17
$region0: #{wide_resnet_forward.17}
  #allocation0 [shape = 'u32[]', space=smem, size = 0x4, offset = 0x4, fixed_abs, tag = 'smem constant byte address 0x4 - core index']
  #allocation1 [shape = 'u32[144,128]{1,0:T(1,128)}', space=vmem, size = 0x12000, scoped, tag = 'internal scratch']
  %s0 = inlined_call_operand.vmem [shape: bf16[128,32], index: 0, kind: input, shape index: {}]
  %s1 = inlined_call_operand.vmem [shape: bf16[32,64], index: 1, kind: input, shape index: {}]
  %s2 = inlined_call_operand.vmem [shape: f32[128,64], index: 2, kind: output, shape index: {}]
  %s3 = sld [smem:[#allocation0]]
  $region41: #{wide_resnet_forward.17} parent=0
    _
  %s5 = ssub.s32 1, %s3
  %s6 = scalar_select 0, %s5, %s3
  loop: start=0, step=1, limit=4
  $region2: #{wide_resnet_forward.17} parent=0 // loop_pre_header
    _
  $region3: #{wide_resnet_forward.17} parent=0 // loop_header
    %s8 = sphi 0, %s12
    %p9 = scmp.ge.s32.totalorder %s8, 4
    %s18 = sphi 0, %s20
    %s21 = sphi 0, %s18
    %s22 = sphi 0, %s21
    %s38 = sphi 0, %s22
    %s42 = sphi 0, %s42
    %s44 = sphi 0, %s42
    %s45 = sphi 0, %s44
    %s59 = sphi 0, %s45
    %s65 = sphi 0, %s67
    %s68 = sphi 0, %s65
    %s69 = sphi 0, %s68
    %s85 = sphi 0, %s69
  $region4: #{wide_resnet_forward.17} parent=0 // loop_header_branch
    %11 = sbr.rel (%p9) target = $region8
  $region5: #{wide_resnet_forward.17} parent=0 // loop_body
    %s13 = ssub.s32 %s8, 1
    %s14 = ssub.s32 %s8, 2
    %s15 = sadd.s32 %s8, 1
    %s16 = ssub.s32 %s8, %s15
    %p17 = scmp.eq.s32.totalorder %s16, 0
    %s19 = sadd.s32 %s18, 1
    %s20 = scalar_select %p17, %s18, %s19
    %p23 = pneg %p17
    %p24 = scmp.eq.s32.totalorder %s8, 1
    %p25 = por %p23, %p24
    %p26 = scmp.ne.s32.totalorder %s18, %s21
    %p27 = scmp.eq.s32.totalorder %s8, 0
    %p28 = por %p26, %p27
    %p29 = scmp.ne.s32.totalorder %s18, %s21
    %p30 = scmp.eq.s32.totalorder %s13, 1
    %p31 = por %p29, %p30
    %p32 = scmp.ne.s32.totalorder %s21, %s22
    %p33 = scmp.eq.s32.totalorder %s13, 0
    %p34 = por %p32, %p33
    %p35 = scmp.ne.s32.totalorder %s21, %s22
    %p36 = scmp.eq.s32.totalorder %s14, 1
    %p37 = por %p35, %p36
    %p39 = scmp.ne.s32.totalorder %s22, %s38
    %p40 = scmp.eq.s32.totalorder %s14, 0
    %p41 = por %p39, %p40
    %s43 = sadd.s32 %s42, 1
    %p46 = scmp.eq.s32.totalorder %s8, 1
    %p47 = scmp.ne.s32.totalorder %s42, %s44
    %p48 = scmp.eq.s32.totalorder %s8, 0
    %p49 = por %p47, %p48
    %p50 = scmp.ne.s32.totalorder %s42, %s44
    %p51 = scmp.eq.s32.totalorder %s13, 1
    %p52 = por %p50, %p51
    %p53 = scmp.ne.s32.totalorder %s44, %s45
    %p54 = scmp.eq.s32.totalorder %s13, 0
    %p55 = por %p53, %p54
    %p56 = scmp.ne.s32.totalorder %s44, %s45
    %p57 = scmp.eq.s32.totalorder %s14, 1
    %p58 = por %p56, %p57
    %p60 = scmp.ne.s32.totalorder %s45, %s59
    %p61 = scmp.eq.s32.totalorder %s14, 0
    %p62 = por %p60, %p61
    %s63 = ssub.s32 %s8, %s15
    %p64 = scmp.eq.s32.totalorder %s63, 0
    %s66 = sadd.s32 %s65, 1
    %s67 = scalar_select %p64, %s65, %s66
    %p70 = pneg %p64
    %p71 = scmp.eq.s32.totalorder %s8, 1
    %p72 = por %p70, %p71
    %p73 = scmp.ne.s32.totalorder %s65, %s68
    %p74 = scmp.eq.s32.totalorder %s8, 0
    %p75 = por %p73, %p74
    %p76 = scmp.ne.s32.totalorder %s65, %s68
    %p77 = scmp.eq.s32.totalorder %s13, 1
    %p78 = por %p76, %p77
    %p79 = scmp.ne.s32.totalorder %s68, %s69
    %p80 = scmp.eq.s32.totalorder %s13, 0
    %p81 = por %p79, %p80
    %p82 = scmp.ne.s32.totalorder %s68, %s69
    %p83 = scmp.eq.s32.totalorder %s14, 1
    %p84 = por %p82, %p83
    %p86 = scmp.ne.s32.totalorder %s69, %s85
    %p87 = scmp.eq.s32.totalorder %s14, 0
    %p88 = por %p86, %p87
    %p89 = scmp.le.s32.totalorder 1, %s8
    %p90 = scmp.lt.s32.totalorder %s8, 3
    %p91 = pnand %p89, %p90
    %p92 = pneg %p91
    // Predicated region
    $region9: #{wide_resnet_forward.17} parent=5 // pred_check
      _
    $region10: #{wide_resnet_forward.17} parent=5 // pred_check_branch
      %94 = sbr.rel (%p91) target = $region12
    $region11: #{wide_resnet_forward.17} parent=5 // pred_region
      %s95 = ssub.s32 %s8, 1
      // Predicated region
      $region13: #{wide_resnet_forward.17} parent=11 // pred_check
        %p96 = pneg %p55
      $region14: #{wide_resnet_forward.17} parent=11 // pred_check_branch
        %98 = sbr.rel (%p96) target = $region16
      $region15: #{wide_resnet_forward.17} parent=11 // pred_region
        _
      $region16: #{wide_resnet_forward.17} parent=11 // pred_fallthru
        _
    $region12: #{wide_resnet_forward.17} parent=5 // pred_fallthru
      _
    %p99 = scmp.lt.s32.totalorder %s8, 2
    // Predicated region
    $region17: #{wide_resnet_forward.17} parent=5 // pred_check
      %p100 = pneg %p99
    $region18: #{wide_resnet_forward.17} parent=5 // pred_check_branch
      %102 = sbr.rel (%p100) target = $region20
    $region19: #{wide_resnet_forward.17} parent=5 // pred_region
      // Predicated region
      $region21: #{wide_resnet_forward.17} parent=19 // pred_check
        %p103 = pneg %p28
      $region22: #{wide_resnet_forward.17} parent=19 // pred_check_branch
        %105 = sbr.rel (%p103) target = $region24
      $region23: #{wide_resnet_forward.17} parent=19 // pred_region
        %s106 = smul.u32 8, %s8
        %p107 = scmp.lt.s32.totalorder %s106, 15
        %s108 = scalar_select %p107, %s106, 15
        %s109 = smul.addr %s108, 4
        %s110 = scalar_lea.vmem %s0, %s109
        %s111 = smul.u32 8, %s8
      $region24: #{wide_resnet_forward.17} parent=19 // pred_fallthru
        _
    $region20: #{wide_resnet_forward.17} parent=5 // pred_fallthru
      _
    %p112 = scmp.le.s32.totalorder 1, %s8
    %p113 = scmp.lt.s32.totalorder %s8, 3
    %p114 = pnand %p112, %p113
    %p115 = pneg %p114
    // Predicated region
    $region25: #{wide_resnet_forward.17} parent=5 // pred_check
      _
    $region26: #{wide_resnet_forward.17} parent=5 // pred_check_branch
      %117 = sbr.rel (%p114) target = $region28
    $region27: #{wide_resnet_forward.17} parent=5 // pred_region
      %s118 = ssub.s32 %s8, 1
      %s119 = smul.u32 8, %s13
      %p120 = scmp.lt.s32.totalorder %s119, 15
      %s121 = scalar_select %p120, %s119, 15
      %s122 = smul.addr %s121, 4
      %s123 = scalar_lea.vmem %s0, %s122
      %p124 = pneg %p34
      %p125 = pneg %p31
      %p126 = pneg %p55
      %p127 = pneg %p52
      %p128 = pneg %p81
      %p129 = pneg %p78
      %s130 = smul.u32 8, %s13
      %p131 = scmp.lt.s32.totalorder %s130, 15
      %s132 = scalar_select %p131, %s130, 15
      %s133 = smul.addr %s132, 8
      %s134 = scalar_lea.vmem %s2, %s133
      %s135 = smul.u32 8, %s13
      %p136 = scmp.lt.s32.totalorder %s135, 15
      %s137 = scalar_select %p136, %s135, 15
      %s138 = smul.addr %s137, 4
      %s139 = scalar_lea.vmem %s0, %s138
      %s140 = smul.u32 8, %s13
      %s141 = smul.u32 8, %s13
      %p142 = scmp.lt.s32.totalorder %s141, 15
      %s143 = scalar_select %p142, %s141, 15
      %s144 = smul.addr %s143, 8
      %s145 = scalar_lea.vmem %s2, %s144
      %s146 = smul.u32 8, %s13
      %v148 = vld [vmem:[%s139] sm:$0xf]
      %v149 = vld [vmem:[%s139 + $0x4] sm:$0xf]
      %v150 = vld [vmem:[%s139 + $0x8] sm:$0xf]
      %v151 = vld [vmem:[%s139 + $0xc] sm:$0xf]
      %v152 = vld [vmem:[%s139 + $0x10] sm:$0xf]
      %v153 = vld [vmem:[%s139 + $0x14] sm:$0xf]
      %v154 = vld [vmem:[%s139 + $0x18] sm:$0xf]
      %v155 = vld [vmem:[%s139 + $0x1c] sm:$0xf]
      %v156 = vld [vmem:[%s1] sm:$0xf]
      %v157 = vld [vmem:[%s1 + $0x4] sm:$0xf]
      %v158 = vld [vmem:[%s1 + $0x8] sm:$0xf]
      %v159 = vld [vmem:[%s1 + $0xc] sm:$0xf]
      %v168 = vunpack.c.l.b16 %v148
      %v169 = vunpack.c.l.b16 %v149
      %v170 = vunpack.c.l.b16 %v150
      %v171 = vunpack.c.l.b16 %v151
      %v172 = vunpack.c.l.b16 %v152
      %v173 = vunpack.c.l.b16 %v153
      %v174 = vunpack.c.l.b16 %v154
      %v175 = vunpack.c.l.b16 %v155
      %v176 = vpack.c.b16 %v169, %v168
      %v177 = vpack.c.b16 %v171, %v170
      %v178 = vpack.c.b16 %v173, %v172
      %v179 = vpack.c.b16 %v175, %v174
      %v184 = vunpack.c.l.b16 %v156
      %v185 = vunpack.c.l.b16 %v157
      %v186 = vunpack.c.l.b16 %v158
      %v187 = vunpack.c.l.b16 %v159
      %v188 = vpack.c.b16 %v185, %v184
      %v189 = vpack.c.b16 %v187, %v186
      %vm192 = vcmask 261120
      %v194 = vsel %vm192, %v176, 0
      %v197 = vsel %vm192, %v177, 0
      %v200 = vsel %vm192, %v178, 0
      %v203 = vsel %vm192, %v179, 0
      %205 = vmatprep.subr.bf16.mxu0 0
      %206 = vmatpush1.bf16.msra.mxu0 %v188
      %207 = vmatprep.subr.bf16.mxu0 0
      %208 = vmatpush1.bf16.msra.mxu0 %v189
      %209 = vmatprep.subr.bf16.mxu0 0
      %210 = vmatpush1.bf16.msra.mxu0 0
      %211 = vmatprep.subr.bf16.mxu0 0
      %212 = vmatpush1.bf16.msra.mxu0 0
      %213 = vmatprep.subr.bf16.mxu0 0
      %214 = vmatpush1.bf16.msra.mxu0 0
      %215 = vmatprep.subr.bf16.mxu0 0
      %216 = vmatpush1.bf16.msra.mxu0 0
      %217 = vmatprep.subr.bf16.mxu0 0
      %218 = vmatpush1.bf16.msra.mxu0 0
      %219 = vmatprep.subr.bf16.mxu0 0
      %220 = vmatpush1.bf16.msra.mxu0 0
      %221 = vmatprep.subr.bf16.mxu0 0
      %222 = vmatpush1.bf16.msra.mxu0 0
      %223 = vmatprep.subr.bf16.mxu0 0
      %224 = vmatpush1.bf16.msra.mxu0 0
      %225 = vmatprep.subr.bf16.mxu0 0
      %226 = vmatpush1.bf16.msra.mxu0 0
      %227 = vmatprep.subr.bf16.mxu0 0
      %228 = vmatpush1.bf16.msra.mxu0 0
      %229 = vmatprep.subr.bf16.mxu0 0
      %230 = vmatpush1.bf16.msra.mxu0 0
      %231 = vmatprep.subr.bf16.mxu0 0
      %232 = vmatpush1.bf16.msra.mxu0 0
      %233 = vmatprep.subr.bf16.mxu0 0
      %234 = vmatpush1.bf16.msra.mxu0 0
      %235 = vmatprep.subr.bf16.mxu0 0
      %236 = vmatpush1.bf16.msra.mxu0 0
      %237 = vmatprep.mubr.bf16.mxu0 0
      %238 = vmatmul.mubr.bf16.gmra.mrb[0].mxu0 %v194
      %v239 = vpop.f32.mrb[0].mxu0
      %v240 = vadd.f32 0.0, %v239
      %v241 = vpop.f32.mrb[0].mxu0
      %v242 = vpop.f32.mrb[0].mxu0
      %v243 = vadd.f32 0.0, %v242
      %v244 = vpop.f32.mrb[0].mxu0
      %245 = vmatprep.mubr.bf16.mxu0 0
      %246 = vmatmul.mubr.bf16.gmra.mrb[0].mxu0 %v197
      %v247 = vpop.f32.mrb[0].mxu0
      %v248 = vadd.f32 0.0, %v247
      %v249 = vpop.f32.mrb[0].mxu0
      %v250 = vpop.f32.mrb[0].mxu0
      %v251 = vadd.f32 0.0, %v250
      %v252 = vpop.f32.mrb[0].mxu0
      %253 = vmatprep.mubr.bf16.mxu0 0
      %254 = vmatmul.mubr.bf16.gmra.mrb[0].mxu0 %v200
      %v255 = vpop.f32.mrb[0].mxu0
      %v256 = vadd.f32 0.0, %v255
      %v257 = vpop.f32.mrb[0].mxu0
      %v258 = vpop.f32.mrb[0].mxu0
      %v259 = vadd.f32 0.0, %v258
      %v260 = vpop.f32.mrb[0].mxu0
      %261 = vmatprep.mubr.bf16.mxu0 0
      %262 = vmatmul.mubr.bf16.gmra.mrb[0].mxu0 %v203
      %v263 = vpop.f32.mrb[0].mxu0
      %v264 = vadd.f32 0.0, %v263
      %v265 = vpop.f32.mrb[0].mxu0
      %v266 = vpop.f32.mrb[0].mxu0
      %v267 = vadd.f32 0.0, %v266
      %v268 = vpop.f32.mrb[0].mxu0
      %269 = vdwg.mxu0
      %vm270 = vcmask 523264
      %271 = vst.msk [vmem:[%s145] sm:$0xff] %vm270, %v240
      %272 = vst.msk [vmem:[%s145 + $0x8] sm:$0xff] %vm270, %v243
      %273 = vst.msk [vmem:[%s145 + $0x10] sm:$0xff] %vm270, %v248
      %274 = vst.msk [vmem:[%s145 + $0x18] sm:$0xff] %vm270, %v251
      %275 = vst.msk [vmem:[%s145 + $0x20] sm:$0xff] %vm270, %v256
      %276 = vst.msk [vmem:[%s145 + $0x28] sm:$0xff] %vm270, %v259
      %277 = vst.msk [vmem:[%s145 + $0x30] sm:$0xff] %vm270, %v264
      %278 = vst.msk [vmem:[%s145 + $0x38] sm:$0xff] %vm270, %v267
      %s279 = smul.u32 8, %s13
      %p280 = scmp.lt.s32.totalorder %s279, 15
      %s281 = scalar_select %p280, %s279, 15
      %s282 = smul.addr %s281, 8
      %s283 = scalar_lea.vmem %s2, %s282
      // Predicated region
      $region29: #{wide_resnet_forward.17} parent=27 // pred_check
        %p284 = pneg %p78
      $region30: #{wide_resnet_forward.17} parent=27 // pred_check_branch
        %286 = sbr.rel (%p284) target = $region32
      $region31: #{wide_resnet_forward.17} parent=27 // pred_region
        %s287 = smul.u32 8, %s13
      $region32: #{wide_resnet_forward.17} parent=27 // pred_fallthru
        _
    $region28: #{wide_resnet_forward.17} parent=5 // pred_fallthru
      _
    %p288 = scmp.le.s32.totalorder 2, %s8
    // Predicated region
    $region33: #{wide_resnet_forward.17} parent=5 // pred_check
      %p289 = pneg %p288
    $region34: #{wide_resnet_forward.17} parent=5 // pred_check_branch
      %291 = sbr.rel (%p289) target = $region36
    $region35: #{wide_resnet_forward.17} parent=5 // pred_region
      %s292 = ssub.s32 %s8, 2
      // Predicated region
      $region37: #{wide_resnet_forward.17} parent=35 // pred_check
        %p293 = pneg %p84
      $region38: #{wide_resnet_forward.17} parent=35 // pred_check_branch
        %295 = sbr.rel (%p293) target = $region40
      $region39: #{wide_resnet_forward.17} parent=35 // pred_region
        %s296 = smul.u32 8, %s14
        %p297 = scmp.lt.s32.totalorder %s296, 15
        %s298 = scalar_select %p297, %s296, 15
        %s299 = smul.addr %s298, 8
        %s300 = scalar_lea.vmem %s2, %s299
      $region40: #{wide_resnet_forward.17} parent=35 // pred_fallthru
        _
    $region36: #{wide_resnet_forward.17} parent=5 // pred_fallthru
      _
  $region6: #{wide_resnet_forward.17} parent=0 // loop_footer
    %s12 = sadd.s32 1, %s8
  $region7: #{wide_resnet_forward.17} parent=0 // loop_footer_branch
    %7 = sbr.rel target = $region3
  $region8: #{wide_resnet_forward.17} parent=0 // loop_exit
    _

// kernel: wide_resnet_forward.16
$region0: #{wide_resnet_forward.16}
  #allocation0 [shape = 'u32[]', space=smem, size = 0x4, offset = 0x4, fixed_abs, tag = 'smem constant byte address 0x4 - core index']
  #allocation1 [shape = 'u32[144,128]{1,0:T(1,128)}', space=vmem, size = 0x12000, scoped, tag = 'internal scratch']
  %s0 = inlined_call_operand.vmem [shape: bf16[128,288], index: 0, kind: input, shape index: {}]
  %s1 = inlined_call_operand.vmem [shape: bf16[288,64], index: 1, kind: input, shape index: {}]
  %s2 = inlined_call_operand.vmem [shape: f32[1,64], index: 2, kind: input, shape index: {}]
  %s3 = inlined_call_operand.vmem [shape: f32[1,64], index: 3, kind: input, shape index: {}]
  %s4 = inlined_call_operand.vmem [shape: f32[128,64], index: 4, kind: output, shape index: {}]
  %s5 = sld [smem:[#allocation0]]
  $region49: #{wide_resnet_forward.16} parent=0
    _
  %s7 = ssub.s32 1, %s5
  %s8 = scalar_select 0, %s7, %s5
  loop: start=0, step=1, limit=4
  $region2: #{wide_resnet_forward.16} parent=0 // loop_pre_header
    _
  $region3: #{wide_resnet_forward.16} parent=0 // loop_header
    %s10 = sphi 0, %s14
    %p11 = scmp.ge.s32.totalorder %s10, 4
    %s20 = sphi 0, %s22
    %s23 = sphi 0, %s20
    %s24 = sphi 0, %s23
    %s40 = sphi 0, %s24
    %s44 = sphi 0, %s44
    %s46 = sphi 0, %s44
    %s47 = sphi 0, %s46
    %s61 = sphi 0, %s47
    %s65 = sphi 0, %s65
    %s67 = sphi 0, %s65
    %s68 = sphi 0, %s67
    %s82 = sphi 0, %s68
    %s86 = sphi 0, %s86
    %s88 = sphi 0, %s86
    %s89 = sphi 0, %s88
    %s103 = sphi 0, %s89
    %s109 = sphi 0, %s111
    %s112 = sphi 0, %s109
    %s113 = sphi 0, %s112
    %s129 = sphi 0, %s113
  $region4: #{wide_resnet_forward.16} parent=0 // loop_header_branch
    %13 = sbr.rel (%p11) target = $region8
  $region5: #{wide_resnet_forward.16} parent=0 // loop_body
    %s15 = ssub.s32 %s10, 1
    %s16 = ssub.s32 %s10, 2
    %s17 = sadd.s32 %s10, 1
    %s18 = ssub.s32 %s10, %s17
    %p19 = scmp.eq.s32.totalorder %s18, 0
    %s21 = sadd.s32 %s20, 1
    %s22 = scalar_select %p19, %s20, %s21
    %p25 = pneg %p19
    %p26 = scmp.eq.s32.totalorder %s10, 1
    %p27 = por %p25, %p26
    %p28 = scmp.ne.s32.totalorder %s20, %s23
    %p29 = scmp.eq.s32.totalorder %s10, 0
    %p30 = por %p28, %p29
    %p31 = scmp.ne.s32.totalorder %s20, %s23
    %p32 = scmp.eq.s32.totalorder %s15, 1
    %p33 = por %p31, %p32
    %p34 = scmp.ne.s32.totalorder %s23, %s24
    %p35 = scmp.eq.s32.totalorder %s15, 0
    %p36 = por %p34, %p35
    %p37 = scmp.ne.s32.totalorder %s23, %s24
    %p38 = scmp.eq.s32.totalorder %s16, 1
    %p39 = por %p37, %p38
    %p41 = scmp.ne.s32.totalorder %s24, %s40
    %p42 = scmp.eq.s32.totalorder %s16, 0
    %p43 = por %p41, %p42
    %s45 = sadd.s32 %s44, 1
    %p48 = scmp.eq.s32.totalorder %s10, 1
    %p49 = scmp.ne.s32.totalorder %s44, %s46
    %p50 = scmp.eq.s32.totalorder %s10, 0
    %p51 = por %p49, %p50
    %p52 = scmp.ne.s32.totalorder %s44, %s46
    %p53 = scmp.eq.s32.totalorder %s15, 1
    %p54 = por %p52, %p53
    %p55 = scmp.ne.s32.totalorder %s46, %s47
    %p56 = scmp.eq.s32.totalorder %s15, 0
    %p57 = por %p55, %p56
    %p58 = scmp.ne.s32.totalorder %s46, %s47
    %p59 = scmp.eq.s32.totalorder %s16, 1
    %p60 = por %p58, %p59
    %p62 = scmp.ne.s32.totalorder %s47, %s61
    %p63 = scmp.eq.s32.totalorder %s16, 0
    %p64 = por %p62, %p63
    %s66 = sadd.s32 %s65, 1
    %p69 = scmp.eq.s32.totalorder %s10, 1
    %p70 = scmp.ne.s32.totalorder %s65, %s67
    %p71 = scmp.eq.s32.totalorder %s10, 0
    %p72 = por %p70, %p71
    %p73 = scmp.ne.s32.totalorder %s65, %s67
    %p74 = scmp.eq.s32.totalorder %s15, 1
    %p75 = por %p73, %p74
    %p76 = scmp.ne.s32.totalorder %s67, %s68
    %p77 = scmp.eq.s32.totalorder %s15, 0
    %p78 = por %p76, %p77
    %p79 = scmp.ne.s32.totalorder %s67, %s68
    %p80 = scmp.eq.s32.totalorder %s16, 1
    %p81 = por %p79, %p80
    %p83 = scmp.ne.s32.totalorder %s68, %s82
    %p84 = scmp.eq.s32.totalorder %s16, 0
    %p85 = por %p83, %p84
    %s87 = sadd.s32 %s86, 1
    %p90 = scmp.eq.s32.totalorder %s10, 1
    %p91 = scmp.ne.s32.totalorder %s86, %s88
    %p92 = scmp.eq.s32.totalorder %s10, 0
    %p93 = por %p91, %p92
    %p94 = scmp.ne.s32.totalorder %s86, %s88
    %p95 = scmp.eq.s32.totalorder %s15, 1
    %p96 = por %p94, %p95
    %p97 = scmp.ne.s32.totalorder %s88, %s89
    %p98 = scmp.eq.s32.totalorder %s15, 0
    %p99 = por %p97, %p98
    %p100 = scmp.ne.s32.totalorder %s88, %s89
    %p101 = scmp.eq.s32.totalorder %s16, 1
    %p102 = por %p100, %p101
    %p104 = scmp.ne.s32.totalorder %s89, %s103
    %p105 = scmp.eq.s32.totalorder %s16, 0
    %p106 = por %p104, %p105
    %s107 = ssub.s32 %s10, %s17
    %p108 = scmp.eq.s32.totalorder %s107, 0
    %s110 = sadd.s32 %s109, 1
    %s111 = scalar_select %p108, %s109, %s110
    %p114 = pneg %p108
    %p115 = scmp.eq.s32.totalorder %s10, 1
    %p116 = por %p114, %p115
    %p117 = scmp.ne.s32.totalorder %s109, %s112
    %p118 = scmp.eq.s32.totalorder %s10, 0
    %p119 = por %p117, %p118
    %p120 = scmp.ne.s32.totalorder %s109, %s112
    %p121 = scmp.eq.s32.totalorder %s15, 1
    %p122 = por %p120, %p121
    %p123 = scmp.ne.s32.totalorder %s112, %s113
    %p124 = scmp.eq.s32.totalorder %s15, 0
    %p125 = por %p123, %p124
    %p126 = scmp.ne.s32.totalorder %s112, %s113
    %p127 = scmp.eq.s32.totalorder %s16, 1
    %p128 = por %p126, %p127
    %p130 = scmp.ne.s32.totalorder %s113, %s129
    %p131 = scmp.eq.s32.totalorder %s16, 0
    %p132 = por %p130, %p131
    %p133 = scmp.le.s32.totalorder 1, %s10
    %p134 = scmp.lt.s32.totalorder %s10, 3
    %p135 = pnand %p133, %p134
    %p136 = pneg %p135
    // Predicated region
    $region9: #{wide_resnet_forward.16} parent=5 // pred_check
      _
    $region10: #{wide_resnet_forward.16} parent=5 // pred_check_branch
      %138 = sbr.rel (%p135) target = $region12
    $region11: #{wide_resnet_forward.16} parent=5 // pred_region
      %s139 = ssub.s32 %s10, 1
      // Predicated region
      $region13: #{wide_resnet_forward.16} parent=11 // pred_check
        %p140 = pneg %p57
      $region14: #{wide_resnet_forward.16} parent=11 // pred_check_branch
        %142 = sbr.rel (%p140) target = $region16
      $region15: #{wide_resnet_forward.16} parent=11 // pred_region
        _
      $region16: #{wide_resnet_forward.16} parent=11 // pred_fallthru
        _
      // Predicated region
      $region17: #{wide_resnet_forward.16} parent=11 // pred_check
        %p143 = pneg %p78
      $region18: #{wide_resnet_forward.16} parent=11 // pred_check_branch
        %145 = sbr.rel (%p143) target = $region20
      $region19: #{wide_resnet_forward.16} parent=11 // pred_region
        _
      $region20: #{wide_resnet_forward.16} parent=11 // pred_fallthru
        _
      // Predicated region
      $region21: #{wide_resnet_forward.16} parent=11 // pred_check
        %p146 = pneg %p99
      $region22: #{wide_resnet_forward.16} parent=11 // pred_check_branch
        %148 = sbr.rel (%p146) target = $region24
      $region23: #{wide_resnet_forward.16} parent=11 // pred_region
        _
      $region24: #{wide_resnet_forward.16} parent=11 // pred_fallthru
        _
    $region12: #{wide_resnet_forward.16} parent=5 // pred_fallthru
      _
    %p149 = scmp.lt.s32.totalorder %s10, 2
    // Predicated region
    $region25: #{wide_resnet_forward.16} parent=5 // pred_check
      %p150 = pneg %p149
    $region26: #{wide_resnet_forward.16} parent=5 // pred_check_branch
      %152 = sbr.rel (%p150) target = $region28
    $region27: #{wide_resnet_forward.16} parent=5 // pred_region
      // Predicated region
      $region29: #{wide_resnet_forward.16} parent=27 // pred_check
        %p153 = pneg %p30
      $region30: #{wide_resnet_forward.16} parent=27 // pred_check_branch
        %155 = sbr.rel (%p153) target = $region32
      $region31: #{wide_resnet_forward.16} parent=27 // pred_region
        %s156 = smul.u32 8, %s10
        %p157 = scmp.lt.s32.totalorder %s156, 15
        %s158 = scalar_select %p157, %s156, 15
        %s159 = smul.addr %s158, 3
        %s160 = smul.addr %s159, 4
        %s161 = scalar_lea.vmem %s0, %s160
        %s162 = smul.u32 8, %s10
      $region32: #{wide_resnet_forward.16} parent=27 // pred_fallthru
        _
    $region28: #{wide_resnet_forward.16} parent=5 // pred_fallthru
      _
    %p163 = scmp.le.s32.totalorder 1, %s10
    %p164 = scmp.lt.s32.totalorder %s10, 3
    %p165 = pnand %p163, %p164
    %p166 = pneg %p165
    // Predicated region
    $region33: #{wide_resnet_forward.16} parent=5 // pred_check
      _
    $region34: #{wide_resnet_forward.16} parent=5 // pred_check_branch
      %168 = sbr.rel (%p165) target = $region36
    $region35: #{wide_resnet_forward.16} parent=5 // pred_region
      %s169 = ssub.s32 %s10, 1
      %s170 = smul.u32 8, %s15
      %p171 = scmp.lt.s32.totalorder %s170, 15
      %s172 = scalar_select %p171, %s170, 15
      %s173 = smul.addr %s172, 3
      %s174 = smul.addr %s173, 4
      %s175 = scalar_lea.vmem %s0, %s174
      %p176 = pneg %p36
      %p177 = pneg %p33
      %p178 = pneg %p57
      %p179 = pneg %p54
      %p180 = pneg %p78
      %p181 = pneg %p75
      %p182 = pneg %p99
      %p183 = pneg %p96
      %p184 = pneg %p125
      %p185 = pneg %p122
      %s186 = smul.u32 8, %s15
      %p187 = scmp.lt.s32.totalorder %s186, 15
      %s188 = scalar_select %p187, %s186, 15
      %s189 = smul.addr %s188, 8
      %s190 = scalar_lea.vmem %s4, %s189
      %s191 = smul.u32 8, %s15
      %p192 = scmp.lt.s32.totalorder %s191, 15
      %s193 = scalar_select %p192, %s191, 15
      %s194 = smul.addr %s193, 3
      %s195 = smul.addr %s194, 4
      %s196 = scalar_lea.vmem %s0, %s195
      %s197 = smul.u32 8, %s15
      %s198 = smul.u32 8, %s15
      %p199 = scmp.lt.s32.totalorder %s198, 15
      %s200 = scalar_select %p199, %s198, 15
      %s201 = smul.addr %s200, 8
      %s202 = scalar_lea.vmem %s4, %s201
      %s203 = smul.u32 8, %s15
      %v205 = vld [vmem:[%s196] sm:$0xff]
      %v206 = vld [vmem:[%s196 + $0x8] sm:$0xf]
      %v207 = vld [vmem:[%s196 + $0xc] sm:$0xff]
      %v208 = vld [vmem:[%s196 + $0x14] sm:$0xf]
      %v209 = vld [vmem:[%s196 + $0x18] sm:$0xff]
      %v210 = vld [vmem:[%s196 + $0x20] sm:$0xf]
      %v211 = vld [vmem:[%s196 + $0x24] sm:$0xff]
      %v212 = vld [vmem:[%s196 + $0x2c] sm:$0xf]
      %v213 = vld [vmem:[%s196 + $0x30] sm:$0xff]
      %v214 = vld [vmem:[%s196 + $0x38] sm:$0xf]
      %v215 = vld [vmem:[%s196 + $0x3c] sm:$0xff]
      %v216 = vld [vmem:[%s196 + $0x44] sm:$0xf]
      %v217 = vld [vmem:[%s196 + $0x48] sm:$0xff]
      %v218 = vld [vmem:[%s196 + $0x50] sm:$0xf]
      %v219 = vld [vmem:[%s196 + $0x54] sm:$0xff]
      %v220 = vld [vmem:[%s196 + $0x5c] sm:$0xf]
      %v221 = vld [vmem:[%s1] sm:$0xf]
      %v222 = vld [vmem:[%s1 + $0x4] sm:$0xf]
      %v223 = vld [vmem:[%s1 + $0x8] sm:$0xf]
      %v224 = vld [vmem:[%s1 + $0xc] sm:$0xf]
      %v225 = vld [vmem:[%s1 + $0x10] sm:$0xf]
      %v226 = vld [vmem:[%s1 + $0x14] sm:$0xf]
      %v227 = vld [vmem:[%s1 + $0x18] sm:$0xf]
      %v228 = vld [vmem:[%s1 + $0x1c] sm:$0xf]
      %v229 = vld [vmem:[%s1 + $0x20] sm:$0xf]
      %v230 = vld [vmem:[%s1 + $0x24] sm:$0xf]
      %v231 = vld [vmem:[%s1 + $0x28] sm:$0xf]
      %v232 = vld [vmem:[%s1 + $0x2c] sm:$0xf]
      %v233 = vld [vmem:[%s1 + $0x30] sm:$0xf]
      %v234 = vld [vmem:[%s1 + $0x34] sm:$0xf]
      %v235 = vld [vmem:[%s1 + $0x38] sm:$0xf]
      %v236 = vld [vmem:[%s1 + $0x3c] sm:$0xf]
      %v237 = vld [vmem:[%s1 + $0x40] sm:$0xf]
      %v238 = vld [vmem:[%s1 + $0x44] sm:$0xf]
      %v239 = vld [vmem:[%s1 + $0x48] sm:$0xf]
      %v240 = vld [vmem:[%s1 + $0x4c] sm:$0xf]
      %v241 = vld [vmem:[%s1 + $0x50] sm:$0xf]
      %v242 = vld [vmem:[%s1 + $0x54] sm:$0xf]
      %v243 = vld [vmem:[%s1 + $0x58] sm:$0xf]
      %v244 = vld [vmem:[%s1 + $0x5c] sm:$0xf]
      %v245 = vld [vmem:[%s1 + $0x60] sm:$0xf]
      %v246 = vld [vmem:[%s1 + $0x64] sm:$0xf]
      %v247 = vld [vmem:[%s1 + $0x68] sm:$0xf]
      %v248 = vld [vmem:[%s1 + $0x6c] sm:$0xf]
      %v249 = vld [vmem:[%s1 + $0x70] sm:$0xf]
      %v250 = vld [vmem:[%s1 + $0x74] sm:$0xf]
      %v251 = vld [vmem:[%s1 + $0x78] sm:$0xf]
      %v252 = vld [vmem:[%s1 + $0x7c] sm:$0xf]
      %v253 = vld [vmem:[%s1 + $0x80] sm:$0xf]
      %v254 = vld [vmem:[%s1 + $0x84] sm:$0xf]
      %v255 = vld [vmem:[%s1 + $0x88] sm:$0xf]
      %v256 = vld [vmem:[%s1 + $0x8c] sm:$0xf]
      %v273 = vunpack.c.l.b16 %v205
      %v274 = vunpack.c.h.b16 %v205
      %v275 = vunpack.c.l.b16 %v206
      %v276 = vunpack.c.l.b16 %v207
      %v277 = vunpack.c.h.b16 %v207
      %v278 = vunpack.c.l.b16 %v208
      %v279 = vunpack.c.l.b16 %v209
      %v280 = vunpack.c.h.b16 %v209
      %v281 = vunpack.c.l.b16 %v210
      %v282 = vunpack.c.l.b16 %v211
      %v283 = vunpack.c.h.b16 %v211
      %v284 = vunpack.c.l.b16 %v212
      %v285 = vunpack.c.l.b16 %v213
      %v286 = vunpack.c.h.b16 %v213
      %v287 = vunpack.c.l.b16 %v214
      %v288 = vunpack.c.l.b16 %v215
      %v289 = vunpack.c.h.b16 %v215
      %v290 = vunpack.c.l.b16 %v216
      %v291 = vunpack.c.l.b16 %v217
      %v292 = vunpack.c.h.b16 %v217
      %v293 = vunpack.c.l.b16 %v218
      %v294 = vunpack.c.l.b16 %v219
      %v295 = vunpack.c.h.b16 %v219
      %v296 = vunpack.c.l.b16 %v220
      %v297 = vpack.c.b16 %v276, %v273
      %v298 = vpack.c.b16 %v277, %v274
      %v299 = vpack.c.b16 %v278, %v275
      %v300 = vpack.c.b16 %v282, %v279
      %v301 = vpack.c.b16 %v283, %v280
      %v302 = vpack.c.b16 %v284, %v281
      %v303 = vpack.c.b16 %v288, %v285
      %v304 = vpack.c.b16 %v289, %v286
      %v305 = vpack.c.b16 %v290, %v287
      %v306 = vpack.c.b16 %v294, %v291
      %v307 = vpack.c.b16 %v295, %v292
      %v308 = vpack.c.b16 %v296, %v293
      %v353 = vunpack.c.l.b16 %v221
      %v354 = vunpack.c.l.b16 %v222
      %v355 = vunpack.c.l.b16 %v223
      %v356 = vunpack.c.l.b16 %v224
      %v357 = vunpack.c.l.b16 %v225
      %v358 = vunpack.c.l.b16 %v226
      %v359 = vunpack.c.l.b16 %v227
      %v360 = vunpack.c.l.b16 %v228
      %v361 = vunpack.c.l.b16 %v229
      %v362 = vunpack.c.l.b16 %v230
      %v363 = vunpack.c.l.b16 %v231
      %v364 = vunpack.c.l.b16 %v232
      %v365 = vunpack.c.l.b16 %v233
      %v366 = vunpack.c.l.b16 %v234
      %v367 = vunpack.c.l.b16 %v235
      %v368 = vunpack.c.l.b16 %v236
      %v369 = vunpack.c.l.b16 %v237
      %v370 = vunpack.c.l.b16 %v238
      %v371 = vunpack.c.l.b16 %v239
      %v372 = vunpack.c.l.b16 %v240
      %v373 = vunpack.c.l.b16 %v241
      %v374 = vunpack.c.l.b16 %v242
      %v375 = vunpack.c.l.b16 %v243
      %v376 = vunpack.c.l.b16 %v244
      %v377 = vunpack.c.l.b16 %v245
      %v378 = vunpack.c.l.b16 %v246
      %v379 = vunpack.c.l.b16 %v247
      %v380 = vunpack.c.l.b16 %v248
      %v381 = vunpack.c.l.b16 %v249
      %v382 = vunpack.c.l.b16 %v250
      %v383 = vunpack.c.l.b16 %v251
      %v384 = vunpack.c.l.b16 %v252
      %v385 = vunpack.c.l.b16 %v253
      %v386 = vunpack.c.l.b16 %v254
      %v387 = vunpack.c.l.b16 %v255
      %v388 = vunpack.c.l.b16 %v256
      %v389 = vpack.c.b16 %v354, %v353
      %v390 = vpack.c.b16 %v356, %v355
      %v391 = vpack.c.b16 %v358, %v357
      %v392 = vpack.c.b16 %v360, %v359
      %v393 = vpack.c.b16 %v362, %v361
      %v394 = vpack.c.b16 %v364, %v363
      %v395 = vpack.c.b16 %v366, %v365
      %v396 = vpack.c.b16 %v368, %v367
      %v397 = vpack.c.b16 %v370, %v369
      %v398 = vpack.c.b16 %v372, %v371
      %v399 = vpack.c.b16 %v374, %v373
      %v400 = vpack.c.b16 %v376, %v375
      %v401 = vpack.c.b16 %v378, %v377
      %v402 = vpack.c.b16 %v380, %v379
      %v403 = vpack.c.b16 %v382, %v381
      %v404 = vpack.c.b16 %v384, %v383
      %v405 = vpack.c.b16 %v386, %v385
      %v406 = vpack.c.b16 %v388, %v387
      %vm425 = vcmask 261120
      %v427 = vsel %vm425, %v299, 0
      %v430 = vsel %vm425, %v302, 0
      %v433 = vsel %vm425, %v305, 0
      %v436 = vsel %vm425, %v308, 0
      %438 = vmatprep.subr.bf16.mxu0 0
      %439 = vmatpush1.bf16.msra.mxu0 %v389
      %440 = vmatprep.subr.bf16.mxu0 0
      %441 = vmatpush1.bf16.msra.mxu0 %v390
      %442 = vmatprep.subr.bf16.mxu0 0
      %443 = vmatpush1.bf16.msra.mxu0 %v391
      %444 = vmatprep.subr.bf16.mxu0 0
      %445 = vmatpush1.bf16.msra.mxu0 %v392
      %446 = vmatprep.subr.bf16.mxu0 0
      %447 = vmatpush1.bf16.msra.mxu0 %v393
      %448 = vmatprep.subr.bf16.mxu0 0
      %449 = vmatpush1.bf16.msra.mxu0 %v394
      %450 = vmatprep.subr.bf16.mxu0 0
      %451 = vmatpush1.bf16.msra.mxu0 %v395
      %452 = vmatprep.subr.bf16.mxu0 0
      %453 = vmatpush1.bf16.msra.mxu0 %v396
      %454 = vmatprep.subr.bf16.mxu0 0
      %455 = vmatpush1.bf16.msra.mxu0 %v397
      %456 = vmatprep.subr.bf16.mxu0 0
      %457 = vmatpush1.bf16.msra.mxu0 %v398
      %458 = vmatprep.subr.bf16.mxu0 0
      %459 = vmatpush1.bf16.msra.mxu0 %v399
      %460 = vmatprep.subr.bf16.mxu0 0
      %461 = vmatpush1.bf16.msra.mxu0 %v400
      %462 = vmatprep.subr.bf16.mxu0 0
      %463 = vmatpush1.bf16.msra.mxu0 %v401
      %464 = vmatprep.subr.bf16.mxu0 0
      %465 = vmatpush1.bf16.msra.mxu0 %v402
      %466 = vmatprep.subr.bf16.mxu0 0
      %467 = vmatpush1.bf16.msra.mxu0 %v403
      %468 = vmatprep.subr.bf16.mxu0 0
      %469 = vmatpush1.bf16.msra.mxu0 %v404
      %470 = vmatprep.mubr.bf16.mxu0 %v298
      %471 = vmatmul.mubr.bf16.gmra.mrb[0].mxu0 %v297
      %v472 = vpop.f32.mrb[0].mxu0
      %v473 = vadd.f32 0.0, %v472
      %v474 = vpop.f32.mrb[0].mxu0
      %v475 = vpop.f32.mrb[0].mxu0
      %v476 = vadd.f32 0.0, %v475
      %v477 = vpop.f32.mrb[0].mxu0
      %478 = vmatprep.mubr.bf16.mxu0 %v301
      %479 = vmatmul.mubr.bf16.gmra.mrb[0].mxu0 %v300
      %v480 = vpop.f32.mrb[0].mxu0
      %v481 = vadd.f32 0.0, %v480
      %v482 = vpop.f32.mrb[0].mxu0
      %v483 = vpop.f32.mrb[0].mxu0
      %v484 = vadd.f32 0.0, %v483
      %v485 = vpop.f32.mrb[0].mxu0
      %486 = vmatprep.mubr.bf16.mxu0 %v304
      %487 = vmatmul.mubr.bf16.gmra.mrb[0].mxu0 %v303
      %v488 = vpop.f32.mrb[0].mxu0
      %v489 = vadd.f32 0.0, %v488
      %v490 = vpop.f32.mrb[0].mxu0
      %v491 = vpop.f32.mrb[0].mxu0
      %v492 = vadd.f32 0.0, %v491
      %v493 = vpop.f32.mrb[0].mxu0
      %494 = vmatprep.mubr.bf16.mxu0 %v307
      %495 = vmatmul.mubr.bf16.gmra.mrb[0].mxu0 %v306
      %v496 = vpop.f32.mrb[0].mxu0
      %v497 = vadd.f32 0.0, %v496
      %v498 = vpop.f32.mrb[0].mxu0
      %v499 = vpop.f32.mrb[0].mxu0
      %v500 = vadd.f32 0.0, %v499
      %v501 = vpop.f32.mrb[0].mxu0
      %502 = vdwg.mxu0
      %503 = vmatprep.subr.bf16.mxu0 0
      %504 = vmatpush1.bf16.msra.mxu0 %v405
      %505 = vmatprep.subr.bf16.mxu0 0
      %506 = vmatpush1.bf16.msra.mxu0 %v406
      %507 = vmatprep.subr.bf16.mxu0 0
      %508 = vmatpush1.bf16.msra.mxu0 0
      %509 = vmatprep.subr.bf16.mxu0 0
      %510 = vmatpush1.bf16.msra.mxu0 0
      %511 = vmatprep.subr.bf16.mxu0 0
      %512 = vmatpush1.bf16.msra.mxu0 0
      %513 = vmatprep.subr.bf16.mxu0 0
      %514 = vmatpush1.bf16.msra.mxu0 0
      %515 = vmatprep.subr.bf16.mxu0 0
      %516 = vmatpush1.bf16.msra.mxu0 0
      %517 = vmatprep.subr.bf16.mxu0 0
      %518 = vmatpush1.bf16.msra.mxu0 0
      %519 = vmatprep.subr.bf16.mxu0 0
      %520 = vmatpush1.bf16.msra.mxu0 0
      %521 = vmatprep.subr.bf16.mxu0 0
      %522 = vmatpush1.bf16.msra.mxu0 0
      %523 = vmatprep.subr.bf16.mxu0 0
      %524 = vmatpush1.bf16.msra.mxu0 0
      %525 = vmatprep.subr.bf16.mxu0 0
      %526 = vmatpush1.bf16.msra.mxu0 0
      %527 = vmatprep.subr.bf16.mxu0 0
      %528 = vmatpush1.bf16.msra.mxu0 0
      %529 = vmatprep.subr.bf16.mxu0 0
      %530 = vmatpush1.bf16.msra.mxu0 0
      %531 = vmatprep.subr.bf16.mxu0 0
      %532 = vmatpush1.bf16.msra.mxu0 0
      %533 = vmatprep.subr.bf16.mxu0 0
      %534 = vmatpush1.bf16.msra.mxu0 0
      %535 = vmatprep.mubr.bf16.mxu0 0
      %536 = vmatmul.mubr.bf16.gmra.mrb[0].mxu0 %v427
      %v537 = vpop.f32.mrb[0].mxu0
      %v538 = vadd.f32 %v473, %v537
      %v539 = vpop.f32.mrb[0].mxu0
      %v540 = vpop.f32.mrb[0].mxu0
      %v541 = vadd.f32 %v476, %v540
      %v542 = vpop.f32.mrb[0].mxu0
      %543 = vmatprep.mubr.bf16.mxu0 0
      %544 = vmatmul.mubr.bf16.gmra.mrb[0].mxu0 %v430
      %v545 = vpop.f32.mrb[0].mxu0
      %v546 = vadd.f32 %v481, %v545
      %v547 = vpop.f32.mrb[0].mxu0
      %v548 = vpop.f32.mrb[0].mxu0
      %v549 = vadd.f32 %v484, %v548
      %v550 = vpop.f32.mrb[0].mxu0
      %551 = vmatprep.mubr.bf16.mxu0 0
      %552 = vmatmul.mubr.bf16.gmra.mrb[0].mxu0 %v433
      %v553 = vpop.f32.mrb[0].mxu0
      %v554 = vadd.f32 %v489, %v553
      %v555 = vpop.f32.mrb[0].mxu0
      %v556 = vpop.f32.mrb[0].mxu0
      %v557 = vadd.f32 %v492, %v556
      %v558 = vpop.f32.mrb[0].mxu0
      %559 = vmatprep.mubr.bf16.mxu0 0
      %560 = vmatmul.mubr.bf16.gmra.mrb[0].mxu0 %v436
      %v561 = vpop.f32.mrb[0].mxu0
      %v562 = vadd.f32 %v497, %v561
      %v563 = vpop.f32.mrb[0].mxu0
      %v564 = vpop.f32.mrb[0].mxu0
      %v565 = vadd.f32 %v500, %v564
      %v566 = vpop.f32.mrb[0].mxu0
      %567 = vdwg.mxu0
      %v568 = vld [vmem:[%s2] sm:$0x1]
      %v570 = vlaneseq
      %v571 = vshrl.u32 %v570, 7
      %v572 = vsub.s32 0, %v571
      %v573 = vrot.slane %v568, %v572
      %v575 = vmul.f32 %v538, %v573
      %v576 = vmul.f32 %v541, %v573
      %v577 = vmul.f32 %v546, %v573
      %v578 = vmul.f32 %v549, %v573
      %v579 = vmul.f32 %v554, %v573
      %v580 = vmul.f32 %v557, %v573
      %v581 = vmul.f32 %v562, %v573
      %v582 = vmul.f32 %v565, %v573
      %v583 = vld [vmem:[%s3] sm:$0x1]
      %v585 = vlaneseq
      %v586 = vshrl.u32 %v585, 7
      %v587 = vsub.s32 0, %v586
      %v588 = vrot.slane %v583, %v587
      %v590 = vadd.f32 %v575, %v588
      %v591 = vadd.f32 %v576, %v588
      %v592 = vadd.f32 %v577, %v588
      %v593 = vadd.f32 %v578, %v588
      %v594 = vadd.f32 %v579, %v588
      %v595 = vadd.f32 %v580, %v588
      %v596 = vadd.f32 %v581, %v588
      %v597 = vadd.f32 %v582, %v588
      %v598 = vmax.f32 %v590, 0.0
      %v599 = vmax.f32 %v591, 0.0
      %v600 = vmax.f32 %v592, 0.0
      %v601 = vmax.f32 %v593, 0.0
      %v602 = vmax.f32 %v594, 0.0
      %v603 = vmax.f32 %v595, 0.0
      %v604 = vmax.f32 %v596, 0.0
      %v605 = vmax.f32 %v597, 0.0
      %vm606 = vcmask 523264
      %607 = vst.msk [vmem:[%s202] sm:$0xff] %vm606, %v598
      %608 = vst.msk [vmem:[%s202 + $0x8] sm:$0xff] %vm606, %v599
      %609 = vst.msk [vmem:[%s202 + $0x10] sm:$0xff] %vm606, %v600
      %610 = vst.msk [vmem:[%s202 + $0x18] sm:$0xff] %vm606, %v601
      %611 = vst.msk [vmem:[%s202 + $0x20] sm:$0xff] %vm606, %v602
      %612 = vst.msk [vmem:[%s202 + $0x28] sm:$0xff] %vm606, %v603
      %613 = vst.msk [vmem:[%s202 + $0x30] sm:$0xff] %vm606, %v604
      %614 = vst.msk [vmem:[%s202 + $0x38] sm:$0xff] %vm606, %v605
      %s615 = smul.u32 8, %s15
      %p616 = scmp.lt.s32.totalorder %s615, 15
      %s617 = scalar_select %p616, %s615, 15
      %s618 = smul.addr %s617, 8
      %s619 = scalar_lea.vmem %s4, %s618
      // Predicated region
      $region37: #{wide_resnet_forward.16} parent=35 // pred_check
        %p620 = pneg %p122
      $region38: #{wide_resnet_forward.16} parent=35 // pred_check_branch
        %622 = sbr.rel (%p620) target = $region40
      $region39: #{wide_resnet_forward.16} parent=35 // pred_region
        %s623 = smul.u32 8, %s15
      $region40: #{wide_resnet_forward.16} parent=35 // pred_fallthru
        _
    $region36: #{wide_resnet_forward.16} parent=5 // pred_fallthru
      _
    %p624 = scmp.le.s32.totalorder 2, %s10
    // Predicated region
    $region41: #{wide_resnet_forward.16} parent=5 // pred_check
      %p625 = pneg %p624
    $region42: #{wide_resnet_forward.16} parent=5 // pred_check_branch
      %627 = sbr.rel (%p625) target = $region44
    $region43: #{wide_resnet_forward.16} parent=5 // pred_region
      %s628 = ssub.s32 %s10, 2
      // Predicated region
      $region45: #{wide_resnet_forward.16} parent=43 // pred_check
        %p629 = pneg %p128
      $region46: #{wide_resnet_forward.16} parent=43 // pred_check_branch
        %631 = sbr.rel (%p629) target = $region48
      $region47: #{wide_resnet_forward.16} parent=43 // pred_region
        %s632 = smul.u32 8, %s16
        %p633 = scmp.lt.s32.totalorder %s632, 15
        %s634 = scalar_select %p633, %s632, 15
        %s635 = smul.addr %s634, 8
        %s636 = scalar_lea.vmem %s4, %s635
      $region48: #{wide_resnet_forward.16} parent=43 // pred_fallthru
        _
    $region44: #{wide_resnet_forward.16} parent=5 // pred_fallthru
      _
  $region6: #{wide_resnet_forward.16} parent=0 // loop_footer
    %s14 = sadd.s32 1, %s10
  $region7: #{wide_resnet_forward.16} parent=0 // loop_footer_branch
    %9 = sbr.rel target = $region3
  $region8: #{wide_resnet_forward.16} parent=0 // loop_exit
    _

// kernel: wide_resnet_forward.19
$region0: #{wide_resnet_forward.19}
  #allocation0 [shape = 'u32[]', space=smem, size = 0x4, offset = 0x4, fixed_abs, tag = 'smem constant byte address 0x4 - core index']
  #allocation1 [shape = 'u32[144,128]{1,0:T(1,128)}', space=vmem, size = 0x12000, scoped, tag = 'internal scratch']
  %s0 = inlined_call_operand.vmem [shape: f32[2,64,64], index: 0, kind: input, shape index: {}]
  %s1 = inlined_call_operand.vmem [shape: f32[64,10], index: 1, kind: input, shape index: {}]
  %s2 = inlined_call_operand.vmem [shape: f32[1,10], index: 2, kind: input, shape index: {}]
  %s3 = inlined_call_operand.hbm [shape: f32[2,10], index: 3, kind: output, shape index: {}]
  %s4 = sld [smem:[#allocation0]]
  $region22: #{wide_resnet_forward.19} parent=0
    _
  %s6 = ssub.s32 1, %s4
  %s7 = scalar_select 0, %s6, %s4
  $region1: #{wide_resnet_forward.19} parent=0
    #allocation2 [shape = 'u8[1024]{0}', space=vmem, size = 0x400, scoped, tag = 'output window, operand 0, single buffered']
    #allocation3 [shape = 's32[1]{0}', space=sflag, size = 0x4, scoped, tag = 'scoped memory for wide_resnet_forward.19']
    %8 = vsyncpa [#allocation3], 0
    // Predicated region
    $region2: #{wide_resnet_forward.19} parent=1 // pred_check
      _
    $region3: #{wide_resnet_forward.19} parent=1 // pred_check_branch
      %10 = sbr.rel (0) target = $region5
    $region4: #{wide_resnet_forward.19} parent=1 // pred_region
      _
    $region5: #{wide_resnet_forward.19} parent=1 // pred_fallthru
      _
    // Predicated region
    $region6: #{wide_resnet_forward.19} parent=1 // pred_check
      _
    $region7: #{wide_resnet_forward.19} parent=1 // pred_check_branch
      %12 = sbr.rel (0) target = $region9
    $region8: #{wide_resnet_forward.19} parent=1 // pred_region
      _
    $region9: #{wide_resnet_forward.19} parent=1 // pred_fallthru
      _
    // Predicated region
    $region10: #{wide_resnet_forward.19} parent=1 // pred_check
      _
    $region11: #{wide_resnet_forward.19} parent=1 // pred_check_branch
      %14 = sbr.rel (0) target = $region13
    $region12: #{wide_resnet_forward.19} parent=1 // pred_region
      _
    $region13: #{wide_resnet_forward.19} parent=1 // pred_fallthru
      _
    %v15 = vld [vmem:[%s0] sm:$0xff]
    %v16 = vld [vmem:[%s0 + $0x8] sm:$0xff]
    %v17 = vld [vmem:[%s0 + $0x10] sm:$0xff]
    %v18 = vld [vmem:[%s0 + $0x18] sm:$0xff]
    %v19 = vld [vmem:[%s0 + $0x20] sm:$0xff]
    %v20 = vld [vmem:[%s0 + $0x28] sm:$0xff]
    %v21 = vld [vmem:[%s0 + $0x30] sm:$0xff]
    %v22 = vld [vmem:[%s0 + $0x38] sm:$0xff]
    %v23 = vld [vmem:[%s0 + $0x40] sm:$0xff]
    %v24 = vld [vmem:[%s0 + $0x48] sm:$0xff]
    %v25 = vld [vmem:[%s0 + $0x50] sm:$0xff]
    %v26 = vld [vmem:[%s0 + $0x58] sm:$0xff]
    %v27 = vld [vmem:[%s0 + $0x60] sm:$0xff]
    %v28 = vld [vmem:[%s0 + $0x68] sm:$0xff]
    %v29 = vld [vmem:[%s0 + $0x70] sm:$0xff]
    %v30 = vld [vmem:[%s0 + $0x78] sm:$0xff]
    %vm31 = vcmask 523264
    %v32 = vsel %vm31, %v15, 0.0
    %v33 = vsel %vm31, %v16, 0.0
    %v34 = vadd.f32 %v32, %v33
    %v35 = vsel %vm31, %v17, 0.0
    %v36 = vadd.f32 %v34, %v35
    %v37 = vsel %vm31, %v18, 0.0
    %v38 = vadd.f32 %v36, %v37
    %v39 = vsel %vm31, %v19, 0.0
    %v40 = vadd.f32 %v38, %v39
    %v41 = vsel %vm31, %v20, 0.0
    %v42 = vadd.f32 %v40, %v41
    %v43 = vsel %vm31, %v21, 0.0
    %v44 = vadd.f32 %v42, %v43
    %v45 = vsel %vm31, %v22, 0.0
    %v46 = vadd.f32 %v44, %v45
    %v47 = vrot.slane %v46, 4
    %v48 = vadd.f32 %v46, %v47
    %v49 = vrot.slane %v48, 2
    %v50 = vadd.f32 %v48, %v49
    %v51 = vrot.slane %v50, 1
    %v52 = vadd.f32 %v50, %v51
    %v53 = vsel %vm31, %v23, 0.0
    %v54 = vsel %vm31, %v24, 0.0
    %v55 = vadd.f32 %v53, %v54
    %v56 = vsel %vm31, %v25, 0.0
    %v57 = vadd.f32 %v55, %v56
    %v58 = vsel %vm31, %v26, 0.0
    %v59 = vadd.f32 %v57, %v58
    %v60 = vsel %vm31, %v27, 0.0
    %v61 = vadd.f32 %v59, %v60
    %v62 = vsel %vm31, %v28, 0.0
    %v63 = vadd.f32 %v61, %v62
    %v64 = vsel %vm31, %v29, 0.0
    %v65 = vadd.f32 %v63, %v64
    %v66 = vsel %vm31, %v30, 0.0
    %v67 = vadd.f32 %v65, %v66
    %v68 = vrot.slane %v67, 4
    %v69 = vadd.f32 %v67, %v68
    %v70 = vrot.slane %v69, 2
    %v71 = vadd.f32 %v69, %v70
    %v72 = vrot.slane %v71, 1
    %v73 = vadd.f32 %v71, %v72
    %v74 = vmul.f32 %v52, 0.015625
    %v75 = vmul.f32 %v73, 0.015625
    %v76 = vld [vmem:[%s1] sm:$0xff]
    %v77 = vld [vmem:[%s1 + $0x8] sm:$0xff]
    %v78 = vld [vmem:[%s1 + $0x10] sm:$0xff]
    %v79 = vld [vmem:[%s1 + $0x18] sm:$0xff]
    %v80 = vld [vmem:[%s1 + $0x20] sm:$0xff]
    %v81 = vld [vmem:[%s1 + $0x28] sm:$0xff]
    %v82 = vld [vmem:[%s1 + $0x30] sm:$0xff]
    %v83 = vld [vmem:[%s1 + $0x38] sm:$0xff]
    %v84 = vld [vmem:[%s2] sm:$0x1]
    %v86 = vlaneseq
    %v87 = vshrl.u32 %v86, 7
    %v88 = vsub.s32 0, %v87
    %v89 = vrot.slane %v84, %v88
    %vm93 = vcmask 1041409
    %v94 = vsel %vm93, %v75, %v74
    %v95 = vsel %vm31, %v94, 0
    %97 = vmatprep.subr.mxu0 0.0
    %98 = vmatpush1.msra.mxu0 %v76
    %99 = vmatprep.subr.mxu0 0.0
    %100 = vmatpush1.msra.mxu0 %v77
    %101 = vmatprep.subr.mxu0 0.0
    %102 = vmatpush1.msra.mxu0 %v78
    %103 = vmatprep.subr.mxu0 0.0
    %104 = vmatpush1.msra.mxu0 %v79
    %105 = vmatprep.subr.mxu0 0.0
    %106 = vmatpush1.msra.mxu0 %v80
    %107 = vmatprep.subr.mxu0 0.0
    %108 = vmatpush1.msra.mxu0 %v81
    %109 = vmatprep.subr.mxu0 0.0
    %110 = vmatpush1.msra.mxu0 %v82
    %111 = vmatprep.subr.mxu0 0.0
    %112 = vmatpush1.msra.mxu0 %v83
    %113 = vmatprep.subr.mxu0 0.0
    %114 = vmatpush1.msra.mxu0 0.0
    %115 = vmatprep.subr.mxu0 0.0
    %116 = vmatpush1.msra.mxu0 0.0
    %117 = vmatprep.subr.mxu0 0.0
    %118 = vmatpush1.msra.mxu0 0.0
    %119 = vmatprep.subr.mxu0 0.0
    %120 = vmatpush1.msra.mxu0 0.0
    %121 = vmatprep.subr.mxu0 0.0
    %122 = vmatpush1.msra.mxu0 0.0
    %123 = vmatprep.subr.mxu0 0.0
    %124 = vmatpush1.msra.mxu0 0.0
    %125 = vmatprep.subr.mxu0 0.0
    %126 = vmatpush1.msra.mxu0 0.0
    %127 = vmatprep.subr.mxu0 0.0
    %128 = vmatpush1.msra.mxu0 0.0
    %129 = vmatprep.subr.mxu0 0.0
    %130 = vmatpush1.msra.mxu0 0.0
    %131 = vmatprep.subr.mxu0 0.0
    %132 = vmatpush1.msra.mxu0 0.0
    %133 = vmatprep.subr.mxu0 0.0
    %134 = vmatpush1.msra.mxu0 0.0
    %135 = vmatprep.subr.mxu0 0.0
    %136 = vmatpush1.msra.mxu0 0.0
    %137 = vmatprep.subr.mxu0 0.0
    %138 = vmatpush1.msra.mxu0 0.0
    %139 = vmatprep.subr.mxu0 0.0
    %140 = vmatpush1.msra.mxu0 0.0
    %141 = vmatprep.subr.mxu0 0.0
    %142 = vmatpush1.msra.mxu0 0.0
    %143 = vmatprep.subr.mxu0 0.0
    %144 = vmatpush1.msra.mxu0 0.0
    %145 = vmatprep.subr.mxu0 0.0
    %146 = vmatpush1.msra.mxu0 0.0
    %147 = vmatprep.subr.mxu0 0.0
    %148 = vmatpush1.msra.mxu0 0.0
    %149 = vmatprep.subr.mxu0 0.0
    %150 = vmatpush1.msra.mxu0 0.0
    %151 = vmatprep.subr.mxu0 0.0
    %152 = vmatpush1.msra.mxu0 0.0
    %153 = vmatprep.subr.mxu0 0.0
    %154 = vmatpush1.msra.mxu0 0.0
    %155 = vmatprep.subr.mxu0 0.0
    %156 = vmatpush1.msra.mxu0 0.0
    %157 = vmatprep.subr.mxu0 0.0
    %158 = vmatpush1.msra.mxu0 0.0
    %159 = vmatprep.subr.mxu0 0.0
    %160 = vmatpush1.msra.mxu0 0.0
    %161 = vmatprep.mubr.f32.mxu0 0.0
    %162 = vmatmul.mubr.f32.gmra.mrb[0].mxu0 %v95
    %v163 = vpop.f32.mrb[0].mxu0
    %v164 = vadd.f32 %v89, %v163
    %v165 = vpop.f32.mrb[0].mxu0
    %166 = vdwg.mxu0
    %vm167 = vcmask 74752
    %168 = vst.msk [vmem:[#allocation2] sm:$0x3] %vm167, %v164
    // Predicated region
    $region14: #{wide_resnet_forward.19} parent=1 // pred_check
      _
    $region15: #{wide_resnet_forward.19} parent=1 // pred_check_branch
      %170 = sbr.rel (0) target = $region17
    $region16: #{wide_resnet_forward.19} parent=1 // pred_region
      %s172 = ssub.s32 32, 32
      %173 = vsyncadd [#allocation3], %s172
      %s175 = sshll.u32 [#allocation2], 4
      %s176 = int_to_ptr.vmem [resolvable:$true] %s175
      %178 = dma.vmem_to_hbm [thread:$0]  %s176, 32, %s3, [#allocation3]
    $region17: #{wide_resnet_forward.19} parent=1 // pred_fallthru
      _
    // Predicated region
    $region18: #{wide_resnet_forward.19} parent=1 // pred_check
      _
    $region19: #{wide_resnet_forward.19} parent=1 // pred_check_branch
      %180 = sbr.rel (0) target = $region21
    $region20: #{wide_resnet_forward.19} parent=1 // pred_region
      %181 = dma.done [#allocation3], 32
    $region21: #{wide_resnet_forward.19} parent=1 // pred_fallthru
      _
    %182 = vsyncpa [#allocation3], 1

// kernel: wide_resnet_forward.18
$region0: #{wide_resnet_forward.18}
  #allocation0 [shape = 'u32[]', space=smem, size = 0x4, offset = 0x4, fixed_abs, tag = 'smem constant byte address 0x4 - core index']
  #allocation1 [shape = 'u32[144,128]{1,0:T(1,128)}', space=vmem, size = 0x12000, scoped, tag = 'internal scratch']
  %s0 = inlined_call_operand.vmem [shape: bf16[128,576], index: 0, kind: input, shape index: {}]
  %s1 = inlined_call_operand.vmem [shape: bf16[576,64], index: 1, kind: input, shape index: {}]
  %s2 = inlined_call_operand.vmem [shape: f32[128,64], index: 2, kind: input, shape index: {}]
  %s3 = inlined_call_operand.vmem [shape: f32[1,64], index: 3, kind: input, shape index: {}]
  %s4 = inlined_call_operand.vmem [shape: f32[1,64], index: 4, kind: input, shape index: {}]
  %s5 = inlined_call_operand.vmem [shape: f32[128,64], index: 5, kind: output, shape index: {}]
  %s6 = sld [smem:[#allocation0]]
  $region53: #{wide_resnet_forward.18} parent=0
    _
  %s8 = ssub.s32 1, %s6
  %s9 = scalar_select 0, %s8, %s6
  loop: start=0, step=1, limit=4
  $region2: #{wide_resnet_forward.18} parent=0 // loop_pre_header
    _
  $region3: #{wide_resnet_forward.18} parent=0 // loop_header
    %s11 = sphi 0, %s15
    %p12 = scmp.ge.s32.totalorder %s11, 4
    %s21 = sphi 0, %s23
    %s24 = sphi 0, %s21
    %s25 = sphi 0, %s24
    %s41 = sphi 0, %s25
    %s45 = sphi 0, %s45
    %s47 = sphi 0, %s45
    %s48 = sphi 0, %s47
    %s62 = sphi 0, %s48
    %s68 = sphi 0, %s70
    %s71 = sphi 0, %s68
    %s72 = sphi 0, %s71
    %s88 = sphi 0, %s72
    %s92 = sphi 0, %s92
    %s94 = sphi 0, %s92
    %s95 = sphi 0, %s94
    %s109 = sphi 0, %s95
    %s113 = sphi 0, %s113
    %s115 = sphi 0, %s113
    %s116 = sphi 0, %s115
    %s130 = sphi 0, %s116
    %s136 = sphi 0, %s138
    %s139 = sphi 0, %s136
    %s140 = sphi 0, %s139
    %s156 = sphi 0, %s140
  $region4: #{wide_resnet_forward.18} parent=0 // loop_header_branch
    %14 = sbr.rel (%p12) target = $region8
  $region5: #{wide_resnet_forward.18} parent=0 // loop_body
    %s16 = ssub.s32 %s11, 1
    %s17 = ssub.s32 %s11, 2
    %s18 = sadd.s32 %s11, 1
    %s19 = ssub.s32 %s11, %s18
    %p20 = scmp.eq.s32.totalorder %s19, 0
    %s22 = sadd.s32 %s21, 1
    %s23 = scalar_select %p20, %s21, %s22
    %p26 = pneg %p20
    %p27 = scmp.eq.s32.totalorder %s11, 1
    %p28 = por %p26, %p27
    %p29 = scmp.ne.s32.totalorder %s21, %s24
    %p30 = scmp.eq.s32.totalorder %s11, 0
    %p31 = por %p29, %p30
    %p32 = scmp.ne.s32.totalorder %s21, %s24
    %p33 = scmp.eq.s32.totalorder %s16, 1
    %p34 = por %p32, %p33
    %p35 = scmp.ne.s32.totalorder %s24, %s25
    %p36 = scmp.eq.s32.totalorder %s16, 0
    %p37 = por %p35, %p36
    %p38 = scmp.ne.s32.totalorder %s24, %s25
    %p39 = scmp.eq.s32.totalorder %s17, 1
    %p40 = por %p38, %p39
    %p42 = scmp.ne.s32.totalorder %s25, %s41
    %p43 = scmp.eq.s32.totalorder %s17, 0
    %p44 = por %p42, %p43
    %s46 = sadd.s32 %s45, 1
    %p49 = scmp.eq.s32.totalorder %s11, 1
    %p50 = scmp.ne.s32.totalorder %s45, %s47
    %p51 = scmp.eq.s32.totalorder %s11, 0
    %p52 = por %p50, %p51
    %p53 = scmp.ne.s32.totalorder %s45, %s47
    %p54 = scmp.eq.s32.totalorder %s16, 1
    %p55 = por %p53, %p54
    %p56 = scmp.ne.s32.totalorder %s47, %s48
    %p57 = scmp.eq.s32.totalorder %s16, 0
    %p58 = por %p56, %p57
    %p59 = scmp.ne.s32.totalorder %s47, %s48
    %p60 = scmp.eq.s32.totalorder %s17, 1
    %p61 = por %p59, %p60
    %p63 = scmp.ne.s32.totalorder %s48, %s62
    %p64 = scmp.eq.s32.totalorder %s17, 0
    %p65 = por %p63, %p64
    %s66 = ssub.s32 %s11, %s18
    %p67 = scmp.eq.s32.totalorder %s66, 0
    %s69 = sadd.s32 %s68, 1
    %s70 = scalar_select %p67, %s68, %s69
    %p73 = pneg %p67
    %p74 = scmp.eq.s32.totalorder %s11, 1
    %p75 = por %p73, %p74
    %p76 = scmp.ne.s32.totalorder %s68, %s71
    %p77 = scmp.eq.s32.totalorder %s11, 0
    %p78 = por %p76, %p77
    %p79 = scmp.ne.s32.totalorder %s68, %s71
    %p80 = scmp.eq.s32.totalorder %s16, 1
    %p81 = por %p79, %p80
    %p82 = scmp.ne.s32.totalorder %s71, %s72
    %p83 = scmp.eq.s32.totalorder %s16, 0
    %p84 = por %p82, %p83
    %p85 = scmp.ne.s32.totalorder %s71, %s72
    %p86 = scmp.eq.s32.totalorder %s17, 1
    %p87 = por %p85, %p86
    %p89 = scmp.ne.s32.totalorder %s72, %s88
    %p90 = scmp.eq.s32.totalorder %s17, 0
    %p91 = por %p89, %p90
    %s93 = sadd.s32 %s92, 1
    %p96 = scmp.eq.s32.totalorder %s11, 1
    %p97 = scmp.ne.s32.totalorder %s92, %s94
    %p98 = scmp.eq.s32.totalorder %s11, 0
    %p99 = por %p97, %p98
    %p100 = scmp.ne.s32.totalorder %s92, %s94
    %p101 = scmp.eq.s32.totalorder %s16, 1
    %p102 = por %p100, %p101
    %p103 = scmp.ne.s32.totalorder %s94, %s95
    %p104 = scmp.eq.s32.totalorder %s16, 0
    %p105 = por %p103, %p104
    %p106 = scmp.ne.s32.totalorder %s94, %s95
    %p107 = scmp.eq.s32.totalorder %s17, 1
    %p108 = por %p106, %p107
    %p110 = scmp.ne.s32.totalorder %s95, %s109
    %p111 = scmp.eq.s32.totalorder %s17, 0
    %p112 = por %p110, %p111
    %s114 = sadd.s32 %s113, 1
    %p117 = scmp.eq.s32.totalorder %s11, 1
    %p118 = scmp.ne.s32.totalorder %s113, %s115
    %p119 = scmp.eq.s32.totalorder %s11, 0
    %p120 = por %p118, %p119
    %p121 = scmp.ne.s32.totalorder %s113, %s115
    %p122 = scmp.eq.s32.totalorder %s16, 1
    %p123 = por %p121, %p122
    %p124 = scmp.ne.s32.totalorder %s115, %s116
    %p125 = scmp.eq.s32.totalorder %s16, 0
    %p126 = por %p124, %p125
    %p127 = scmp.ne.s32.totalorder %s115, %s116
    %p128 = scmp.eq.s32.totalorder %s17, 1
    %p129 = por %p127, %p128
    %p131 = scmp.ne.s32.totalorder %s116, %s130
    %p132 = scmp.eq.s32.totalorder %s17, 0
    %p133 = por %p131, %p132
    %s134 = ssub.s32 %s11, %s18
    %p135 = scmp.eq.s32.totalorder %s134, 0
    %s137 = sadd.s32 %s136, 1
    %s138 = scalar_select %p135, %s136, %s137
    %p141 = pneg %p135
    %p142 = scmp.eq.s32.totalorder %s11, 1
    %p143 = por %p141, %p142
    %p144 = scmp.ne.s32.totalorder %s136, %s139
    %p145 = scmp.eq.s32.totalorder %s11, 0
    %p146 = por %p144, %p145
    %p147 = scmp.ne.s32.totalorder %s136, %s139
    %p148 = scmp.eq.s32.totalorder %s16, 1
    %p149 = por %p147, %p148
    %p150 = scmp.ne.s32.totalorder %s139, %s140
    %p151 = scmp.eq.s32.totalorder %s16, 0
    %p152 = por %p150, %p151
    %p153 = scmp.ne.s32.totalorder %s139, %s140
    %p154 = scmp.eq.s32.totalorder %s17, 1
    %p155 = por %p153, %p154
    %p157 = scmp.ne.s32.totalorder %s140, %s156
    %p158 = scmp.eq.s32.totalorder %s17, 0
    %p159 = por %p157, %p158
    %p160 = scmp.le.s32.totalorder 1, %s11
    %p161 = scmp.lt.s32.totalorder %s11, 3
    %p162 = pnand %p160, %p161
    %p163 = pneg %p162
    // Predicated region
    $region9: #{wide_resnet_forward.18} parent=5 // pred_check
      _
    $region10: #{wide_resnet_forward.18} parent=5 // pred_check_branch
      %165 = sbr.rel (%p162) target = $region12
    $region11: #{wide_resnet_forward.18} parent=5 // pred_region
      %s166 = ssub.s32 %s11, 1
      // Predicated region
      $region13: #{wide_resnet_forward.18} parent=11 // pred_check
        %p167 = pneg %p58
      $region14: #{wide_resnet_forward.18} parent=11 // pred_check_branch
        %169 = sbr.rel (%p167) target = $region16
      $region15: #{wide_resnet_forward.18} parent=11 // pred_region
        _
      $region16: #{wide_resnet_forward.18} parent=11 // pred_fallthru
        _
      // Predicated region
      $region17: #{wide_resnet_forward.18} parent=11 // pred_check
        %p170 = pneg %p105
      $region18: #{wide_resnet_forward.18} parent=11 // pred_check_branch
        %172 = sbr.rel (%p170) target = $region20
      $region19: #{wide_resnet_forward.18} parent=11 // pred_region
        _
      $region20: #{wide_resnet_forward.18} parent=11 // pred_fallthru
        _
      // Predicated region
      $region21: #{wide_resnet_forward.18} parent=11 // pred_check
        %p173 = pneg %p126
      $region22: #{wide_resnet_forward.18} parent=11 // pred_check_branch
        %175 = sbr.rel (%p173) target = $region24
      $region23: #{wide_resnet_forward.18} parent=11 // pred_region
        _
      $region24: #{wide_resnet_forward.18} parent=11 // pred_fallthru
        _
    $region12: #{wide_resnet_forward.18} parent=5 // pred_fallthru
      _
    %p176 = scmp.lt.s32.totalorder %s11, 2
    // Predicated region
    $region25: #{wide_resnet_forward.18} parent=5 // pred_check
      %p177 = pneg %p176
    $region26: #{wide_resnet_forward.18} parent=5 // pred_check_branch
      %179 = sbr.rel (%p177) target = $region28
    $region27: #{wide_resnet_forward.18} parent=5 // pred_region
      // Predicated region
      $region29: #{wide_resnet_forward.18} parent=27 // pred_check
        %p180 = pneg %p31
      $region30: #{wide_resnet_forward.18} parent=27 // pred_check_branch
        %182 = sbr.rel (%p180) target = $region32
      $region31: #{wide_resnet_forward.18} parent=27 // pred_region
        %s183 = smul.u32 8, %s11
        %p184 = scmp.lt.s32.totalorder %s183, 15
        %s185 = scalar_select %p184, %s183, 15
        %s186 = smul.addr %s185, 5
        %s187 = smul.addr %s186, 4
        %s188 = scalar_lea.vmem %s0, %s187
        %s189 = smul.u32 8, %s11
      $region32: #{wide_resnet_forward.18} parent=27 // pred_fallthru
        _
      // Predicated region
      $region33: #{wide_resnet_forward.18} parent=27 // pred_check
        %p190 = pneg %p78
      $region34: #{wide_resnet_forward.18} parent=27 // pred_check_branch
        %192 = sbr.rel (%p190) target = $region36
      $region35: #{wide_resnet_forward.18} parent=27 // pred_region
        %s193 = smul.u32 8, %s11
        %p194 = scmp.lt.s32.totalorder %s193, 15
        %s195 = scalar_select %p194, %s193, 15
        %s196 = smul.addr %s195, 8
        %s197 = scalar_lea.vmem %s2, %s196
        %s198 = smul.u32 8, %s11
      $region36: #{wide_resnet_forward.18} parent=27 // pred_fallthru
        _
    $region28: #{wide_resnet_forward.18} parent=5 // pred_fallthru
      _
    %p199 = scmp.le.s32.totalorder 1, %s11
    %p200 = scmp.lt.s32.totalorder %s11, 3
    %p201 = pnand %p199, %p200
    %p202 = pneg %p201
    // Predicated region
    $region37: #{wide_resnet_forward.18} parent=5 // pred_check
      _
    $region38: #{wide_resnet_forward.18} parent=5 // pred_check_branch
      %204 = sbr.rel (%p201) target = $region40
    $region39: #{wide_resnet_forward.18} parent=5 // pred_region
      %s205 = ssub.s32 %s11, 1
      %s206 = smul.u32 8, %s16
      %p207 = scmp.lt.s32.totalorder %s206, 15
      %s208 = scalar_select %p207, %s206, 15
      %s209 = smul.addr %s208, 5
      %s210 = smul.addr %s209, 4
      %s211 = scalar_lea.vmem %s0, %s210
      %p212 = pneg %p37
      %p213 = pneg %p34
      %p214 = pneg %p58
      %p215 = pneg %p55
      %s216 = smul.u32 8, %s16
      %p217 = scmp.lt.s32.totalorder %s216, 15
      %s218 = scalar_select %p217, %s216, 15
      %s219 = smul.addr %s218, 8
      %s220 = scalar_lea.vmem %s2, %s219
      %p221 = pneg %p84
      %p222 = pneg %p81
      %p223 = pneg %p105
      %p224 = pneg %p102
      %p225 = pneg %p126
      %p226 = pneg %p123
      %p227 = pneg %p152
      %p228 = pneg %p149
      %s229 = smul.u32 8, %s16
      %p230 = scmp.lt.s32.totalorder %s229, 15
      %s231 = scalar_select %p230, %s229, 15
      %s232 = smul.addr %s231, 8
      %s233 = scalar_lea.vmem %s5, %s232
      %s234 = smul.u32 8, %s16
      %p235 = scmp.lt.s32.totalorder %s234, 15
      %s236 = scalar_select %p235, %s234, 15
      %s237 = smul.addr %s236, 5
      %s238 = smul.addr %s237, 4
      %s239 = scalar_lea.vmem %s0, %s238
      %s240 = smul.u32 8, %s16
      %s241 = smul.u32 8, %s16
      %p242 = scmp.lt.s32.totalorder %s241, 15
      %s243 = scalar_select %p242, %s241, 15
      %s244 = smul.addr %s243, 8
      %s245 = scalar_lea.vmem %s2, %s244
      %s246 = smul.u32 8, %s16
      %s247 = smul.u32 8, %s16
      %p248 = scmp.lt.s32.totalorder %s247, 15
      %s249 = scalar_select %p248, %s247, 15
      %s250 = smul.addr %s249, 8
      %s251 = scalar_lea.vmem %s5, %s250
      %s252 = smul.u32 8, %s16
      %v254 = vld [vmem:[%s239] sm:$0xff]
      %v255 = vld [vmem:[%s239 + $0x8] sm:$0xff]
      %v256 = vld [vmem:[%s239 + $0x10] sm:$0xf]
      %v257 = vld [vmem:[%s239 + $0x14] sm:$0xff]
      %v258 = vld [vmem:[%s239 + $0x1c] sm:$0xff]
      %v259 = vld [vmem:[%s239 + $0x24] sm:$0xf]
      %v260 = vld [vmem:[%s239 + $0x28] sm:$0xff]
      %v261 = vld [vmem:[%s239 + $0x30] sm:$0xff]
      %v262 = vld [vmem:[%s239 + $0x38] sm:$0xf]
      %v263 = vld [vmem:[%s239 + $0x3c] sm:$0xff]
      %v264 = vld [vmem:[%s239 + $0x44] sm:$0xff]
      %v265 = vld [vmem:[%s239 + $0x4c] sm:$0xf]
      %v266 = vld [vmem:[%s239 + $0x50] sm:$0xff]
      %v267 = vld [vmem:[%s239 + $0x58] sm:$0xff]
      %v268 = vld [vmem:[%s239 + $0x60] sm:$0xf]
      %v269 = vld [vmem:[%s239 + $0x64] sm:$0xff]
      %v270 = vld [vmem:[%s239 + $0x6c] sm:$0xff]
      %v271 = vld [vmem:[%s239 + $0x74] sm:$0xf]
      %v272 = vld [vmem:[%s239 + $0x78] sm:$0xff]
      %v273 = vld [vmem:[%s239 + $0x80] sm:$0xff]
      %v274 = vld [vmem:[%s239 + $0x88] sm:$0xf]
      %v275 = vld [vmem:[%s239 + $0x8c] sm:$0xff]
      %v276 = vld [vmem:[%s239 + $0x94] sm:$0xff]
      %v277 = vld [vmem:[%s239 + $0x9c] sm:$0xf]
      %v278 = vld [vmem:[%s1] sm:$0xf]
      %v279 = vld [vmem:[%s1 + $0x4] sm:$0xf]
      %v280 = vld [vmem:[%s1 + $0x8] sm:$0xf]
      %v281 = vld [vmem:[%s1 + $0xc] sm:$0xf]
      %v282 = vld [vmem:[%s1 + $0x10] sm:$0xf]
      %v283 = vld [vmem:[%s1 + $0x14] sm:$0xf]
      %v284 = vld [vmem:[%s1 + $0x18] sm:$0xf]
      %v285 = vld [vmem:[%s1 + $0x1c] sm:$0xf]
      %v286 = vld [vmem:[%s1 + $0x20] sm:$0xf]
      %v287 = vld [vmem:[%s1 + $0x24] sm:$0xf]
      %v288 = vld [vmem:[%s1 + $0x28] sm:$0xf]
      %v289 = vld [vmem:[%s1 + $0x2c] sm:$0xf]
      %v290 = vld [vmem:[%s1 + $0x30] sm:$0xf]
      %v291 = vld [vmem:[%s1 + $0x34] sm:$0xf]
      %v292 = vld [vmem:[%s1 + $0x38] sm:$0xf]
      %v293 = vld [vmem:[%s1 + $0x3c] sm:$0xf]
      %v294 = vld [vmem:[%s1 + $0x40] sm:$0xf]
      %v295 = vld [vmem:[%s1 + $0x44] sm:$0xf]
      %v296 = vld [vmem:[%s1 + $0x48] sm:$0xf]
      %v297 = vld [vmem:[%s1 + $0x4c] sm:$0xf]
      %v298 = vld [vmem:[%s1 + $0x50] sm:$0xf]
      %v299 = vld [vmem:[%s1 + $0x54] sm:$0xf]
      %v300 = vld [vmem:[%s1 + $0x58] sm:$0xf]
      %v301 = vld [vmem:[%s1 + $0x5c] sm:$0xf]
      %v302 = vld [vmem:[%s1 + $0x60] sm:$0xf]
      %v303 = vld [vmem:[%s1 + $0x64] sm:$0xf]
      %v304 = vld [vmem:[%s1 + $0x68] sm:$0xf]
      %v305 = vld [vmem:[%s1 + $0x6c] sm:$0xf]
      %v306 = vld [vmem:[%s1 + $0x70] sm:$0xf]
      %v307 = vld [vmem:[%s1 + $0x74] sm:$0xf]
      %v308 = vld [vmem:[%s1 + $0x78] sm:$0xf]
      %v309 = vld [vmem:[%s1 + $0x7c] sm:$0xf]
      %v310 = vld [vmem:[%s1 + $0x80] sm:$0xf]
      %v311 = vld [vmem:[%s1 + $0x84] sm:$0xf]
      %v312 = vld [vmem:[%s1 + $0x88] sm:$0xf]
      %v313 = vld [vmem:[%s1 + $0x8c] sm:$0xf]
      %v314 = vld [vmem:[%s1 + $0x90] sm:$0xf]
      %v315 = vld [vmem:[%s1 + $0x94] sm:$0xf]
      %v316 = vld [vmem:[%s1 + $0x98] sm:$0xf]
      %v317 = vld [vmem:[%s1 + $0x9c] sm:$0xf]
      %v318 = vld [vmem:[%s1 + $0xa0] sm:$0xf]
      %v319 = vld [vmem:[%s1 + $0xa4] sm:$0xf]
      %v320 = vld [vmem:[%s1 + $0xa8] sm:$0xf]
      %v321 = vld [vmem:[%s1 + $0xac] sm:$0xf]
      %v322 = vld [vmem:[%s1 + $0xb0] sm:$0xf]
      %v323 = vld [vmem:[%s1 + $0xb4] sm:$0xf]
      %v324 = vld [vmem:[%s1 + $0xb8] sm:$0xf]
      %v325 = vld [vmem:[%s1 + $0xbc] sm:$0xf]
      %v326 = vld [vmem:[%s1 + $0xc0] sm:$0xf]
      %v327 = vld [vmem:[%s1 + $0xc4] sm:$0xf]
      %v328 = vld [vmem:[%s1 + $0xc8] sm:$0xf]
      %v329 = vld [vmem:[%s1 + $0xcc] sm:$0xf]
      %v330 = vld [vmem:[%s1 + $0xd0] sm:$0xf]
      %v331 = vld [vmem:[%s1 + $0xd4] sm:$0xf]
      %v332 = vld [vmem:[%s1 + $0xd8] sm:$0xf]
      %v333 = vld [vmem:[%s1 + $0xdc] sm:$0xf]
      %v334 = vld [vmem:[%s1 + $0xe0] sm:$0xf]
      %v335 = vld [vmem:[%s1 + $0xe4] sm:$0xf]
      %v336 = vld [vmem:[%s1 + $0xe8] sm:$0xf]
      %v337 = vld [vmem:[%s1 + $0xec] sm:$0xf]
      %v338 = vld [vmem:[%s1 + $0xf0] sm:$0xf]
      %v339 = vld [vmem:[%s1 + $0xf4] sm:$0xf]
      %v340 = vld [vmem:[%s1 + $0xf8] sm:$0xf]
      %v341 = vld [vmem:[%s1 + $0xfc] sm:$0xf]
      %v342 = vld [vmem:[%s1 + $0x100] sm:$0xf]
      %v343 = vld [vmem:[%s1 + $0x104] sm:$0xf]
      %v344 = vld [vmem:[%s1 + $0x108] sm:$0xf]
      %v345 = vld [vmem:[%s1 + $0x10c] sm:$0xf]
      %v346 = vld [vmem:[%s1 + $0x110] sm:$0xf]
      %v347 = vld [vmem:[%s1 + $0x114] sm:$0xf]
      %v348 = vld [vmem:[%s1 + $0x118] sm:$0xf]
      %v349 = vld [vmem:[%s1 + $0x11c] sm:$0xf]
      %v350 = vld [vmem:[%s245] sm:$0xff]
      %v351 = vld [vmem:[%s245 + $0x8] sm:$0xff]
      %v352 = vld [vmem:[%s245 + $0x10] sm:$0xff]
      %v353 = vld [vmem:[%s245 + $0x18] sm:$0xff]
      %v354 = vld [vmem:[%s245 + $0x20] sm:$0xff]
      %v355 = vld [vmem:[%s245 + $0x28] sm:$0xff]
      %v356 = vld [vmem:[%s245 + $0x30] sm:$0xff]
      %v357 = vld [vmem:[%s245 + $0x38] sm:$0xff]
      %v382 = vunpack.c.l.b16 %v254
      %v383 = vunpack.c.h.b16 %v254
      %v384 = vunpack.c.l.b16 %v255
      %v385 = vunpack.c.h.b16 %v255
      %v386 = vunpack.c.l.b16 %v256
      %v387 = vunpack.c.l.b16 %v257
      %v388 = vunpack.c.h.b16 %v257
      %v389 = vunpack.c.l.b16 %v258
      %v390 = vunpack.c.h.b16 %v258
      %v391 = vunpack.c.l.b16 %v259
      %v392 = vunpack.c.l.b16 %v260
      %v393 = vunpack.c.h.b16 %v260
      %v394 = vunpack.c.l.b16 %v261
      %v395 = vunpack.c.h.b16 %v261
      %v396 = vunpack.c.l.b16 %v262
      %v397 = vunpack.c.l.b16 %v263
      %v398 = vunpack.c.h.b16 %v263
      %v399 = vunpack.c.l.b16 %v264
      %v400 = vunpack.c.h.b16 %v264
      %v401 = vunpack.c.l.b16 %v265
      %v402 = vunpack.c.l.b16 %v266
      %v403 = vunpack.c.h.b16 %v266
      %v404 = vunpack.c.l.b16 %v267
      %v405 = vunpack.c.h.b16 %v267
      %v406 = vunpack.c.l.b16 %v268
      %v407 = vunpack.c.l.b16 %v269
      %v408 = vunpack.c.h.b16 %v269
      %v409 = vunpack.c.l.b16 %v270
      %v410 = vunpack.c.h.b16 %v270
      %v411 = vunpack.c.l.b16 %v271
      %v412 = vunpack.c.l.b16 %v272
      %v413 = vunpack.c.h.b16 %v272
      %v414 = vunpack.c.l.b16 %v273
      %v415 = vunpack.c.h.b16 %v273
      %v416 = vunpack.c.l.b16 %v274
      %v417 = vunpack.c.l.b16 %v275
      %v418 = vunpack.c.h.b16 %v275
      %v419 = vunpack.c.l.b16 %v276
      %v420 = vunpack.c.h.b16 %v276
      %v421 = vunpack.c.l.b16 %v277
      %v422 = vpack.c.b16 %v387, %v382
      %v423 = vpack.c.b16 %v388, %v383
      %v424 = vpack.c.b16 %v389, %v384
      %v425 = vpack.c.b16 %v390, %v385
      %v426 = vpack.c.b16 %v391, %v386
      %v427 = vpack.c.b16 %v397, %v392
      %v428 = vpack.c.b16 %v398, %v393
      %v429 = vpack.c.b16 %v399, %v394
      %v430 = vpack.c.b16 %v400, %v395
      %v431 = vpack.c.b16 %v401, %v396
      %v432 = vpack.c.b16 %v407, %v402
      %v433 = vpack.c.b16 %v408, %v403
      %v434 = vpack.c.b16 %v409, %v404
      %v435 = vpack.c.b16 %v410, %v405
      %v436 = vpack.c.b16 %v411, %v406
      %v437 = vpack.c.b16 %v417, %v412
      %v438 = vpack.c.b16 %v418, %v413
      %v439 = vpack.c.b16 %v419, %v414
      %v440 = vpack.c.b16 %v420, %v415
      %v441 = vpack.c.b16 %v421, %v416
      %v530 = vunpack.c.l.b16 %v278
      %v531 = vunpack.c.l.b16 %v279
      %v532 = vunpack.c.l.b16 %v280
      %v533 = vunpack.c.l.b16 %v281
      %v534 = vunpack.c.l.b16 %v282
      %v535 = vunpack.c.l.b16 %v283
      %v536 = vunpack.c.l.b16 %v284
      %v537 = vunpack.c.l.b16 %v285
      %v538 = vunpack.c.l.b16 %v286
      %v539 = vunpack.c.l.b16 %v287
      %v540 = vunpack.c.l.b16 %v288
      %v541 = vunpack.c.l.b16 %v289
      %v542 = vunpack.c.l.b16 %v290
      %v543 = vunpack.c.l.b16 %v291
      %v544 = vunpack.c.l.b16 %v292
      %v545 = vunpack.c.l.b16 %v293
      %v546 = vunpack.c.l.b16 %v294
      %v547 = vunpack.c.l.b16 %v295
      %v548 = vunpack.c.l.b16 %v296
      %v549 = vunpack.c.l.b16 %v297
      %v550 = vunpack.c.l.b16 %v298
      %v551 = vunpack.c.l.b16 %v299
      %v552 = vunpack.c.l.b16 %v300
      %v553 = vunpack.c.l.b16 %v301
      %v554 = vunpack.c.l.b16 %v302
      %v555 = vunpack.c.l.b16 %v303
      %v556 = vunpack.c.l.b16 %v304
      %v557 = vunpack.c.l.b16 %v305
      %v558 = vunpack.c.l.b16 %v306
      %v559 = vunpack.c.l.b16 %v307
      %v560 = vunpack.c.l.b16 %v308
      %v561 = vunpack.c.l.b16 %v309
      %v562 = vunpack.c.l.b16 %v310
      %v563 = vunpack.c.l.b16 %v311
      %v564 = vunpack.c.l.b16 %v312
      %v565 = vunpack.c.l.b16 %v313
      %v566 = vunpack.c.l.b16 %v314
      %v567 = vunpack.c.l.b16 %v315
      %v568 = vunpack.c.l.b16 %v316
      %v569 = vunpack.c.l.b16 %v317
      %v570 = vunpack.c.l.b16 %v318
      %v571 = vunpack.c.l.b16 %v319
      %v572 = vunpack.c.l.b16 %v320
      %v573 = vunpack.c.l.b16 %v321
      %v574 = vunpack.c.l.b16 %v322
      %v575 = vunpack.c.l.b16 %v323
      %v576 = vunpack.c.l.b16 %v324
      %v577 = vunpack.c.l.b16 %v325
      %v578 = vunpack.c.l.b16 %v326
      %v579 = vunpack.c.l.b16 %v327
      %v580 = vunpack.c.l.b16 %v328
      %v581 = vunpack.c.l.b16 %v329
      %v582 = vunpack.c.l.b16 %v330
      %v583 = vunpack.c.l.b16 %v331
      %v584 = vunpack.c.l.b16 %v332
      %v585 = vunpack.c.l.b16 %v333
      %v586 = vunpack.c.l.b16 %v334
      %v587 = vunpack.c.l.b16 %v335
      %v588 = vunpack.c.l.b16 %v336
      %v589 = vunpack.c.l.b16 %v337
      %v590 = vunpack.c.l.b16 %v338
      %v591 = vunpack.c.l.b16 %v339
      %v592 = vunpack.c.l.b16 %v340
      %v593 = vunpack.c.l.b16 %v341
      %v594 = vunpack.c.l.b16 %v342
      %v595 = vunpack.c.l.b16 %v343
      %v596 = vunpack.c.l.b16 %v344
      %v597 = vunpack.c.l.b16 %v345
      %v598 = vunpack.c.l.b16 %v346
      %v599 = vunpack.c.l.b16 %v347
      %v600 = vunpack.c.l.b16 %v348
      %v601 = vunpack.c.l.b16 %v349
      %v602 = vpack.c.b16 %v531, %v530
      %v603 = vpack.c.b16 %v533, %v532
      %v604 = vpack.c.b16 %v535, %v534
      %v605 = vpack.c.b16 %v537, %v536
      %v606 = vpack.c.b16 %v539, %v538
      %v607 = vpack.c.b16 %v541, %v540
      %v608 = vpack.c.b16 %v543, %v542
      %v609 = vpack.c.b16 %v545, %v544
      %v610 = vpack.c.b16 %v547, %v546
      %v611 = vpack.c.b16 %v549, %v548
      %v612 = vpack.c.b16 %v551, %v550
      %v613 = vpack.c.b16 %v553, %v552
      %v614 = vpack.c.b16 %v555, %v554
      %v615 = vpack.c.b16 %v557, %v556
      %v616 = vpack.c.b16 %v559, %v558
      %v617 = vpack.c.b16 %v561, %v560
      %v618 = vpack.c.b16 %v563, %v562
      %v619 = vpack.c.b16 %v565, %v564
      %v620 = vpack.c.b16 %v567, %v566
      %v621 = vpack.c.b16 %v569, %v568
      %v622 = vpack.c.b16 %v571, %v570
      %v623 = vpack.c.b16 %v573, %v572
      %v624 = vpack.c.b16 %v575, %v574
      %v625 = vpack.c.b16 %v577, %v576
      %v626 = vpack.c.b16 %v579, %v578
      %v627 = vpack.c.b16 %v581, %v580
      %v628 = vpack.c.b16 %v583, %v582
      %v629 = vpack.c.b16 %v585, %v584
      %v630 = vpack.c.b16 %v587, %v586
      %v631 = vpack.c.b16 %v589, %v588
      %v632 = vpack.c.b16 %v591, %v590
      %v633 = vpack.c.b16 %v593, %v592
      %v634 = vpack.c.b16 %v595, %v594
      %v635 = vpack.c.b16 %v597, %v596
      %v636 = vpack.c.b16 %v599, %v598
      %v637 = vpack.c.b16 %v601, %v600
      %vm674 = vcmask 523264
      %v676 = vsel %vm674, %v426, 0
      %v679 = vsel %vm674, %v431, 0
      %v682 = vsel %vm674, %v436, 0
      %v685 = vsel %vm674, %v441, 0
      %687 = vmatprep.subr.bf16.mxu0 0
      %688 = vmatpush1.bf16.msra.mxu0 %v602
      %689 = vmatprep.subr.bf16.mxu0 0
      %690 = vmatpush1.bf16.msra.mxu0 %v603
      %691 = vmatprep.subr.bf16.mxu0 0
      %692 = vmatpush1.bf16.msra.mxu0 %v604
      %693 = vmatprep.subr.bf16.mxu0 0
      %694 = vmatpush1.bf16.msra.mxu0 %v605
      %695 = vmatprep.subr.bf16.mxu0 0
      %696 = vmatpush1.bf16.msra.mxu0 %v606
      %697 = vmatprep.subr.bf16.mxu0 0
      %698 = vmatpush1.bf16.msra.mxu0 %v607
      %699 = vmatprep.subr.bf16.mxu0 0
      %700 = vmatpush1.bf16.msra.mxu0 %v608
      %701 = vmatprep.subr.bf16.mxu0 0
      %702 = vmatpush1.bf16.msra.mxu0 %v609
      %703 = vmatprep.subr.bf16.mxu0 0
      %704 = vmatpush1.bf16.msra.mxu0 %v610
      %705 = vmatprep.subr.bf16.mxu0 0
      %706 = vmatpush1.bf16.msra.mxu0 %v611
      %707 = vmatprep.subr.bf16.mxu0 0
      %708 = vmatpush1.bf16.msra.mxu0 %v612
      %709 = vmatprep.subr.bf16.mxu0 0
      %710 = vmatpush1.bf16.msra.mxu0 %v613
      %711 = vmatprep.subr.bf16.mxu0 0
      %712 = vmatpush1.bf16.msra.mxu0 %v614
      %713 = vmatprep.subr.bf16.mxu0 0
      %714 = vmatpush1.bf16.msra.mxu0 %v615
      %715 = vmatprep.subr.bf16.mxu0 0
      %716 = vmatpush1.bf16.msra.mxu0 %v616
      %717 = vmatprep.subr.bf16.mxu0 0
      %718 = vmatpush1.bf16.msra.mxu0 %v617
      %719 = vmatprep.mubr.bf16.mxu0 %v423
      %720 = vmatmul.mubr.bf16.gmra.mrb[0].mxu0 %v422
      %v721 = vpop.f32.mrb[0].mxu0
      %v722 = vadd.f32 %v350, %v721
      %v723 = vpop.f32.mrb[0].mxu0
      %v724 = vpop.f32.mrb[0].mxu0
      %v725 = vadd.f32 %v351, %v724
      %v726 = vpop.f32.mrb[0].mxu0
      %727 = vmatprep.mubr.bf16.mxu0 %v428
      %728 = vmatmul.mubr.bf16.gmra.mrb[0].mxu0 %v427
      %v729 = vpop.f32.mrb[0].mxu0
      %v730 = vadd.f32 %v352, %v729
      %v731 = vpop.f32.mrb[0].mxu0
      %v732 = vpop.f32.mrb[0].mxu0
      %v733 = vadd.f32 %v353, %v732
      %v734 = vpop.f32.mrb[0].mxu0
      %735 = vmatprep.mubr.bf16.mxu0 %v433
      %736 = vmatmul.mubr.bf16.gmra.mrb[0].mxu0 %v432
      %v737 = vpop.f32.mrb[0].mxu0
      %v738 = vadd.f32 %v354, %v737
      %v739 = vpop.f32.mrb[0].mxu0
      %v740 = vpop.f32.mrb[0].mxu0
      %v741 = vadd.f32 %v355, %v740
      %v742 = vpop.f32.mrb[0].mxu0
      %743 = vmatprep.mubr.bf16.mxu0 %v438
      %744 = vmatmul.mubr.bf16.gmra.mrb[0].mxu0 %v437
      %v745 = vpop.f32.mrb[0].mxu0
      %v746 = vadd.f32 %v356, %v745
      %v747 = vpop.f32.mrb[0].mxu0
      %v748 = vpop.f32.mrb[0].mxu0
      %v749 = vadd.f32 %v357, %v748
      %v750 = vpop.f32.mrb[0].mxu0
      %751 = vdwg.mxu0
      %752 = vmatprep.subr.bf16.mxu0 0
      %753 = vmatpush1.bf16.msra.mxu0 %v618
      %754 = vmatprep.subr.bf16.mxu0 0
      %755 = vmatpush1.bf16.msra.mxu0 %v619
      %756 = vmatprep.subr.bf16.mxu0 0
      %757 = vmatpush1.bf16.msra.mxu0 %v620
      %758 = vmatprep.subr.bf16.mxu0 0
      %759 = vmatpush1.bf16.msra.mxu0 %v621
      %760 = vmatprep.subr.bf16.mxu0 0
      %761 = vmatpush1.bf16.msra.mxu0 %v622
      %762 = vmatprep.subr.bf16.mxu0 0
      %763 = vmatpush1.bf16.msra.mxu0 %v623
      %764 = vmatprep.subr.bf16.mxu0 0
      %765 = vmatpush1.bf16.msra.mxu0 %v624
      %766 = vmatprep.subr.bf16.mxu0 0
      %767 = vmatpush1.bf16.msra.mxu0 %v625
      %768 = vmatprep.subr.bf16.mxu0 0
      %769 = vmatpush1.bf16.msra.mxu0 %v626
      %770 = vmatprep.subr.bf16.mxu0 0
      %771 = vmatpush1.bf16.msra.mxu0 %v627
      %772 = vmatprep.subr.bf16.mxu0 0
      %773 = vmatpush1.bf16.msra.mxu0 %v628
      %774 = vmatprep.subr.bf16.mxu0 0
      %775 = vmatpush1.bf16.msra.mxu0 %v629
      %776 = vmatprep.subr.bf16.mxu0 0
      %777 = vmatpush1.bf16.msra.mxu0 %v630
      %778 = vmatprep.subr.bf16.mxu0 0
      %779 = vmatpush1.bf16.msra.mxu0 %v631
      %780 = vmatprep.subr.bf16.mxu0 0
      %781 = vmatpush1.bf16.msra.mxu0 %v632
      %782 = vmatprep.subr.bf16.mxu0 0
      %783 = vmatpush1.bf16.msra.mxu0 %v633
      %784 = vmatprep.mubr.bf16.mxu0 %v425
      %785 = vmatmul.mubr.bf16.gmra.mrb[0].mxu0 %v424
      %v786 = vpop.f32.mrb[0].mxu0
      %v787 = vadd.f32 %v722, %v786
      %v788 = vpop.f32.mrb[0].mxu0
      %v789 = vpop.f32.mrb[0].mxu0
      %v790 = vadd.f32 %v725, %v789
      %v791 = vpop.f32.mrb[0].mxu0
      %792 = vmatprep.mubr.bf16.mxu0 %v430
      %793 = vmatmul.mubr.bf16.gmra.mrb[0].mxu0 %v429
      %v794 = vpop.f32.mrb[0].mxu0
      %v795 = vadd.f32 %v730, %v794
      %v796 = vpop.f32.mrb[0].mxu0
      %v797 = vpop.f32.mrb[0].mxu0
      %v798 = vadd.f32 %v733, %v797
      %v799 = vpop.f32.mrb[0].mxu0
      %800 = vmatprep.mubr.bf16.mxu0 %v435
      %801 = vmatmul.mubr.bf16.gmra.mrb[0].mxu0 %v434
      %v802 = vpop.f32.mrb[0].mxu0
      %v803 = vadd.f32 %v738, %v802
      %v804 = vpop.f32.mrb[0].mxu0
      %v805 = vpop.f32.mrb[0].mxu0
      %v806 = vadd.f32 %v741, %v805
      %v807 = vpop.f32.mrb[0].mxu0
      %808 = vmatprep.mubr.bf16.mxu0 %v440
      %809 = vmatmul.mubr.bf16.gmra.mrb[0].mxu0 %v439
      %v810 = vpop.f32.mrb[0].mxu0
      %v811 = vadd.f32 %v746, %v810
      %v812 = vpop.f32.mrb[0].mxu0
      %v813 = vpop.f32.mrb[0].mxu0
      %v814 = vadd.f32 %v749, %v813
      %v815 = vpop.f32.mrb[0].mxu0
      %816 = vdwg.mxu0
      %817 = vmatprep.subr.bf16.mxu0 0
      %818 = vmatpush1.bf16.msra.mxu0 %v634
      %819 = vmatprep.subr.bf16.mxu0 0
      %820 = vmatpush1.bf16.msra.mxu0 %v635
      %821 = vmatprep.subr.bf16.mxu0 0
      %822 = vmatpush1.bf16.msra.mxu0 %v636
      %823 = vmatprep.subr.bf16.mxu0 0
      %824 = vmatpush1.bf16.msra.mxu0 %v637
      %825 = vmatprep.subr.bf16.mxu0 0
      %826 = vmatpush1.bf16.msra.mxu0 0
      %827 = vmatprep.subr.bf16.mxu0 0
      %828 = vmatpush1.bf16.msra.mxu0 0
      %829 = vmatprep.subr.bf16.mxu0 0
      %830 = vmatpush1.bf16.msra.mxu0 0
      %831 = vmatprep.subr.bf16.mxu0 0
      %832 = vmatpush1.bf16.msra.mxu0 0
      %833 = vmatprep.subr.bf16.mxu0 0
      %834 = vmatpush1.bf16.msra.mxu0 0
      %835 = vmatprep.subr.bf16.mxu0 0
      %836 = vmatpush1.bf16.msra.mxu0 0
      %837 = vmatprep.subr.bf16.mxu0 0
      %838 = vmatpush1.bf16.msra.mxu0 0
      %839 = vmatprep.subr.bf16.mxu0 0
      %840 = vmatpush1.bf16.msra.mxu0 0
      %841 = vmatprep.subr.bf16.mxu0 0
      %842 = vmatpush1.bf16.msra.mxu0 0
      %843 = vmatprep.subr.bf16.mxu0 0
      %844 = vmatpush1.bf16.msra.mxu0 0
      %845 = vmatprep.subr.bf16.mxu0 0
      %846 = vmatpush1.bf16.msra.mxu0 0
      %847 = vmatprep.subr.bf16.mxu0 0
      %848 = vmatpush1.bf16.msra.mxu0 0
      %849 = vmatprep.mubr.bf16.mxu0 0
      %850 = vmatmul.mubr.bf16.gmra.mrb[0].mxu0 %v676
      %v851 = vpop.f32.mrb[0].mxu0
      %v852 = vadd.f32 %v787, %v851
      %v853 = vpop.f32.mrb[0].mxu0
      %v854 = vpop.f32.mrb[0].mxu0
      %v855 = vadd.f32 %v790, %v854
      %v856 = vpop.f32.mrb[0].mxu0
      %857 = vmatprep.mubr.bf16.mxu0 0
      %858 = vmatmul.mubr.bf16.gmra.mrb[0].mxu0 %v679
      %v859 = vpop.f32.mrb[0].mxu0
      %v860 = vadd.f32 %v795, %v859
      %v861 = vpop.f32.mrb[0].mxu0
      %v862 = vpop.f32.mrb[0].mxu0
      %v863 = vadd.f32 %v798, %v862
      %v864 = vpop.f32.mrb[0].mxu0
      %865 = vmatprep.mubr.bf16.mxu0 0
      %866 = vmatmul.mubr.bf16.gmra.mrb[0].mxu0 %v682
      %v867 = vpop.f32.mrb[0].mxu0
      %v868 = vadd.f32 %v803, %v867
      %v869 = vpop.f32.mrb[0].mxu0
      %v870 = vpop.f32.mrb[0].mxu0
      %v871 = vadd.f32 %v806, %v870
      %v872 = vpop.f32.mrb[0].mxu0
      %873 = vmatprep.mubr.bf16.mxu0 0
      %874 = vmatmul.mubr.bf16.gmra.mrb[0].mxu0 %v685
      %v875 = vpop.f32.mrb[0].mxu0
      %v876 = vadd.f32 %v811, %v875
      %v877 = vpop.f32.mrb[0].mxu0
      %v878 = vpop.f32.mrb[0].mxu0
      %v879 = vadd.f32 %v814, %v878
      %v880 = vpop.f32.mrb[0].mxu0
      %881 = vdwg.mxu0
      %v882 = vld [vmem:[%s3] sm:$0x1]
      %v884 = vlaneseq
      %v885 = vshrl.u32 %v884, 7
      %v886 = vsub.s32 0, %v885
      %v887 = vrot.slane %v882, %v886
      %v889 = vmul.f32 %v852, %v887
      %v890 = vmul.f32 %v855, %v887
      %v891 = vmul.f32 %v860, %v887
      %v892 = vmul.f32 %v863, %v887
      %v893 = vmul.f32 %v868, %v887
      %v894 = vmul.f32 %v871, %v887
      %v895 = vmul.f32 %v876, %v887
      %v896 = vmul.f32 %v879, %v887
      %v897 = vld [vmem:[%s4] sm:$0x1]
      %v899 = vlaneseq
      %v900 = vshrl.u32 %v899, 7
      %v901 = vsub.s32 0, %v900
      %v902 = vrot.slane %v897, %v901
      %v904 = vadd.f32 %v889, %v902
      %v905 = vadd.f32 %v890, %v902
      %v906 = vadd.f32 %v891, %v902
      %v907 = vadd.f32 %v892, %v902
      %v908 = vadd.f32 %v893, %v902
      %v909 = vadd.f32 %v894, %v902
      %v910 = vadd.f32 %v895, %v902
      %v911 = vadd.f32 %v896, %v902
      %v912 = vmax.f32 %v904, 0.0
      %v913 = vmax.f32 %v905, 0.0
      %v914 = vmax.f32 %v906, 0.0
      %v915 = vmax.f32 %v907, 0.0
      %v916 = vmax.f32 %v908, 0.0
      %v917 = vmax.f32 %v909, 0.0
      %v918 = vmax.f32 %v910, 0.0
      %v919 = vmax.f32 %v911, 0.0
      %920 = vst.msk [vmem:[%s251] sm:$0xff] %vm674, %v912
      %921 = vst.msk [vmem:[%s251 + $0x8] sm:$0xff] %vm674, %v913
      %922 = vst.msk [vmem:[%s251 + $0x10] sm:$0xff] %vm674, %v914
      %923 = vst.msk [vmem:[%s251 + $0x18] sm:$0xff] %vm674, %v915
      %924 = vst.msk [vmem:[%s251 + $0x20] sm:$0xff] %vm674, %v916
      %925 = vst.msk [vmem:[%s251 + $0x28] sm:$0xff] %vm674, %v917
      %926 = vst.msk [vmem:[%s251 + $0x30] sm:$0xff] %vm674, %v918
      %927 = vst.msk [vmem:[%s251 + $0x38] sm:$0xff] %vm674, %v919
      %s928 = smul.u32 8, %s16
      %p929 = scmp.lt.s32.totalorder %s928, 15
      %s930 = scalar_select %p929, %s928, 15
      %s931 = smul.addr %s930, 8
      %s932 = scalar_lea.vmem %s5, %s931
      // Predicated region
      $region41: #{wide_resnet_forward.18} parent=39 // pred_check
        %p933 = pneg %p149
      $region42: #{wide_resnet_forward.18} parent=39 // pred_check_branch
        %935 = sbr.rel (%p933) target = $region44
      $region43: #{wide_resnet_forward.18} parent=39 // pred_region
        %s936 = smul.u32 8, %s16
      $region44: #{wide_resnet_forward.18} parent=39 // pred_fallthru
        _
    $region40: #{wide_resnet_forward.18} parent=5 // pred_fallthru
      _
    %p937 = scmp.le.s32.totalorder 2, %s11
    // Predicated region
    $region45: #{wide_resnet_forward.18} parent=5 // pred_check
      %p938 = pneg %p937
    $region46: #{wide_resnet_forward.18} parent=5 // pred_check_branch
      %940 = sbr.rel (%p938) target = $region48
    $region47: #{wide_resnet_forward.18} parent=5 // pred_region
      %s941 = ssub.s32 %s11, 2
      // Predicated region
      $region49: #{wide_resnet_forward.18} parent=47 // pred_check
        %p942 = pneg %p155
      $region50: #{wide_resnet_forward.18} parent=47 // pred_check_branch
        %944 = sbr.rel (%p942) target = $region52
      $region51: #{wide_resnet_forward.18} parent=47 // pred_region
        %s945 = smul.u32 8, %s17
        %p946 = scmp.lt.s32.totalorder %s945, 15
        %s947 = scalar_select %p946, %s945, 15
        %s948 = smul.addr %s947, 8
        %s949 = scalar_lea.vmem %s5, %s948
      $region52: #{wide_resnet_forward.18} parent=47 // pred_fallthru
        _
    $region48: #{wide_resnet_forward.18} parent=5 // pred_fallthru
      _
  $region6: #{wide_resnet_forward.18} parent=0 // loop_footer
    %s15 = sadd.s32 1, %s11
  $region7: #{wide_resnet_forward.18} parent=0 // loop_footer_branch
    %10 = sbr.rel target = $region3
  $region8: #{wide_resnet_forward.18} parent=0 // loop_exit
    _

</llo_original>
